<compile_context>
chip_gen: v7x
topology: tpu7x:2x2x1
jax: 0.10.0
libtpu: 0.0.40
codegen_flags: <defaults>
</compile_context>

<pallas_src>
import numpy as np

import jax
import jax.numpy as jnp
from jax.experimental import pallas as pl
from jax.experimental.pallas import tpu as pltpu


# PyTorch layer dims (in, out) and whether each Linear has a bias.
_IN_DIMS = (3000, 1024, 512, 256, 512, 1024)
_OUT_DIMS = (1024, 512, 256, 512, 1024, 3000)
_HAS_BIAS = (False, True, True, True, True, True)

# Lane-aligned (multiple-of-128) padded dims used inside the kernel.
_PAD_IN = (3072, 1024, 512, 256, 512, 1024)
_PAD_OUT = (1024, 512, 256, 512, 1024, 3072)

_N_LAYERS = 6
_F_IN_PAD = _PAD_IN[0]     # 3072
_F_OUT_PAD = _PAD_OUT[-1]  # 3072
_MAX_BATCH_TILE = 128      # rows per grid step (keeps VMEM bounded on v7x)
_WEIGHT_DTYPE = jnp.bfloat16


def _auto_fused_kernel(*refs):
    """One fused kernel for all 6 Linear(+Tanh) layers, batch-tiled.

    Ref layout (inputs, outputs, scratch):
      refs[0]        : x tile   (TB, 3072)  VMEM, f32
      refs[1:7]      : W0..W5   HBM refs (memory_space=pl.ANY), bf16
      refs[7:12]     : b1..b5   VMEM, f32 (layer 0 has no bias)
      refs[12]       : out tile (TB, 3072)  VMEM, f32
      refs[13:19]    : bf16 VMEM weight scratch (persists across grid steps)
      refs[19]       : DMA semaphores, shape (6,)
    """
    x_ref = refs[0]
    w_hbm = refs[1:1 + _N_LAYERS]
    b_refs = refs[1 + _N_LAYERS:1 + _N_LAYERS + 5]
    o_ref = refs[1 + _N_LAYERS + 5]
    w_vmem = refs[1 + _N_LAYERS + 6:1 + 2 * _N_LAYERS + 6]
    sems = refs[1 + 2 * _N_LAYERS + 6]

    is_first = pl.program_id(0) == 0

    # Fetch weights from HBM ONCE (first batch tile only); VMEM scratch
    # persists across grid iterations, so every later tile reuses them.
    # All six DMAs are started immediately so the DMA engine streams later
    # layers' weights while earlier layers compute.
    @pl.when(is_first)
    def _start_weight_dmas():
        for i in range(_N_LAYERS):
            pltpu.make_async_copy(w_hbm[i], w_vmem[i], sems.at[i]).start()

    biases = (None,) + tuple(b_refs)   # aligned with layer index

    h = x_ref[...]                     # (TB, 3072) f32
    for i in range(_N_LAYERS):
        @pl.when(is_first)
        def _wait_weight(i=i):
            pltpu.make_async_copy(w_hbm[i], w_vmem[i], sems.at[i]).wait()

        # bf16 x bf16 -> f32 accumulate on the MXU.  Only the matmul operands
        # are bf16 (halves HBM weight bytes); bias add & tanh stay f32.
        acc = jnp.dot(h.astype(_WEIGHT_DTYPE), w_vmem[i][...],
                      preferred_element_type=jnp.float32)
        if biases[i] is not None:
            acc = acc + biases[i][...]          # (1, N) broadcast over rows
        if i < _N_LAYERS - 1:
            h = jnp.tanh(acc)                   # EUP transcendental
        else:
            o_ref[...] = acc.astype(o_ref.dtype)


def _build_auto_call(batch_pad, tb):
    in_specs = (
        [pl.BlockSpec((tb, _F_IN_PAD), lambda i: (i, 0))]
        + [pl.BlockSpec(memory_space=pl.ANY)] * _N_LAYERS
        + [pl.BlockSpec((1, n), lambda i: (0, 0)) for n in _PAD_OUT[1:]]
    )
    out_specs = pl.BlockSpec((tb, _F_OUT_PAD), lambda i: (i, 0))
    scratch_shapes = (
        [pltpu.VMEM((pin, pout), _WEIGHT_DTYPE)
         for pin, pout in zip(_PAD_IN, _PAD_OUT)]
        + [pltpu.SemaphoreType.DMA((_N_LAYERS,))]
    )
    return pl.pallas_call(
        _auto_fused_kernel,
        out_shape=jax.ShapeDtypeStruct((batch_pad, _F_OUT_PAD), jnp.float32),
        grid=(batch_pad // tb,),
        in_specs=in_specs,
        out_specs=out_specs,
        scratch_shapes=scratch_shapes,
        compiler_params=pltpu.CompilerParams(
            # Must run sequentially on one TensorCore: later batch tiles reuse
            # the weights loaded at iteration 0 (and megacore batch sharding
            # would double weight HBM traffic on this bandwidth-bound kernel).
            dimension_semantics=("arbitrary",),
            # ~14.5 MiB bf16 weight scratch + small double-buffered activation
            # tiles; well under v7x's 64 MiB physical VMEM per TensorCore.
            vmem_limit_bytes=32 * 1024 * 1024,
        ),
    )


def auto_forward(x, weights, biases):
    """Forward pass of `Auto` for x of shape (B, 3000), f32.

    `weights` are the lane-padded bf16 weight slabs, `biases` the padded f32
    bias rows (see init_params).
    """
    B = x.shape[0]
    b8 = max(8, ((B + 7) // 8) * 8)                 # sublane-aligned batch
    tb = min(b8, _MAX_BATCH_TILE)                   # batch tile (multiple of 8)
    batch_pad = ((b8 + tb - 1) // tb) * tb          # divisible by tile

    # Defensive cast: a no-op when weights are already stored as bf16 in HBM.
    weights = [w.astype(_WEIGHT_DTYPE) for w in weights]

    x_p = jnp.zeros((batch_pad, _F_IN_PAD), jnp.float32)
    x_p = x_p.at[:B, :_IN_DIMS[0]].set(x.astype(jnp.float32))
    y_p = _build_auto_call(batch_pad, tb)(x_p, *weights, *biases)
    return y_p[:B, :_OUT_DIMS[-1]]


# ----------------------------------------------------------------------------
# Parameter construction (deterministic, mimics PyTorch default Linear init:
# U(-1/sqrt(fan_in), +1/sqrt(fan_in))), stored pre-padded to lane-aligned
# shapes (padding is zero, so the math is unchanged).  Returns f32 masters;
# the bf16 streaming copies are made once at the call site.
# ----------------------------------------------------------------------------
def init_params(key):
    weights, biases = [], []
    for fan_in, fan_out, pin, pout, has_bias in zip(
            _IN_DIMS, _OUT_DIMS, _PAD_IN, _PAD_OUT, _HAS_BIAS):
        key, wk, bk = jax.random.split(key, 3)
        bound = 1.0 / float(np.sqrt(fan_in))
        w = jax.random.uniform(wk, (fan_in, fan_out), jnp.float32,
                               minval=-bound, maxval=bound)
        w_pad = jnp.zeros((pin, pout), jnp.float32).at[:fan_in, :fan_out].set(w)
        weights.append(w_pad)
        if has_bias:
            b = jax.random.uniform(bk, (1, fan_out), jnp.float32,
                                   minval=-bound, maxval=bound)
            b_pad = jnp.zeros((1, pout), jnp.float32).at[:, :fan_out].set(b)
            biases.append(b_pad)
    return weights, biases


def auto_reference(x, weights, biases):
    """Pure-JAX f32 reference (uses the unpadded sub-blocks of the params)."""
    h = x.astype(jnp.float32)
    bi = 0
    for i in range(_N_LAYERS):
        w = weights[i][:_IN_DIMS[i], :_OUT_DIMS[i]]
        h = jnp.dot(h, w, precision=jax.lax.Precision.HIGHEST)
        if _HAS_BIAS[i]:
            h = h + biases[bi][:, :_OUT_DIMS[i]]
            bi += 1
        if i < _N_LAYERS - 1:
            h = jnp.tanh(h)
    return h


if __name__ == "__main__":
    key = jax.random.PRNGKey(0)
    pkey, xkey = jax.random.split(key)

    weights_f32, biases = init_params(pkey)
    # Store the streamed weights as bf16 in HBM (half the weight bytes).
    weights_bf16 = [w.astype(_WEIGHT_DTYPE) for w in weights_f32]

    # Small batch of 3000-dim inputs, consistent with Linear(3000, ...).
    x = jax.random.normal(xkey, (2, 3000), jnp.float32)

    fwd = jax.jit(auto_forward)
    y = fwd(x, weights_bf16, biases)
    jax.block_until_ready(y)

    assert y.shape == (2, 3000) and y.dtype == jnp.float32
    assert bool(jnp.all(jnp.isfinite(y)))

    y_ref = auto_reference(x, weights_f32, biases)
    max_err = float(jnp.max(jnp.abs(y - y_ref)))
    assert bool(jnp.allclose(y, y_ref, rtol=2e-2, atol=2e-2)), max_err

    print("KERNEL_OK")
</pallas_src>

<mosaic_0001>
module attributes {stable_mosaic.version = 11 : i64} {
  func.func @_auto_fused_kernel(%arg0: i32, %arg1: memref<8x3072xf32, #tpu.memory_space<vmem>>, %arg2: memref<3072x1024xbf16, #tpu.memory_space<any>>, %arg3: memref<1024x512xbf16, #tpu.memory_space<any>>, %arg4: memref<512x256xbf16, #tpu.memory_space<any>>, %arg5: memref<256x512xbf16, #tpu.memory_space<any>>, %arg6: memref<512x1024xbf16, #tpu.memory_space<any>>, %arg7: memref<1024x3072xbf16, #tpu.memory_space<any>>, %arg8: memref<1x512xf32, #tpu.memory_space<vmem>>, %arg9: memref<1x256xf32, #tpu.memory_space<vmem>>, %arg10: memref<1x512xf32, #tpu.memory_space<vmem>>, %arg11: memref<1x1024xf32, #tpu.memory_space<vmem>>, %arg12: memref<1x3072xf32, #tpu.memory_space<vmem>>, %arg13: memref<8x3072xf32, #tpu.memory_space<vmem>>, %arg14: memref<3072x1024xbf16, #tpu.memory_space<vmem>>, %arg15: memref<1024x512xbf16, #tpu.memory_space<vmem>>, %arg16: memref<512x256xbf16, #tpu.memory_space<vmem>>, %arg17: memref<256x512xbf16, #tpu.memory_space<vmem>>, %arg18: memref<512x1024xbf16, #tpu.memory_space<vmem>>, %arg19: memref<1024x3072xbf16, #tpu.memory_space<vmem>>, %arg20: memref<6x!tpu.dma_semaphore, #tpu.memory_space<semaphore_mem>>) attributes {dimension_semantics = [#tpu.dimension_semantics<arbitrary>], iteration_bounds = array<i64: 1>, scalar_prefetch = 0 : i64, scratch_operands = 7 : i64, tpu.core_type = #tpu.core_type<tc>, window_params = [{transform_indices = @transform_0, window_bounds = array<i64: 8, 3072>}, {}, {}, {}, {}, {}, {}, {pipeline_mode = #tpu.pipeline_mode<synchronous>, transform_indices = @transform_7, window_bounds = array<i64: 1, 512>}, {pipeline_mode = #tpu.pipeline_mode<synchronous>, transform_indices = @transform_8, window_bounds = array<i64: 1, 256>}, {pipeline_mode = #tpu.pipeline_mode<synchronous>, transform_indices = @transform_9, window_bounds = array<i64: 1, 512>}, {pipeline_mode = #tpu.pipeline_mode<synchronous>, transform_indices = @transform_10, window_bounds = array<i64: 1, 1024>}, {pipeline_mode = #tpu.pipeline_mode<synchronous>, transform_indices = @transform_11, window_bounds = array<i64: 1, 3072>}, {transform_indices = @transform_12, window_bounds = array<i64: 8, 3072>}]} {
    %c0_i32 = arith.constant 0 : i32
    %0 = arith.cmpi eq, %arg0, %c0_i32 : i32
    %1 = arith.extui %0 : i1 to i32
    %c0_i32_0 = arith.constant 0 : i32
    %2 = arith.cmpi ne, %1, %c0_i32_0 : i32
    scf.if %2 {
      %c0_i32_37 = arith.constant 0 : i32
      %55 = tpu.memref_slice %arg20[%c0_i32_37] : memref<6x!tpu.dma_semaphore, #tpu.memory_space<semaphore_mem>> -> memref<1x!tpu.dma_semaphore, #tpu.memory_space<semaphore_mem>>
      %56 = tpu.memref_squeeze %55 : memref<1x!tpu.dma_semaphore, #tpu.memory_space<semaphore_mem>> -> memref<!tpu.dma_semaphore, #tpu.memory_space<semaphore_mem>>
      tpu.enqueue_dma source(%arg2 : memref<3072x1024xbf16, #tpu.memory_space<any>>) target(%arg14 : memref<3072x1024xbf16, #tpu.memory_space<vmem>>) target_semaphore(%56 : memref<!tpu.dma_semaphore, #tpu.memory_space<semaphore_mem>>)
      %c1_i32 = arith.constant 1 : i32
      %57 = tpu.memref_slice %arg20[%c1_i32] : memref<6x!tpu.dma_semaphore, #tpu.memory_space<semaphore_mem>> -> memref<1x!tpu.dma_semaphore, #tpu.memory_space<semaphore_mem>>
      %58 = tpu.memref_squeeze %57 : memref<1x!tpu.dma_semaphore, #tpu.memory_space<semaphore_mem>> -> memref<!tpu.dma_semaphore, #tpu.memory_space<semaphore_mem>>
      tpu.enqueue_dma source(%arg3 : memref<1024x512xbf16, #tpu.memory_space<any>>) target(%arg15 : memref<1024x512xbf16, #tpu.memory_space<vmem>>) target_semaphore(%58 : memref<!tpu.dma_semaphore, #tpu.memory_space<semaphore_mem>>)
      %c2_i32 = arith.constant 2 : i32
      %59 = tpu.memref_slice %arg20[%c2_i32] : memref<6x!tpu.dma_semaphore, #tpu.memory_space<semaphore_mem>> -> memref<1x!tpu.dma_semaphore, #tpu.memory_space<semaphore_mem>>
      %60 = tpu.memref_squeeze %59 : memref<1x!tpu.dma_semaphore, #tpu.memory_space<semaphore_mem>> -> memref<!tpu.dma_semaphore, #tpu.memory_space<semaphore_mem>>
      tpu.enqueue_dma source(%arg4 : memref<512x256xbf16, #tpu.memory_space<any>>) target(%arg16 : memref<512x256xbf16, #tpu.memory_space<vmem>>) target_semaphore(%60 : memref<!tpu.dma_semaphore, #tpu.memory_space<semaphore_mem>>)
      %c3_i32 = arith.constant 3 : i32
      %61 = tpu.memref_slice %arg20[%c3_i32] : memref<6x!tpu.dma_semaphore, #tpu.memory_space<semaphore_mem>> -> memref<1x!tpu.dma_semaphore, #tpu.memory_space<semaphore_mem>>
      %62 = tpu.memref_squeeze %61 : memref<1x!tpu.dma_semaphore, #tpu.memory_space<semaphore_mem>> -> memref<!tpu.dma_semaphore, #tpu.memory_space<semaphore_mem>>
      tpu.enqueue_dma source(%arg5 : memref<256x512xbf16, #tpu.memory_space<any>>) target(%arg17 : memref<256x512xbf16, #tpu.memory_space<vmem>>) target_semaphore(%62 : memref<!tpu.dma_semaphore, #tpu.memory_space<semaphore_mem>>)
      %c4_i32 = arith.constant 4 : i32
      %63 = tpu.memref_slice %arg20[%c4_i32] : memref<6x!tpu.dma_semaphore, #tpu.memory_space<semaphore_mem>> -> memref<1x!tpu.dma_semaphore, #tpu.memory_space<semaphore_mem>>
      %64 = tpu.memref_squeeze %63 : memref<1x!tpu.dma_semaphore, #tpu.memory_space<semaphore_mem>> -> memref<!tpu.dma_semaphore, #tpu.memory_space<semaphore_mem>>
      tpu.enqueue_dma source(%arg6 : memref<512x1024xbf16, #tpu.memory_space<any>>) target(%arg18 : memref<512x1024xbf16, #tpu.memory_space<vmem>>) target_semaphore(%64 : memref<!tpu.dma_semaphore, #tpu.memory_space<semaphore_mem>>)
      %c5_i32 = arith.constant 5 : i32
      %65 = tpu.memref_slice %arg20[%c5_i32] : memref<6x!tpu.dma_semaphore, #tpu.memory_space<semaphore_mem>> -> memref<1x!tpu.dma_semaphore, #tpu.memory_space<semaphore_mem>>
      %66 = tpu.memref_squeeze %65 : memref<1x!tpu.dma_semaphore, #tpu.memory_space<semaphore_mem>> -> memref<!tpu.dma_semaphore, #tpu.memory_space<semaphore_mem>>
      tpu.enqueue_dma source(%arg7 : memref<1024x3072xbf16, #tpu.memory_space<any>>) target(%arg19 : memref<1024x3072xbf16, #tpu.memory_space<vmem>>) target_semaphore(%66 : memref<!tpu.dma_semaphore, #tpu.memory_space<semaphore_mem>>)
    } else {
    }
    %c0 = arith.constant 0 : index
    %c0_1 = arith.constant 0 : index
    %3 = vector.load %arg1[%c0, %c0_1] : memref<8x3072xf32, #tpu.memory_space<vmem>>, vector<8x3072xf32>
    %4 = arith.extui %0 : i1 to i32
    %c0_i32_2 = arith.constant 0 : i32
    %5 = arith.cmpi ne, %4, %c0_i32_2 : i32
    scf.if %5 {
      %c0_i32_37 = arith.constant 0 : i32
      %55 = tpu.memref_slice %arg20[%c0_i32_37] : memref<6x!tpu.dma_semaphore, #tpu.memory_space<semaphore_mem>> -> memref<1x!tpu.dma_semaphore, #tpu.memory_space<semaphore_mem>>
      %56 = tpu.memref_squeeze %55 : memref<1x!tpu.dma_semaphore, #tpu.memory_space<semaphore_mem>> -> memref<!tpu.dma_semaphore, #tpu.memory_space<semaphore_mem>>
      tpu.wait_dma2 semaphore(%56 : memref<!tpu.dma_semaphore, #tpu.memory_space<semaphore_mem>>) src(%arg2 : memref<3072x1024xbf16, #tpu.memory_space<any>>) dst(%arg14 : memref<3072x1024xbf16, #tpu.memory_space<vmem>>)
    } else {
    }
    %6 = arith.truncf %3 : vector<8x3072xf32> to vector<8x3072xbf16>
    %c0_3 = arith.constant 0 : index
    %c0_4 = arith.constant 0 : index
    %7 = vector.load %arg14[%c0_3, %c0_4] : memref<3072x1024xbf16, #tpu.memory_space<vmem>>, vector<3072x1024xbf16>
    %cst = arith.constant dense<0.000000e+00> : vector<8x1024xf32>
    %8 = tpu.matmul %6, %7, %cst {dimension_numbers = #tpu.dot_dimension_numbers<[1], [0], [0], [1], [0, 0, 1, 1], [], []>} : vector<8x3072xbf16>, vector<3072x1024xbf16>, vector<8x1024xf32> -> vector<8x1024xf32>
    %9 = math.tanh %8 : vector<8x1024xf32>
    %10 = arith.extui %0 : i1 to i32
    %c0_i32_5 = arith.constant 0 : i32
    %11 = arith.cmpi ne, %10, %c0_i32_5 : i32
    scf.if %11 {
      %c1_i32 = arith.constant 1 : i32
      %55 = tpu.memref_slice %arg20[%c1_i32] : memref<6x!tpu.dma_semaphore, #tpu.memory_space<semaphore_mem>> -> memref<1x!tpu.dma_semaphore, #tpu.memory_space<semaphore_mem>>
      %56 = tpu.memref_squeeze %55 : memref<1x!tpu.dma_semaphore, #tpu.memory_space<semaphore_mem>> -> memref<!tpu.dma_semaphore, #tpu.memory_space<semaphore_mem>>
      tpu.wait_dma2 semaphore(%56 : memref<!tpu.dma_semaphore, #tpu.memory_space<semaphore_mem>>) src(%arg3 : memref<1024x512xbf16, #tpu.memory_space<any>>) dst(%arg15 : memref<1024x512xbf16, #tpu.memory_space<vmem>>)
    } else {
    }
    %12 = arith.truncf %9 : vector<8x1024xf32> to vector<8x1024xbf16>
    %c0_6 = arith.constant 0 : index
    %c0_7 = arith.constant 0 : index
    %13 = vector.load %arg15[%c0_6, %c0_7] : memref<1024x512xbf16, #tpu.memory_space<vmem>>, vector<1024x512xbf16>
    %cst_8 = arith.constant dense<0.000000e+00> : vector<8x512xf32>
    %14 = tpu.matmul %12, %13, %cst_8 {dimension_numbers = #tpu.dot_dimension_numbers<[1], [0], [0], [1], [0, 0, 1, 1], [], []>} : vector<8x1024xbf16>, vector<1024x512xbf16>, vector<8x512xf32> -> vector<8x512xf32>
    %c0_9 = arith.constant 0 : index
    %c0_10 = arith.constant 0 : index
    %15 = vector.load %arg8[%c0_9, %c0_10] : memref<1x512xf32, #tpu.memory_space<vmem>>, vector<1x512xf32>
    %16 = vector.broadcast %15 : vector<1x512xf32> to vector<8x512xf32>
    %17 = arith.addf %14, %16 : vector<8x512xf32>
    %18 = math.tanh %17 : vector<8x512xf32>
    %19 = arith.extui %0 : i1 to i32
    %c0_i32_11 = arith.constant 0 : i32
    %20 = arith.cmpi ne, %19, %c0_i32_11 : i32
    scf.if %20 {
      %c2_i32 = arith.constant 2 : i32
      %55 = tpu.memref_slice %arg20[%c2_i32] : memref<6x!tpu.dma_semaphore, #tpu.memory_space<semaphore_mem>> -> memref<1x!tpu.dma_semaphore, #tpu.memory_space<semaphore_mem>>
      %56 = tpu.memref_squeeze %55 : memref<1x!tpu.dma_semaphore, #tpu.memory_space<semaphore_mem>> -> memref<!tpu.dma_semaphore, #tpu.memory_space<semaphore_mem>>
      tpu.wait_dma2 semaphore(%56 : memref<!tpu.dma_semaphore, #tpu.memory_space<semaphore_mem>>) src(%arg4 : memref<512x256xbf16, #tpu.memory_space<any>>) dst(%arg16 : memref<512x256xbf16, #tpu.memory_space<vmem>>)
    } else {
    }
    %21 = arith.truncf %18 : vector<8x512xf32> to vector<8x512xbf16>
    %c0_12 = arith.constant 0 : index
    %c0_13 = arith.constant 0 : index
    %22 = vector.load %arg16[%c0_12, %c0_13] : memref<512x256xbf16, #tpu.memory_space<vmem>>, vector<512x256xbf16>
    %cst_14 = arith.constant dense<0.000000e+00> : vector<8x256xf32>
    %23 = tpu.matmul %21, %22, %cst_14 {dimension_numbers = #tpu.dot_dimension_numbers<[1], [0], [0], [1], [0, 0, 1, 1], [], []>} : vector<8x512xbf16>, vector<512x256xbf16>, vector<8x256xf32> -> vector<8x256xf32>
    %c0_15 = arith.constant 0 : index
    %c0_16 = arith.constant 0 : index
    %24 = vector.load %arg9[%c0_15, %c0_16] : memref<1x256xf32, #tpu.memory_space<vmem>>, vector<1x256xf32>
    %25 = vector.broadcast %24 : vector<1x256xf32> to vector<8x256xf32>
    %26 = arith.addf %23, %25 : vector<8x256xf32>
    %27 = math.tanh %26 : vector<8x256xf32>
    %28 = arith.extui %0 : i1 to i32
    %c0_i32_17 = arith.constant 0 : i32
    %29 = arith.cmpi ne, %28, %c0_i32_17 : i32
    scf.if %29 {
      %c3_i32 = arith.constant 3 : i32
      %55 = tpu.memref_slice %arg20[%c3_i32] : memref<6x!tpu.dma_semaphore, #tpu.memory_space<semaphore_mem>> -> memref<1x!tpu.dma_semaphore, #tpu.memory_space<semaphore_mem>>
      %56 = tpu.memref_squeeze %55 : memref<1x!tpu.dma_semaphore, #tpu.memory_space<semaphore_mem>> -> memref<!tpu.dma_semaphore, #tpu.memory_space<semaphore_mem>>
      tpu.wait_dma2 semaphore(%56 : memref<!tpu.dma_semaphore, #tpu.memory_space<semaphore_mem>>) src(%arg5 : memref<256x512xbf16, #tpu.memory_space<any>>) dst(%arg17 : memref<256x512xbf16, #tpu.memory_space<vmem>>)
    } else {
    }
    %30 = arith.truncf %27 : vector<8x256xf32> to vector<8x256xbf16>
    %c0_18 = arith.constant 0 : index
    %c0_19 = arith.constant 0 : index
    %31 = vector.load %arg17[%c0_18, %c0_19] : memref<256x512xbf16, #tpu.memory_space<vmem>>, vector<256x512xbf16>
    %cst_20 = arith.constant dense<0.000000e+00> : vector<8x512xf32>
    %32 = tpu.matmul %30, %31, %cst_20 {dimension_numbers = #tpu.dot_dimension_numbers<[1], [0], [0], [1], [0, 0, 1, 1], [], []>} : vector<8x256xbf16>, vector<256x512xbf16>, vector<8x512xf32> -> vector<8x512xf32>
    %c0_21 = arith.constant 0 : index
    %c0_22 = arith.constant 0 : index
    %33 = vector.load %arg10[%c0_21, %c0_22] : memref<1x512xf32, #tpu.memory_space<vmem>>, vector<1x512xf32>
    %34 = vector.broadcast %33 : vector<1x512xf32> to vector<8x512xf32>
    %35 = arith.addf %32, %34 : vector<8x512xf32>
    %36 = math.tanh %35 : vector<8x512xf32>
    %37 = arith.extui %0 : i1 to i32
    %c0_i32_23 = arith.constant 0 : i32
    %38 = arith.cmpi ne, %37, %c0_i32_23 : i32
    scf.if %38 {
      %c4_i32 = arith.constant 4 : i32
      %55 = tpu.memref_slice %arg20[%c4_i32] : memref<6x!tpu.dma_semaphore, #tpu.memory_space<semaphore_mem>> -> memref<1x!tpu.dma_semaphore, #tpu.memory_space<semaphore_mem>>
      %56 = tpu.memref_squeeze %55 : memref<1x!tpu.dma_semaphore, #tpu.memory_space<semaphore_mem>> -> memref<!tpu.dma_semaphore, #tpu.memory_space<semaphore_mem>>
      tpu.wait_dma2 semaphore(%56 : memref<!tpu.dma_semaphore, #tpu.memory_space<semaphore_mem>>) src(%arg6 : memref<512x1024xbf16, #tpu.memory_space<any>>) dst(%arg18 : memref<512x1024xbf16, #tpu.memory_space<vmem>>)
    } else {
    }
    %39 = arith.truncf %36 : vector<8x512xf32> to vector<8x512xbf16>
    %c0_24 = arith.constant 0 : index
    %c0_25 = arith.constant 0 : index
    %40 = vector.load %arg18[%c0_24, %c0_25] : memref<512x1024xbf16, #tpu.memory_space<vmem>>, vector<512x1024xbf16>
    %cst_26 = arith.constant dense<0.000000e+00> : vector<8x1024xf32>
    %41 = tpu.matmul %39, %40, %cst_26 {dimension_numbers = #tpu.dot_dimension_numbers<[1], [0], [0], [1], [0, 0, 1, 1], [], []>} : vector<8x512xbf16>, vector<512x1024xbf16>, vector<8x1024xf32> -> vector<8x1024xf32>
    %c0_27 = arith.constant 0 : index
    %c0_28 = arith.constant 0 : index
    %42 = vector.load %arg11[%c0_27, %c0_28] : memref<1x1024xf32, #tpu.memory_space<vmem>>, vector<1x1024xf32>
    %43 = vector.broadcast %42 : vector<1x1024xf32> to vector<8x1024xf32>
    %44 = arith.addf %41, %43 : vector<8x1024xf32>
    %45 = math.tanh %44 : vector<8x1024xf32>
    %46 = arith.extui %0 : i1 to i32
    %c0_i32_29 = arith.constant 0 : i32
    %47 = arith.cmpi ne, %46, %c0_i32_29 : i32
    scf.if %47 {
      %c5_i32 = arith.constant 5 : i32
      %55 = tpu.memref_slice %arg20[%c5_i32] : memref<6x!tpu.dma_semaphore, #tpu.memory_space<semaphore_mem>> -> memref<1x!tpu.dma_semaphore, #tpu.memory_space<semaphore_mem>>
      %56 = tpu.memref_squeeze %55 : memref<1x!tpu.dma_semaphore, #tpu.memory_space<semaphore_mem>> -> memref<!tpu.dma_semaphore, #tpu.memory_space<semaphore_mem>>
      tpu.wait_dma2 semaphore(%56 : memref<!tpu.dma_semaphore, #tpu.memory_space<semaphore_mem>>) src(%arg7 : memref<1024x3072xbf16, #tpu.memory_space<any>>) dst(%arg19 : memref<1024x3072xbf16, #tpu.memory_space<vmem>>)
    } else {
    }
    %48 = arith.truncf %45 : vector<8x1024xf32> to vector<8x1024xbf16>
    %c0_30 = arith.constant 0 : index
    %c0_31 = arith.constant 0 : index
    %49 = vector.load %arg19[%c0_30, %c0_31] : memref<1024x3072xbf16, #tpu.memory_space<vmem>>, vector<1024x3072xbf16>
    %cst_32 = arith.constant dense<0.000000e+00> : vector<8x3072xf32>
    %50 = tpu.matmul %48, %49, %cst_32 {dimension_numbers = #tpu.dot_dimension_numbers<[1], [0], [0], [1], [0, 0, 1, 1], [], []>} : vector<8x1024xbf16>, vector<1024x3072xbf16>, vector<8x3072xf32> -> vector<8x3072xf32>
    %c0_33 = arith.constant 0 : index
    %c0_34 = arith.constant 0 : index
    %51 = vector.load %arg12[%c0_33, %c0_34] : memref<1x3072xf32, #tpu.memory_space<vmem>>, vector<1x3072xf32>
    %52 = vector.broadcast %51 : vector<1x3072xf32> to vector<8x3072xf32>
    %53 = arith.addf %50, %52 : vector<8x3072xf32>
    %c0_35 = arith.constant 0 : index
    %c0_36 = arith.constant 0 : index
    %54 = vector.load %arg13[%c0_35, %c0_36] : memref<8x3072xf32, #tpu.memory_space<vmem>>, vector<8x3072xf32>
    tpu.vector_store %arg13[%c0_35, %c0_36], %53 {strides = array<i32>} : memref<8x3072xf32, #tpu.memory_space<vmem>>, vector<8x3072xf32>,
    return
  }
  func.func @transform_0(%arg0: i32) -> (i32, i32) {
    %c0_i32 = arith.constant 0 : i32
    %c0_i32_0 = arith.constant 0 : i32
    return %arg0, %c0_i32 : i32, i32
  }
  func.func @transform_7(%arg0: i32) -> (i32, i32) {
    %c0_i32 = arith.constant 0 : i32
    %c0_i32_0 = arith.constant 0 : i32
    %c0_i32_1 = arith.constant 0 : i32
    return %c0_i32, %c0_i32_0 : i32, i32
  }
  func.func @transform_8(%arg0: i32) -> (i32, i32) {
    %c0_i32 = arith.constant 0 : i32
    %c0_i32_0 = arith.constant 0 : i32
    %c0_i32_1 = arith.constant 0 : i32
    return %c0_i32, %c0_i32_0 : i32, i32
  }
  func.func @transform_9(%arg0: i32) -> (i32, i32) {
    %c0_i32 = arith.constant 0 : i32
    %c0_i32_0 = arith.constant 0 : i32
    %c0_i32_1 = arith.constant 0 : i32
    return %c0_i32, %c0_i32_0 : i32, i32
  }
  func.func @transform_10(%arg0: i32) -> (i32, i32) {
    %c0_i32 = arith.constant 0 : i32
    %c0_i32_0 = arith.constant 0 : i32
    %c0_i32_1 = arith.constant 0 : i32
    return %c0_i32, %c0_i32_0 : i32, i32
  }
  func.func @transform_11(%arg0: i32) -> (i32, i32) {
    %c0_i32 = arith.constant 0 : i32
    %c0_i32_0 = arith.constant 0 : i32
    %c0_i32_1 = arith.constant 0 : i32
    return %c0_i32, %c0_i32_0 : i32, i32
  }
  func.func @transform_12(%arg0: i32) -> (i32, i32) {
    %c0_i32 = arith.constant 0 : i32
    %c0_i32_0 = arith.constant 0 : i32
    return %arg0, %c0_i32 : i32, i32
  }
}

</mosaic_0001>

<llo_original>
// kernel: auto_forward.1
$region0: #{auto_forward.1}
  #allocation0 [shape = 'u32[]', space=smem, size = 0x4, offset = 0x4, fixed_abs, tag = 'smem constant byte address 0x4 - core index']
  #allocation1 [shape = 'u32[144,128]{1,0:T(1,128)}', space=vmem, size = 0x12000, scoped, tag = 'internal scratch']
  #allocation2 [shape = 'bf16[3072,1024]{1,0:T(16,128)(2,1)}', space=vmem, size = 0x600000, scoped, tag = 'scratch operand']
  #allocation3 [shape = 'bf16[1024,512]{1,0:T(16,128)(2,1)}', space=vmem, size = 0x100000, scoped, tag = 'scratch operand']
  #allocation4 [shape = 'bf16[512,256]{1,0:T(16,128)(2,1)}', space=vmem, size = 0x40000, scoped, tag = 'scratch operand']
  #allocation5 [shape = 'bf16[256,512]{1,0:T(16,128)(2,1)}', space=vmem, size = 0x40000, scoped, tag = 'scratch operand']
  #allocation6 [shape = 'bf16[512,1024]{1,0:T(16,128)(2,1)}', space=vmem, size = 0x100000, scoped, tag = 'scratch operand']
  #allocation7 [shape = 'bf16[1024,3072]{1,0:T(16,128)(2,1)}', space=vmem, size = 0x600000, scoped, tag = 'scratch operand']
  #allocation8 [shape = 's32[6]{0}', space=sflag, size = 0x18, scoped, tag = 'scratch operand']
  #allocation17 [shape = 's32[]', space=sflag, size = 0x4, offset = 0, fixed_abs, tag = 'sflag constant byte address 0x0 - dummy sync flag']
  #allocation19 [shape = 's32[]', space=sflag, size = 0x4, offset = 0, fixed_abs, tag = 'sflag constant byte address 0x0 - dummy sync flag']
  #allocation21 [shape = 's32[]', space=sflag, size = 0x4, offset = 0, fixed_abs, tag = 'sflag constant byte address 0x0 - dummy sync flag']
  #allocation23 [shape = 's32[]', space=sflag, size = 0x4, offset = 0, fixed_abs, tag = 'sflag constant byte address 0x0 - dummy sync flag']
  #allocation25 [shape = 's32[]', space=sflag, size = 0x4, offset = 0, fixed_abs, tag = 'sflag constant byte address 0x0 - dummy sync flag']
  #allocation27 [shape = 's32[]', space=sflag, size = 0x4, offset = 0, fixed_abs, tag = 'sflag constant byte address 0x0 - dummy sync flag']
  %s0 = inlined_call_operand.vmem [shape: f32[8,3072], index: 0, kind: input, shape index: {}]
  %s1 = inlined_call_operand.hbm [shape: bf16[3072,1024], index: 1, kind: input, shape index: {}]
  %s2 = inlined_call_operand.hbm [shape: bf16[1024,512], index: 2, kind: input, shape index: {}]
  %s3 = inlined_call_operand.hbm [shape: bf16[512,256], index: 3, kind: input, shape index: {}]
  %s4 = inlined_call_operand.hbm [shape: bf16[256,512], index: 4, kind: input, shape index: {}]
  %s5 = inlined_call_operand.hbm [shape: bf16[512,1024], index: 5, kind: input, shape index: {}]
  %s6 = inlined_call_operand.hbm [shape: bf16[1024,3072], index: 6, kind: input, shape index: {}]
  %s7 = inlined_call_operand.hbm [shape: f32[1,512], index: 7, kind: input, shape index: {}]
  %s8 = inlined_call_operand.hbm [shape: f32[1,256], index: 8, kind: input, shape index: {}]
  %s9 = inlined_call_operand.hbm [shape: f32[1,512], index: 9, kind: input, shape index: {}]
  %s10 = inlined_call_operand.hbm [shape: f32[1,1024], index: 10, kind: input, shape index: {}]
  %s11 = inlined_call_operand.hbm [shape: f32[1,3072], index: 11, kind: input, shape index: {}]
  %s12 = inlined_call_operand.vmem [shape: f32[8,3072], index: 12, kind: output, shape index: {}]
  %s13 = sld [smem:[#allocation0]]
  $region82: #{auto_forward.1} parent=0
    _
  %s15 = ssub.s32 1, %s13
  %s16 = scalar_select 0, %s15, %s13
  $region1: #{auto_forward.1} parent=0
    #allocation9 [shape = 'u8[2048]{0}', space=vmem, size = 0x800, scoped, tag = 'input window, operand 7, single buffered']
    #allocation10 [shape = 's32[1]{0}', space=sflag, size = 0x4, scoped, tag = 'scoped memory for auto_forward.1']
    #allocation11 [shape = 'u8[1024]{0}', space=vmem, size = 0x400, scoped, tag = 'input window, operand 8, single buffered']
    #allocation12 [shape = 's32[1]{0}', space=sflag, size = 0x4, scoped, tag = 'scoped memory for auto_forward.1']
    #allocation13 [shape = 'u8[2048]{0}', space=vmem, size = 0x800, scoped, tag = 'input window, operand 9, single buffered']
    #allocation14 [shape = 'u8[4096]{0}', space=vmem, size = 0x1000, scoped, tag = 'input window, operand 10, single buffered']
    #allocation15 [shape = 's32[1]{0}', space=sflag, size = 0x4, scoped, tag = 'scoped memory for auto_forward.1']
    #allocation16 [shape = 'u8[12288]{0}', space=vmem, size = 0x3000, scoped, tag = 'input window, operand 11, single buffered']
    %17 = vsyncpa [#allocation10], 0
    %18 = vsyncpa [#allocation12], 0
    %19 = vsyncpa [#allocation15], 0
    // Predicated region
    $region2: #{auto_forward.1} parent=1 // pred_check
      _
    $region3: #{auto_forward.1} parent=1 // pred_check_branch
      %21 = sbr.rel (0) target = $region5
    $region4: #{auto_forward.1} parent=1 // pred_region
      _
    $region5: #{auto_forward.1} parent=1 // pred_fallthru
      _
    // Predicated region
    $region6: #{auto_forward.1} parent=1 // pred_check
      _
    $region7: #{auto_forward.1} parent=1 // pred_check_branch
      %23 = sbr.rel (0) target = $region9
    $region8: #{auto_forward.1} parent=1 // pred_region
      %s25 = ssub.s32 64, 64
      %26 = vsyncadd [#allocation10], %s25
      %s28 = sshll.u32 [#allocation9], 4
      %s29 = int_to_ptr.vmem [resolvable:$true] %s28
      %31 = dma.hbm_to_vmem [thread:$0]  %s7, 64, %s29, [#allocation10]
    $region9: #{auto_forward.1} parent=1 // pred_fallthru
      _
    // Predicated region
    $region10: #{auto_forward.1} parent=1 // pred_check
      _
    $region11: #{auto_forward.1} parent=1 // pred_check_branch
      %33 = sbr.rel (0) target = $region13
    $region12: #{auto_forward.1} parent=1 // pred_region
      %s35 = ssub.s32 32, 32
      %36 = vsyncadd [#allocation12], %s35
      %s38 = sshll.u32 [#allocation11], 4
      %s39 = int_to_ptr.vmem [resolvable:$true] %s38
      %41 = dma.hbm_to_vmem [thread:$0]  %s8, 32, %s39, [#allocation12]
    $region13: #{auto_forward.1} parent=1 // pred_fallthru
      _
    // Predicated region
    $region14: #{auto_forward.1} parent=1 // pred_check
      _
    $region15: #{auto_forward.1} parent=1 // pred_check_branch
      %43 = sbr.rel (0) target = $region17
    $region16: #{auto_forward.1} parent=1 // pred_region
      %s45 = ssub.s32 64, 64
      %46 = vsyncadd [#allocation12], %s45
      %s48 = sshll.u32 [#allocation13], 4
      %s49 = int_to_ptr.vmem [resolvable:$true] %s48
      %51 = dma.hbm_to_vmem [thread:$0]  %s9, 64, %s49, [#allocation12]
    $region17: #{auto_forward.1} parent=1 // pred_fallthru
      _
    // Predicated region
    $region18: #{auto_forward.1} parent=1 // pred_check
      _
    $region19: #{auto_forward.1} parent=1 // pred_check_branch
      %53 = sbr.rel (0) target = $region21
    $region20: #{auto_forward.1} parent=1 // pred_region
      %s55 = ssub.s32 128, 128
      %56 = vsyncadd [#allocation15], %s55
      %s58 = sshll.u32 [#allocation14], 4
      %s59 = int_to_ptr.vmem [resolvable:$true] %s58
      %61 = dma.hbm_to_vmem [thread:$0]  %s10, 128, %s59, [#allocation15]
    $region21: #{auto_forward.1} parent=1 // pred_fallthru
      _
    // Predicated region
    $region22: #{auto_forward.1} parent=1 // pred_check
      _
    $region23: #{auto_forward.1} parent=1 // pred_check_branch
      %63 = sbr.rel (0) target = $region25
    $region24: #{auto_forward.1} parent=1 // pred_region
      %s65 = ssub.s32 384, 384
      %66 = vsyncadd [#allocation15], %s65
      %s68 = sshll.u32 [#allocation16], 4
      %s69 = int_to_ptr.vmem [resolvable:$true] %s68
      %71 = dma.hbm_to_vmem [thread:$0]  %s11, 384, %s69, [#allocation15]
    $region25: #{auto_forward.1} parent=1 // pred_fallthru
      _
    // Predicated region
    $region26: #{auto_forward.1} parent=1 // pred_check
      _
    $region27: #{auto_forward.1} parent=1 // pred_check_branch
      %73 = sbr.rel (0) target = $region29
    $region28: #{auto_forward.1} parent=1 // pred_region
      %74 = dma.done [#allocation10], 64
    $region29: #{auto_forward.1} parent=1 // pred_fallthru
      _
    // Predicated region
    $region30: #{auto_forward.1} parent=1 // pred_check
      _
    $region31: #{auto_forward.1} parent=1 // pred_check_branch
      %76 = sbr.rel (0) target = $region33
    $region32: #{auto_forward.1} parent=1 // pred_region
      %77 = dma.done [#allocation12], 32
    $region33: #{auto_forward.1} parent=1 // pred_fallthru
      _
    // Predicated region
    $region34: #{auto_forward.1} parent=1 // pred_check
      _
    $region35: #{auto_forward.1} parent=1 // pred_check_branch
      %79 = sbr.rel (0) target = $region37
    $region36: #{auto_forward.1} parent=1 // pred_region
      %80 = dma.done [#allocation12], 64
    $region37: #{auto_forward.1} parent=1 // pred_fallthru
      _
    // Predicated region
    $region38: #{auto_forward.1} parent=1 // pred_check
      _
    $region39: #{auto_forward.1} parent=1 // pred_check_branch
      %82 = sbr.rel (0) target = $region41
    $region40: #{auto_forward.1} parent=1 // pred_region
      %83 = dma.done [#allocation15], 128
    $region41: #{auto_forward.1} parent=1 // pred_fallthru
      _
    // Predicated region
    $region42: #{auto_forward.1} parent=1 // pred_check
      _
    $region43: #{auto_forward.1} parent=1 // pred_check_branch
      %85 = sbr.rel (0) target = $region45
    $region44: #{auto_forward.1} parent=1 // pred_region
      %86 = dma.done [#allocation15], 384
    $region45: #{auto_forward.1} parent=1 // pred_fallthru
      _
    %p87 = scmp.eq.s32.totalorder 0, 0
    // Predicated region
    $region46: #{auto_forward.1} parent=1 // pred_check
      %p88 = pneg %p87
    $region47: #{auto_forward.1} parent=1 // pred_check_branch
      %90 = sbr.rel (%p88) target = $region49
    $region48: #{auto_forward.1} parent=1 // pred_region
      #allocation18 [shape = 'u32[9]{0}', space=smem, size = 0x24, scoped, tag = 'DMA stride descriptor']
      #allocation20 [shape = 'u32[9]{0}', space=smem, size = 0x24, scoped, tag = 'DMA stride descriptor']
      #allocation22 [shape = 'u32[9]{0}', space=smem, size = 0x24, scoped, tag = 'DMA stride descriptor']
      #allocation24 [shape = 'u32[9]{0}', space=smem, size = 0x24, scoped, tag = 'DMA stride descriptor']
      #allocation26 [shape = 'u32[9]{0}', space=smem, size = 0x24, scoped, tag = 'DMA stride descriptor']
      #allocation28 [shape = 'u32[9]{0}', space=smem, size = 0x24, scoped, tag = 'DMA stride descriptor']
      %s92 = sshll.u32 1, 14
      %s93 = sxor.u32 4294967295, %s92
      %s95 = sld [smem:[#allocation0]]
      %s96 = sadd.s32 2, %s95
      %s98 = sshll.u32 7, 26
      %s99 = sxor.u32 4294967295, %s98
      %s100 = sand.u32 0, %s99
      %s101 = sshll.u32 %s96, 26
      %s102 = sor.u32 %s100, %s101
      %s103 = sshll.u32 [#allocation2], 4
      %s104 = int_to_ptr.vmem [resolvable:$true] %s103
      %107 = sst [smem:[#allocation18]] 1024
      %s108 = scalar_lea.smem [#allocation18], 1
      %109 = sst [smem:[%s108]] 1024
      %s110 = scalar_lea.smem [#allocation18], 2
      %111 = sst [smem:[%s110]] 8
      %s112 = scalar_lea.smem [#allocation18], 3
      %113 = sst [smem:[%s112]] 64
      %s114 = scalar_lea.smem [#allocation18], 4
      %115 = sst [smem:[%s114]] 128
      %s116 = scalar_lea.smem [#allocation18], 5
      %117 = sst [smem:[%s116]] 2
      %s118 = scalar_lea.smem [#allocation18], 6
      %119 = sst [smem:[%s118]] 512
      %s120 = scalar_lea.smem [#allocation18], 7
      %121 = sst [smem:[%s120]] 64
      %s122 = scalar_lea.smem [#allocation18], 8
      %123 = sst [smem:[%s122]] 4
      %125 = dma.general %s1, 196608, %s104, [#allocation8], [#allocation17], [#allocation18], %s102, 0
      %s126 = scalar_lea.sflag [#allocation8], 1
      %s128 = sshll.u32 1, 14
      %s129 = sxor.u32 4294967295, %s128
      %s131 = sadd.s32 2, %s95
      %s133 = sshll.u32 7, 26
      %s134 = sxor.u32 4294967295, %s133
      %s135 = sand.u32 0, %s134
      %s136 = sshll.u32 %s131, 26
      %s137 = sor.u32 %s135, %s136
      %s138 = sshll.u32 [#allocation3], 4
      %s139 = int_to_ptr.vmem [resolvable:$true] %s138
      %142 = sst [smem:[#allocation20]] 512
      %s143 = scalar_lea.smem [#allocation20], 1
      %144 = sst [smem:[%s143]] 512
      %s145 = scalar_lea.smem [#allocation20], 2
      %146 = sst [smem:[%s145]] 4
      %s147 = scalar_lea.smem [#allocation20], 3
      %148 = sst [smem:[%s147]] 64
      %s149 = scalar_lea.smem [#allocation20], 4
      %150 = sst [smem:[%s149]] 128
      %s151 = scalar_lea.smem [#allocation20], 5
      %152 = sst [smem:[%s151]] 2
      %s153 = scalar_lea.smem [#allocation20], 6
      %154 = sst [smem:[%s153]] 256
      %s155 = scalar_lea.smem [#allocation20], 7
      %156 = sst [smem:[%s155]] 64
      %s157 = scalar_lea.smem [#allocation20], 8
      %158 = sst [smem:[%s157]] 4
      %160 = dma.general %s2, 32768, %s139, %s126, [#allocation19], [#allocation20], %s137, 0
      %s161 = scalar_lea.sflag [#allocation8], 2
      %s163 = sshll.u32 1, 14
      %s164 = sxor.u32 4294967295, %s163
      %s166 = sadd.s32 2, %s95
      %s168 = sshll.u32 7, 26
      %s169 = sxor.u32 4294967295, %s168
      %s170 = sand.u32 0, %s169
      %s171 = sshll.u32 %s166, 26
      %s172 = sor.u32 %s170, %s171
      %s173 = sshll.u32 [#allocation4], 4
      %s174 = int_to_ptr.vmem [resolvable:$true] %s173
      %177 = sst [smem:[#allocation22]] 256
      %s178 = scalar_lea.smem [#allocation22], 1
      %179 = sst [smem:[%s178]] 256
      %s180 = scalar_lea.smem [#allocation22], 2
      %181 = sst [smem:[%s180]] 2
      %s182 = scalar_lea.smem [#allocation22], 3
      %183 = sst [smem:[%s182]] 64
      %s184 = scalar_lea.smem [#allocation22], 4
      %185 = sst [smem:[%s184]] 128
      %s186 = scalar_lea.smem [#allocation22], 5
      %187 = sst [smem:[%s186]] 2
      %s188 = scalar_lea.smem [#allocation22], 6
      %189 = sst [smem:[%s188]] 128
      %s190 = scalar_lea.smem [#allocation22], 7
      %191 = sst [smem:[%s190]] 64
      %s192 = scalar_lea.smem [#allocation22], 8
      %193 = sst [smem:[%s192]] 4
      %195 = dma.general %s3, 8192, %s174, %s161, [#allocation21], [#allocation22], %s172, 0
      %s196 = scalar_lea.sflag [#allocation8], 3
      %s198 = sshll.u32 1, 14
      %s199 = sxor.u32 4294967295, %s198
      %s201 = sadd.s32 2, %s95
      %s203 = sshll.u32 7, 26
      %s204 = sxor.u32 4294967295, %s203
      %s205 = sand.u32 0, %s204
      %s206 = sshll.u32 %s201, 26
      %s207 = sor.u32 %s205, %s206
      %s208 = sshll.u32 [#allocation5], 4
      %s209 = int_to_ptr.vmem [resolvable:$true] %s208
      %212 = sst [smem:[#allocation24]] 512
      %s213 = scalar_lea.smem [#allocation24], 1
      %214 = sst [smem:[%s213]] 512
      %s215 = scalar_lea.smem [#allocation24], 2
      %216 = sst [smem:[%s215]] 4
      %s217 = scalar_lea.smem [#allocation24], 3
      %218 = sst [smem:[%s217]] 64
      %s219 = scalar_lea.smem [#allocation24], 4
      %220 = sst [smem:[%s219]] 128
      %s221 = scalar_lea.smem [#allocation24], 5
      %222 = sst [smem:[%s221]] 2
      %s223 = scalar_lea.smem [#allocation24], 6
      %224 = sst [smem:[%s223]] 256
      %s225 = scalar_lea.smem [#allocation24], 7
      %226 = sst [smem:[%s225]] 64
      %s227 = scalar_lea.smem [#allocation24], 8
      %228 = sst [smem:[%s227]] 4
      %230 = dma.general %s4, 8192, %s209, %s196, [#allocation23], [#allocation24], %s207, 0
      %s231 = scalar_lea.sflag [#allocation8], 4
      %s233 = sshll.u32 1, 14
      %s234 = sxor.u32 4294967295, %s233
      %s236 = sadd.s32 2, %s95
      %s238 = sshll.u32 7, 26
      %s239 = sxor.u32 4294967295, %s238
      %s240 = sand.u32 0, %s239
      %s241 = sshll.u32 %s236, 26
      %s242 = sor.u32 %s240, %s241
      %s243 = sshll.u32 [#allocation6], 4
      %s244 = int_to_ptr.vmem [resolvable:$true] %s243
      %247 = sst [smem:[#allocation26]] 1024
      %s248 = scalar_lea.smem [#allocation26], 1
      %249 = sst [smem:[%s248]] 1024
      %s250 = scalar_lea.smem [#allocation26], 2
      %251 = sst [smem:[%s250]] 8
      %s252 = scalar_lea.smem [#allocation26], 3
      %253 = sst [smem:[%s252]] 64
      %s254 = scalar_lea.smem [#allocation26], 4
      %255 = sst [smem:[%s254]] 128
      %s256 = scalar_lea.smem [#allocation26], 5
      %257 = sst [smem:[%s256]] 2
      %s258 = scalar_lea.smem [#allocation26], 6
      %259 = sst [smem:[%s258]] 512
      %s260 = scalar_lea.smem [#allocation26], 7
      %261 = sst [smem:[%s260]] 64
      %s262 = scalar_lea.smem [#allocation26], 8
      %263 = sst [smem:[%s262]] 4
      %265 = dma.general %s5, 32768, %s244, %s231, [#allocation25], [#allocation26], %s242, 0
      %s266 = scalar_lea.sflag [#allocation8], 5
      %s268 = sshll.u32 1, 14
      %s269 = sxor.u32 4294967295, %s268
      %s271 = sadd.s32 2, %s95
      %s273 = sshll.u32 7, 26
      %s274 = sxor.u32 4294967295, %s273
      %s275 = sand.u32 0, %s274
      %s276 = sshll.u32 %s271, 26
      %s277 = sor.u32 %s275, %s276
      %s278 = sshll.u32 [#allocation7], 4
      %s279 = int_to_ptr.vmem [resolvable:$true] %s278
      %282 = sst [smem:[#allocation28]] 3072
      %s283 = scalar_lea.smem [#allocation28], 1
      %284 = sst [smem:[%s283]] 3072
      %s285 = scalar_lea.smem [#allocation28], 2
      %286 = sst [smem:[%s285]] 24
      %s287 = scalar_lea.smem [#allocation28], 3
      %288 = sst [smem:[%s287]] 64
      %s289 = scalar_lea.smem [#allocation28], 4
      %290 = sst [smem:[%s289]] 128
      %s291 = scalar_lea.smem [#allocation28], 5
      %292 = sst [smem:[%s291]] 2
      %s293 = scalar_lea.smem [#allocation28], 6
      %294 = sst [smem:[%s293]] 1536
      %s295 = scalar_lea.smem [#allocation28], 7
      %296 = sst [smem:[%s295]] 64
      %s297 = scalar_lea.smem [#allocation28], 8
      %298 = sst [smem:[%s297]] 4
      %300 = dma.general %s6, 196608, %s279, %s266, [#allocation27], [#allocation28], %s277, 0
    $region49: #{auto_forward.1} parent=1 // pred_fallthru
      _
    %v301 = vld [vmem:[%s0] sm:$0xff]
    %v302 = vld [vmem:[%s0 + $0x8] sm:$0xff]
    %v303 = vld [vmem:[%s0 + $0x10] sm:$0xff]
    %v304 = vld [vmem:[%s0 + $0x18] sm:$0xff]
    %v305 = vld [vmem:[%s0 + $0x20] sm:$0xff]
    %v306 = vld [vmem:[%s0 + $0x28] sm:$0xff]
    %v307 = vld [vmem:[%s0 + $0x30] sm:$0xff]
    %v308 = vld [vmem:[%s0 + $0x38] sm:$0xff]
    %v309 = vld [vmem:[%s0 + $0x40] sm:$0xff]
    %v310 = vld [vmem:[%s0 + $0x48] sm:$0xff]
    %v311 = vld [vmem:[%s0 + $0x50] sm:$0xff]
    %v312 = vld [vmem:[%s0 + $0x58] sm:$0xff]
    %v313 = vld [vmem:[%s0 + $0x60] sm:$0xff]
    %v314 = vld [vmem:[%s0 + $0x68] sm:$0xff]
    %v315 = vld [vmem:[%s0 + $0x70] sm:$0xff]
    %v316 = vld [vmem:[%s0 + $0x78] sm:$0xff]
    %v317 = vld [vmem:[%s0 + $0x80] sm:$0xff]
    %v318 = vld [vmem:[%s0 + $0x88] sm:$0xff]
    %v319 = vld [vmem:[%s0 + $0x90] sm:$0xff]
    %v320 = vld [vmem:[%s0 + $0x98] sm:$0xff]
    %v321 = vld [vmem:[%s0 + $0xa0] sm:$0xff]
    %v322 = vld [vmem:[%s0 + $0xa8] sm:$0xff]
    %v323 = vld [vmem:[%s0 + $0xb0] sm:$0xff]
    %v324 = vld [vmem:[%s0 + $0xb8] sm:$0xff]
    // Predicated region
    $region50: #{auto_forward.1} parent=1 // pred_check
      %p325 = pneg %p87
    $region51: #{auto_forward.1} parent=1 // pred_check_branch
      %327 = sbr.rel (%p325) target = $region53
    $region52: #{auto_forward.1} parent=1 // pred_region
      %s328 = smul.u32 4, 384
      %s329 = smul.u32 %s328, 8
      %s330 = sshll.u32 %s329, 4
      %331 = dma.done [#allocation8], %s330
    $region53: #{auto_forward.1} parent=1 // pred_fallthru
      _
    %v332 = vpack.c.bf16 %v301, %v301
    %v333 = vpack.c.bf16 %v302, %v302
    %v334 = vpack.c.bf16 %v303, %v303
    %v335 = vpack.c.bf16 %v304, %v304
    %v336 = vpack.c.bf16 %v305, %v305
    %v337 = vpack.c.bf16 %v306, %v306
    %v338 = vpack.c.bf16 %v307, %v307
    %v339 = vpack.c.bf16 %v308, %v308
    %v340 = vpack.c.bf16 %v309, %v309
    %v341 = vpack.c.bf16 %v310, %v310
    %v342 = vpack.c.bf16 %v311, %v311
    %v343 = vpack.c.bf16 %v312, %v312
    %v344 = vpack.c.bf16 %v313, %v313
    %v345 = vpack.c.bf16 %v314, %v314
    %v346 = vpack.c.bf16 %v315, %v315
    %v347 = vpack.c.bf16 %v316, %v316
    %v348 = vpack.c.bf16 %v317, %v317
    %v349 = vpack.c.bf16 %v318, %v318
    %v350 = vpack.c.bf16 %v319, %v319
    %v351 = vpack.c.bf16 %v320, %v320
    %v352 = vpack.c.bf16 %v321, %v321
    %v353 = vpack.c.bf16 %v322, %v322
    %v354 = vpack.c.bf16 %v323, %v323
    %v355 = vpack.c.bf16 %v324, %v324
    %v356 = vld [vmem:[#allocation2] sm:$0xff]
    %v357 = vld [vmem:[#allocation2 + $0x8] sm:$0xff]
    %v358 = vld [vmem:[#allocation2 + $0x10] sm:$0xff]
    %v359 = vld [vmem:[#allocation2 + $0x18] sm:$0xff]
    %v360 = vld [vmem:[#allocation2 + $0x20] sm:$0xff]
    %v361 = vld [vmem:[#allocation2 + $0x28] sm:$0xff]
    %v362 = vld [vmem:[#allocation2 + $0x30] sm:$0xff]
    %v363 = vld [vmem:[#allocation2 + $0x38] sm:$0xff]
    %v364 = vld [vmem:[#allocation2 + $0x40] sm:$0xff]
    %v365 = vld [vmem:[#allocation2 + $0x48] sm:$0xff]
    %v366 = vld [vmem:[#allocation2 + $0x50] sm:$0xff]
    %v367 = vld [vmem:[#allocation2 + $0x58] sm:$0xff]
    %v368 = vld [vmem:[#allocation2 + $0x60] sm:$0xff]
    %v369 = vld [vmem:[#allocation2 + $0x68] sm:$0xff]
    %v370 = vld [vmem:[#allocation2 + $0x70] sm:$0xff]
    %v371 = vld [vmem:[#allocation2 + $0x78] sm:$0xff]
    %v372 = vld [vmem:[#allocation2 + $0x80] sm:$0xff]
    %v373 = vld [vmem:[#allocation2 + $0x88] sm:$0xff]
    %v374 = vld [vmem:[#allocation2 + $0x90] sm:$0xff]
    %v375 = vld [vmem:[#allocation2 + $0x98] sm:$0xff]
    %v376 = vld [vmem:[#allocation2 + $0xa0] sm:$0xff]
    %v377 = vld [vmem:[#allocation2 + $0xa8] sm:$0xff]
    %v378 = vld [vmem:[#allocation2 + $0xb0] sm:$0xff]
    %v379 = vld [vmem:[#allocation2 + $0xb8] sm:$0xff]
    %v380 = vld [vmem:[#allocation2 + $0xc0] sm:$0xff]
    %v381 = vld [vmem:[#allocation2 + $0xc8] sm:$0xff]
    %v382 = vld [vmem:[#allocation2 + $0xd0] sm:$0xff]
    %v383 = vld [vmem:[#allocation2 + $0xd8] sm:$0xff]
    %v384 = vld [vmem:[#allocation2 + $0xe0] sm:$0xff]
    %v385 = vld [vmem:[#allocation2 + $0xe8] sm:$0xff]
    %v386 = vld [vmem:[#allocation2 + $0xf0] sm:$0xff]
    %v387 = vld [vmem:[#allocation2 + $0xf8] sm:$0xff]
    %v388 = vld [vmem:[#allocation2 + $0x100] sm:$0xff]
    %v389 = vld [vmem:[#allocation2 + $0x108] sm:$0xff]
    %v390 = vld [vmem:[#allocation2 + $0x110] sm:$0xff]
    %v391 = vld [vmem:[#allocation2 + $0x118] sm:$0xff]
    %v392 = vld [vmem:[#allocation2 + $0x120] sm:$0xff]
    %v393 = vld [vmem:[#allocation2 + $0x128] sm:$0xff]
    %v394 = vld [vmem:[#allocation2 + $0x130] sm:$0xff]
    %v395 = vld [vmem:[#allocation2 + $0x138] sm:$0xff]
    %v396 = vld [vmem:[#allocation2 + $0x140] sm:$0xff]
    %v397 = vld [vmem:[#allocation2 + $0x148] sm:$0xff]
    %v398 = vld [vmem:[#allocation2 + $0x150] sm:$0xff]
    %v399 = vld [vmem:[#allocation2 + $0x158] sm:$0xff]
    %v400 = vld [vmem:[#allocation2 + $0x160] sm:$0xff]
    %v401 = vld [vmem:[#allocation2 + $0x168] sm:$0xff]
    %v402 = vld [vmem:[#allocation2 + $0x170] sm:$0xff]
    %v403 = vld [vmem:[#allocation2 + $0x178] sm:$0xff]
    %v404 = vld [vmem:[#allocation2 + $0x180] sm:$0xff]
    %v405 = vld [vmem:[#allocation2 + $0x188] sm:$0xff]
    %v406 = vld [vmem:[#allocation2 + $0x190] sm:$0xff]
    %v407 = vld [vmem:[#allocation2 + $0x198] sm:$0xff]
    %v408 = vld [vmem:[#allocation2 + $0x1a0] sm:$0xff]
    %v409 = vld [vmem:[#allocation2 + $0x1a8] sm:$0xff]
    %v410 = vld [vmem:[#allocation2 + $0x1b0] sm:$0xff]
    %v411 = vld [vmem:[#allocation2 + $0x1b8] sm:$0xff]
    %v412 = vld [vmem:[#allocation2 + $0x1c0] sm:$0xff]
    %v413 = vld [vmem:[#allocation2 + $0x1c8] sm:$0xff]
    %v414 = vld [vmem:[#allocation2 + $0x1d0] sm:$0xff]
    %v415 = vld [vmem:[#allocation2 + $0x1d8] sm:$0xff]
    %v416 = vld [vmem:[#allocation2 + $0x1e0] sm:$0xff]
    %v417 = vld [vmem:[#allocation2 + $0x1e8] sm:$0xff]
    %v418 = vld [vmem:[#allocation2 + $0x1f0] sm:$0xff]
    %v419 = vld [vmem:[#allocation2 + $0x1f8] sm:$0xff]
    %v420 = vld [vmem:[#allocation2 + $0x200] sm:$0xff]
    %v421 = vld [vmem:[#allocation2 + $0x208] sm:$0xff]
    %v422 = vld [vmem:[#allocation2 + $0x210] sm:$0xff]
    %v423 = vld [vmem:[#allocation2 + $0x218] sm:$0xff]
    %v424 = vld [vmem:[#allocation2 + $0x220] sm:$0xff]
    %v425 = vld [vmem:[#allocation2 + $0x228] sm:$0xff]
    %v426 = vld [vmem:[#allocation2 + $0x230] sm:$0xff]
    %v427 = vld [vmem:[#allocation2 + $0x238] sm:$0xff]
    %v428 = vld [vmem:[#allocation2 + $0x240] sm:$0xff]
    %v429 = vld [vmem:[#allocation2 + $0x248] sm:$0xff]
    %v430 = vld [vmem:[#allocation2 + $0x250] sm:$0xff]
    %v431 = vld [vmem:[#allocation2 + $0x258] sm:$0xff]
    %v432 = vld [vmem:[#allocation2 + $0x260] sm:$0xff]
    %v433 = vld [vmem:[#allocation2 + $0x268] sm:$0xff]
    %v434 = vld [vmem:[#allocation2 + $0x270] sm:$0xff]
    %v435 = vld [vmem:[#allocation2 + $0x278] sm:$0xff]
    %v436 = vld [vmem:[#allocation2 + $0x280] sm:$0xff]
    %v437 = vld [vmem:[#allocation2 + $0x288] sm:$0xff]
    %v438 = vld [vmem:[#allocation2 + $0x290] sm:$0xff]
    %v439 = vld [vmem:[#allocation2 + $0x298] sm:$0xff]
    %v440 = vld [vmem:[#allocation2 + $0x2a0] sm:$0xff]
    %v441 = vld [vmem:[#allocation2 + $0x2a8] sm:$0xff]
    %v442 = vld [vmem:[#allocation2 + $0x2b0] sm:$0xff]
    %v443 = vld [vmem:[#allocation2 + $0x2b8] sm:$0xff]
    %v444 = vld [vmem:[#allocation2 + $0x2c0] sm:$0xff]
    %v445 = vld [vmem:[#allocation2 + $0x2c8] sm:$0xff]
    %v446 = vld [vmem:[#allocation2 + $0x2d0] sm:$0xff]
    %v447 = vld [vmem:[#allocation2 + $0x2d8] sm:$0xff]
    %v448 = vld [vmem:[#allocation2 + $0x2e0] sm:$0xff]
    %v449 = vld [vmem:[#allocation2 + $0x2e8] sm:$0xff]
    %v450 = vld [vmem:[#allocation2 + $0x2f0] sm:$0xff]
    %v451 = vld [vmem:[#allocation2 + $0x2f8] sm:$0xff]
    %v452 = vld [vmem:[#allocation2 + $0x300] sm:$0xff]
    %v453 = vld [vmem:[#allocation2 + $0x308] sm:$0xff]
    %v454 = vld [vmem:[#allocation2 + $0x310] sm:$0xff]
    %v455 = vld [vmem:[#allocation2 + $0x318] sm:$0xff]
    %v456 = vld [vmem:[#allocation2 + $0x320] sm:$0xff]
    %v457 = vld [vmem:[#allocation2 + $0x328] sm:$0xff]
    %v458 = vld [vmem:[#allocation2 + $0x330] sm:$0xff]
    %v459 = vld [vmem:[#allocation2 + $0x338] sm:$0xff]
    %v460 = vld [vmem:[#allocation2 + $0x340] sm:$0xff]
    %v461 = vld [vmem:[#allocation2 + $0x348] sm:$0xff]
    %v462 = vld [vmem:[#allocation2 + $0x350] sm:$0xff]
    %v463 = vld [vmem:[#allocation2 + $0x358] sm:$0xff]
    %v464 = vld [vmem:[#allocation2 + $0x360] sm:$0xff]
    %v465 = vld [vmem:[#allocation2 + $0x368] sm:$0xff]
    %v466 = vld [vmem:[#allocation2 + $0x370] sm:$0xff]
    %v467 = vld [vmem:[#allocation2 + $0x378] sm:$0xff]
    %v468 = vld [vmem:[#allocation2 + $0x380] sm:$0xff]
    %v469 = vld [vmem:[#allocation2 + $0x388] sm:$0xff]
    %v470 = vld [vmem:[#allocation2 + $0x390] sm:$0xff]
    %v471 = vld [vmem:[#allocation2 + $0x398] sm:$0xff]
    %v472 = vld [vmem:[#allocation2 + $0x3a0] sm:$0xff]
    %v473 = vld [vmem:[#allocation2 + $0x3a8] sm:$0xff]
    %v474 = vld [vmem:[#allocation2 + $0x3b0] sm:$0xff]
    %v475 = vld [vmem:[#allocation2 + $0x3b8] sm:$0xff]
    %v476 = vld [vmem:[#allocation2 + $0x3c0] sm:$0xff]
    %v477 = vld [vmem:[#allocation2 + $0x3c8] sm:$0xff]
    %v478 = vld [vmem:[#allocation2 + $0x3d0] sm:$0xff]
    %v479 = vld [vmem:[#allocation2 + $0x3d8] sm:$0xff]
    %v480 = vld [vmem:[#allocation2 + $0x3e0] sm:$0xff]
    %v481 = vld [vmem:[#allocation2 + $0x3e8] sm:$0xff]
    %v482 = vld [vmem:[#allocation2 + $0x3f0] sm:$0xff]
    %v483 = vld [vmem:[#allocation2 + $0x3f8] sm:$0xff]
    %v484 = vld [vmem:[#allocation2 + $0x400] sm:$0xff]
    %v485 = vld [vmem:[#allocation2 + $0x408] sm:$0xff]
    %v486 = vld [vmem:[#allocation2 + $0x410] sm:$0xff]
    %v487 = vld [vmem:[#allocation2 + $0x418] sm:$0xff]
    %v488 = vld [vmem:[#allocation2 + $0x420] sm:$0xff]
    %v489 = vld [vmem:[#allocation2 + $0x428] sm:$0xff]
    %v490 = vld [vmem:[#allocation2 + $0x430] sm:$0xff]
    %v491 = vld [vmem:[#allocation2 + $0x438] sm:$0xff]
    %v492 = vld [vmem:[#allocation2 + $0x440] sm:$0xff]
    %v493 = vld [vmem:[#allocation2 + $0x448] sm:$0xff]
    %v494 = vld [vmem:[#allocation2 + $0x450] sm:$0xff]
    %v495 = vld [vmem:[#allocation2 + $0x458] sm:$0xff]
    %v496 = vld [vmem:[#allocation2 + $0x460] sm:$0xff]
    %v497 = vld [vmem:[#allocation2 + $0x468] sm:$0xff]
    %v498 = vld [vmem:[#allocation2 + $0x470] sm:$0xff]
    %v499 = vld [vmem:[#allocation2 + $0x478] sm:$0xff]
    %v500 = vld [vmem:[#allocation2 + $0x480] sm:$0xff]
    %v501 = vld [vmem:[#allocation2 + $0x488] sm:$0xff]
    %v502 = vld [vmem:[#allocation2 + $0x490] sm:$0xff]
    %v503 = vld [vmem:[#allocation2 + $0x498] sm:$0xff]
    %v504 = vld [vmem:[#allocation2 + $0x4a0] sm:$0xff]
    %v505 = vld [vmem:[#allocation2 + $0x4a8] sm:$0xff]
    %v506 = vld [vmem:[#allocation2 + $0x4b0] sm:$0xff]
    %v507 = vld [vmem:[#allocation2 + $0x4b8] sm:$0xff]
    %v508 = vld [vmem:[#allocation2 + $0x4c0] sm:$0xff]
    %v509 = vld [vmem:[#allocation2 + $0x4c8] sm:$0xff]
    %v510 = vld [vmem:[#allocation2 + $0x4d0] sm:$0xff]
    %v511 = vld [vmem:[#allocation2 + $0x4d8] sm:$0xff]
    %v512 = vld [vmem:[#allocation2 + $0x4e0] sm:$0xff]
    %v513 = vld [vmem:[#allocation2 + $0x4e8] sm:$0xff]
    %v514 = vld [vmem:[#allocation2 + $0x4f0] sm:$0xff]
    %v515 = vld [vmem:[#allocation2 + $0x4f8] sm:$0xff]
    %v516 = vld [vmem:[#allocation2 + $0x500] sm:$0xff]
    %v517 = vld [vmem:[#allocation2 + $0x508] sm:$0xff]
    %v518 = vld [vmem:[#allocation2 + $0x510] sm:$0xff]
    %v519 = vld [vmem:[#allocation2 + $0x518] sm:$0xff]
    %v520 = vld [vmem:[#allocation2 + $0x520] sm:$0xff]
    %v521 = vld [vmem:[#allocation2 + $0x528] sm:$0xff]
    %v522 = vld [vmem:[#allocation2 + $0x530] sm:$0xff]
    %v523 = vld [vmem:[#allocation2 + $0x538] sm:$0xff]
    %v524 = vld [vmem:[#allocation2 + $0x540] sm:$0xff]
    %v525 = vld [vmem:[#allocation2 + $0x548] sm:$0xff]
    %v526 = vld [vmem:[#allocation2 + $0x550] sm:$0xff]
    %v527 = vld [vmem:[#allocation2 + $0x558] sm:$0xff]
    %v528 = vld [vmem:[#allocation2 + $0x560] sm:$0xff]
    %v529 = vld [vmem:[#allocation2 + $0x568] sm:$0xff]
    %v530 = vld [vmem:[#allocation2 + $0x570] sm:$0xff]
    %v531 = vld [vmem:[#allocation2 + $0x578] sm:$0xff]
    %v532 = vld [vmem:[#allocation2 + $0x580] sm:$0xff]
    %v533 = vld [vmem:[#allocation2 + $0x588] sm:$0xff]
    %v534 = vld [vmem:[#allocation2 + $0x590] sm:$0xff]
    %v535 = vld [vmem:[#allocation2 + $0x598] sm:$0xff]
    %v536 = vld [vmem:[#allocation2 + $0x5a0] sm:$0xff]
    %v537 = vld [vmem:[#allocation2 + $0x5a8] sm:$0xff]
    %v538 = vld [vmem:[#allocation2 + $0x5b0] sm:$0xff]
    %v539 = vld [vmem:[#allocation2 + $0x5b8] sm:$0xff]
    %v540 = vld [vmem:[#allocation2 + $0x5c0] sm:$0xff]
    %v541 = vld [vmem:[#allocation2 + $0x5c8] sm:$0xff]
    %v542 = vld [vmem:[#allocation2 + $0x5d0] sm:$0xff]
    %v543 = vld [vmem:[#allocation2 + $0x5d8] sm:$0xff]
    %v544 = vld [vmem:[#allocation2 + $0x5e0] sm:$0xff]
    %v545 = vld [vmem:[#allocation2 + $0x5e8] sm:$0xff]
    %v546 = vld [vmem:[#allocation2 + $0x5f0] sm:$0xff]
    %v547 = vld [vmem:[#allocation2 + $0x5f8] sm:$0xff]
    %v548 = vld [vmem:[#allocation2 + $0x600] sm:$0xff]
    %v549 = vld [vmem:[#allocation2 + $0x608] sm:$0xff]
    %v550 = vld [vmem:[#allocation2 + $0x610] sm:$0xff]
    %v551 = vld [vmem:[#allocation2 + $0x618] sm:$0xff]
    %v552 = vld [vmem:[#allocation2 + $0x620] sm:$0xff]
    %v553 = vld [vmem:[#allocation2 + $0x628] sm:$0xff]
    %v554 = vld [vmem:[#allocation2 + $0x630] sm:$0xff]
    %v555 = vld [vmem:[#allocation2 + $0x638] sm:$0xff]
    %v556 = vld [vmem:[#allocation2 + $0x640] sm:$0xff]
    %v557 = vld [vmem:[#allocation2 + $0x648] sm:$0xff]
    %v558 = vld [vmem:[#allocation2 + $0x650] sm:$0xff]
    %v559 = vld [vmem:[#allocation2 + $0x658] sm:$0xff]
    %v560 = vld [vmem:[#allocation2 + $0x660] sm:$0xff]
    %v561 = vld [vmem:[#allocation2 + $0x668] sm:$0xff]
    %v562 = vld [vmem:[#allocation2 + $0x670] sm:$0xff]
    %v563 = vld [vmem:[#allocation2 + $0x678] sm:$0xff]
    %v564 = vld [vmem:[#allocation2 + $0x680] sm:$0xff]
    %v565 = vld [vmem:[#allocation2 + $0x688] sm:$0xff]
    %v566 = vld [vmem:[#allocation2 + $0x690] sm:$0xff]
    %v567 = vld [vmem:[#allocation2 + $0x698] sm:$0xff]
    %v568 = vld [vmem:[#allocation2 + $0x6a0] sm:$0xff]
    %v569 = vld [vmem:[#allocation2 + $0x6a8] sm:$0xff]
    %v570 = vld [vmem:[#allocation2 + $0x6b0] sm:$0xff]
    %v571 = vld [vmem:[#allocation2 + $0x6b8] sm:$0xff]
    %v572 = vld [vmem:[#allocation2 + $0x6c0] sm:$0xff]
    %v573 = vld [vmem:[#allocation2 + $0x6c8] sm:$0xff]
    %v574 = vld [vmem:[#allocation2 + $0x6d0] sm:$0xff]
    %v575 = vld [vmem:[#allocation2 + $0x6d8] sm:$0xff]
    %v576 = vld [vmem:[#allocation2 + $0x6e0] sm:$0xff]
    %v577 = vld [vmem:[#allocation2 + $0x6e8] sm:$0xff]
    %v578 = vld [vmem:[#allocation2 + $0x6f0] sm:$0xff]
    %v579 = vld [vmem:[#allocation2 + $0x6f8] sm:$0xff]
    %v580 = vld [vmem:[#allocation2 + $0x700] sm:$0xff]
    %v581 = vld [vmem:[#allocation2 + $0x708] sm:$0xff]
    %v582 = vld [vmem:[#allocation2 + $0x710] sm:$0xff]
    %v583 = vld [vmem:[#allocation2 + $0x718] sm:$0xff]
    %v584 = vld [vmem:[#allocation2 + $0x720] sm:$0xff]
    %v585 = vld [vmem:[#allocation2 + $0x728] sm:$0xff]
    %v586 = vld [vmem:[#allocation2 + $0x730] sm:$0xff]
    %v587 = vld [vmem:[#allocation2 + $0x738] sm:$0xff]
    %v588 = vld [vmem:[#allocation2 + $0x740] sm:$0xff]
    %v589 = vld [vmem:[#allocation2 + $0x748] sm:$0xff]
    %v590 = vld [vmem:[#allocation2 + $0x750] sm:$0xff]
    %v591 = vld [vmem:[#allocation2 + $0x758] sm:$0xff]
    %v592 = vld [vmem:[#allocation2 + $0x760] sm:$0xff]
    %v593 = vld [vmem:[#allocation2 + $0x768] sm:$0xff]
    %v594 = vld [vmem:[#allocation2 + $0x770] sm:$0xff]
    %v595 = vld [vmem:[#allocation2 + $0x778] sm:$0xff]
    %v596 = vld [vmem:[#allocation2 + $0x780] sm:$0xff]
    %v597 = vld [vmem:[#allocation2 + $0x788] sm:$0xff]
    %v598 = vld [vmem:[#allocation2 + $0x790] sm:$0xff]
    %v599 = vld [vmem:[#allocation2 + $0x798] sm:$0xff]
    %v600 = vld [vmem:[#allocation2 + $0x7a0] sm:$0xff]
    %v601 = vld [vmem:[#allocation2 + $0x7a8] sm:$0xff]
    %v602 = vld [vmem:[#allocation2 + $0x7b0] sm:$0xff]
    %v603 = vld [vmem:[#allocation2 + $0x7b8] sm:$0xff]
    %v604 = vld [vmem:[#allocation2 + $0x7c0] sm:$0xff]
    %v605 = vld [vmem:[#allocation2 + $0x7c8] sm:$0xff]
    %v606 = vld [vmem:[#allocation2 + $0x7d0] sm:$0xff]
    %v607 = vld [vmem:[#allocation2 + $0x7d8] sm:$0xff]
    %v608 = vld [vmem:[#allocation2 + $0x7e0] sm:$0xff]
    %v609 = vld [vmem:[#allocation2 + $0x7e8] sm:$0xff]
    %v610 = vld [vmem:[#allocation2 + $0x7f0] sm:$0xff]
    %v611 = vld [vmem:[#allocation2 + $0x7f8] sm:$0xff]
    %v612 = vld [vmem:[#allocation2 + $0x800] sm:$0xff]
    %v613 = vld [vmem:[#allocation2 + $0x808] sm:$0xff]
    %v614 = vld [vmem:[#allocation2 + $0x810] sm:$0xff]
    %v615 = vld [vmem:[#allocation2 + $0x818] sm:$0xff]
    %v616 = vld [vmem:[#allocation2 + $0x820] sm:$0xff]
    %v617 = vld [vmem:[#allocation2 + $0x828] sm:$0xff]
    %v618 = vld [vmem:[#allocation2 + $0x830] sm:$0xff]
    %v619 = vld [vmem:[#allocation2 + $0x838] sm:$0xff]
    %v620 = vld [vmem:[#allocation2 + $0x840] sm:$0xff]
    %v621 = vld [vmem:[#allocation2 + $0x848] sm:$0xff]
    %v622 = vld [vmem:[#allocation2 + $0x850] sm:$0xff]
    %v623 = vld [vmem:[#allocation2 + $0x858] sm:$0xff]
    %v624 = vld [vmem:[#allocation2 + $0x860] sm:$0xff]
    %v625 = vld [vmem:[#allocation2 + $0x868] sm:$0xff]
    %v626 = vld [vmem:[#allocation2 + $0x870] sm:$0xff]
    %v627 = vld [vmem:[#allocation2 + $0x878] sm:$0xff]
    %v628 = vld [vmem:[#allocation2 + $0x880] sm:$0xff]
    %v629 = vld [vmem:[#allocation2 + $0x888] sm:$0xff]
    %v630 = vld [vmem:[#allocation2 + $0x890] sm:$0xff]
    %v631 = vld [vmem:[#allocation2 + $0x898] sm:$0xff]
    %v632 = vld [vmem:[#allocation2 + $0x8a0] sm:$0xff]
    %v633 = vld [vmem:[#allocation2 + $0x8a8] sm:$0xff]
    %v634 = vld [vmem:[#allocation2 + $0x8b0] sm:$0xff]
    %v635 = vld [vmem:[#allocation2 + $0x8b8] sm:$0xff]
    %v636 = vld [vmem:[#allocation2 + $0x8c0] sm:$0xff]
    %v637 = vld [vmem:[#allocation2 + $0x8c8] sm:$0xff]
    %v638 = vld [vmem:[#allocation2 + $0x8d0] sm:$0xff]
    %v639 = vld [vmem:[#allocation2 + $0x8d8] sm:$0xff]
    %v640 = vld [vmem:[#allocation2 + $0x8e0] sm:$0xff]
    %v641 = vld [vmem:[#allocation2 + $0x8e8] sm:$0xff]
    %v642 = vld [vmem:[#allocation2 + $0x8f0] sm:$0xff]
    %v643 = vld [vmem:[#allocation2 + $0x8f8] sm:$0xff]
    %v644 = vld [vmem:[#allocation2 + $0x900] sm:$0xff]
    %v645 = vld [vmem:[#allocation2 + $0x908] sm:$0xff]
    %v646 = vld [vmem:[#allocation2 + $0x910] sm:$0xff]
    %v647 = vld [vmem:[#allocation2 + $0x918] sm:$0xff]
    %v648 = vld [vmem:[#allocation2 + $0x920] sm:$0xff]
    %v649 = vld [vmem:[#allocation2 + $0x928] sm:$0xff]
    %v650 = vld [vmem:[#allocation2 + $0x930] sm:$0xff]
    %v651 = vld [vmem:[#allocation2 + $0x938] sm:$0xff]
    %v652 = vld [vmem:[#allocation2 + $0x940] sm:$0xff]
    %v653 = vld [vmem:[#allocation2 + $0x948] sm:$0xff]
    %v654 = vld [vmem:[#allocation2 + $0x950] sm:$0xff]
    %v655 = vld [vmem:[#allocation2 + $0x958] sm:$0xff]
    %v656 = vld [vmem:[#allocation2 + $0x960] sm:$0xff]
    %v657 = vld [vmem:[#allocation2 + $0x968] sm:$0xff]
    %v658 = vld [vmem:[#allocation2 + $0x970] sm:$0xff]
    %v659 = vld [vmem:[#allocation2 + $0x978] sm:$0xff]
    %v660 = vld [vmem:[#allocation2 + $0x980] sm:$0xff]
    %v661 = vld [vmem:[#allocation2 + $0x988] sm:$0xff]
    %v662 = vld [vmem:[#allocation2 + $0x990] sm:$0xff]
    %v663 = vld [vmem:[#allocation2 + $0x998] sm:$0xff]
    %v664 = vld [vmem:[#allocation2 + $0x9a0] sm:$0xff]
    %v665 = vld [vmem:[#allocation2 + $0x9a8] sm:$0xff]
    %v666 = vld [vmem:[#allocation2 + $0x9b0] sm:$0xff]
    %v667 = vld [vmem:[#allocation2 + $0x9b8] sm:$0xff]
    %v668 = vld [vmem:[#allocation2 + $0x9c0] sm:$0xff]
    %v669 = vld [vmem:[#allocation2 + $0x9c8] sm:$0xff]
    %v670 = vld [vmem:[#allocation2 + $0x9d0] sm:$0xff]
    %v671 = vld [vmem:[#allocation2 + $0x9d8] sm:$0xff]
    %v672 = vld [vmem:[#allocation2 + $0x9e0] sm:$0xff]
    %v673 = vld [vmem:[#allocation2 + $0x9e8] sm:$0xff]
    %v674 = vld [vmem:[#allocation2 + $0x9f0] sm:$0xff]
    %v675 = vld [vmem:[#allocation2 + $0x9f8] sm:$0xff]
    %v676 = vld [vmem:[#allocation2 + $0xa00] sm:$0xff]
    %v677 = vld [vmem:[#allocation2 + $0xa08] sm:$0xff]
    %v678 = vld [vmem:[#allocation2 + $0xa10] sm:$0xff]
    %v679 = vld [vmem:[#allocation2 + $0xa18] sm:$0xff]
    %v680 = vld [vmem:[#allocation2 + $0xa20] sm:$0xff]
    %v681 = vld [vmem:[#allocation2 + $0xa28] sm:$0xff]
    %v682 = vld [vmem:[#allocation2 + $0xa30] sm:$0xff]
    %v683 = vld [vmem:[#allocation2 + $0xa38] sm:$0xff]
    %v684 = vld [vmem:[#allocation2 + $0xa40] sm:$0xff]
    %v685 = vld [vmem:[#allocation2 + $0xa48] sm:$0xff]
    %v686 = vld [vmem:[#allocation2 + $0xa50] sm:$0xff]
    %v687 = vld [vmem:[#allocation2 + $0xa58] sm:$0xff]
    %v688 = vld [vmem:[#allocation2 + $0xa60] sm:$0xff]
    %v689 = vld [vmem:[#allocation2 + $0xa68] sm:$0xff]
    %v690 = vld [vmem:[#allocation2 + $0xa70] sm:$0xff]
    %v691 = vld [vmem:[#allocation2 + $0xa78] sm:$0xff]
    %v692 = vld [vmem:[#allocation2 + $0xa80] sm:$0xff]
    %v693 = vld [vmem:[#allocation2 + $0xa88] sm:$0xff]
    %v694 = vld [vmem:[#allocation2 + $0xa90] sm:$0xff]
    %v695 = vld [vmem:[#allocation2 + $0xa98] sm:$0xff]
    %v696 = vld [vmem:[#allocation2 + $0xaa0] sm:$0xff]
    %v697 = vld [vmem:[#allocation2 + $0xaa8] sm:$0xff]
    %v698 = vld [vmem:[#allocation2 + $0xab0] sm:$0xff]
    %v699 = vld [vmem:[#allocation2 + $0xab8] sm:$0xff]
    %v700 = vld [vmem:[#allocation2 + $0xac0] sm:$0xff]
    %v701 = vld [vmem:[#allocation2 + $0xac8] sm:$0xff]
    %v702 = vld [vmem:[#allocation2 + $0xad0] sm:$0xff]
    %v703 = vld [vmem:[#allocation2 + $0xad8] sm:$0xff]
    %v704 = vld [vmem:[#allocation2 + $0xae0] sm:$0xff]
    %v705 = vld [vmem:[#allocation2 + $0xae8] sm:$0xff]
    %v706 = vld [vmem:[#allocation2 + $0xaf0] sm:$0xff]
    %v707 = vld [vmem:[#allocation2 + $0xaf8] sm:$0xff]
    %v708 = vld [vmem:[#allocation2 + $0xb00] sm:$0xff]
    %v709 = vld [vmem:[#allocation2 + $0xb08] sm:$0xff]
    %v710 = vld [vmem:[#allocation2 + $0xb10] sm:$0xff]
    %v711 = vld [vmem:[#allocation2 + $0xb18] sm:$0xff]
    %v712 = vld [vmem:[#allocation2 + $0xb20] sm:$0xff]
    %v713 = vld [vmem:[#allocation2 + $0xb28] sm:$0xff]
    %v714 = vld [vmem:[#allocation2 + $0xb30] sm:$0xff]
    %v715 = vld [vmem:[#allocation2 + $0xb38] sm:$0xff]
    %v716 = vld [vmem:[#allocation2 + $0xb40] sm:$0xff]
    %v717 = vld [vmem:[#allocation2 + $0xb48] sm:$0xff]
    %v718 = vld [vmem:[#allocation2 + $0xb50] sm:$0xff]
    %v719 = vld [vmem:[#allocation2 + $0xb58] sm:$0xff]
    %v720 = vld [vmem:[#allocation2 + $0xb60] sm:$0xff]
    %v721 = vld [vmem:[#allocation2 + $0xb68] sm:$0xff]
    %v722 = vld [vmem:[#allocation2 + $0xb70] sm:$0xff]
    %v723 = vld [vmem:[#allocation2 + $0xb78] sm:$0xff]
    %v724 = vld [vmem:[#allocation2 + $0xb80] sm:$0xff]
    %v725 = vld [vmem:[#allocation2 + $0xb88] sm:$0xff]
    %v726 = vld [vmem:[#allocation2 + $0xb90] sm:$0xff]
    %v727 = vld [vmem:[#allocation2 + $0xb98] sm:$0xff]
    %v728 = vld [vmem:[#allocation2 + $0xba0] sm:$0xff]
    %v729 = vld [vmem:[#allocation2 + $0xba8] sm:$0xff]
    %v730 = vld [vmem:[#allocation2 + $0xbb0] sm:$0xff]
    %v731 = vld [vmem:[#allocation2 + $0xbb8] sm:$0xff]
    %v732 = vld [vmem:[#allocation2 + $0xbc0] sm:$0xff]
    %v733 = vld [vmem:[#allocation2 + $0xbc8] sm:$0xff]
    %v734 = vld [vmem:[#allocation2 + $0xbd0] sm:$0xff]
    %v735 = vld [vmem:[#allocation2 + $0xbd8] sm:$0xff]
    %v736 = vld [vmem:[#allocation2 + $0xbe0] sm:$0xff]
    %v737 = vld [vmem:[#allocation2 + $0xbe8] sm:$0xff]
    %v738 = vld [vmem:[#allocation2 + $0xbf0] sm:$0xff]
    %v739 = vld [vmem:[#allocation2 + $0xbf8] sm:$0xff]
    %v740 = vld [vmem:[#allocation2 + $0xc00] sm:$0xff]
    %v741 = vld [vmem:[#allocation2 + $0xc08] sm:$0xff]
    %v742 = vld [vmem:[#allocation2 + $0xc10] sm:$0xff]
    %v743 = vld [vmem:[#allocation2 + $0xc18] sm:$0xff]
    %v744 = vld [vmem:[#allocation2 + $0xc20] sm:$0xff]
    %v745 = vld [vmem:[#allocation2 + $0xc28] sm:$0xff]
    %v746 = vld [vmem:[#allocation2 + $0xc30] sm:$0xff]
    %v747 = vld [vmem:[#allocation2 + $0xc38] sm:$0xff]
    %v748 = vld [vmem:[#allocation2 + $0xc40] sm:$0xff]
    %v749 = vld [vmem:[#allocation2 + $0xc48] sm:$0xff]
    %v750 = vld [vmem:[#allocation2 + $0xc50] sm:$0xff]
    %v751 = vld [vmem:[#allocation2 + $0xc58] sm:$0xff]
    %v752 = vld [vmem:[#allocation2 + $0xc60] sm:$0xff]
    %v753 = vld [vmem:[#allocation2 + $0xc68] sm:$0xff]
    %v754 = vld [vmem:[#allocation2 + $0xc70] sm:$0xff]
    %v755 = vld [vmem:[#allocation2 + $0xc78] sm:$0xff]
    %v756 = vld [vmem:[#allocation2 + $0xc80] sm:$0xff]
    %v757 = vld [vmem:[#allocation2 + $0xc88] sm:$0xff]
    %v758 = vld [vmem:[#allocation2 + $0xc90] sm:$0xff]
    %v759 = vld [vmem:[#allocation2 + $0xc98] sm:$0xff]
    %v760 = vld [vmem:[#allocation2 + $0xca0] sm:$0xff]
    %v761 = vld [vmem:[#allocation2 + $0xca8] sm:$0xff]
    %v762 = vld [vmem:[#allocation2 + $0xcb0] sm:$0xff]
    %v763 = vld [vmem:[#allocation2 + $0xcb8] sm:$0xff]
    %v764 = vld [vmem:[#allocation2 + $0xcc0] sm:$0xff]
    %v765 = vld [vmem:[#allocation2 + $0xcc8] sm:$0xff]
    %v766 = vld [vmem:[#allocation2 + $0xcd0] sm:$0xff]
    %v767 = vld [vmem:[#allocation2 + $0xcd8] sm:$0xff]
    %v768 = vld [vmem:[#allocation2 + $0xce0] sm:$0xff]
    %v769 = vld [vmem:[#allocation2 + $0xce8] sm:$0xff]
    %v770 = vld [vmem:[#allocation2 + $0xcf0] sm:$0xff]
    %v771 = vld [vmem:[#allocation2 + $0xcf8] sm:$0xff]
    %v772 = vld [vmem:[#allocation2 + $0xd00] sm:$0xff]
    %v773 = vld [vmem:[#allocation2 + $0xd08] sm:$0xff]
    %v774 = vld [vmem:[#allocation2 + $0xd10] sm:$0xff]
    %v775 = vld [vmem:[#allocation2 + $0xd18] sm:$0xff]
    %v776 = vld [vmem:[#allocation2 + $0xd20] sm:$0xff]
    %v777 = vld [vmem:[#allocation2 + $0xd28] sm:$0xff]
    %v778 = vld [vmem:[#allocation2 + $0xd30] sm:$0xff]
    %v779 = vld [vmem:[#allocation2 + $0xd38] sm:$0xff]
    %v780 = vld [vmem:[#allocation2 + $0xd40] sm:$0xff]
    %v781 = vld [vmem:[#allocation2 + $0xd48] sm:$0xff]
    %v782 = vld [vmem:[#allocation2 + $0xd50] sm:$0xff]
    %v783 = vld [vmem:[#allocation2 + $0xd58] sm:$0xff]
    %v784 = vld [vmem:[#allocation2 + $0xd60] sm:$0xff]
    %v785 = vld [vmem:[#allocation2 + $0xd68] sm:$0xff]
    %v786 = vld [vmem:[#allocation2 + $0xd70] sm:$0xff]
    %v787 = vld [vmem:[#allocation2 + $0xd78] sm:$0xff]
    %v788 = vld [vmem:[#allocation2 + $0xd80] sm:$0xff]
    %v789 = vld [vmem:[#allocation2 + $0xd88] sm:$0xff]
    %v790 = vld [vmem:[#allocation2 + $0xd90] sm:$0xff]
    %v791 = vld [vmem:[#allocation2 + $0xd98] sm:$0xff]
    %v792 = vld [vmem:[#allocation2 + $0xda0] sm:$0xff]
    %v793 = vld [vmem:[#allocation2 + $0xda8] sm:$0xff]
    %v794 = vld [vmem:[#allocation2 + $0xdb0] sm:$0xff]
    %v795 = vld [vmem:[#allocation2 + $0xdb8] sm:$0xff]
    %v796 = vld [vmem:[#allocation2 + $0xdc0] sm:$0xff]
    %v797 = vld [vmem:[#allocation2 + $0xdc8] sm:$0xff]
    %v798 = vld [vmem:[#allocation2 + $0xdd0] sm:$0xff]
    %v799 = vld [vmem:[#allocation2 + $0xdd8] sm:$0xff]
    %v800 = vld [vmem:[#allocation2 + $0xde0] sm:$0xff]
    %v801 = vld [vmem:[#allocation2 + $0xde8] sm:$0xff]
    %v802 = vld [vmem:[#allocation2 + $0xdf0] sm:$0xff]
    %v803 = vld [vmem:[#allocation2 + $0xdf8] sm:$0xff]
    %v804 = vld [vmem:[#allocation2 + $0xe00] sm:$0xff]
    %v805 = vld [vmem:[#allocation2 + $0xe08] sm:$0xff]
    %v806 = vld [vmem:[#allocation2 + $0xe10] sm:$0xff]
    %v807 = vld [vmem:[#allocation2 + $0xe18] sm:$0xff]
    %v808 = vld [vmem:[#allocation2 + $0xe20] sm:$0xff]
    %v809 = vld [vmem:[#allocation2 + $0xe28] sm:$0xff]
    %v810 = vld [vmem:[#allocation2 + $0xe30] sm:$0xff]
    %v811 = vld [vmem:[#allocation2 + $0xe38] sm:$0xff]
    %v812 = vld [vmem:[#allocation2 + $0xe40] sm:$0xff]
    %v813 = vld [vmem:[#allocation2 + $0xe48] sm:$0xff]
    %v814 = vld [vmem:[#allocation2 + $0xe50] sm:$0xff]
    %v815 = vld [vmem:[#allocation2 + $0xe58] sm:$0xff]
    %v816 = vld [vmem:[#allocation2 + $0xe60] sm:$0xff]
    %v817 = vld [vmem:[#allocation2 + $0xe68] sm:$0xff]
    %v818 = vld [vmem:[#allocation2 + $0xe70] sm:$0xff]
    %v819 = vld [vmem:[#allocation2 + $0xe78] sm:$0xff]
    %v820 = vld [vmem:[#allocation2 + $0xe80] sm:$0xff]
    %v821 = vld [vmem:[#allocation2 + $0xe88] sm:$0xff]
    %v822 = vld [vmem:[#allocation2 + $0xe90] sm:$0xff]
    %v823 = vld [vmem:[#allocation2 + $0xe98] sm:$0xff]
    %v824 = vld [vmem:[#allocation2 + $0xea0] sm:$0xff]
    %v825 = vld [vmem:[#allocation2 + $0xea8] sm:$0xff]
    %v826 = vld [vmem:[#allocation2 + $0xeb0] sm:$0xff]
    %v827 = vld [vmem:[#allocation2 + $0xeb8] sm:$0xff]
    %v828 = vld [vmem:[#allocation2 + $0xec0] sm:$0xff]
    %v829 = vld [vmem:[#allocation2 + $0xec8] sm:$0xff]
    %v830 = vld [vmem:[#allocation2 + $0xed0] sm:$0xff]
    %v831 = vld [vmem:[#allocation2 + $0xed8] sm:$0xff]
    %v832 = vld [vmem:[#allocation2 + $0xee0] sm:$0xff]
    %v833 = vld [vmem:[#allocation2 + $0xee8] sm:$0xff]
    %v834 = vld [vmem:[#allocation2 + $0xef0] sm:$0xff]
    %v835 = vld [vmem:[#allocation2 + $0xef8] sm:$0xff]
    %v836 = vld [vmem:[#allocation2 + $0xf00] sm:$0xff]
    %v837 = vld [vmem:[#allocation2 + $0xf08] sm:$0xff]
    %v838 = vld [vmem:[#allocation2 + $0xf10] sm:$0xff]
    %v839 = vld [vmem:[#allocation2 + $0xf18] sm:$0xff]
    %v840 = vld [vmem:[#allocation2 + $0xf20] sm:$0xff]
    %v841 = vld [vmem:[#allocation2 + $0xf28] sm:$0xff]
    %v842 = vld [vmem:[#allocation2 + $0xf30] sm:$0xff]
    %v843 = vld [vmem:[#allocation2 + $0xf38] sm:$0xff]
    %v844 = vld [vmem:[#allocation2 + $0xf40] sm:$0xff]
    %v845 = vld [vmem:[#allocation2 + $0xf48] sm:$0xff]
    %v846 = vld [vmem:[#allocation2 + $0xf50] sm:$0xff]
    %v847 = vld [vmem:[#allocation2 + $0xf58] sm:$0xff]
    %v848 = vld [vmem:[#allocation2 + $0xf60] sm:$0xff]
    %v849 = vld [vmem:[#allocation2 + $0xf68] sm:$0xff]
    %v850 = vld [vmem:[#allocation2 + $0xf70] sm:$0xff]
    %v851 = vld [vmem:[#allocation2 + $0xf78] sm:$0xff]
    %v852 = vld [vmem:[#allocation2 + $0xf80] sm:$0xff]
    %v853 = vld [vmem:[#allocation2 + $0xf88] sm:$0xff]
    %v854 = vld [vmem:[#allocation2 + $0xf90] sm:$0xff]
    %v855 = vld [vmem:[#allocation2 + $0xf98] sm:$0xff]
    %v856 = vld [vmem:[#allocation2 + $0xfa0] sm:$0xff]
    %v857 = vld [vmem:[#allocation2 + $0xfa8] sm:$0xff]
    %v858 = vld [vmem:[#allocation2 + $0xfb0] sm:$0xff]
    %v859 = vld [vmem:[#allocation2 + $0xfb8] sm:$0xff]
    %v860 = vld [vmem:[#allocation2 + $0xfc0] sm:$0xff]
    %v861 = vld [vmem:[#allocation2 + $0xfc8] sm:$0xff]
    %v862 = vld [vmem:[#allocation2 + $0xfd0] sm:$0xff]
    %v863 = vld [vmem:[#allocation2 + $0xfd8] sm:$0xff]
    %v864 = vld [vmem:[#allocation2 + $0xfe0] sm:$0xff]
    %v865 = vld [vmem:[#allocation2 + $0xfe8] sm:$0xff]
    %v866 = vld [vmem:[#allocation2 + $0xff0] sm:$0xff]
    %v867 = vld [vmem:[#allocation2 + $0xff8] sm:$0xff]
    %v868 = vld [vmem:[#allocation2 + $0x1000] sm:$0xff]
    %v869 = vld [vmem:[#allocation2 + $0x1008] sm:$0xff]
    %v870 = vld [vmem:[#allocation2 + $0x1010] sm:$0xff]
    %v871 = vld [vmem:[#allocation2 + $0x1018] sm:$0xff]
    %v872 = vld [vmem:[#allocation2 + $0x1020] sm:$0xff]
    %v873 = vld [vmem:[#allocation2 + $0x1028] sm:$0xff]
    %v874 = vld [vmem:[#allocation2 + $0x1030] sm:$0xff]
    %v875 = vld [vmem:[#allocation2 + $0x1038] sm:$0xff]
    %v876 = vld [vmem:[#allocation2 + $0x1040] sm:$0xff]
    %v877 = vld [vmem:[#allocation2 + $0x1048] sm:$0xff]
    %v878 = vld [vmem:[#allocation2 + $0x1050] sm:$0xff]
    %v879 = vld [vmem:[#allocation2 + $0x1058] sm:$0xff]
    %v880 = vld [vmem:[#allocation2 + $0x1060] sm:$0xff]
    %v881 = vld [vmem:[#allocation2 + $0x1068] sm:$0xff]
    %v882 = vld [vmem:[#allocation2 + $0x1070] sm:$0xff]
    %v883 = vld [vmem:[#allocation2 + $0x1078] sm:$0xff]
    %v884 = vld [vmem:[#allocation2 + $0x1080] sm:$0xff]
    %v885 = vld [vmem:[#allocation2 + $0x1088] sm:$0xff]
    %v886 = vld [vmem:[#allocation2 + $0x1090] sm:$0xff]
    %v887 = vld [vmem:[#allocation2 + $0x1098] sm:$0xff]
    %v888 = vld [vmem:[#allocation2 + $0x10a0] sm:$0xff]
    %v889 = vld [vmem:[#allocation2 + $0x10a8] sm:$0xff]
    %v890 = vld [vmem:[#allocation2 + $0x10b0] sm:$0xff]
    %v891 = vld [vmem:[#allocation2 + $0x10b8] sm:$0xff]
    %v892 = vld [vmem:[#allocation2 + $0x10c0] sm:$0xff]
    %v893 = vld [vmem:[#allocation2 + $0x10c8] sm:$0xff]
    %v894 = vld [vmem:[#allocation2 + $0x10d0] sm:$0xff]
    %v895 = vld [vmem:[#allocation2 + $0x10d8] sm:$0xff]
    %v896 = vld [vmem:[#allocation2 + $0x10e0] sm:$0xff]
    %v897 = vld [vmem:[#allocation2 + $0x10e8] sm:$0xff]
    %v898 = vld [vmem:[#allocation2 + $0x10f0] sm:$0xff]
    %v899 = vld [vmem:[#allocation2 + $0x10f8] sm:$0xff]
    %v900 = vld [vmem:[#allocation2 + $0x1100] sm:$0xff]
    %v901 = vld [vmem:[#allocation2 + $0x1108] sm:$0xff]
    %v902 = vld [vmem:[#allocation2 + $0x1110] sm:$0xff]
    %v903 = vld [vmem:[#allocation2 + $0x1118] sm:$0xff]
    %v904 = vld [vmem:[#allocation2 + $0x1120] sm:$0xff]
    %v905 = vld [vmem:[#allocation2 + $0x1128] sm:$0xff]
    %v906 = vld [vmem:[#allocation2 + $0x1130] sm:$0xff]
    %v907 = vld [vmem:[#allocation2 + $0x1138] sm:$0xff]
    %v908 = vld [vmem:[#allocation2 + $0x1140] sm:$0xff]
    %v909 = vld [vmem:[#allocation2 + $0x1148] sm:$0xff]
    %v910 = vld [vmem:[#allocation2 + $0x1150] sm:$0xff]
    %v911 = vld [vmem:[#allocation2 + $0x1158] sm:$0xff]
    %v912 = vld [vmem:[#allocation2 + $0x1160] sm:$0xff]
    %v913 = vld [vmem:[#allocation2 + $0x1168] sm:$0xff]
    %v914 = vld [vmem:[#allocation2 + $0x1170] sm:$0xff]
    %v915 = vld [vmem:[#allocation2 + $0x1178] sm:$0xff]
    %v916 = vld [vmem:[#allocation2 + $0x1180] sm:$0xff]
    %v917 = vld [vmem:[#allocation2 + $0x1188] sm:$0xff]
    %v918 = vld [vmem:[#allocation2 + $0x1190] sm:$0xff]
    %v919 = vld [vmem:[#allocation2 + $0x1198] sm:$0xff]
    %v920 = vld [vmem:[#allocation2 + $0x11a0] sm:$0xff]
    %v921 = vld [vmem:[#allocation2 + $0x11a8] sm:$0xff]
    %v922 = vld [vmem:[#allocation2 + $0x11b0] sm:$0xff]
    %v923 = vld [vmem:[#allocation2 + $0x11b8] sm:$0xff]
    %v924 = vld [vmem:[#allocation2 + $0x11c0] sm:$0xff]
    %v925 = vld [vmem:[#allocation2 + $0x11c8] sm:$0xff]
    %v926 = vld [vmem:[#allocation2 + $0x11d0] sm:$0xff]
    %v927 = vld [vmem:[#allocation2 + $0x11d8] sm:$0xff]
    %v928 = vld [vmem:[#allocation2 + $0x11e0] sm:$0xff]
    %v929 = vld [vmem:[#allocation2 + $0x11e8] sm:$0xff]
    %v930 = vld [vmem:[#allocation2 + $0x11f0] sm:$0xff]
    %v931 = vld [vmem:[#allocation2 + $0x11f8] sm:$0xff]
    %v932 = vld [vmem:[#allocation2 + $0x1200] sm:$0xff]
    %v933 = vld [vmem:[#allocation2 + $0x1208] sm:$0xff]
    %v934 = vld [vmem:[#allocation2 + $0x1210] sm:$0xff]
    %v935 = vld [vmem:[#allocation2 + $0x1218] sm:$0xff]
    %v936 = vld [vmem:[#allocation2 + $0x1220] sm:$0xff]
    %v937 = vld [vmem:[#allocation2 + $0x1228] sm:$0xff]
    %v938 = vld [vmem:[#allocation2 + $0x1230] sm:$0xff]
    %v939 = vld [vmem:[#allocation2 + $0x1238] sm:$0xff]
    %v940 = vld [vmem:[#allocation2 + $0x1240] sm:$0xff]
    %v941 = vld [vmem:[#allocation2 + $0x1248] sm:$0xff]
    %v942 = vld [vmem:[#allocation2 + $0x1250] sm:$0xff]
    %v943 = vld [vmem:[#allocation2 + $0x1258] sm:$0xff]
    %v944 = vld [vmem:[#allocation2 + $0x1260] sm:$0xff]
    %v945 = vld [vmem:[#allocation2 + $0x1268] sm:$0xff]
    %v946 = vld [vmem:[#allocation2 + $0x1270] sm:$0xff]
    %v947 = vld [vmem:[#allocation2 + $0x1278] sm:$0xff]
    %v948 = vld [vmem:[#allocation2 + $0x1280] sm:$0xff]
    %v949 = vld [vmem:[#allocation2 + $0x1288] sm:$0xff]
    %v950 = vld [vmem:[#allocation2 + $0x1290] sm:$0xff]
    %v951 = vld [vmem:[#allocation2 + $0x1298] sm:$0xff]
    %v952 = vld [vmem:[#allocation2 + $0x12a0] sm:$0xff]
    %v953 = vld [vmem:[#allocation2 + $0x12a8] sm:$0xff]
    %v954 = vld [vmem:[#allocation2 + $0x12b0] sm:$0xff]
    %v955 = vld [vmem:[#allocation2 + $0x12b8] sm:$0xff]
    %v956 = vld [vmem:[#allocation2 + $0x12c0] sm:$0xff]
    %v957 = vld [vmem:[#allocation2 + $0x12c8] sm:$0xff]
    %v958 = vld [vmem:[#allocation2 + $0x12d0] sm:$0xff]
    %v959 = vld [vmem:[#allocation2 + $0x12d8] sm:$0xff]
    %v960 = vld [vmem:[#allocation2 + $0x12e0] sm:$0xff]
    %v961 = vld [vmem:[#allocation2 + $0x12e8] sm:$0xff]
    %v962 = vld [vmem:[#allocation2 + $0x12f0] sm:$0xff]
    %v963 = vld [vmem:[#allocation2 + $0x12f8] sm:$0xff]
    %v964 = vld [vmem:[#allocation2 + $0x1300] sm:$0xff]
    %v965 = vld [vmem:[#allocation2 + $0x1308] sm:$0xff]
    %v966 = vld [vmem:[#allocation2 + $0x1310] sm:$0xff]
    %v967 = vld [vmem:[#allocation2 + $0x1318] sm:$0xff]
    %v968 = vld [vmem:[#allocation2 + $0x1320] sm:$0xff]
    %v969 = vld [vmem:[#allocation2 + $0x1328] sm:$0xff]
    %v970 = vld [vmem:[#allocation2 + $0x1330] sm:$0xff]
    %v971 = vld [vmem:[#allocation2 + $0x1338] sm:$0xff]
    %v972 = vld [vmem:[#allocation2 + $0x1340] sm:$0xff]
    %v973 = vld [vmem:[#allocation2 + $0x1348] sm:$0xff]
    %v974 = vld [vmem:[#allocation2 + $0x1350] sm:$0xff]
    %v975 = vld [vmem:[#allocation2 + $0x1358] sm:$0xff]
    %v976 = vld [vmem:[#allocation2 + $0x1360] sm:$0xff]
    %v977 = vld [vmem:[#allocation2 + $0x1368] sm:$0xff]
    %v978 = vld [vmem:[#allocation2 + $0x1370] sm:$0xff]
    %v979 = vld [vmem:[#allocation2 + $0x1378] sm:$0xff]
    %v980 = vld [vmem:[#allocation2 + $0x1380] sm:$0xff]
    %v981 = vld [vmem:[#allocation2 + $0x1388] sm:$0xff]
    %v982 = vld [vmem:[#allocation2 + $0x1390] sm:$0xff]
    %v983 = vld [vmem:[#allocation2 + $0x1398] sm:$0xff]
    %v984 = vld [vmem:[#allocation2 + $0x13a0] sm:$0xff]
    %v985 = vld [vmem:[#allocation2 + $0x13a8] sm:$0xff]
    %v986 = vld [vmem:[#allocation2 + $0x13b0] sm:$0xff]
    %v987 = vld [vmem:[#allocation2 + $0x13b8] sm:$0xff]
    %v988 = vld [vmem:[#allocation2 + $0x13c0] sm:$0xff]
    %v989 = vld [vmem:[#allocation2 + $0x13c8] sm:$0xff]
    %v990 = vld [vmem:[#allocation2 + $0x13d0] sm:$0xff]
    %v991 = vld [vmem:[#allocation2 + $0x13d8] sm:$0xff]
    %v992 = vld [vmem:[#allocation2 + $0x13e0] sm:$0xff]
    %v993 = vld [vmem:[#allocation2 + $0x13e8] sm:$0xff]
    %v994 = vld [vmem:[#allocation2 + $0x13f0] sm:$0xff]
    %v995 = vld [vmem:[#allocation2 + $0x13f8] sm:$0xff]
    %v996 = vld [vmem:[#allocation2 + $0x1400] sm:$0xff]
    %v997 = vld [vmem:[#allocation2 + $0x1408] sm:$0xff]
    %v998 = vld [vmem:[#allocation2 + $0x1410] sm:$0xff]
    %v999 = vld [vmem:[#allocation2 + $0x1418] sm:$0xff]
    %v1000 = vld [vmem:[#allocation2 + $0x1420] sm:$0xff]
    %v1001 = vld [vmem:[#allocation2 + $0x1428] sm:$0xff]
    %v1002 = vld [vmem:[#allocation2 + $0x1430] sm:$0xff]
    %v1003 = vld [vmem:[#allocation2 + $0x1438] sm:$0xff]
    %v1004 = vld [vmem:[#allocation2 + $0x1440] sm:$0xff]
    %v1005 = vld [vmem:[#allocation2 + $0x1448] sm:$0xff]
    %v1006 = vld [vmem:[#allocation2 + $0x1450] sm:$0xff]
    %v1007 = vld [vmem:[#allocation2 + $0x1458] sm:$0xff]
    %v1008 = vld [vmem:[#allocation2 + $0x1460] sm:$0xff]
    %v1009 = vld [vmem:[#allocation2 + $0x1468] sm:$0xff]
    %v1010 = vld [vmem:[#allocation2 + $0x1470] sm:$0xff]
    %v1011 = vld [vmem:[#allocation2 + $0x1478] sm:$0xff]
    %v1012 = vld [vmem:[#allocation2 + $0x1480] sm:$0xff]
    %v1013 = vld [vmem:[#allocation2 + $0x1488] sm:$0xff]
    %v1014 = vld [vmem:[#allocation2 + $0x1490] sm:$0xff]
    %v1015 = vld [vmem:[#allocation2 + $0x1498] sm:$0xff]
    %v1016 = vld [vmem:[#allocation2 + $0x14a0] sm:$0xff]
    %v1017 = vld [vmem:[#allocation2 + $0x14a8] sm:$0xff]
    %v1018 = vld [vmem:[#allocation2 + $0x14b0] sm:$0xff]
    %v1019 = vld [vmem:[#allocation2 + $0x14b8] sm:$0xff]
    %v1020 = vld [vmem:[#allocation2 + $0x14c0] sm:$0xff]
    %v1021 = vld [vmem:[#allocation2 + $0x14c8] sm:$0xff]
    %v1022 = vld [vmem:[#allocation2 + $0x14d0] sm:$0xff]
    %v1023 = vld [vmem:[#allocation2 + $0x14d8] sm:$0xff]
    %v1024 = vld [vmem:[#allocation2 + $0x14e0] sm:$0xff]
    %v1025 = vld [vmem:[#allocation2 + $0x14e8] sm:$0xff]
    %v1026 = vld [vmem:[#allocation2 + $0x14f0] sm:$0xff]
    %v1027 = vld [vmem:[#allocation2 + $0x14f8] sm:$0xff]
    %v1028 = vld [vmem:[#allocation2 + $0x1500] sm:$0xff]
    %v1029 = vld [vmem:[#allocation2 + $0x1508] sm:$0xff]
    %v1030 = vld [vmem:[#allocation2 + $0x1510] sm:$0xff]
    %v1031 = vld [vmem:[#allocation2 + $0x1518] sm:$0xff]
    %v1032 = vld [vmem:[#allocation2 + $0x1520] sm:$0xff]
    %v1033 = vld [vmem:[#allocation2 + $0x1528] sm:$0xff]
    %v1034 = vld [vmem:[#allocation2 + $0x1530] sm:$0xff]
    %v1035 = vld [vmem:[#allocation2 + $0x1538] sm:$0xff]
    %v1036 = vld [vmem:[#allocation2 + $0x1540] sm:$0xff]
    %v1037 = vld [vmem:[#allocation2 + $0x1548] sm:$0xff]
    %v1038 = vld [vmem:[#allocation2 + $0x1550] sm:$0xff]
    %v1039 = vld [vmem:[#allocation2 + $0x1558] sm:$0xff]
    %v1040 = vld [vmem:[#allocation2 + $0x1560] sm:$0xff]
    %v1041 = vld [vmem:[#allocation2 + $0x1568] sm:$0xff]
    %v1042 = vld [vmem:[#allocation2 + $0x1570] sm:$0xff]
    %v1043 = vld [vmem:[#allocation2 + $0x1578] sm:$0xff]
    %v1044 = vld [vmem:[#allocation2 + $0x1580] sm:$0xff]
    %v1045 = vld [vmem:[#allocation2 + $0x1588] sm:$0xff]
    %v1046 = vld [vmem:[#allocation2 + $0x1590] sm:$0xff]
    %v1047 = vld [vmem:[#allocation2 + $0x1598] sm:$0xff]
    %v1048 = vld [vmem:[#allocation2 + $0x15a0] sm:$0xff]
    %v1049 = vld [vmem:[#allocation2 + $0x15a8] sm:$0xff]
    %v1050 = vld [vmem:[#allocation2 + $0x15b0] sm:$0xff]
    %v1051 = vld [vmem:[#allocation2 + $0x15b8] sm:$0xff]
    %v1052 = vld [vmem:[#allocation2 + $0x15c0] sm:$0xff]
    %v1053 = vld [vmem:[#allocation2 + $0x15c8] sm:$0xff]
    %v1054 = vld [vmem:[#allocation2 + $0x15d0] sm:$0xff]
    %v1055 = vld [vmem:[#allocation2 + $0x15d8] sm:$0xff]
    %v1056 = vld [vmem:[#allocation2 + $0x15e0] sm:$0xff]
    %v1057 = vld [vmem:[#allocation2 + $0x15e8] sm:$0xff]
    %v1058 = vld [vmem:[#allocation2 + $0x15f0] sm:$0xff]
    %v1059 = vld [vmem:[#allocation2 + $0x15f8] sm:$0xff]
    %v1060 = vld [vmem:[#allocation2 + $0x1600] sm:$0xff]
    %v1061 = vld [vmem:[#allocation2 + $0x1608] sm:$0xff]
    %v1062 = vld [vmem:[#allocation2 + $0x1610] sm:$0xff]
    %v1063 = vld [vmem:[#allocation2 + $0x1618] sm:$0xff]
    %v1064 = vld [vmem:[#allocation2 + $0x1620] sm:$0xff]
    %v1065 = vld [vmem:[#allocation2 + $0x1628] sm:$0xff]
    %v1066 = vld [vmem:[#allocation2 + $0x1630] sm:$0xff]
    %v1067 = vld [vmem:[#allocation2 + $0x1638] sm:$0xff]
    %v1068 = vld [vmem:[#allocation2 + $0x1640] sm:$0xff]
    %v1069 = vld [vmem:[#allocation2 + $0x1648] sm:$0xff]
    %v1070 = vld [vmem:[#allocation2 + $0x1650] sm:$0xff]
    %v1071 = vld [vmem:[#allocation2 + $0x1658] sm:$0xff]
    %v1072 = vld [vmem:[#allocation2 + $0x1660] sm:$0xff]
    %v1073 = vld [vmem:[#allocation2 + $0x1668] sm:$0xff]
    %v1074 = vld [vmem:[#allocation2 + $0x1670] sm:$0xff]
    %v1075 = vld [vmem:[#allocation2 + $0x1678] sm:$0xff]
    %v1076 = vld [vmem:[#allocation2 + $0x1680] sm:$0xff]
    %v1077 = vld [vmem:[#allocation2 + $0x1688] sm:$0xff]
    %v1078 = vld [vmem:[#allocation2 + $0x1690] sm:$0xff]
    %v1079 = vld [vmem:[#allocation2 + $0x1698] sm:$0xff]
    %v1080 = vld [vmem:[#allocation2 + $0x16a0] sm:$0xff]
    %v1081 = vld [vmem:[#allocation2 + $0x16a8] sm:$0xff]
    %v1082 = vld [vmem:[#allocation2 + $0x16b0] sm:$0xff]
    %v1083 = vld [vmem:[#allocation2 + $0x16b8] sm:$0xff]
    %v1084 = vld [vmem:[#allocation2 + $0x16c0] sm:$0xff]
    %v1085 = vld [vmem:[#allocation2 + $0x16c8] sm:$0xff]
    %v1086 = vld [vmem:[#allocation2 + $0x16d0] sm:$0xff]
    %v1087 = vld [vmem:[#allocation2 + $0x16d8] sm:$0xff]
    %v1088 = vld [vmem:[#allocation2 + $0x16e0] sm:$0xff]
    %v1089 = vld [vmem:[#allocation2 + $0x16e8] sm:$0xff]
    %v1090 = vld [vmem:[#allocation2 + $0x16f0] sm:$0xff]
    %v1091 = vld [vmem:[#allocation2 + $0x16f8] sm:$0xff]
    %v1092 = vld [vmem:[#allocation2 + $0x1700] sm:$0xff]
    %v1093 = vld [vmem:[#allocation2 + $0x1708] sm:$0xff]
    %v1094 = vld [vmem:[#allocation2 + $0x1710] sm:$0xff]
    %v1095 = vld [vmem:[#allocation2 + $0x1718] sm:$0xff]
    %v1096 = vld [vmem:[#allocation2 + $0x1720] sm:$0xff]
    %v1097 = vld [vmem:[#allocation2 + $0x1728] sm:$0xff]
    %v1098 = vld [vmem:[#allocation2 + $0x1730] sm:$0xff]
    %v1099 = vld [vmem:[#allocation2 + $0x1738] sm:$0xff]
    %v1100 = vld [vmem:[#allocation2 + $0x1740] sm:$0xff]
    %v1101 = vld [vmem:[#allocation2 + $0x1748] sm:$0xff]
    %v1102 = vld [vmem:[#allocation2 + $0x1750] sm:$0xff]
    %v1103 = vld [vmem:[#allocation2 + $0x1758] sm:$0xff]
    %v1104 = vld [vmem:[#allocation2 + $0x1760] sm:$0xff]
    %v1105 = vld [vmem:[#allocation2 + $0x1768] sm:$0xff]
    %v1106 = vld [vmem:[#allocation2 + $0x1770] sm:$0xff]
    %v1107 = vld [vmem:[#allocation2 + $0x1778] sm:$0xff]
    %v1108 = vld [vmem:[#allocation2 + $0x1780] sm:$0xff]
    %v1109 = vld [vmem:[#allocation2 + $0x1788] sm:$0xff]
    %v1110 = vld [vmem:[#allocation2 + $0x1790] sm:$0xff]
    %v1111 = vld [vmem:[#allocation2 + $0x1798] sm:$0xff]
    %v1112 = vld [vmem:[#allocation2 + $0x17a0] sm:$0xff]
    %v1113 = vld [vmem:[#allocation2 + $0x17a8] sm:$0xff]
    %v1114 = vld [vmem:[#allocation2 + $0x17b0] sm:$0xff]
    %v1115 = vld [vmem:[#allocation2 + $0x17b8] sm:$0xff]
    %v1116 = vld [vmem:[#allocation2 + $0x17c0] sm:$0xff]
    %v1117 = vld [vmem:[#allocation2 + $0x17c8] sm:$0xff]
    %v1118 = vld [vmem:[#allocation2 + $0x17d0] sm:$0xff]
    %v1119 = vld [vmem:[#allocation2 + $0x17d8] sm:$0xff]
    %v1120 = vld [vmem:[#allocation2 + $0x17e0] sm:$0xff]
    %v1121 = vld [vmem:[#allocation2 + $0x17e8] sm:$0xff]
    %v1122 = vld [vmem:[#allocation2 + $0x17f0] sm:$0xff]
    %v1123 = vld [vmem:[#allocation2 + $0x17f8] sm:$0xff]
    %v1124 = vld [vmem:[#allocation2 + $0x1800] sm:$0xff]
    %v1125 = vld [vmem:[#allocation2 + $0x1808] sm:$0xff]
    %v1126 = vld [vmem:[#allocation2 + $0x1810] sm:$0xff]
    %v1127 = vld [vmem:[#allocation2 + $0x1818] sm:$0xff]
    %v1128 = vld [vmem:[#allocation2 + $0x1820] sm:$0xff]
    %v1129 = vld [vmem:[#allocation2 + $0x1828] sm:$0xff]
    %v1130 = vld [vmem:[#allocation2 + $0x1830] sm:$0xff]
    %v1131 = vld [vmem:[#allocation2 + $0x1838] sm:$0xff]
    %v1132 = vld [vmem:[#allocation2 + $0x1840] sm:$0xff]
    %v1133 = vld [vmem:[#allocation2 + $0x1848] sm:$0xff]
    %v1134 = vld [vmem:[#allocation2 + $0x1850] sm:$0xff]
    %v1135 = vld [vmem:[#allocation2 + $0x1858] sm:$0xff]
    %v1136 = vld [vmem:[#allocation2 + $0x1860] sm:$0xff]
    %v1137 = vld [vmem:[#allocation2 + $0x1868] sm:$0xff]
    %v1138 = vld [vmem:[#allocation2 + $0x1870] sm:$0xff]
    %v1139 = vld [vmem:[#allocation2 + $0x1878] sm:$0xff]
    %v1140 = vld [vmem:[#allocation2 + $0x1880] sm:$0xff]
    %v1141 = vld [vmem:[#allocation2 + $0x1888] sm:$0xff]
    %v1142 = vld [vmem:[#allocation2 + $0x1890] sm:$0xff]
    %v1143 = vld [vmem:[#allocation2 + $0x1898] sm:$0xff]
    %v1144 = vld [vmem:[#allocation2 + $0x18a0] sm:$0xff]
    %v1145 = vld [vmem:[#allocation2 + $0x18a8] sm:$0xff]
    %v1146 = vld [vmem:[#allocation2 + $0x18b0] sm:$0xff]
    %v1147 = vld [vmem:[#allocation2 + $0x18b8] sm:$0xff]
    %v1148 = vld [vmem:[#allocation2 + $0x18c0] sm:$0xff]
    %v1149 = vld [vmem:[#allocation2 + $0x18c8] sm:$0xff]
    %v1150 = vld [vmem:[#allocation2 + $0x18d0] sm:$0xff]
    %v1151 = vld [vmem:[#allocation2 + $0x18d8] sm:$0xff]
    %v1152 = vld [vmem:[#allocation2 + $0x18e0] sm:$0xff]
    %v1153 = vld [vmem:[#allocation2 + $0x18e8] sm:$0xff]
    %v1154 = vld [vmem:[#allocation2 + $0x18f0] sm:$0xff]
    %v1155 = vld [vmem:[#allocation2 + $0x18f8] sm:$0xff]
    %v1156 = vld [vmem:[#allocation2 + $0x1900] sm:$0xff]
    %v1157 = vld [vmem:[#allocation2 + $0x1908] sm:$0xff]
    %v1158 = vld [vmem:[#allocation2 + $0x1910] sm:$0xff]
    %v1159 = vld [vmem:[#allocation2 + $0x1918] sm:$0xff]
    %v1160 = vld [vmem:[#allocation2 + $0x1920] sm:$0xff]
    %v1161 = vld [vmem:[#allocation2 + $0x1928] sm:$0xff]
    %v1162 = vld [vmem:[#allocation2 + $0x1930] sm:$0xff]
    %v1163 = vld [vmem:[#allocation2 + $0x1938] sm:$0xff]
    %v1164 = vld [vmem:[#allocation2 + $0x1940] sm:$0xff]
    %v1165 = vld [vmem:[#allocation2 + $0x1948] sm:$0xff]
    %v1166 = vld [vmem:[#allocation2 + $0x1950] sm:$0xff]
    %v1167 = vld [vmem:[#allocation2 + $0x1958] sm:$0xff]
    %v1168 = vld [vmem:[#allocation2 + $0x1960] sm:$0xff]
    %v1169 = vld [vmem:[#allocation2 + $0x1968] sm:$0xff]
    %v1170 = vld [vmem:[#allocation2 + $0x1970] sm:$0xff]
    %v1171 = vld [vmem:[#allocation2 + $0x1978] sm:$0xff]
    %v1172 = vld [vmem:[#allocation2 + $0x1980] sm:$0xff]
    %v1173 = vld [vmem:[#allocation2 + $0x1988] sm:$0xff]
    %v1174 = vld [vmem:[#allocation2 + $0x1990] sm:$0xff]
    %v1175 = vld [vmem:[#allocation2 + $0x1998] sm:$0xff]
    %v1176 = vld [vmem:[#allocation2 + $0x19a0] sm:$0xff]
    %v1177 = vld [vmem:[#allocation2 + $0x19a8] sm:$0xff]
    %v1178 = vld [vmem:[#allocation2 + $0x19b0] sm:$0xff]
    %v1179 = vld [vmem:[#allocation2 + $0x19b8] sm:$0xff]
    %v1180 = vld [vmem:[#allocation2 + $0x19c0] sm:$0xff]
    %v1181 = vld [vmem:[#allocation2 + $0x19c8] sm:$0xff]
    %v1182 = vld [vmem:[#allocation2 + $0x19d0] sm:$0xff]
    %v1183 = vld [vmem:[#allocation2 + $0x19d8] sm:$0xff]
    %v1184 = vld [vmem:[#allocation2 + $0x19e0] sm:$0xff]
    %v1185 = vld [vmem:[#allocation2 + $0x19e8] sm:$0xff]
    %v1186 = vld [vmem:[#allocation2 + $0x19f0] sm:$0xff]
    %v1187 = vld [vmem:[#allocation2 + $0x19f8] sm:$0xff]
    %v1188 = vld [vmem:[#allocation2 + $0x1a00] sm:$0xff]
    %v1189 = vld [vmem:[#allocation2 + $0x1a08] sm:$0xff]
    %v1190 = vld [vmem:[#allocation2 + $0x1a10] sm:$0xff]
    %v1191 = vld [vmem:[#allocation2 + $0x1a18] sm:$0xff]
    %v1192 = vld [vmem:[#allocation2 + $0x1a20] sm:$0xff]
    %v1193 = vld [vmem:[#allocation2 + $0x1a28] sm:$0xff]
    %v1194 = vld [vmem:[#allocation2 + $0x1a30] sm:$0xff]
    %v1195 = vld [vmem:[#allocation2 + $0x1a38] sm:$0xff]
    %v1196 = vld [vmem:[#allocation2 + $0x1a40] sm:$0xff]
    %v1197 = vld [vmem:[#allocation2 + $0x1a48] sm:$0xff]
    %v1198 = vld [vmem:[#allocation2 + $0x1a50] sm:$0xff]
    %v1199 = vld [vmem:[#allocation2 + $0x1a58] sm:$0xff]
    %v1200 = vld [vmem:[#allocation2 + $0x1a60] sm:$0xff]
    %v1201 = vld [vmem:[#allocation2 + $0x1a68] sm:$0xff]
    %v1202 = vld [vmem:[#allocation2 + $0x1a70] sm:$0xff]
    %v1203 = vld [vmem:[#allocation2 + $0x1a78] sm:$0xff]
    %v1204 = vld [vmem:[#allocation2 + $0x1a80] sm:$0xff]
    %v1205 = vld [vmem:[#allocation2 + $0x1a88] sm:$0xff]
    %v1206 = vld [vmem:[#allocation2 + $0x1a90] sm:$0xff]
    %v1207 = vld [vmem:[#allocation2 + $0x1a98] sm:$0xff]
    %v1208 = vld [vmem:[#allocation2 + $0x1aa0] sm:$0xff]
    %v1209 = vld [vmem:[#allocation2 + $0x1aa8] sm:$0xff]
    %v1210 = vld [vmem:[#allocation2 + $0x1ab0] sm:$0xff]
    %v1211 = vld [vmem:[#allocation2 + $0x1ab8] sm:$0xff]
    %v1212 = vld [vmem:[#allocation2 + $0x1ac0] sm:$0xff]
    %v1213 = vld [vmem:[#allocation2 + $0x1ac8] sm:$0xff]
    %v1214 = vld [vmem:[#allocation2 + $0x1ad0] sm:$0xff]
    %v1215 = vld [vmem:[#allocation2 + $0x1ad8] sm:$0xff]
    %v1216 = vld [vmem:[#allocation2 + $0x1ae0] sm:$0xff]
    %v1217 = vld [vmem:[#allocation2 + $0x1ae8] sm:$0xff]
    %v1218 = vld [vmem:[#allocation2 + $0x1af0] sm:$0xff]
    %v1219 = vld [vmem:[#allocation2 + $0x1af8] sm:$0xff]
    %v1220 = vld [vmem:[#allocation2 + $0x1b00] sm:$0xff]
    %v1221 = vld [vmem:[#allocation2 + $0x1b08] sm:$0xff]
    %v1222 = vld [vmem:[#allocation2 + $0x1b10] sm:$0xff]
    %v1223 = vld [vmem:[#allocation2 + $0x1b18] sm:$0xff]
    %v1224 = vld [vmem:[#allocation2 + $0x1b20] sm:$0xff]
    %v1225 = vld [vmem:[#allocation2 + $0x1b28] sm:$0xff]
    %v1226 = vld [vmem:[#allocation2 + $0x1b30] sm:$0xff]
    %v1227 = vld [vmem:[#allocation2 + $0x1b38] sm:$0xff]
    %v1228 = vld [vmem:[#allocation2 + $0x1b40] sm:$0xff]
    %v1229 = vld [vmem:[#allocation2 + $0x1b48] sm:$0xff]
    %v1230 = vld [vmem:[#allocation2 + $0x1b50] sm:$0xff]
    %v1231 = vld [vmem:[#allocation2 + $0x1b58] sm:$0xff]
    %v1232 = vld [vmem:[#allocation2 + $0x1b60] sm:$0xff]
    %v1233 = vld [vmem:[#allocation2 + $0x1b68] sm:$0xff]
    %v1234 = vld [vmem:[#allocation2 + $0x1b70] sm:$0xff]
    %v1235 = vld [vmem:[#allocation2 + $0x1b78] sm:$0xff]
    %v1236 = vld [vmem:[#allocation2 + $0x1b80] sm:$0xff]
    %v1237 = vld [vmem:[#allocation2 + $0x1b88] sm:$0xff]
    %v1238 = vld [vmem:[#allocation2 + $0x1b90] sm:$0xff]
    %v1239 = vld [vmem:[#allocation2 + $0x1b98] sm:$0xff]
    %v1240 = vld [vmem:[#allocation2 + $0x1ba0] sm:$0xff]
    %v1241 = vld [vmem:[#allocation2 + $0x1ba8] sm:$0xff]
    %v1242 = vld [vmem:[#allocation2 + $0x1bb0] sm:$0xff]
    %v1243 = vld [vmem:[#allocation2 + $0x1bb8] sm:$0xff]
    %v1244 = vld [vmem:[#allocation2 + $0x1bc0] sm:$0xff]
    %v1245 = vld [vmem:[#allocation2 + $0x1bc8] sm:$0xff]
    %v1246 = vld [vmem:[#allocation2 + $0x1bd0] sm:$0xff]
    %v1247 = vld [vmem:[#allocation2 + $0x1bd8] sm:$0xff]
    %v1248 = vld [vmem:[#allocation2 + $0x1be0] sm:$0xff]
    %v1249 = vld [vmem:[#allocation2 + $0x1be8] sm:$0xff]
    %v1250 = vld [vmem:[#allocation2 + $0x1bf0] sm:$0xff]
    %v1251 = vld [vmem:[#allocation2 + $0x1bf8] sm:$0xff]
    %v1252 = vld [vmem:[#allocation2 + $0x1c00] sm:$0xff]
    %v1253 = vld [vmem:[#allocation2 + $0x1c08] sm:$0xff]
    %v1254 = vld [vmem:[#allocation2 + $0x1c10] sm:$0xff]
    %v1255 = vld [vmem:[#allocation2 + $0x1c18] sm:$0xff]
    %v1256 = vld [vmem:[#allocation2 + $0x1c20] sm:$0xff]
    %v1257 = vld [vmem:[#allocation2 + $0x1c28] sm:$0xff]
    %v1258 = vld [vmem:[#allocation2 + $0x1c30] sm:$0xff]
    %v1259 = vld [vmem:[#allocation2 + $0x1c38] sm:$0xff]
    %v1260 = vld [vmem:[#allocation2 + $0x1c40] sm:$0xff]
    %v1261 = vld [vmem:[#allocation2 + $0x1c48] sm:$0xff]
    %v1262 = vld [vmem:[#allocation2 + $0x1c50] sm:$0xff]
    %v1263 = vld [vmem:[#allocation2 + $0x1c58] sm:$0xff]
    %v1264 = vld [vmem:[#allocation2 + $0x1c60] sm:$0xff]
    %v1265 = vld [vmem:[#allocation2 + $0x1c68] sm:$0xff]
    %v1266 = vld [vmem:[#allocation2 + $0x1c70] sm:$0xff]
    %v1267 = vld [vmem:[#allocation2 + $0x1c78] sm:$0xff]
    %v1268 = vld [vmem:[#allocation2 + $0x1c80] sm:$0xff]
    %v1269 = vld [vmem:[#allocation2 + $0x1c88] sm:$0xff]
    %v1270 = vld [vmem:[#allocation2 + $0x1c90] sm:$0xff]
    %v1271 = vld [vmem:[#allocation2 + $0x1c98] sm:$0xff]
    %v1272 = vld [vmem:[#allocation2 + $0x1ca0] sm:$0xff]
    %v1273 = vld [vmem:[#allocation2 + $0x1ca8] sm:$0xff]
    %v1274 = vld [vmem:[#allocation2 + $0x1cb0] sm:$0xff]
    %v1275 = vld [vmem:[#allocation2 + $0x1cb8] sm:$0xff]
    %v1276 = vld [vmem:[#allocation2 + $0x1cc0] sm:$0xff]
    %v1277 = vld [vmem:[#allocation2 + $0x1cc8] sm:$0xff]
    %v1278 = vld [vmem:[#allocation2 + $0x1cd0] sm:$0xff]
    %v1279 = vld [vmem:[#allocation2 + $0x1cd8] sm:$0xff]
    %v1280 = vld [vmem:[#allocation2 + $0x1ce0] sm:$0xff]
    %v1281 = vld [vmem:[#allocation2 + $0x1ce8] sm:$0xff]
    %v1282 = vld [vmem:[#allocation2 + $0x1cf0] sm:$0xff]
    %v1283 = vld [vmem:[#allocation2 + $0x1cf8] sm:$0xff]
    %v1284 = vld [vmem:[#allocation2 + $0x1d00] sm:$0xff]
    %v1285 = vld [vmem:[#allocation2 + $0x1d08] sm:$0xff]
    %v1286 = vld [vmem:[#allocation2 + $0x1d10] sm:$0xff]
    %v1287 = vld [vmem:[#allocation2 + $0x1d18] sm:$0xff]
    %v1288 = vld [vmem:[#allocation2 + $0x1d20] sm:$0xff]
    %v1289 = vld [vmem:[#allocation2 + $0x1d28] sm:$0xff]
    %v1290 = vld [vmem:[#allocation2 + $0x1d30] sm:$0xff]
    %v1291 = vld [vmem:[#allocation2 + $0x1d38] sm:$0xff]
    %v1292 = vld [vmem:[#allocation2 + $0x1d40] sm:$0xff]
    %v1293 = vld [vmem:[#allocation2 + $0x1d48] sm:$0xff]
    %v1294 = vld [vmem:[#allocation2 + $0x1d50] sm:$0xff]
    %v1295 = vld [vmem:[#allocation2 + $0x1d58] sm:$0xff]
    %v1296 = vld [vmem:[#allocation2 + $0x1d60] sm:$0xff]
    %v1297 = vld [vmem:[#allocation2 + $0x1d68] sm:$0xff]
    %v1298 = vld [vmem:[#allocation2 + $0x1d70] sm:$0xff]
    %v1299 = vld [vmem:[#allocation2 + $0x1d78] sm:$0xff]
    %v1300 = vld [vmem:[#allocation2 + $0x1d80] sm:$0xff]
    %v1301 = vld [vmem:[#allocation2 + $0x1d88] sm:$0xff]
    %v1302 = vld [vmem:[#allocation2 + $0x1d90] sm:$0xff]
    %v1303 = vld [vmem:[#allocation2 + $0x1d98] sm:$0xff]
    %v1304 = vld [vmem:[#allocation2 + $0x1da0] sm:$0xff]
    %v1305 = vld [vmem:[#allocation2 + $0x1da8] sm:$0xff]
    %v1306 = vld [vmem:[#allocation2 + $0x1db0] sm:$0xff]
    %v1307 = vld [vmem:[#allocation2 + $0x1db8] sm:$0xff]
    %v1308 = vld [vmem:[#allocation2 + $0x1dc0] sm:$0xff]
    %v1309 = vld [vmem:[#allocation2 + $0x1dc8] sm:$0xff]
    %v1310 = vld [vmem:[#allocation2 + $0x1dd0] sm:$0xff]
    %v1311 = vld [vmem:[#allocation2 + $0x1dd8] sm:$0xff]
    %v1312 = vld [vmem:[#allocation2 + $0x1de0] sm:$0xff]
    %v1313 = vld [vmem:[#allocation2 + $0x1de8] sm:$0xff]
    %v1314 = vld [vmem:[#allocation2 + $0x1df0] sm:$0xff]
    %v1315 = vld [vmem:[#allocation2 + $0x1df8] sm:$0xff]
    %v1316 = vld [vmem:[#allocation2 + $0x1e00] sm:$0xff]
    %v1317 = vld [vmem:[#allocation2 + $0x1e08] sm:$0xff]
    %v1318 = vld [vmem:[#allocation2 + $0x1e10] sm:$0xff]
    %v1319 = vld [vmem:[#allocation2 + $0x1e18] sm:$0xff]
    %v1320 = vld [vmem:[#allocation2 + $0x1e20] sm:$0xff]
    %v1321 = vld [vmem:[#allocation2 + $0x1e28] sm:$0xff]
    %v1322 = vld [vmem:[#allocation2 + $0x1e30] sm:$0xff]
    %v1323 = vld [vmem:[#allocation2 + $0x1e38] sm:$0xff]
    %v1324 = vld [vmem:[#allocation2 + $0x1e40] sm:$0xff]
    %v1325 = vld [vmem:[#allocation2 + $0x1e48] sm:$0xff]
    %v1326 = vld [vmem:[#allocation2 + $0x1e50] sm:$0xff]
    %v1327 = vld [vmem:[#allocation2 + $0x1e58] sm:$0xff]
    %v1328 = vld [vmem:[#allocation2 + $0x1e60] sm:$0xff]
    %v1329 = vld [vmem:[#allocation2 + $0x1e68] sm:$0xff]
    %v1330 = vld [vmem:[#allocation2 + $0x1e70] sm:$0xff]
    %v1331 = vld [vmem:[#allocation2 + $0x1e78] sm:$0xff]
    %v1332 = vld [vmem:[#allocation2 + $0x1e80] sm:$0xff]
    %v1333 = vld [vmem:[#allocation2 + $0x1e88] sm:$0xff]
    %v1334 = vld [vmem:[#allocation2 + $0x1e90] sm:$0xff]
    %v1335 = vld [vmem:[#allocation2 + $0x1e98] sm:$0xff]
    %v1336 = vld [vmem:[#allocation2 + $0x1ea0] sm:$0xff]
    %v1337 = vld [vmem:[#allocation2 + $0x1ea8] sm:$0xff]
    %v1338 = vld [vmem:[#allocation2 + $0x1eb0] sm:$0xff]
    %v1339 = vld [vmem:[#allocation2 + $0x1eb8] sm:$0xff]
    %v1340 = vld [vmem:[#allocation2 + $0x1ec0] sm:$0xff]
    %v1341 = vld [vmem:[#allocation2 + $0x1ec8] sm:$0xff]
    %v1342 = vld [vmem:[#allocation2 + $0x1ed0] sm:$0xff]
    %v1343 = vld [vmem:[#allocation2 + $0x1ed8] sm:$0xff]
    %v1344 = vld [vmem:[#allocation2 + $0x1ee0] sm:$0xff]
    %v1345 = vld [vmem:[#allocation2 + $0x1ee8] sm:$0xff]
    %v1346 = vld [vmem:[#allocation2 + $0x1ef0] sm:$0xff]
    %v1347 = vld [vmem:[#allocation2 + $0x1ef8] sm:$0xff]
    %v1348 = vld [vmem:[#allocation2 + $0x1f00] sm:$0xff]
    %v1349 = vld [vmem:[#allocation2 + $0x1f08] sm:$0xff]
    %v1350 = vld [vmem:[#allocation2 + $0x1f10] sm:$0xff]
    %v1351 = vld [vmem:[#allocation2 + $0x1f18] sm:$0xff]
    %v1352 = vld [vmem:[#allocation2 + $0x1f20] sm:$0xff]
    %v1353 = vld [vmem:[#allocation2 + $0x1f28] sm:$0xff]
    %v1354 = vld [vmem:[#allocation2 + $0x1f30] sm:$0xff]
    %v1355 = vld [vmem:[#allocation2 + $0x1f38] sm:$0xff]
    %v1356 = vld [vmem:[#allocation2 + $0x1f40] sm:$0xff]
    %v1357 = vld [vmem:[#allocation2 + $0x1f48] sm:$0xff]
    %v1358 = vld [vmem:[#allocation2 + $0x1f50] sm:$0xff]
    %v1359 = vld [vmem:[#allocation2 + $0x1f58] sm:$0xff]
    %v1360 = vld [vmem:[#allocation2 + $0x1f60] sm:$0xff]
    %v1361 = vld [vmem:[#allocation2 + $0x1f68] sm:$0xff]
    %v1362 = vld [vmem:[#allocation2 + $0x1f70] sm:$0xff]
    %v1363 = vld [vmem:[#allocation2 + $0x1f78] sm:$0xff]
    %v1364 = vld [vmem:[#allocation2 + $0x1f80] sm:$0xff]
    %v1365 = vld [vmem:[#allocation2 + $0x1f88] sm:$0xff]
    %v1366 = vld [vmem:[#allocation2 + $0x1f90] sm:$0xff]
    %v1367 = vld [vmem:[#allocation2 + $0x1f98] sm:$0xff]
    %v1368 = vld [vmem:[#allocation2 + $0x1fa0] sm:$0xff]
    %v1369 = vld [vmem:[#allocation2 + $0x1fa8] sm:$0xff]
    %v1370 = vld [vmem:[#allocation2 + $0x1fb0] sm:$0xff]
    %v1371 = vld [vmem:[#allocation2 + $0x1fb8] sm:$0xff]
    %v1372 = vld [vmem:[#allocation2 + $0x1fc0] sm:$0xff]
    %v1373 = vld [vmem:[#allocation2 + $0x1fc8] sm:$0xff]
    %v1374 = vld [vmem:[#allocation2 + $0x1fd0] sm:$0xff]
    %v1375 = vld [vmem:[#allocation2 + $0x1fd8] sm:$0xff]
    %v1376 = vld [vmem:[#allocation2 + $0x1fe0] sm:$0xff]
    %v1377 = vld [vmem:[#allocation2 + $0x1fe8] sm:$0xff]
    %v1378 = vld [vmem:[#allocation2 + $0x1ff0] sm:$0xff]
    %v1379 = vld [vmem:[#allocation2 + $0x1ff8] sm:$0xff]
    %v1380 = vld [vmem:[#allocation2 + $0x2000] sm:$0xff]
    %v1381 = vld [vmem:[#allocation2 + $0x2008] sm:$0xff]
    %v1382 = vld [vmem:[#allocation2 + $0x2010] sm:$0xff]
    %v1383 = vld [vmem:[#allocation2 + $0x2018] sm:$0xff]
    %v1384 = vld [vmem:[#allocation2 + $0x2020] sm:$0xff]
    %v1385 = vld [vmem:[#allocation2 + $0x2028] sm:$0xff]
    %v1386 = vld [vmem:[#allocation2 + $0x2030] sm:$0xff]
    %v1387 = vld [vmem:[#allocation2 + $0x2038] sm:$0xff]
    %v1388 = vld [vmem:[#allocation2 + $0x2040] sm:$0xff]
    %v1389 = vld [vmem:[#allocation2 + $0x2048] sm:$0xff]
    %v1390 = vld [vmem:[#allocation2 + $0x2050] sm:$0xff]
    %v1391 = vld [vmem:[#allocation2 + $0x2058] sm:$0xff]
    %v1392 = vld [vmem:[#allocation2 + $0x2060] sm:$0xff]
    %v1393 = vld [vmem:[#allocation2 + $0x2068] sm:$0xff]
    %v1394 = vld [vmem:[#allocation2 + $0x2070] sm:$0xff]
    %v1395 = vld [vmem:[#allocation2 + $0x2078] sm:$0xff]
    %v1396 = vld [vmem:[#allocation2 + $0x2080] sm:$0xff]
    %v1397 = vld [vmem:[#allocation2 + $0x2088] sm:$0xff]
    %v1398 = vld [vmem:[#allocation2 + $0x2090] sm:$0xff]
    %v1399 = vld [vmem:[#allocation2 + $0x2098] sm:$0xff]
    %v1400 = vld [vmem:[#allocation2 + $0x20a0] sm:$0xff]
    %v1401 = vld [vmem:[#allocation2 + $0x20a8] sm:$0xff]
    %v1402 = vld [vmem:[#allocation2 + $0x20b0] sm:$0xff]
    %v1403 = vld [vmem:[#allocation2 + $0x20b8] sm:$0xff]
    %v1404 = vld [vmem:[#allocation2 + $0x20c0] sm:$0xff]
    %v1405 = vld [vmem:[#allocation2 + $0x20c8] sm:$0xff]
    %v1406 = vld [vmem:[#allocation2 + $0x20d0] sm:$0xff]
    %v1407 = vld [vmem:[#allocation2 + $0x20d8] sm:$0xff]
    %v1408 = vld [vmem:[#allocation2 + $0x20e0] sm:$0xff]
    %v1409 = vld [vmem:[#allocation2 + $0x20e8] sm:$0xff]
    %v1410 = vld [vmem:[#allocation2 + $0x20f0] sm:$0xff]
    %v1411 = vld [vmem:[#allocation2 + $0x20f8] sm:$0xff]
    %v1412 = vld [vmem:[#allocation2 + $0x2100] sm:$0xff]
    %v1413 = vld [vmem:[#allocation2 + $0x2108] sm:$0xff]
    %v1414 = vld [vmem:[#allocation2 + $0x2110] sm:$0xff]
    %v1415 = vld [vmem:[#allocation2 + $0x2118] sm:$0xff]
    %v1416 = vld [vmem:[#allocation2 + $0x2120] sm:$0xff]
    %v1417 = vld [vmem:[#allocation2 + $0x2128] sm:$0xff]
    %v1418 = vld [vmem:[#allocation2 + $0x2130] sm:$0xff]
    %v1419 = vld [vmem:[#allocation2 + $0x2138] sm:$0xff]
    %v1420 = vld [vmem:[#allocation2 + $0x2140] sm:$0xff]
    %v1421 = vld [vmem:[#allocation2 + $0x2148] sm:$0xff]
    %v1422 = vld [vmem:[#allocation2 + $0x2150] sm:$0xff]
    %v1423 = vld [vmem:[#allocation2 + $0x2158] sm:$0xff]
    %v1424 = vld [vmem:[#allocation2 + $0x2160] sm:$0xff]
    %v1425 = vld [vmem:[#allocation2 + $0x2168] sm:$0xff]
    %v1426 = vld [vmem:[#allocation2 + $0x2170] sm:$0xff]
    %v1427 = vld [vmem:[#allocation2 + $0x2178] sm:$0xff]
    %v1428 = vld [vmem:[#allocation2 + $0x2180] sm:$0xff]
    %v1429 = vld [vmem:[#allocation2 + $0x2188] sm:$0xff]
    %v1430 = vld [vmem:[#allocation2 + $0x2190] sm:$0xff]
    %v1431 = vld [vmem:[#allocation2 + $0x2198] sm:$0xff]
    %v1432 = vld [vmem:[#allocation2 + $0x21a0] sm:$0xff]
    %v1433 = vld [vmem:[#allocation2 + $0x21a8] sm:$0xff]
    %v1434 = vld [vmem:[#allocation2 + $0x21b0] sm:$0xff]
    %v1435 = vld [vmem:[#allocation2 + $0x21b8] sm:$0xff]
    %v1436 = vld [vmem:[#allocation2 + $0x21c0] sm:$0xff]
    %v1437 = vld [vmem:[#allocation2 + $0x21c8] sm:$0xff]
    %v1438 = vld [vmem:[#allocation2 + $0x21d0] sm:$0xff]
    %v1439 = vld [vmem:[#allocation2 + $0x21d8] sm:$0xff]
    %v1440 = vld [vmem:[#allocation2 + $0x21e0] sm:$0xff]
    %v1441 = vld [vmem:[#allocation2 + $0x21e8] sm:$0xff]
    %v1442 = vld [vmem:[#allocation2 + $0x21f0] sm:$0xff]
    %v1443 = vld [vmem:[#allocation2 + $0x21f8] sm:$0xff]
    %v1444 = vld [vmem:[#allocation2 + $0x2200] sm:$0xff]
    %v1445 = vld [vmem:[#allocation2 + $0x2208] sm:$0xff]
    %v1446 = vld [vmem:[#allocation2 + $0x2210] sm:$0xff]
    %v1447 = vld [vmem:[#allocation2 + $0x2218] sm:$0xff]
    %v1448 = vld [vmem:[#allocation2 + $0x2220] sm:$0xff]
    %v1449 = vld [vmem:[#allocation2 + $0x2228] sm:$0xff]
    %v1450 = vld [vmem:[#allocation2 + $0x2230] sm:$0xff]
    %v1451 = vld [vmem:[#allocation2 + $0x2238] sm:$0xff]
    %v1452 = vld [vmem:[#allocation2 + $0x2240] sm:$0xff]
    %v1453 = vld [vmem:[#allocation2 + $0x2248] sm:$0xff]
    %v1454 = vld [vmem:[#allocation2 + $0x2250] sm:$0xff]
    %v1455 = vld [vmem:[#allocation2 + $0x2258] sm:$0xff]
    %v1456 = vld [vmem:[#allocation2 + $0x2260] sm:$0xff]
    %v1457 = vld [vmem:[#allocation2 + $0x2268] sm:$0xff]
    %v1458 = vld [vmem:[#allocation2 + $0x2270] sm:$0xff]
    %v1459 = vld [vmem:[#allocation2 + $0x2278] sm:$0xff]
    %v1460 = vld [vmem:[#allocation2 + $0x2280] sm:$0xff]
    %v1461 = vld [vmem:[#allocation2 + $0x2288] sm:$0xff]
    %v1462 = vld [vmem:[#allocation2 + $0x2290] sm:$0xff]
    %v1463 = vld [vmem:[#allocation2 + $0x2298] sm:$0xff]
    %v1464 = vld [vmem:[#allocation2 + $0x22a0] sm:$0xff]
    %v1465 = vld [vmem:[#allocation2 + $0x22a8] sm:$0xff]
    %v1466 = vld [vmem:[#allocation2 + $0x22b0] sm:$0xff]
    %v1467 = vld [vmem:[#allocation2 + $0x22b8] sm:$0xff]
    %v1468 = vld [vmem:[#allocation2 + $0x22c0] sm:$0xff]
    %v1469 = vld [vmem:[#allocation2 + $0x22c8] sm:$0xff]
    %v1470 = vld [vmem:[#allocation2 + $0x22d0] sm:$0xff]
    %v1471 = vld [vmem:[#allocation2 + $0x22d8] sm:$0xff]
    %v1472 = vld [vmem:[#allocation2 + $0x22e0] sm:$0xff]
    %v1473 = vld [vmem:[#allocation2 + $0x22e8] sm:$0xff]
    %v1474 = vld [vmem:[#allocation2 + $0x22f0] sm:$0xff]
    %v1475 = vld [vmem:[#allocation2 + $0x22f8] sm:$0xff]
    %v1476 = vld [vmem:[#allocation2 + $0x2300] sm:$0xff]
    %v1477 = vld [vmem:[#allocation2 + $0x2308] sm:$0xff]
    %v1478 = vld [vmem:[#allocation2 + $0x2310] sm:$0xff]
    %v1479 = vld [vmem:[#allocation2 + $0x2318] sm:$0xff]
    %v1480 = vld [vmem:[#allocation2 + $0x2320] sm:$0xff]
    %v1481 = vld [vmem:[#allocation2 + $0x2328] sm:$0xff]
    %v1482 = vld [vmem:[#allocation2 + $0x2330] sm:$0xff]
    %v1483 = vld [vmem:[#allocation2 + $0x2338] sm:$0xff]
    %v1484 = vld [vmem:[#allocation2 + $0x2340] sm:$0xff]
    %v1485 = vld [vmem:[#allocation2 + $0x2348] sm:$0xff]
    %v1486 = vld [vmem:[#allocation2 + $0x2350] sm:$0xff]
    %v1487 = vld [vmem:[#allocation2 + $0x2358] sm:$0xff]
    %v1488 = vld [vmem:[#allocation2 + $0x2360] sm:$0xff]
    %v1489 = vld [vmem:[#allocation2 + $0x2368] sm:$0xff]
    %v1490 = vld [vmem:[#allocation2 + $0x2370] sm:$0xff]
    %v1491 = vld [vmem:[#allocation2 + $0x2378] sm:$0xff]
    %v1492 = vld [vmem:[#allocation2 + $0x2380] sm:$0xff]
    %v1493 = vld [vmem:[#allocation2 + $0x2388] sm:$0xff]
    %v1494 = vld [vmem:[#allocation2 + $0x2390] sm:$0xff]
    %v1495 = vld [vmem:[#allocation2 + $0x2398] sm:$0xff]
    %v1496 = vld [vmem:[#allocation2 + $0x23a0] sm:$0xff]
    %v1497 = vld [vmem:[#allocation2 + $0x23a8] sm:$0xff]
    %v1498 = vld [vmem:[#allocation2 + $0x23b0] sm:$0xff]
    %v1499 = vld [vmem:[#allocation2 + $0x23b8] sm:$0xff]
    %v1500 = vld [vmem:[#allocation2 + $0x23c0] sm:$0xff]
    %v1501 = vld [vmem:[#allocation2 + $0x23c8] sm:$0xff]
    %v1502 = vld [vmem:[#allocation2 + $0x23d0] sm:$0xff]
    %v1503 = vld [vmem:[#allocation2 + $0x23d8] sm:$0xff]
    %v1504 = vld [vmem:[#allocation2 + $0x23e0] sm:$0xff]
    %v1505 = vld [vmem:[#allocation2 + $0x23e8] sm:$0xff]
    %v1506 = vld [vmem:[#allocation2 + $0x23f0] sm:$0xff]
    %v1507 = vld [vmem:[#allocation2 + $0x23f8] sm:$0xff]
    %v1508 = vld [vmem:[#allocation2 + $0x2400] sm:$0xff]
    %v1509 = vld [vmem:[#allocation2 + $0x2408] sm:$0xff]
    %v1510 = vld [vmem:[#allocation2 + $0x2410] sm:$0xff]
    %v1511 = vld [vmem:[#allocation2 + $0x2418] sm:$0xff]
    %v1512 = vld [vmem:[#allocation2 + $0x2420] sm:$0xff]
    %v1513 = vld [vmem:[#allocation2 + $0x2428] sm:$0xff]
    %v1514 = vld [vmem:[#allocation2 + $0x2430] sm:$0xff]
    %v1515 = vld [vmem:[#allocation2 + $0x2438] sm:$0xff]
    %v1516 = vld [vmem:[#allocation2 + $0x2440] sm:$0xff]
    %v1517 = vld [vmem:[#allocation2 + $0x2448] sm:$0xff]
    %v1518 = vld [vmem:[#allocation2 + $0x2450] sm:$0xff]
    %v1519 = vld [vmem:[#allocation2 + $0x2458] sm:$0xff]
    %v1520 = vld [vmem:[#allocation2 + $0x2460] sm:$0xff]
    %v1521 = vld [vmem:[#allocation2 + $0x2468] sm:$0xff]
    %v1522 = vld [vmem:[#allocation2 + $0x2470] sm:$0xff]
    %v1523 = vld [vmem:[#allocation2 + $0x2478] sm:$0xff]
    %v1524 = vld [vmem:[#allocation2 + $0x2480] sm:$0xff]
    %v1525 = vld [vmem:[#allocation2 + $0x2488] sm:$0xff]
    %v1526 = vld [vmem:[#allocation2 + $0x2490] sm:$0xff]
    %v1527 = vld [vmem:[#allocation2 + $0x2498] sm:$0xff]
    %v1528 = vld [vmem:[#allocation2 + $0x24a0] sm:$0xff]
    %v1529 = vld [vmem:[#allocation2 + $0x24a8] sm:$0xff]
    %v1530 = vld [vmem:[#allocation2 + $0x24b0] sm:$0xff]
    %v1531 = vld [vmem:[#allocation2 + $0x24b8] sm:$0xff]
    %v1532 = vld [vmem:[#allocation2 + $0x24c0] sm:$0xff]
    %v1533 = vld [vmem:[#allocation2 + $0x24c8] sm:$0xff]
    %v1534 = vld [vmem:[#allocation2 + $0x24d0] sm:$0xff]
    %v1535 = vld [vmem:[#allocation2 + $0x24d8] sm:$0xff]
    %v1536 = vld [vmem:[#allocation2 + $0x24e0] sm:$0xff]
    %v1537 = vld [vmem:[#allocation2 + $0x24e8] sm:$0xff]
    %v1538 = vld [vmem:[#allocation2 + $0x24f0] sm:$0xff]
    %v1539 = vld [vmem:[#allocation2 + $0x24f8] sm:$0xff]
    %v1540 = vld [vmem:[#allocation2 + $0x2500] sm:$0xff]
    %v1541 = vld [vmem:[#allocation2 + $0x2508] sm:$0xff]
    %v1542 = vld [vmem:[#allocation2 + $0x2510] sm:$0xff]
    %v1543 = vld [vmem:[#allocation2 + $0x2518] sm:$0xff]
    %v1544 = vld [vmem:[#allocation2 + $0x2520] sm:$0xff]
    %v1545 = vld [vmem:[#allocation2 + $0x2528] sm:$0xff]
    %v1546 = vld [vmem:[#allocation2 + $0x2530] sm:$0xff]
    %v1547 = vld [vmem:[#allocation2 + $0x2538] sm:$0xff]
    %v1548 = vld [vmem:[#allocation2 + $0x2540] sm:$0xff]
    %v1549 = vld [vmem:[#allocation2 + $0x2548] sm:$0xff]
    %v1550 = vld [vmem:[#allocation2 + $0x2550] sm:$0xff]
    %v1551 = vld [vmem:[#allocation2 + $0x2558] sm:$0xff]
    %v1552 = vld [vmem:[#allocation2 + $0x2560] sm:$0xff]
    %v1553 = vld [vmem:[#allocation2 + $0x2568] sm:$0xff]
    %v1554 = vld [vmem:[#allocation2 + $0x2570] sm:$0xff]
    %v1555 = vld [vmem:[#allocation2 + $0x2578] sm:$0xff]
    %v1556 = vld [vmem:[#allocation2 + $0x2580] sm:$0xff]
    %v1557 = vld [vmem:[#allocation2 + $0x2588] sm:$0xff]
    %v1558 = vld [vmem:[#allocation2 + $0x2590] sm:$0xff]
    %v1559 = vld [vmem:[#allocation2 + $0x2598] sm:$0xff]
    %v1560 = vld [vmem:[#allocation2 + $0x25a0] sm:$0xff]
    %v1561 = vld [vmem:[#allocation2 + $0x25a8] sm:$0xff]
    %v1562 = vld [vmem:[#allocation2 + $0x25b0] sm:$0xff]
    %v1563 = vld [vmem:[#allocation2 + $0x25b8] sm:$0xff]
    %v1564 = vld [vmem:[#allocation2 + $0x25c0] sm:$0xff]
    %v1565 = vld [vmem:[#allocation2 + $0x25c8] sm:$0xff]
    %v1566 = vld [vmem:[#allocation2 + $0x25d0] sm:$0xff]
    %v1567 = vld [vmem:[#allocation2 + $0x25d8] sm:$0xff]
    %v1568 = vld [vmem:[#allocation2 + $0x25e0] sm:$0xff]
    %v1569 = vld [vmem:[#allocation2 + $0x25e8] sm:$0xff]
    %v1570 = vld [vmem:[#allocation2 + $0x25f0] sm:$0xff]
    %v1571 = vld [vmem:[#allocation2 + $0x25f8] sm:$0xff]
    %v1572 = vld [vmem:[#allocation2 + $0x2600] sm:$0xff]
    %v1573 = vld [vmem:[#allocation2 + $0x2608] sm:$0xff]
    %v1574 = vld [vmem:[#allocation2 + $0x2610] sm:$0xff]
    %v1575 = vld [vmem:[#allocation2 + $0x2618] sm:$0xff]
    %v1576 = vld [vmem:[#allocation2 + $0x2620] sm:$0xff]
    %v1577 = vld [vmem:[#allocation2 + $0x2628] sm:$0xff]
    %v1578 = vld [vmem:[#allocation2 + $0x2630] sm:$0xff]
    %v1579 = vld [vmem:[#allocation2 + $0x2638] sm:$0xff]
    %v1580 = vld [vmem:[#allocation2 + $0x2640] sm:$0xff]
    %v1581 = vld [vmem:[#allocation2 + $0x2648] sm:$0xff]
    %v1582 = vld [vmem:[#allocation2 + $0x2650] sm:$0xff]
    %v1583 = vld [vmem:[#allocation2 + $0x2658] sm:$0xff]
    %v1584 = vld [vmem:[#allocation2 + $0x2660] sm:$0xff]
    %v1585 = vld [vmem:[#allocation2 + $0x2668] sm:$0xff]
    %v1586 = vld [vmem:[#allocation2 + $0x2670] sm:$0xff]
    %v1587 = vld [vmem:[#allocation2 + $0x2678] sm:$0xff]
    %v1588 = vld [vmem:[#allocation2 + $0x2680] sm:$0xff]
    %v1589 = vld [vmem:[#allocation2 + $0x2688] sm:$0xff]
    %v1590 = vld [vmem:[#allocation2 + $0x2690] sm:$0xff]
    %v1591 = vld [vmem:[#allocation2 + $0x2698] sm:$0xff]
    %v1592 = vld [vmem:[#allocation2 + $0x26a0] sm:$0xff]
    %v1593 = vld [vmem:[#allocation2 + $0x26a8] sm:$0xff]
    %v1594 = vld [vmem:[#allocation2 + $0x26b0] sm:$0xff]
    %v1595 = vld [vmem:[#allocation2 + $0x26b8] sm:$0xff]
    %v1596 = vld [vmem:[#allocation2 + $0x26c0] sm:$0xff]
    %v1597 = vld [vmem:[#allocation2 + $0x26c8] sm:$0xff]
    %v1598 = vld [vmem:[#allocation2 + $0x26d0] sm:$0xff]
    %v1599 = vld [vmem:[#allocation2 + $0x26d8] sm:$0xff]
    %v1600 = vld [vmem:[#allocation2 + $0x26e0] sm:$0xff]
    %v1601 = vld [vmem:[#allocation2 + $0x26e8] sm:$0xff]
    %v1602 = vld [vmem:[#allocation2 + $0x26f0] sm:$0xff]
    %v1603 = vld [vmem:[#allocation2 + $0x26f8] sm:$0xff]
    %v1604 = vld [vmem:[#allocation2 + $0x2700] sm:$0xff]
    %v1605 = vld [vmem:[#allocation2 + $0x2708] sm:$0xff]
    %v1606 = vld [vmem:[#allocation2 + $0x2710] sm:$0xff]
    %v1607 = vld [vmem:[#allocation2 + $0x2718] sm:$0xff]
    %v1608 = vld [vmem:[#allocation2 + $0x2720] sm:$0xff]
    %v1609 = vld [vmem:[#allocation2 + $0x2728] sm:$0xff]
    %v1610 = vld [vmem:[#allocation2 + $0x2730] sm:$0xff]
    %v1611 = vld [vmem:[#allocation2 + $0x2738] sm:$0xff]
    %v1612 = vld [vmem:[#allocation2 + $0x2740] sm:$0xff]
    %v1613 = vld [vmem:[#allocation2 + $0x2748] sm:$0xff]
    %v1614 = vld [vmem:[#allocation2 + $0x2750] sm:$0xff]
    %v1615 = vld [vmem:[#allocation2 + $0x2758] sm:$0xff]
    %v1616 = vld [vmem:[#allocation2 + $0x2760] sm:$0xff]
    %v1617 = vld [vmem:[#allocation2 + $0x2768] sm:$0xff]
    %v1618 = vld [vmem:[#allocation2 + $0x2770] sm:$0xff]
    %v1619 = vld [vmem:[#allocation2 + $0x2778] sm:$0xff]
    %v1620 = vld [vmem:[#allocation2 + $0x2780] sm:$0xff]
    %v1621 = vld [vmem:[#allocation2 + $0x2788] sm:$0xff]
    %v1622 = vld [vmem:[#allocation2 + $0x2790] sm:$0xff]
    %v1623 = vld [vmem:[#allocation2 + $0x2798] sm:$0xff]
    %v1624 = vld [vmem:[#allocation2 + $0x27a0] sm:$0xff]
    %v1625 = vld [vmem:[#allocation2 + $0x27a8] sm:$0xff]
    %v1626 = vld [vmem:[#allocation2 + $0x27b0] sm:$0xff]
    %v1627 = vld [vmem:[#allocation2 + $0x27b8] sm:$0xff]
    %v1628 = vld [vmem:[#allocation2 + $0x27c0] sm:$0xff]
    %v1629 = vld [vmem:[#allocation2 + $0x27c8] sm:$0xff]
    %v1630 = vld [vmem:[#allocation2 + $0x27d0] sm:$0xff]
    %v1631 = vld [vmem:[#allocation2 + $0x27d8] sm:$0xff]
    %v1632 = vld [vmem:[#allocation2 + $0x27e0] sm:$0xff]
    %v1633 = vld [vmem:[#allocation2 + $0x27e8] sm:$0xff]
    %v1634 = vld [vmem:[#allocation2 + $0x27f0] sm:$0xff]
    %v1635 = vld [vmem:[#allocation2 + $0x27f8] sm:$0xff]
    %v1636 = vld [vmem:[#allocation2 + $0x2800] sm:$0xff]
    %v1637 = vld [vmem:[#allocation2 + $0x2808] sm:$0xff]
    %v1638 = vld [vmem:[#allocation2 + $0x2810] sm:$0xff]
    %v1639 = vld [vmem:[#allocation2 + $0x2818] sm:$0xff]
    %v1640 = vld [vmem:[#allocation2 + $0x2820] sm:$0xff]
    %v1641 = vld [vmem:[#allocation2 + $0x2828] sm:$0xff]
    %v1642 = vld [vmem:[#allocation2 + $0x2830] sm:$0xff]
    %v1643 = vld [vmem:[#allocation2 + $0x2838] sm:$0xff]
    %v1644 = vld [vmem:[#allocation2 + $0x2840] sm:$0xff]
    %v1645 = vld [vmem:[#allocation2 + $0x2848] sm:$0xff]
    %v1646 = vld [vmem:[#allocation2 + $0x2850] sm:$0xff]
    %v1647 = vld [vmem:[#allocation2 + $0x2858] sm:$0xff]
    %v1648 = vld [vmem:[#allocation2 + $0x2860] sm:$0xff]
    %v1649 = vld [vmem:[#allocation2 + $0x2868] sm:$0xff]
    %v1650 = vld [vmem:[#allocation2 + $0x2870] sm:$0xff]
    %v1651 = vld [vmem:[#allocation2 + $0x2878] sm:$0xff]
    %v1652 = vld [vmem:[#allocation2 + $0x2880] sm:$0xff]
    %v1653 = vld [vmem:[#allocation2 + $0x2888] sm:$0xff]
    %v1654 = vld [vmem:[#allocation2 + $0x2890] sm:$0xff]
    %v1655 = vld [vmem:[#allocation2 + $0x2898] sm:$0xff]
    %v1656 = vld [vmem:[#allocation2 + $0x28a0] sm:$0xff]
    %v1657 = vld [vmem:[#allocation2 + $0x28a8] sm:$0xff]
    %v1658 = vld [vmem:[#allocation2 + $0x28b0] sm:$0xff]
    %v1659 = vld [vmem:[#allocation2 + $0x28b8] sm:$0xff]
    %v1660 = vld [vmem:[#allocation2 + $0x28c0] sm:$0xff]
    %v1661 = vld [vmem:[#allocation2 + $0x28c8] sm:$0xff]
    %v1662 = vld [vmem:[#allocation2 + $0x28d0] sm:$0xff]
    %v1663 = vld [vmem:[#allocation2 + $0x28d8] sm:$0xff]
    %v1664 = vld [vmem:[#allocation2 + $0x28e0] sm:$0xff]
    %v1665 = vld [vmem:[#allocation2 + $0x28e8] sm:$0xff]
    %v1666 = vld [vmem:[#allocation2 + $0x28f0] sm:$0xff]
    %v1667 = vld [vmem:[#allocation2 + $0x28f8] sm:$0xff]
    %v1668 = vld [vmem:[#allocation2 + $0x2900] sm:$0xff]
    %v1669 = vld [vmem:[#allocation2 + $0x2908] sm:$0xff]
    %v1670 = vld [vmem:[#allocation2 + $0x2910] sm:$0xff]
    %v1671 = vld [vmem:[#allocation2 + $0x2918] sm:$0xff]
    %v1672 = vld [vmem:[#allocation2 + $0x2920] sm:$0xff]
    %v1673 = vld [vmem:[#allocation2 + $0x2928] sm:$0xff]
    %v1674 = vld [vmem:[#allocation2 + $0x2930] sm:$0xff]
    %v1675 = vld [vmem:[#allocation2 + $0x2938] sm:$0xff]
    %v1676 = vld [vmem:[#allocation2 + $0x2940] sm:$0xff]
    %v1677 = vld [vmem:[#allocation2 + $0x2948] sm:$0xff]
    %v1678 = vld [vmem:[#allocation2 + $0x2950] sm:$0xff]
    %v1679 = vld [vmem:[#allocation2 + $0x2958] sm:$0xff]
    %v1680 = vld [vmem:[#allocation2 + $0x2960] sm:$0xff]
    %v1681 = vld [vmem:[#allocation2 + $0x2968] sm:$0xff]
    %v1682 = vld [vmem:[#allocation2 + $0x2970] sm:$0xff]
    %v1683 = vld [vmem:[#allocation2 + $0x2978] sm:$0xff]
    %v1684 = vld [vmem:[#allocation2 + $0x2980] sm:$0xff]
    %v1685 = vld [vmem:[#allocation2 + $0x2988] sm:$0xff]
    %v1686 = vld [vmem:[#allocation2 + $0x2990] sm:$0xff]
    %v1687 = vld [vmem:[#allocation2 + $0x2998] sm:$0xff]
    %v1688 = vld [vmem:[#allocation2 + $0x29a0] sm:$0xff]
    %v1689 = vld [vmem:[#allocation2 + $0x29a8] sm:$0xff]
    %v1690 = vld [vmem:[#allocation2 + $0x29b0] sm:$0xff]
    %v1691 = vld [vmem:[#allocation2 + $0x29b8] sm:$0xff]
    %v1692 = vld [vmem:[#allocation2 + $0x29c0] sm:$0xff]
    %v1693 = vld [vmem:[#allocation2 + $0x29c8] sm:$0xff]
    %v1694 = vld [vmem:[#allocation2 + $0x29d0] sm:$0xff]
    %v1695 = vld [vmem:[#allocation2 + $0x29d8] sm:$0xff]
    %v1696 = vld [vmem:[#allocation2 + $0x29e0] sm:$0xff]
    %v1697 = vld [vmem:[#allocation2 + $0x29e8] sm:$0xff]
    %v1698 = vld [vmem:[#allocation2 + $0x29f0] sm:$0xff]
    %v1699 = vld [vmem:[#allocation2 + $0x29f8] sm:$0xff]
    %v1700 = vld [vmem:[#allocation2 + $0x2a00] sm:$0xff]
    %v1701 = vld [vmem:[#allocation2 + $0x2a08] sm:$0xff]
    %v1702 = vld [vmem:[#allocation2 + $0x2a10] sm:$0xff]
    %v1703 = vld [vmem:[#allocation2 + $0x2a18] sm:$0xff]
    %v1704 = vld [vmem:[#allocation2 + $0x2a20] sm:$0xff]
    %v1705 = vld [vmem:[#allocation2 + $0x2a28] sm:$0xff]
    %v1706 = vld [vmem:[#allocation2 + $0x2a30] sm:$0xff]
    %v1707 = vld [vmem:[#allocation2 + $0x2a38] sm:$0xff]
    %v1708 = vld [vmem:[#allocation2 + $0x2a40] sm:$0xff]
    %v1709 = vld [vmem:[#allocation2 + $0x2a48] sm:$0xff]
    %v1710 = vld [vmem:[#allocation2 + $0x2a50] sm:$0xff]
    %v1711 = vld [vmem:[#allocation2 + $0x2a58] sm:$0xff]
    %v1712 = vld [vmem:[#allocation2 + $0x2a60] sm:$0xff]
    %v1713 = vld [vmem:[#allocation2 + $0x2a68] sm:$0xff]
    %v1714 = vld [vmem:[#allocation2 + $0x2a70] sm:$0xff]
    %v1715 = vld [vmem:[#allocation2 + $0x2a78] sm:$0xff]
    %v1716 = vld [vmem:[#allocation2 + $0x2a80] sm:$0xff]
    %v1717 = vld [vmem:[#allocation2 + $0x2a88] sm:$0xff]
    %v1718 = vld [vmem:[#allocation2 + $0x2a90] sm:$0xff]
    %v1719 = vld [vmem:[#allocation2 + $0x2a98] sm:$0xff]
    %v1720 = vld [vmem:[#allocation2 + $0x2aa0] sm:$0xff]
    %v1721 = vld [vmem:[#allocation2 + $0x2aa8] sm:$0xff]
    %v1722 = vld [vmem:[#allocation2 + $0x2ab0] sm:$0xff]
    %v1723 = vld [vmem:[#allocation2 + $0x2ab8] sm:$0xff]
    %v1724 = vld [vmem:[#allocation2 + $0x2ac0] sm:$0xff]
    %v1725 = vld [vmem:[#allocation2 + $0x2ac8] sm:$0xff]
    %v1726 = vld [vmem:[#allocation2 + $0x2ad0] sm:$0xff]
    %v1727 = vld [vmem:[#allocation2 + $0x2ad8] sm:$0xff]
    %v1728 = vld [vmem:[#allocation2 + $0x2ae0] sm:$0xff]
    %v1729 = vld [vmem:[#allocation2 + $0x2ae8] sm:$0xff]
    %v1730 = vld [vmem:[#allocation2 + $0x2af0] sm:$0xff]
    %v1731 = vld [vmem:[#allocation2 + $0x2af8] sm:$0xff]
    %v1732 = vld [vmem:[#allocation2 + $0x2b00] sm:$0xff]
    %v1733 = vld [vmem:[#allocation2 + $0x2b08] sm:$0xff]
    %v1734 = vld [vmem:[#allocation2 + $0x2b10] sm:$0xff]
    %v1735 = vld [vmem:[#allocation2 + $0x2b18] sm:$0xff]
    %v1736 = vld [vmem:[#allocation2 + $0x2b20] sm:$0xff]
    %v1737 = vld [vmem:[#allocation2 + $0x2b28] sm:$0xff]
    %v1738 = vld [vmem:[#allocation2 + $0x2b30] sm:$0xff]
    %v1739 = vld [vmem:[#allocation2 + $0x2b38] sm:$0xff]
    %v1740 = vld [vmem:[#allocation2 + $0x2b40] sm:$0xff]
    %v1741 = vld [vmem:[#allocation2 + $0x2b48] sm:$0xff]
    %v1742 = vld [vmem:[#allocation2 + $0x2b50] sm:$0xff]
    %v1743 = vld [vmem:[#allocation2 + $0x2b58] sm:$0xff]
    %v1744 = vld [vmem:[#allocation2 + $0x2b60] sm:$0xff]
    %v1745 = vld [vmem:[#allocation2 + $0x2b68] sm:$0xff]
    %v1746 = vld [vmem:[#allocation2 + $0x2b70] sm:$0xff]
    %v1747 = vld [vmem:[#allocation2 + $0x2b78] sm:$0xff]
    %v1748 = vld [vmem:[#allocation2 + $0x2b80] sm:$0xff]
    %v1749 = vld [vmem:[#allocation2 + $0x2b88] sm:$0xff]
    %v1750 = vld [vmem:[#allocation2 + $0x2b90] sm:$0xff]
    %v1751 = vld [vmem:[#allocation2 + $0x2b98] sm:$0xff]
    %v1752 = vld [vmem:[#allocation2 + $0x2ba0] sm:$0xff]
    %v1753 = vld [vmem:[#allocation2 + $0x2ba8] sm:$0xff]
    %v1754 = vld [vmem:[#allocation2 + $0x2bb0] sm:$0xff]
    %v1755 = vld [vmem:[#allocation2 + $0x2bb8] sm:$0xff]
    %v1756 = vld [vmem:[#allocation2 + $0x2bc0] sm:$0xff]
    %v1757 = vld [vmem:[#allocation2 + $0x2bc8] sm:$0xff]
    %v1758 = vld [vmem:[#allocation2 + $0x2bd0] sm:$0xff]
    %v1759 = vld [vmem:[#allocation2 + $0x2bd8] sm:$0xff]
    %v1760 = vld [vmem:[#allocation2 + $0x2be0] sm:$0xff]
    %v1761 = vld [vmem:[#allocation2 + $0x2be8] sm:$0xff]
    %v1762 = vld [vmem:[#allocation2 + $0x2bf0] sm:$0xff]
    %v1763 = vld [vmem:[#allocation2 + $0x2bf8] sm:$0xff]
    %v1764 = vld [vmem:[#allocation2 + $0x2c00] sm:$0xff]
    %v1765 = vld [vmem:[#allocation2 + $0x2c08] sm:$0xff]
    %v1766 = vld [vmem:[#allocation2 + $0x2c10] sm:$0xff]
    %v1767 = vld [vmem:[#allocation2 + $0x2c18] sm:$0xff]
    %v1768 = vld [vmem:[#allocation2 + $0x2c20] sm:$0xff]
    %v1769 = vld [vmem:[#allocation2 + $0x2c28] sm:$0xff]
    %v1770 = vld [vmem:[#allocation2 + $0x2c30] sm:$0xff]
    %v1771 = vld [vmem:[#allocation2 + $0x2c38] sm:$0xff]
    %v1772 = vld [vmem:[#allocation2 + $0x2c40] sm:$0xff]
    %v1773 = vld [vmem:[#allocation2 + $0x2c48] sm:$0xff]
    %v1774 = vld [vmem:[#allocation2 + $0x2c50] sm:$0xff]
    %v1775 = vld [vmem:[#allocation2 + $0x2c58] sm:$0xff]
    %v1776 = vld [vmem:[#allocation2 + $0x2c60] sm:$0xff]
    %v1777 = vld [vmem:[#allocation2 + $0x2c68] sm:$0xff]
    %v1778 = vld [vmem:[#allocation2 + $0x2c70] sm:$0xff]
    %v1779 = vld [vmem:[#allocation2 + $0x2c78] sm:$0xff]
    %v1780 = vld [vmem:[#allocation2 + $0x2c80] sm:$0xff]
    %v1781 = vld [vmem:[#allocation2 + $0x2c88] sm:$0xff]
    %v1782 = vld [vmem:[#allocation2 + $0x2c90] sm:$0xff]
    %v1783 = vld [vmem:[#allocation2 + $0x2c98] sm:$0xff]
    %v1784 = vld [vmem:[#allocation2 + $0x2ca0] sm:$0xff]
    %v1785 = vld [vmem:[#allocation2 + $0x2ca8] sm:$0xff]
    %v1786 = vld [vmem:[#allocation2 + $0x2cb0] sm:$0xff]
    %v1787 = vld [vmem:[#allocation2 + $0x2cb8] sm:$0xff]
    %v1788 = vld [vmem:[#allocation2 + $0x2cc0] sm:$0xff]
    %v1789 = vld [vmem:[#allocation2 + $0x2cc8] sm:$0xff]
    %v1790 = vld [vmem:[#allocation2 + $0x2cd0] sm:$0xff]
    %v1791 = vld [vmem:[#allocation2 + $0x2cd8] sm:$0xff]
    %v1792 = vld [vmem:[#allocation2 + $0x2ce0] sm:$0xff]
    %v1793 = vld [vmem:[#allocation2 + $0x2ce8] sm:$0xff]
    %v1794 = vld [vmem:[#allocation2 + $0x2cf0] sm:$0xff]
    %v1795 = vld [vmem:[#allocation2 + $0x2cf8] sm:$0xff]
    %v1796 = vld [vmem:[#allocation2 + $0x2d00] sm:$0xff]
    %v1797 = vld [vmem:[#allocation2 + $0x2d08] sm:$0xff]
    %v1798 = vld [vmem:[#allocation2 + $0x2d10] sm:$0xff]
    %v1799 = vld [vmem:[#allocation2 + $0x2d18] sm:$0xff]
    %v1800 = vld [vmem:[#allocation2 + $0x2d20] sm:$0xff]
    %v1801 = vld [vmem:[#allocation2 + $0x2d28] sm:$0xff]
    %v1802 = vld [vmem:[#allocation2 + $0x2d30] sm:$0xff]
    %v1803 = vld [vmem:[#allocation2 + $0x2d38] sm:$0xff]
    %v1804 = vld [vmem:[#allocation2 + $0x2d40] sm:$0xff]
    %v1805 = vld [vmem:[#allocation2 + $0x2d48] sm:$0xff]
    %v1806 = vld [vmem:[#allocation2 + $0x2d50] sm:$0xff]
    %v1807 = vld [vmem:[#allocation2 + $0x2d58] sm:$0xff]
    %v1808 = vld [vmem:[#allocation2 + $0x2d60] sm:$0xff]
    %v1809 = vld [vmem:[#allocation2 + $0x2d68] sm:$0xff]
    %v1810 = vld [vmem:[#allocation2 + $0x2d70] sm:$0xff]
    %v1811 = vld [vmem:[#allocation2 + $0x2d78] sm:$0xff]
    %v1812 = vld [vmem:[#allocation2 + $0x2d80] sm:$0xff]
    %v1813 = vld [vmem:[#allocation2 + $0x2d88] sm:$0xff]
    %v1814 = vld [vmem:[#allocation2 + $0x2d90] sm:$0xff]
    %v1815 = vld [vmem:[#allocation2 + $0x2d98] sm:$0xff]
    %v1816 = vld [vmem:[#allocation2 + $0x2da0] sm:$0xff]
    %v1817 = vld [vmem:[#allocation2 + $0x2da8] sm:$0xff]
    %v1818 = vld [vmem:[#allocation2 + $0x2db0] sm:$0xff]
    %v1819 = vld [vmem:[#allocation2 + $0x2db8] sm:$0xff]
    %v1820 = vld [vmem:[#allocation2 + $0x2dc0] sm:$0xff]
    %v1821 = vld [vmem:[#allocation2 + $0x2dc8] sm:$0xff]
    %v1822 = vld [vmem:[#allocation2 + $0x2dd0] sm:$0xff]
    %v1823 = vld [vmem:[#allocation2 + $0x2dd8] sm:$0xff]
    %v1824 = vld [vmem:[#allocation2 + $0x2de0] sm:$0xff]
    %v1825 = vld [vmem:[#allocation2 + $0x2de8] sm:$0xff]
    %v1826 = vld [vmem:[#allocation2 + $0x2df0] sm:$0xff]
    %v1827 = vld [vmem:[#allocation2 + $0x2df8] sm:$0xff]
    %v1828 = vld [vmem:[#allocation2 + $0x2e00] sm:$0xff]
    %v1829 = vld [vmem:[#allocation2 + $0x2e08] sm:$0xff]
    %v1830 = vld [vmem:[#allocation2 + $0x2e10] sm:$0xff]
    %v1831 = vld [vmem:[#allocation2 + $0x2e18] sm:$0xff]
    %v1832 = vld [vmem:[#allocation2 + $0x2e20] sm:$0xff]
    %v1833 = vld [vmem:[#allocation2 + $0x2e28] sm:$0xff]
    %v1834 = vld [vmem:[#allocation2 + $0x2e30] sm:$0xff]
    %v1835 = vld [vmem:[#allocation2 + $0x2e38] sm:$0xff]
    %v1836 = vld [vmem:[#allocation2 + $0x2e40] sm:$0xff]
    %v1837 = vld [vmem:[#allocation2 + $0x2e48] sm:$0xff]
    %v1838 = vld [vmem:[#allocation2 + $0x2e50] sm:$0xff]
    %v1839 = vld [vmem:[#allocation2 + $0x2e58] sm:$0xff]
    %v1840 = vld [vmem:[#allocation2 + $0x2e60] sm:$0xff]
    %v1841 = vld [vmem:[#allocation2 + $0x2e68] sm:$0xff]
    %v1842 = vld [vmem:[#allocation2 + $0x2e70] sm:$0xff]
    %v1843 = vld [vmem:[#allocation2 + $0x2e78] sm:$0xff]
    %v1844 = vld [vmem:[#allocation2 + $0x2e80] sm:$0xff]
    %v1845 = vld [vmem:[#allocation2 + $0x2e88] sm:$0xff]
    %v1846 = vld [vmem:[#allocation2 + $0x2e90] sm:$0xff]
    %v1847 = vld [vmem:[#allocation2 + $0x2e98] sm:$0xff]
    %v1848 = vld [vmem:[#allocation2 + $0x2ea0] sm:$0xff]
    %v1849 = vld [vmem:[#allocation2 + $0x2ea8] sm:$0xff]
    %v1850 = vld [vmem:[#allocation2 + $0x2eb0] sm:$0xff]
    %v1851 = vld [vmem:[#allocation2 + $0x2eb8] sm:$0xff]
    %v1852 = vld [vmem:[#allocation2 + $0x2ec0] sm:$0xff]
    %v1853 = vld [vmem:[#allocation2 + $0x2ec8] sm:$0xff]
    %v1854 = vld [vmem:[#allocation2 + $0x2ed0] sm:$0xff]
    %v1855 = vld [vmem:[#allocation2 + $0x2ed8] sm:$0xff]
    %v1856 = vld [vmem:[#allocation2 + $0x2ee0] sm:$0xff]
    %v1857 = vld [vmem:[#allocation2 + $0x2ee8] sm:$0xff]
    %v1858 = vld [vmem:[#allocation2 + $0x2ef0] sm:$0xff]
    %v1859 = vld [vmem:[#allocation2 + $0x2ef8] sm:$0xff]
    %v1860 = vld [vmem:[#allocation2 + $0x2f00] sm:$0xff]
    %v1861 = vld [vmem:[#allocation2 + $0x2f08] sm:$0xff]
    %v1862 = vld [vmem:[#allocation2 + $0x2f10] sm:$0xff]
    %v1863 = vld [vmem:[#allocation2 + $0x2f18] sm:$0xff]
    %v1864 = vld [vmem:[#allocation2 + $0x2f20] sm:$0xff]
    %v1865 = vld [vmem:[#allocation2 + $0x2f28] sm:$0xff]
    %v1866 = vld [vmem:[#allocation2 + $0x2f30] sm:$0xff]
    %v1867 = vld [vmem:[#allocation2 + $0x2f38] sm:$0xff]
    %v1868 = vld [vmem:[#allocation2 + $0x2f40] sm:$0xff]
    %v1869 = vld [vmem:[#allocation2 + $0x2f48] sm:$0xff]
    %v1870 = vld [vmem:[#allocation2 + $0x2f50] sm:$0xff]
    %v1871 = vld [vmem:[#allocation2 + $0x2f58] sm:$0xff]
    %v1872 = vld [vmem:[#allocation2 + $0x2f60] sm:$0xff]
    %v1873 = vld [vmem:[#allocation2 + $0x2f68] sm:$0xff]
    %v1874 = vld [vmem:[#allocation2 + $0x2f70] sm:$0xff]
    %v1875 = vld [vmem:[#allocation2 + $0x2f78] sm:$0xff]
    %v1876 = vld [vmem:[#allocation2 + $0x2f80] sm:$0xff]
    %v1877 = vld [vmem:[#allocation2 + $0x2f88] sm:$0xff]
    %v1878 = vld [vmem:[#allocation2 + $0x2f90] sm:$0xff]
    %v1879 = vld [vmem:[#allocation2 + $0x2f98] sm:$0xff]
    %v1880 = vld [vmem:[#allocation2 + $0x2fa0] sm:$0xff]
    %v1881 = vld [vmem:[#allocation2 + $0x2fa8] sm:$0xff]
    %v1882 = vld [vmem:[#allocation2 + $0x2fb0] sm:$0xff]
    %v1883 = vld [vmem:[#allocation2 + $0x2fb8] sm:$0xff]
    %v1884 = vld [vmem:[#allocation2 + $0x2fc0] sm:$0xff]
    %v1885 = vld [vmem:[#allocation2 + $0x2fc8] sm:$0xff]
    %v1886 = vld [vmem:[#allocation2 + $0x2fd0] sm:$0xff]
    %v1887 = vld [vmem:[#allocation2 + $0x2fd8] sm:$0xff]
    %v1888 = vld [vmem:[#allocation2 + $0x2fe0] sm:$0xff]
    %v1889 = vld [vmem:[#allocation2 + $0x2fe8] sm:$0xff]
    %v1890 = vld [vmem:[#allocation2 + $0x2ff0] sm:$0xff]
    %v1891 = vld [vmem:[#allocation2 + $0x2ff8] sm:$0xff]
    %1892 = vmatprep.subr.bf16.mxu0 %v357
    %1893 = vmatpush1.bf16.msra.mxu0 %v356
    %1894 = vmatprep.subr.bf16.mxu0 %v365
    %1895 = vmatpush1.bf16.msra.mxu0 %v364
    %1896 = vmatprep.subr.bf16.mxu0 %v373
    %1897 = vmatpush1.bf16.msra.mxu0 %v372
    %1898 = vmatprep.subr.bf16.mxu0 %v381
    %1899 = vmatpush1.bf16.msra.mxu0 %v380
    %1900 = vmatprep.subr.bf16.mxu0 %v389
    %1901 = vmatpush1.bf16.msra.mxu0 %v388
    %1902 = vmatprep.subr.bf16.mxu0 %v397
    %1903 = vmatpush1.bf16.msra.mxu0 %v396
    %1904 = vmatprep.subr.bf16.mxu0 %v405
    %1905 = vmatpush1.bf16.msra.mxu0 %v404
    %1906 = vmatprep.subr.bf16.mxu0 %v413
    %1907 = vmatpush1.bf16.msra.mxu0 %v412
    %1908 = vmatprep.subr.bf16.mxu0 %v421
    %1909 = vmatpush1.bf16.msra.mxu0 %v420
    %1910 = vmatprep.subr.bf16.mxu0 %v429
    %1911 = vmatpush1.bf16.msra.mxu0 %v428
    %1912 = vmatprep.subr.bf16.mxu0 %v437
    %1913 = vmatpush1.bf16.msra.mxu0 %v436
    %1914 = vmatprep.subr.bf16.mxu0 %v445
    %1915 = vmatpush1.bf16.msra.mxu0 %v444
    %1916 = vmatprep.subr.bf16.mxu0 %v453
    %1917 = vmatpush1.bf16.msra.mxu0 %v452
    %1918 = vmatprep.subr.bf16.mxu0 %v461
    %1919 = vmatpush1.bf16.msra.mxu0 %v460
    %1920 = vmatprep.subr.bf16.mxu0 %v469
    %1921 = vmatpush1.bf16.msra.mxu0 %v468
    %1922 = vmatprep.subr.bf16.mxu0 %v477
    %1923 = vmatpush1.bf16.msra.mxu0 %v476
    %1924 = vmatprep.mubr.bf16.mxu0 %v333
    %1925 = vmatmul.mubr.bf16.gmra.mrb[0].mxu0 %v332
    %v1926 = vpop.f32.mrb[0].mxu0
    %v1927 = vadd.f32 0.0, %v1926
    %v1928 = vpop.f32.mrb[0].mxu0
    %v1929 = vadd.f32 0.0, %v1928
    %v1930 = vpop.f32.mrb[0].mxu0
    %v1931 = vpop.f32.mrb[0].mxu0
    %1932 = vdwg.mxu0
    %1933 = vmatprep.subr.bf16.mxu0 %v485
    %1934 = vmatpush1.bf16.msra.mxu0 %v484
    %1935 = vmatprep.subr.bf16.mxu0 %v493
    %1936 = vmatpush1.bf16.msra.mxu0 %v492
    %1937 = vmatprep.subr.bf16.mxu0 %v501
    %1938 = vmatpush1.bf16.msra.mxu0 %v500
    %1939 = vmatprep.subr.bf16.mxu0 %v509
    %1940 = vmatpush1.bf16.msra.mxu0 %v508
    %1941 = vmatprep.subr.bf16.mxu0 %v517
    %1942 = vmatpush1.bf16.msra.mxu0 %v516
    %1943 = vmatprep.subr.bf16.mxu0 %v525
    %1944 = vmatpush1.bf16.msra.mxu0 %v524
    %1945 = vmatprep.subr.bf16.mxu0 %v533
    %1946 = vmatpush1.bf16.msra.mxu0 %v532
    %1947 = vmatprep.subr.bf16.mxu0 %v541
    %1948 = vmatpush1.bf16.msra.mxu0 %v540
    %1949 = vmatprep.subr.bf16.mxu0 %v549
    %1950 = vmatpush1.bf16.msra.mxu0 %v548
    %1951 = vmatprep.subr.bf16.mxu0 %v557
    %1952 = vmatpush1.bf16.msra.mxu0 %v556
    %1953 = vmatprep.subr.bf16.mxu0 %v565
    %1954 = vmatpush1.bf16.msra.mxu0 %v564
    %1955 = vmatprep.subr.bf16.mxu0 %v573
    %1956 = vmatpush1.bf16.msra.mxu0 %v572
    %1957 = vmatprep.subr.bf16.mxu0 %v581
    %1958 = vmatpush1.bf16.msra.mxu0 %v580
    %1959 = vmatprep.subr.bf16.mxu0 %v589
    %1960 = vmatpush1.bf16.msra.mxu0 %v588
    %1961 = vmatprep.subr.bf16.mxu0 %v597
    %1962 = vmatpush1.bf16.msra.mxu0 %v596
    %1963 = vmatprep.subr.bf16.mxu0 %v605
    %1964 = vmatpush1.bf16.msra.mxu0 %v604
    %1965 = vmatprep.mubr.bf16.mxu0 %v335
    %1966 = vmatmul.mubr.bf16.gmra.mrb[0].mxu0 %v334
    %v1967 = vpop.f32.mrb[0].mxu0
    %v1968 = vadd.f32 %v1927, %v1967
    %v1969 = vpop.f32.mrb[0].mxu0
    %v1970 = vadd.f32 %v1929, %v1969
    %v1971 = vpop.f32.mrb[0].mxu0
    %v1972 = vpop.f32.mrb[0].mxu0
    %1973 = vdwg.mxu0
    %1974 = vmatprep.subr.bf16.mxu0 %v613
    %1975 = vmatpush1.bf16.msra.mxu0 %v612
    %1976 = vmatprep.subr.bf16.mxu0 %v621
    %1977 = vmatpush1.bf16.msra.mxu0 %v620
    %1978 = vmatprep.subr.bf16.mxu0 %v629
    %1979 = vmatpush1.bf16.msra.mxu0 %v628
    %1980 = vmatprep.subr.bf16.mxu0 %v637
    %1981 = vmatpush1.bf16.msra.mxu0 %v636
    %1982 = vmatprep.subr.bf16.mxu0 %v645
    %1983 = vmatpush1.bf16.msra.mxu0 %v644
    %1984 = vmatprep.subr.bf16.mxu0 %v653
    %1985 = vmatpush1.bf16.msra.mxu0 %v652
    %1986 = vmatprep.subr.bf16.mxu0 %v661
    %1987 = vmatpush1.bf16.msra.mxu0 %v660
    %1988 = vmatprep.subr.bf16.mxu0 %v669
    %1989 = vmatpush1.bf16.msra.mxu0 %v668
    %1990 = vmatprep.subr.bf16.mxu0 %v677
    %1991 = vmatpush1.bf16.msra.mxu0 %v676
    %1992 = vmatprep.subr.bf16.mxu0 %v685
    %1993 = vmatpush1.bf16.msra.mxu0 %v684
    %1994 = vmatprep.subr.bf16.mxu0 %v693
    %1995 = vmatpush1.bf16.msra.mxu0 %v692
    %1996 = vmatprep.subr.bf16.mxu0 %v701
    %1997 = vmatpush1.bf16.msra.mxu0 %v700
    %1998 = vmatprep.subr.bf16.mxu0 %v709
    %1999 = vmatpush1.bf16.msra.mxu0 %v708
    %2000 = vmatprep.subr.bf16.mxu0 %v717
    %2001 = vmatpush1.bf16.msra.mxu0 %v716
    %2002 = vmatprep.subr.bf16.mxu0 %v725
    %2003 = vmatpush1.bf16.msra.mxu0 %v724
    %2004 = vmatprep.subr.bf16.mxu0 %v733
    %2005 = vmatpush1.bf16.msra.mxu0 %v732
    %2006 = vmatprep.mubr.bf16.mxu0 %v337
    %2007 = vmatmul.mubr.bf16.gmra.mrb[0].mxu0 %v336
    %v2008 = vpop.f32.mrb[0].mxu0
    %v2009 = vadd.f32 %v1968, %v2008
    %v2010 = vpop.f32.mrb[0].mxu0
    %v2011 = vadd.f32 %v1970, %v2010
    %v2012 = vpop.f32.mrb[0].mxu0
    %v2013 = vpop.f32.mrb[0].mxu0
    %2014 = vdwg.mxu0
    %2015 = vmatprep.subr.bf16.mxu0 %v741
    %2016 = vmatpush1.bf16.msra.mxu0 %v740
    %2017 = vmatprep.subr.bf16.mxu0 %v749
    %2018 = vmatpush1.bf16.msra.mxu0 %v748
    %2019 = vmatprep.subr.bf16.mxu0 %v757
    %2020 = vmatpush1.bf16.msra.mxu0 %v756
    %2021 = vmatprep.subr.bf16.mxu0 %v765
    %2022 = vmatpush1.bf16.msra.mxu0 %v764
    %2023 = vmatprep.subr.bf16.mxu0 %v773
    %2024 = vmatpush1.bf16.msra.mxu0 %v772
    %2025 = vmatprep.subr.bf16.mxu0 %v781
    %2026 = vmatpush1.bf16.msra.mxu0 %v780
    %2027 = vmatprep.subr.bf16.mxu0 %v789
    %2028 = vmatpush1.bf16.msra.mxu0 %v788
    %2029 = vmatprep.subr.bf16.mxu0 %v797
    %2030 = vmatpush1.bf16.msra.mxu0 %v796
    %2031 = vmatprep.subr.bf16.mxu0 %v805
    %2032 = vmatpush1.bf16.msra.mxu0 %v804
    %2033 = vmatprep.subr.bf16.mxu0 %v813
    %2034 = vmatpush1.bf16.msra.mxu0 %v812
    %2035 = vmatprep.subr.bf16.mxu0 %v821
    %2036 = vmatpush1.bf16.msra.mxu0 %v820
    %2037 = vmatprep.subr.bf16.mxu0 %v829
    %2038 = vmatpush1.bf16.msra.mxu0 %v828
    %2039 = vmatprep.subr.bf16.mxu0 %v837
    %2040 = vmatpush1.bf16.msra.mxu0 %v836
    %2041 = vmatprep.subr.bf16.mxu0 %v845
    %2042 = vmatpush1.bf16.msra.mxu0 %v844
    %2043 = vmatprep.subr.bf16.mxu0 %v853
    %2044 = vmatpush1.bf16.msra.mxu0 %v852
    %2045 = vmatprep.subr.bf16.mxu0 %v861
    %2046 = vmatpush1.bf16.msra.mxu0 %v860
    %2047 = vmatprep.mubr.bf16.mxu0 %v339
    %2048 = vmatmul.mubr.bf16.gmra.mrb[0].mxu0 %v338
    %v2049 = vpop.f32.mrb[0].mxu0
    %v2050 = vadd.f32 %v2009, %v2049
    %v2051 = vpop.f32.mrb[0].mxu0
    %v2052 = vadd.f32 %v2011, %v2051
    %v2053 = vpop.f32.mrb[0].mxu0
    %v2054 = vpop.f32.mrb[0].mxu0
    %2055 = vdwg.mxu0
    %2056 = vmatprep.subr.bf16.mxu0 %v869
    %2057 = vmatpush1.bf16.msra.mxu0 %v868
    %2058 = vmatprep.subr.bf16.mxu0 %v877
    %2059 = vmatpush1.bf16.msra.mxu0 %v876
    %2060 = vmatprep.subr.bf16.mxu0 %v885
    %2061 = vmatpush1.bf16.msra.mxu0 %v884
    %2062 = vmatprep.subr.bf16.mxu0 %v893
    %2063 = vmatpush1.bf16.msra.mxu0 %v892
    %2064 = vmatprep.subr.bf16.mxu0 %v901
    %2065 = vmatpush1.bf16.msra.mxu0 %v900
    %2066 = vmatprep.subr.bf16.mxu0 %v909
    %2067 = vmatpush1.bf16.msra.mxu0 %v908
    %2068 = vmatprep.subr.bf16.mxu0 %v917
    %2069 = vmatpush1.bf16.msra.mxu0 %v916
    %2070 = vmatprep.subr.bf16.mxu0 %v925
    %2071 = vmatpush1.bf16.msra.mxu0 %v924
    %2072 = vmatprep.subr.bf16.mxu0 %v933
    %2073 = vmatpush1.bf16.msra.mxu0 %v932
    %2074 = vmatprep.subr.bf16.mxu0 %v941
    %2075 = vmatpush1.bf16.msra.mxu0 %v940
    %2076 = vmatprep.subr.bf16.mxu0 %v949
    %2077 = vmatpush1.bf16.msra.mxu0 %v948
    %2078 = vmatprep.subr.bf16.mxu0 %v957
    %2079 = vmatpush1.bf16.msra.mxu0 %v956
    %2080 = vmatprep.subr.bf16.mxu0 %v965
    %2081 = vmatpush1.bf16.msra.mxu0 %v964
    %2082 = vmatprep.subr.bf16.mxu0 %v973
    %2083 = vmatpush1.bf16.msra.mxu0 %v972
    %2084 = vmatprep.subr.bf16.mxu0 %v981
    %2085 = vmatpush1.bf16.msra.mxu0 %v980
    %2086 = vmatprep.subr.bf16.mxu0 %v989
    %2087 = vmatpush1.bf16.msra.mxu0 %v988
    %2088 = vmatprep.mubr.bf16.mxu0 %v341
    %2089 = vmatmul.mubr.bf16.gmra.mrb[0].mxu0 %v340
    %v2090 = vpop.f32.mrb[0].mxu0
    %v2091 = vadd.f32 %v2050, %v2090
    %v2092 = vpop.f32.mrb[0].mxu0
    %v2093 = vadd.f32 %v2052, %v2092
    %v2094 = vpop.f32.mrb[0].mxu0
    %v2095 = vpop.f32.mrb[0].mxu0
    %2096 = vdwg.mxu0
    %2097 = vmatprep.subr.bf16.mxu0 %v997
    %2098 = vmatpush1.bf16.msra.mxu0 %v996
    %2099 = vmatprep.subr.bf16.mxu0 %v1005
    %2100 = vmatpush1.bf16.msra.mxu0 %v1004
    %2101 = vmatprep.subr.bf16.mxu0 %v1013
    %2102 = vmatpush1.bf16.msra.mxu0 %v1012
    %2103 = vmatprep.subr.bf16.mxu0 %v1021
    %2104 = vmatpush1.bf16.msra.mxu0 %v1020
    %2105 = vmatprep.subr.bf16.mxu0 %v1029
    %2106 = vmatpush1.bf16.msra.mxu0 %v1028
    %2107 = vmatprep.subr.bf16.mxu0 %v1037
    %2108 = vmatpush1.bf16.msra.mxu0 %v1036
    %2109 = vmatprep.subr.bf16.mxu0 %v1045
    %2110 = vmatpush1.bf16.msra.mxu0 %v1044
    %2111 = vmatprep.subr.bf16.mxu0 %v1053
    %2112 = vmatpush1.bf16.msra.mxu0 %v1052
    %2113 = vmatprep.subr.bf16.mxu0 %v1061
    %2114 = vmatpush1.bf16.msra.mxu0 %v1060
    %2115 = vmatprep.subr.bf16.mxu0 %v1069
    %2116 = vmatpush1.bf16.msra.mxu0 %v1068
    %2117 = vmatprep.subr.bf16.mxu0 %v1077
    %2118 = vmatpush1.bf16.msra.mxu0 %v1076
    %2119 = vmatprep.subr.bf16.mxu0 %v1085
    %2120 = vmatpush1.bf16.msra.mxu0 %v1084
    %2121 = vmatprep.subr.bf16.mxu0 %v1093
    %2122 = vmatpush1.bf16.msra.mxu0 %v1092
    %2123 = vmatprep.subr.bf16.mxu0 %v1101
    %2124 = vmatpush1.bf16.msra.mxu0 %v1100
    %2125 = vmatprep.subr.bf16.mxu0 %v1109
    %2126 = vmatpush1.bf16.msra.mxu0 %v1108
    %2127 = vmatprep.subr.bf16.mxu0 %v1117
    %2128 = vmatpush1.bf16.msra.mxu0 %v1116
    %2129 = vmatprep.mubr.bf16.mxu0 %v343
    %2130 = vmatmul.mubr.bf16.gmra.mrb[0].mxu0 %v342
    %v2131 = vpop.f32.mrb[0].mxu0
    %v2132 = vadd.f32 %v2091, %v2131
    %v2133 = vpop.f32.mrb[0].mxu0
    %v2134 = vadd.f32 %v2093, %v2133
    %v2135 = vpop.f32.mrb[0].mxu0
    %v2136 = vpop.f32.mrb[0].mxu0
    %2137 = vdwg.mxu0
    %2138 = vmatprep.subr.bf16.mxu0 %v1125
    %2139 = vmatpush1.bf16.msra.mxu0 %v1124
    %2140 = vmatprep.subr.bf16.mxu0 %v1133
    %2141 = vmatpush1.bf16.msra.mxu0 %v1132
    %2142 = vmatprep.subr.bf16.mxu0 %v1141
    %2143 = vmatpush1.bf16.msra.mxu0 %v1140
    %2144 = vmatprep.subr.bf16.mxu0 %v1149
    %2145 = vmatpush1.bf16.msra.mxu0 %v1148
    %2146 = vmatprep.subr.bf16.mxu0 %v1157
    %2147 = vmatpush1.bf16.msra.mxu0 %v1156
    %2148 = vmatprep.subr.bf16.mxu0 %v1165
    %2149 = vmatpush1.bf16.msra.mxu0 %v1164
    %2150 = vmatprep.subr.bf16.mxu0 %v1173
    %2151 = vmatpush1.bf16.msra.mxu0 %v1172
    %2152 = vmatprep.subr.bf16.mxu0 %v1181
    %2153 = vmatpush1.bf16.msra.mxu0 %v1180
    %2154 = vmatprep.subr.bf16.mxu0 %v1189
    %2155 = vmatpush1.bf16.msra.mxu0 %v1188
    %2156 = vmatprep.subr.bf16.mxu0 %v1197
    %2157 = vmatpush1.bf16.msra.mxu0 %v1196
    %2158 = vmatprep.subr.bf16.mxu0 %v1205
    %2159 = vmatpush1.bf16.msra.mxu0 %v1204
    %2160 = vmatprep.subr.bf16.mxu0 %v1213
    %2161 = vmatpush1.bf16.msra.mxu0 %v1212
    %2162 = vmatprep.subr.bf16.mxu0 %v1221
    %2163 = vmatpush1.bf16.msra.mxu0 %v1220
    %2164 = vmatprep.subr.bf16.mxu0 %v1229
    %2165 = vmatpush1.bf16.msra.mxu0 %v1228
    %2166 = vmatprep.subr.bf16.mxu0 %v1237
    %2167 = vmatpush1.bf16.msra.mxu0 %v1236
    %2168 = vmatprep.subr.bf16.mxu0 %v1245
    %2169 = vmatpush1.bf16.msra.mxu0 %v1244
    %2170 = vmatprep.mubr.bf16.mxu0 %v345
    %2171 = vmatmul.mubr.bf16.gmra.mrb[0].mxu0 %v344
    %v2172 = vpop.f32.mrb[0].mxu0
    %v2173 = vadd.f32 %v2132, %v2172
    %v2174 = vpop.f32.mrb[0].mxu0
    %v2175 = vadd.f32 %v2134, %v2174
    %v2176 = vpop.f32.mrb[0].mxu0
    %v2177 = vpop.f32.mrb[0].mxu0
    %2178 = vdwg.mxu0
    %2179 = vmatprep.subr.bf16.mxu0 %v1253
    %2180 = vmatpush1.bf16.msra.mxu0 %v1252
    %2181 = vmatprep.subr.bf16.mxu0 %v1261
    %2182 = vmatpush1.bf16.msra.mxu0 %v1260
    %2183 = vmatprep.subr.bf16.mxu0 %v1269
    %2184 = vmatpush1.bf16.msra.mxu0 %v1268
    %2185 = vmatprep.subr.bf16.mxu0 %v1277
    %2186 = vmatpush1.bf16.msra.mxu0 %v1276
    %2187 = vmatprep.subr.bf16.mxu0 %v1285
    %2188 = vmatpush1.bf16.msra.mxu0 %v1284
    %2189 = vmatprep.subr.bf16.mxu0 %v1293
    %2190 = vmatpush1.bf16.msra.mxu0 %v1292
    %2191 = vmatprep.subr.bf16.mxu0 %v1301
    %2192 = vmatpush1.bf16.msra.mxu0 %v1300
    %2193 = vmatprep.subr.bf16.mxu0 %v1309
    %2194 = vmatpush1.bf16.msra.mxu0 %v1308
    %2195 = vmatprep.subr.bf16.mxu0 %v1317
    %2196 = vmatpush1.bf16.msra.mxu0 %v1316
    %2197 = vmatprep.subr.bf16.mxu0 %v1325
    %2198 = vmatpush1.bf16.msra.mxu0 %v1324
    %2199 = vmatprep.subr.bf16.mxu0 %v1333
    %2200 = vmatpush1.bf16.msra.mxu0 %v1332
    %2201 = vmatprep.subr.bf16.mxu0 %v1341
    %2202 = vmatpush1.bf16.msra.mxu0 %v1340
    %2203 = vmatprep.subr.bf16.mxu0 %v1349
    %2204 = vmatpush1.bf16.msra.mxu0 %v1348
    %2205 = vmatprep.subr.bf16.mxu0 %v1357
    %2206 = vmatpush1.bf16.msra.mxu0 %v1356
    %2207 = vmatprep.subr.bf16.mxu0 %v1365
    %2208 = vmatpush1.bf16.msra.mxu0 %v1364
    %2209 = vmatprep.subr.bf16.mxu0 %v1373
    %2210 = vmatpush1.bf16.msra.mxu0 %v1372
    %2211 = vmatprep.mubr.bf16.mxu0 %v347
    %2212 = vmatmul.mubr.bf16.gmra.mrb[0].mxu0 %v346
    %v2213 = vpop.f32.mrb[0].mxu0
    %v2214 = vadd.f32 %v2173, %v2213
    %v2215 = vpop.f32.mrb[0].mxu0
    %v2216 = vadd.f32 %v2175, %v2215
    %v2217 = vpop.f32.mrb[0].mxu0
    %v2218 = vpop.f32.mrb[0].mxu0
    %2219 = vdwg.mxu0
    %2220 = vmatprep.subr.bf16.mxu0 %v1381
    %2221 = vmatpush1.bf16.msra.mxu0 %v1380
    %2222 = vmatprep.subr.bf16.mxu0 %v1389
    %2223 = vmatpush1.bf16.msra.mxu0 %v1388
    %2224 = vmatprep.subr.bf16.mxu0 %v1397
    %2225 = vmatpush1.bf16.msra.mxu0 %v1396
    %2226 = vmatprep.subr.bf16.mxu0 %v1405
    %2227 = vmatpush1.bf16.msra.mxu0 %v1404
    %2228 = vmatprep.subr.bf16.mxu0 %v1413
    %2229 = vmatpush1.bf16.msra.mxu0 %v1412
    %2230 = vmatprep.subr.bf16.mxu0 %v1421
    %2231 = vmatpush1.bf16.msra.mxu0 %v1420
    %2232 = vmatprep.subr.bf16.mxu0 %v1429
    %2233 = vmatpush1.bf16.msra.mxu0 %v1428
    %2234 = vmatprep.subr.bf16.mxu0 %v1437
    %2235 = vmatpush1.bf16.msra.mxu0 %v1436
    %2236 = vmatprep.subr.bf16.mxu0 %v1445
    %2237 = vmatpush1.bf16.msra.mxu0 %v1444
    %2238 = vmatprep.subr.bf16.mxu0 %v1453
    %2239 = vmatpush1.bf16.msra.mxu0 %v1452
    %2240 = vmatprep.subr.bf16.mxu0 %v1461
    %2241 = vmatpush1.bf16.msra.mxu0 %v1460
    %2242 = vmatprep.subr.bf16.mxu0 %v1469
    %2243 = vmatpush1.bf16.msra.mxu0 %v1468
    %2244 = vmatprep.subr.bf16.mxu0 %v1477
    %2245 = vmatpush1.bf16.msra.mxu0 %v1476
    %2246 = vmatprep.subr.bf16.mxu0 %v1485
    %2247 = vmatpush1.bf16.msra.mxu0 %v1484
    %2248 = vmatprep.subr.bf16.mxu0 %v1493
    %2249 = vmatpush1.bf16.msra.mxu0 %v1492
    %2250 = vmatprep.subr.bf16.mxu0 %v1501
    %2251 = vmatpush1.bf16.msra.mxu0 %v1500
    %2252 = vmatprep.mubr.bf16.mxu0 %v349
    %2253 = vmatmul.mubr.bf16.gmra.mrb[0].mxu0 %v348
    %v2254 = vpop.f32.mrb[0].mxu0
    %v2255 = vadd.f32 %v2214, %v2254
    %v2256 = vpop.f32.mrb[0].mxu0
    %v2257 = vadd.f32 %v2216, %v2256
    %v2258 = vpop.f32.mrb[0].mxu0
    %v2259 = vpop.f32.mrb[0].mxu0
    %2260 = vdwg.mxu0
    %2261 = vmatprep.subr.bf16.mxu0 %v1509
    %2262 = vmatpush1.bf16.msra.mxu0 %v1508
    %2263 = vmatprep.subr.bf16.mxu0 %v1517
    %2264 = vmatpush1.bf16.msra.mxu0 %v1516
    %2265 = vmatprep.subr.bf16.mxu0 %v1525
    %2266 = vmatpush1.bf16.msra.mxu0 %v1524
    %2267 = vmatprep.subr.bf16.mxu0 %v1533
    %2268 = vmatpush1.bf16.msra.mxu0 %v1532
    %2269 = vmatprep.subr.bf16.mxu0 %v1541
    %2270 = vmatpush1.bf16.msra.mxu0 %v1540
    %2271 = vmatprep.subr.bf16.mxu0 %v1549
    %2272 = vmatpush1.bf16.msra.mxu0 %v1548
    %2273 = vmatprep.subr.bf16.mxu0 %v1557
    %2274 = vmatpush1.bf16.msra.mxu0 %v1556
    %2275 = vmatprep.subr.bf16.mxu0 %v1565
    %2276 = vmatpush1.bf16.msra.mxu0 %v1564
    %2277 = vmatprep.subr.bf16.mxu0 %v1573
    %2278 = vmatpush1.bf16.msra.mxu0 %v1572
    %2279 = vmatprep.subr.bf16.mxu0 %v1581
    %2280 = vmatpush1.bf16.msra.mxu0 %v1580
    %2281 = vmatprep.subr.bf16.mxu0 %v1589
    %2282 = vmatpush1.bf16.msra.mxu0 %v1588
    %2283 = vmatprep.subr.bf16.mxu0 %v1597
    %2284 = vmatpush1.bf16.msra.mxu0 %v1596
    %2285 = vmatprep.subr.bf16.mxu0 %v1605
    %2286 = vmatpush1.bf16.msra.mxu0 %v1604
    %2287 = vmatprep.subr.bf16.mxu0 %v1613
    %2288 = vmatpush1.bf16.msra.mxu0 %v1612
    %2289 = vmatprep.subr.bf16.mxu0 %v1621
    %2290 = vmatpush1.bf16.msra.mxu0 %v1620
    %2291 = vmatprep.subr.bf16.mxu0 %v1629
    %2292 = vmatpush1.bf16.msra.mxu0 %v1628
    %2293 = vmatprep.mubr.bf16.mxu0 %v351
    %2294 = vmatmul.mubr.bf16.gmra.mrb[0].mxu0 %v350
    %v2295 = vpop.f32.mrb[0].mxu0
    %v2296 = vadd.f32 %v2255, %v2295
    %v2297 = vpop.f32.mrb[0].mxu0
    %v2298 = vadd.f32 %v2257, %v2297
    %v2299 = vpop.f32.mrb[0].mxu0
    %v2300 = vpop.f32.mrb[0].mxu0
    %2301 = vdwg.mxu0
    %2302 = vmatprep.subr.bf16.mxu0 %v1637
    %2303 = vmatpush1.bf16.msra.mxu0 %v1636
    %2304 = vmatprep.subr.bf16.mxu0 %v1645
    %2305 = vmatpush1.bf16.msra.mxu0 %v1644
    %2306 = vmatprep.subr.bf16.mxu0 %v1653
    %2307 = vmatpush1.bf16.msra.mxu0 %v1652
    %2308 = vmatprep.subr.bf16.mxu0 %v1661
    %2309 = vmatpush1.bf16.msra.mxu0 %v1660
    %2310 = vmatprep.subr.bf16.mxu0 %v1669
    %2311 = vmatpush1.bf16.msra.mxu0 %v1668
    %2312 = vmatprep.subr.bf16.mxu0 %v1677
    %2313 = vmatpush1.bf16.msra.mxu0 %v1676
    %2314 = vmatprep.subr.bf16.mxu0 %v1685
    %2315 = vmatpush1.bf16.msra.mxu0 %v1684
    %2316 = vmatprep.subr.bf16.mxu0 %v1693
    %2317 = vmatpush1.bf16.msra.mxu0 %v1692
    %2318 = vmatprep.subr.bf16.mxu0 %v1701
    %2319 = vmatpush1.bf16.msra.mxu0 %v1700
    %2320 = vmatprep.subr.bf16.mxu0 %v1709
    %2321 = vmatpush1.bf16.msra.mxu0 %v1708
    %2322 = vmatprep.subr.bf16.mxu0 %v1717
    %2323 = vmatpush1.bf16.msra.mxu0 %v1716
    %2324 = vmatprep.subr.bf16.mxu0 %v1725
    %2325 = vmatpush1.bf16.msra.mxu0 %v1724
    %2326 = vmatprep.subr.bf16.mxu0 %v1733
    %2327 = vmatpush1.bf16.msra.mxu0 %v1732
    %2328 = vmatprep.subr.bf16.mxu0 %v1741
    %2329 = vmatpush1.bf16.msra.mxu0 %v1740
    %2330 = vmatprep.subr.bf16.mxu0 %v1749
    %2331 = vmatpush1.bf16.msra.mxu0 %v1748
    %2332 = vmatprep.subr.bf16.mxu0 %v1757
    %2333 = vmatpush1.bf16.msra.mxu0 %v1756
    %2334 = vmatprep.mubr.bf16.mxu0 %v353
    %2335 = vmatmul.mubr.bf16.gmra.mrb[0].mxu0 %v352
    %v2336 = vpop.f32.mrb[0].mxu0
    %v2337 = vadd.f32 %v2296, %v2336
    %v2338 = vpop.f32.mrb[0].mxu0
    %v2339 = vadd.f32 %v2298, %v2338
    %v2340 = vpop.f32.mrb[0].mxu0
    %v2341 = vpop.f32.mrb[0].mxu0
    %2342 = vdwg.mxu0
    %2343 = vmatprep.subr.bf16.mxu0 %v1765
    %2344 = vmatpush1.bf16.msra.mxu0 %v1764
    %2345 = vmatprep.subr.bf16.mxu0 %v1773
    %2346 = vmatpush1.bf16.msra.mxu0 %v1772
    %2347 = vmatprep.subr.bf16.mxu0 %v1781
    %2348 = vmatpush1.bf16.msra.mxu0 %v1780
    %2349 = vmatprep.subr.bf16.mxu0 %v1789
    %2350 = vmatpush1.bf16.msra.mxu0 %v1788
    %2351 = vmatprep.subr.bf16.mxu0 %v1797
    %2352 = vmatpush1.bf16.msra.mxu0 %v1796
    %2353 = vmatprep.subr.bf16.mxu0 %v1805
    %2354 = vmatpush1.bf16.msra.mxu0 %v1804
    %2355 = vmatprep.subr.bf16.mxu0 %v1813
    %2356 = vmatpush1.bf16.msra.mxu0 %v1812
    %2357 = vmatprep.subr.bf16.mxu0 %v1821
    %2358 = vmatpush1.bf16.msra.mxu0 %v1820
    %2359 = vmatprep.subr.bf16.mxu0 %v1829
    %2360 = vmatpush1.bf16.msra.mxu0 %v1828
    %2361 = vmatprep.subr.bf16.mxu0 %v1837
    %2362 = vmatpush1.bf16.msra.mxu0 %v1836
    %2363 = vmatprep.subr.bf16.mxu0 %v1845
    %2364 = vmatpush1.bf16.msra.mxu0 %v1844
    %2365 = vmatprep.subr.bf16.mxu0 %v1853
    %2366 = vmatpush1.bf16.msra.mxu0 %v1852
    %2367 = vmatprep.subr.bf16.mxu0 %v1861
    %2368 = vmatpush1.bf16.msra.mxu0 %v1860
    %2369 = vmatprep.subr.bf16.mxu0 %v1869
    %2370 = vmatpush1.bf16.msra.mxu0 %v1868
    %2371 = vmatprep.subr.bf16.mxu0 %v1877
    %2372 = vmatpush1.bf16.msra.mxu0 %v1876
    %2373 = vmatprep.subr.bf16.mxu0 %v1885
    %2374 = vmatpush1.bf16.msra.mxu0 %v1884
    %2375 = vmatprep.mubr.bf16.mxu0 %v355
    %2376 = vmatmul.mubr.bf16.gmra.mrb[0].mxu0 %v354
    %v2377 = vpop.f32.mrb[0].mxu0
    %v2378 = vadd.f32 %v2337, %v2377
    %v2379 = vpop.f32.mrb[0].mxu0
    %v2380 = vadd.f32 %v2339, %v2379
    %v2381 = vpop.f32.mrb[0].mxu0
    %v2382 = vpop.f32.mrb[0].mxu0
    %2383 = vdwg.mxu0
    %2384 = vmatprep.subr.bf16.mxu0 %v359
    %2385 = vmatpush1.bf16.msra.mxu0 %v358
    %2386 = vmatprep.subr.bf16.mxu0 %v367
    %2387 = vmatpush1.bf16.msra.mxu0 %v366
    %2388 = vmatprep.subr.bf16.mxu0 %v375
    %2389 = vmatpush1.bf16.msra.mxu0 %v374
    %2390 = vmatprep.subr.bf16.mxu0 %v383
    %2391 = vmatpush1.bf16.msra.mxu0 %v382
    %2392 = vmatprep.subr.bf16.mxu0 %v391
    %2393 = vmatpush1.bf16.msra.mxu0 %v390
    %2394 = vmatprep.subr.bf16.mxu0 %v399
    %2395 = vmatpush1.bf16.msra.mxu0 %v398
    %2396 = vmatprep.subr.bf16.mxu0 %v407
    %2397 = vmatpush1.bf16.msra.mxu0 %v406
    %2398 = vmatprep.subr.bf16.mxu0 %v415
    %2399 = vmatpush1.bf16.msra.mxu0 %v414
    %2400 = vmatprep.subr.bf16.mxu0 %v423
    %2401 = vmatpush1.bf16.msra.mxu0 %v422
    %2402 = vmatprep.subr.bf16.mxu0 %v431
    %2403 = vmatpush1.bf16.msra.mxu0 %v430
    %2404 = vmatprep.subr.bf16.mxu0 %v439
    %2405 = vmatpush1.bf16.msra.mxu0 %v438
    %2406 = vmatprep.subr.bf16.mxu0 %v447
    %2407 = vmatpush1.bf16.msra.mxu0 %v446
    %2408 = vmatprep.subr.bf16.mxu0 %v455
    %2409 = vmatpush1.bf16.msra.mxu0 %v454
    %2410 = vmatprep.subr.bf16.mxu0 %v463
    %2411 = vmatpush1.bf16.msra.mxu0 %v462
    %2412 = vmatprep.subr.bf16.mxu0 %v471
    %2413 = vmatpush1.bf16.msra.mxu0 %v470
    %2414 = vmatprep.subr.bf16.mxu0 %v479
    %2415 = vmatpush1.bf16.msra.mxu0 %v478
    %2416 = vmatprep.mubr.bf16.mxu0 %v333
    %2417 = vmatmul.mubr.bf16.gmra.mrb[0].mxu0 %v332
    %v2418 = vpop.f32.mrb[0].mxu0
    %v2419 = vadd.f32 0.0, %v2418
    %v2420 = vpop.f32.mrb[0].mxu0
    %v2421 = vadd.f32 0.0, %v2420
    %v2422 = vpop.f32.mrb[0].mxu0
    %v2423 = vpop.f32.mrb[0].mxu0
    %2424 = vdwg.mxu0
    %2425 = vmatprep.subr.bf16.mxu0 %v487
    %2426 = vmatpush1.bf16.msra.mxu0 %v486
    %2427 = vmatprep.subr.bf16.mxu0 %v495
    %2428 = vmatpush1.bf16.msra.mxu0 %v494
    %2429 = vmatprep.subr.bf16.mxu0 %v503
    %2430 = vmatpush1.bf16.msra.mxu0 %v502
    %2431 = vmatprep.subr.bf16.mxu0 %v511
    %2432 = vmatpush1.bf16.msra.mxu0 %v510
    %2433 = vmatprep.subr.bf16.mxu0 %v519
    %2434 = vmatpush1.bf16.msra.mxu0 %v518
    %2435 = vmatprep.subr.bf16.mxu0 %v527
    %2436 = vmatpush1.bf16.msra.mxu0 %v526
    %2437 = vmatprep.subr.bf16.mxu0 %v535
    %2438 = vmatpush1.bf16.msra.mxu0 %v534
    %2439 = vmatprep.subr.bf16.mxu0 %v543
    %2440 = vmatpush1.bf16.msra.mxu0 %v542
    %2441 = vmatprep.subr.bf16.mxu0 %v551
    %2442 = vmatpush1.bf16.msra.mxu0 %v550
    %2443 = vmatprep.subr.bf16.mxu0 %v559
    %2444 = vmatpush1.bf16.msra.mxu0 %v558
    %2445 = vmatprep.subr.bf16.mxu0 %v567
    %2446 = vmatpush1.bf16.msra.mxu0 %v566
    %2447 = vmatprep.subr.bf16.mxu0 %v575
    %2448 = vmatpush1.bf16.msra.mxu0 %v574
    %2449 = vmatprep.subr.bf16.mxu0 %v583
    %2450 = vmatpush1.bf16.msra.mxu0 %v582
    %2451 = vmatprep.subr.bf16.mxu0 %v591
    %2452 = vmatpush1.bf16.msra.mxu0 %v590
    %2453 = vmatprep.subr.bf16.mxu0 %v599
    %2454 = vmatpush1.bf16.msra.mxu0 %v598
    %2455 = vmatprep.subr.bf16.mxu0 %v607
    %2456 = vmatpush1.bf16.msra.mxu0 %v606
    %2457 = vmatprep.mubr.bf16.mxu0 %v335
    %2458 = vmatmul.mubr.bf16.gmra.mrb[0].mxu0 %v334
    %v2459 = vpop.f32.mrb[0].mxu0
    %v2460 = vadd.f32 %v2419, %v2459
    %v2461 = vpop.f32.mrb[0].mxu0
    %v2462 = vadd.f32 %v2421, %v2461
    %v2463 = vpop.f32.mrb[0].mxu0
    %v2464 = vpop.f32.mrb[0].mxu0
    %2465 = vdwg.mxu0
    %2466 = vmatprep.subr.bf16.mxu0 %v615
    %2467 = vmatpush1.bf16.msra.mxu0 %v614
    %2468 = vmatprep.subr.bf16.mxu0 %v623
    %2469 = vmatpush1.bf16.msra.mxu0 %v622
    %2470 = vmatprep.subr.bf16.mxu0 %v631
    %2471 = vmatpush1.bf16.msra.mxu0 %v630
    %2472 = vmatprep.subr.bf16.mxu0 %v639
    %2473 = vmatpush1.bf16.msra.mxu0 %v638
    %2474 = vmatprep.subr.bf16.mxu0 %v647
    %2475 = vmatpush1.bf16.msra.mxu0 %v646
    %2476 = vmatprep.subr.bf16.mxu0 %v655
    %2477 = vmatpush1.bf16.msra.mxu0 %v654
    %2478 = vmatprep.subr.bf16.mxu0 %v663
    %2479 = vmatpush1.bf16.msra.mxu0 %v662
    %2480 = vmatprep.subr.bf16.mxu0 %v671
    %2481 = vmatpush1.bf16.msra.mxu0 %v670
    %2482 = vmatprep.subr.bf16.mxu0 %v679
    %2483 = vmatpush1.bf16.msra.mxu0 %v678
    %2484 = vmatprep.subr.bf16.mxu0 %v687
    %2485 = vmatpush1.bf16.msra.mxu0 %v686
    %2486 = vmatprep.subr.bf16.mxu0 %v695
    %2487 = vmatpush1.bf16.msra.mxu0 %v694
    %2488 = vmatprep.subr.bf16.mxu0 %v703
    %2489 = vmatpush1.bf16.msra.mxu0 %v702
    %2490 = vmatprep.subr.bf16.mxu0 %v711
    %2491 = vmatpush1.bf16.msra.mxu0 %v710
    %2492 = vmatprep.subr.bf16.mxu0 %v719
    %2493 = vmatpush1.bf16.msra.mxu0 %v718
    %2494 = vmatprep.subr.bf16.mxu0 %v727
    %2495 = vmatpush1.bf16.msra.mxu0 %v726
    %2496 = vmatprep.subr.bf16.mxu0 %v735
    %2497 = vmatpush1.bf16.msra.mxu0 %v734
    %2498 = vmatprep.mubr.bf16.mxu0 %v337
    %2499 = vmatmul.mubr.bf16.gmra.mrb[0].mxu0 %v336
    %v2500 = vpop.f32.mrb[0].mxu0
    %v2501 = vadd.f32 %v2460, %v2500
    %v2502 = vpop.f32.mrb[0].mxu0
    %v2503 = vadd.f32 %v2462, %v2502
    %v2504 = vpop.f32.mrb[0].mxu0
    %v2505 = vpop.f32.mrb[0].mxu0
    %2506 = vdwg.mxu0
    %2507 = vmatprep.subr.bf16.mxu0 %v743
    %2508 = vmatpush1.bf16.msra.mxu0 %v742
    %2509 = vmatprep.subr.bf16.mxu0 %v751
    %2510 = vmatpush1.bf16.msra.mxu0 %v750
    %2511 = vmatprep.subr.bf16.mxu0 %v759
    %2512 = vmatpush1.bf16.msra.mxu0 %v758
    %2513 = vmatprep.subr.bf16.mxu0 %v767
    %2514 = vmatpush1.bf16.msra.mxu0 %v766
    %2515 = vmatprep.subr.bf16.mxu0 %v775
    %2516 = vmatpush1.bf16.msra.mxu0 %v774
    %2517 = vmatprep.subr.bf16.mxu0 %v783
    %2518 = vmatpush1.bf16.msra.mxu0 %v782
    %2519 = vmatprep.subr.bf16.mxu0 %v791
    %2520 = vmatpush1.bf16.msra.mxu0 %v790
    %2521 = vmatprep.subr.bf16.mxu0 %v799
    %2522 = vmatpush1.bf16.msra.mxu0 %v798
    %2523 = vmatprep.subr.bf16.mxu0 %v807
    %2524 = vmatpush1.bf16.msra.mxu0 %v806
    %2525 = vmatprep.subr.bf16.mxu0 %v815
    %2526 = vmatpush1.bf16.msra.mxu0 %v814
    %2527 = vmatprep.subr.bf16.mxu0 %v823
    %2528 = vmatpush1.bf16.msra.mxu0 %v822
    %2529 = vmatprep.subr.bf16.mxu0 %v831
    %2530 = vmatpush1.bf16.msra.mxu0 %v830
    %2531 = vmatprep.subr.bf16.mxu0 %v839
    %2532 = vmatpush1.bf16.msra.mxu0 %v838
    %2533 = vmatprep.subr.bf16.mxu0 %v847
    %2534 = vmatpush1.bf16.msra.mxu0 %v846
    %2535 = vmatprep.subr.bf16.mxu0 %v855
    %2536 = vmatpush1.bf16.msra.mxu0 %v854
    %2537 = vmatprep.subr.bf16.mxu0 %v863
    %2538 = vmatpush1.bf16.msra.mxu0 %v862
    %2539 = vmatprep.mubr.bf16.mxu0 %v339
    %2540 = vmatmul.mubr.bf16.gmra.mrb[0].mxu0 %v338
    %v2541 = vpop.f32.mrb[0].mxu0
    %v2542 = vadd.f32 %v2501, %v2541
    %v2543 = vpop.f32.mrb[0].mxu0
    %v2544 = vadd.f32 %v2503, %v2543
    %v2545 = vpop.f32.mrb[0].mxu0
    %v2546 = vpop.f32.mrb[0].mxu0
    %2547 = vdwg.mxu0
    %2548 = vmatprep.subr.bf16.mxu0 %v871
    %2549 = vmatpush1.bf16.msra.mxu0 %v870
    %2550 = vmatprep.subr.bf16.mxu0 %v879
    %2551 = vmatpush1.bf16.msra.mxu0 %v878
    %2552 = vmatprep.subr.bf16.mxu0 %v887
    %2553 = vmatpush1.bf16.msra.mxu0 %v886
    %2554 = vmatprep.subr.bf16.mxu0 %v895
    %2555 = vmatpush1.bf16.msra.mxu0 %v894
    %2556 = vmatprep.subr.bf16.mxu0 %v903
    %2557 = vmatpush1.bf16.msra.mxu0 %v902
    %2558 = vmatprep.subr.bf16.mxu0 %v911
    %2559 = vmatpush1.bf16.msra.mxu0 %v910
    %2560 = vmatprep.subr.bf16.mxu0 %v919
    %2561 = vmatpush1.bf16.msra.mxu0 %v918
    %2562 = vmatprep.subr.bf16.mxu0 %v927
    %2563 = vmatpush1.bf16.msra.mxu0 %v926
    %2564 = vmatprep.subr.bf16.mxu0 %v935
    %2565 = vmatpush1.bf16.msra.mxu0 %v934
    %2566 = vmatprep.subr.bf16.mxu0 %v943
    %2567 = vmatpush1.bf16.msra.mxu0 %v942
    %2568 = vmatprep.subr.bf16.mxu0 %v951
    %2569 = vmatpush1.bf16.msra.mxu0 %v950
    %2570 = vmatprep.subr.bf16.mxu0 %v959
    %2571 = vmatpush1.bf16.msra.mxu0 %v958
    %2572 = vmatprep.subr.bf16.mxu0 %v967
    %2573 = vmatpush1.bf16.msra.mxu0 %v966
    %2574 = vmatprep.subr.bf16.mxu0 %v975
    %2575 = vmatpush1.bf16.msra.mxu0 %v974
    %2576 = vmatprep.subr.bf16.mxu0 %v983
    %2577 = vmatpush1.bf16.msra.mxu0 %v982
    %2578 = vmatprep.subr.bf16.mxu0 %v991
    %2579 = vmatpush1.bf16.msra.mxu0 %v990
    %2580 = vmatprep.mubr.bf16.mxu0 %v341
    %2581 = vmatmul.mubr.bf16.gmra.mrb[0].mxu0 %v340
    %v2582 = vpop.f32.mrb[0].mxu0
    %v2583 = vadd.f32 %v2542, %v2582
    %v2584 = vpop.f32.mrb[0].mxu0
    %v2585 = vadd.f32 %v2544, %v2584
    %v2586 = vpop.f32.mrb[0].mxu0
    %v2587 = vpop.f32.mrb[0].mxu0
    %2588 = vdwg.mxu0
    %2589 = vmatprep.subr.bf16.mxu0 %v999
    %2590 = vmatpush1.bf16.msra.mxu0 %v998
    %2591 = vmatprep.subr.bf16.mxu0 %v1007
    %2592 = vmatpush1.bf16.msra.mxu0 %v1006
    %2593 = vmatprep.subr.bf16.mxu0 %v1015
    %2594 = vmatpush1.bf16.msra.mxu0 %v1014
    %2595 = vmatprep.subr.bf16.mxu0 %v1023
    %2596 = vmatpush1.bf16.msra.mxu0 %v1022
    %2597 = vmatprep.subr.bf16.mxu0 %v1031
    %2598 = vmatpush1.bf16.msra.mxu0 %v1030
    %2599 = vmatprep.subr.bf16.mxu0 %v1039
    %2600 = vmatpush1.bf16.msra.mxu0 %v1038
    %2601 = vmatprep.subr.bf16.mxu0 %v1047
    %2602 = vmatpush1.bf16.msra.mxu0 %v1046
    %2603 = vmatprep.subr.bf16.mxu0 %v1055
    %2604 = vmatpush1.bf16.msra.mxu0 %v1054
    %2605 = vmatprep.subr.bf16.mxu0 %v1063
    %2606 = vmatpush1.bf16.msra.mxu0 %v1062
    %2607 = vmatprep.subr.bf16.mxu0 %v1071
    %2608 = vmatpush1.bf16.msra.mxu0 %v1070
    %2609 = vmatprep.subr.bf16.mxu0 %v1079
    %2610 = vmatpush1.bf16.msra.mxu0 %v1078
    %2611 = vmatprep.subr.bf16.mxu0 %v1087
    %2612 = vmatpush1.bf16.msra.mxu0 %v1086
    %2613 = vmatprep.subr.bf16.mxu0 %v1095
    %2614 = vmatpush1.bf16.msra.mxu0 %v1094
    %2615 = vmatprep.subr.bf16.mxu0 %v1103
    %2616 = vmatpush1.bf16.msra.mxu0 %v1102
    %2617 = vmatprep.subr.bf16.mxu0 %v1111
    %2618 = vmatpush1.bf16.msra.mxu0 %v1110
    %2619 = vmatprep.subr.bf16.mxu0 %v1119
    %2620 = vmatpush1.bf16.msra.mxu0 %v1118
    %2621 = vmatprep.mubr.bf16.mxu0 %v343
    %2622 = vmatmul.mubr.bf16.gmra.mrb[0].mxu0 %v342
    %v2623 = vpop.f32.mrb[0].mxu0
    %v2624 = vadd.f32 %v2583, %v2623
    %v2625 = vpop.f32.mrb[0].mxu0
    %v2626 = vadd.f32 %v2585, %v2625
    %v2627 = vpop.f32.mrb[0].mxu0
    %v2628 = vpop.f32.mrb[0].mxu0
    %2629 = vdwg.mxu0
    %2630 = vmatprep.subr.bf16.mxu0 %v1127
    %2631 = vmatpush1.bf16.msra.mxu0 %v1126
    %2632 = vmatprep.subr.bf16.mxu0 %v1135
    %2633 = vmatpush1.bf16.msra.mxu0 %v1134
    %2634 = vmatprep.subr.bf16.mxu0 %v1143
    %2635 = vmatpush1.bf16.msra.mxu0 %v1142
    %2636 = vmatprep.subr.bf16.mxu0 %v1151
    %2637 = vmatpush1.bf16.msra.mxu0 %v1150
    %2638 = vmatprep.subr.bf16.mxu0 %v1159
    %2639 = vmatpush1.bf16.msra.mxu0 %v1158
    %2640 = vmatprep.subr.bf16.mxu0 %v1167
    %2641 = vmatpush1.bf16.msra.mxu0 %v1166
    %2642 = vmatprep.subr.bf16.mxu0 %v1175
    %2643 = vmatpush1.bf16.msra.mxu0 %v1174
    %2644 = vmatprep.subr.bf16.mxu0 %v1183
    %2645 = vmatpush1.bf16.msra.mxu0 %v1182
    %2646 = vmatprep.subr.bf16.mxu0 %v1191
    %2647 = vmatpush1.bf16.msra.mxu0 %v1190
    %2648 = vmatprep.subr.bf16.mxu0 %v1199
    %2649 = vmatpush1.bf16.msra.mxu0 %v1198
    %2650 = vmatprep.subr.bf16.mxu0 %v1207
    %2651 = vmatpush1.bf16.msra.mxu0 %v1206
    %2652 = vmatprep.subr.bf16.mxu0 %v1215
    %2653 = vmatpush1.bf16.msra.mxu0 %v1214
    %2654 = vmatprep.subr.bf16.mxu0 %v1223
    %2655 = vmatpush1.bf16.msra.mxu0 %v1222
    %2656 = vmatprep.subr.bf16.mxu0 %v1231
    %2657 = vmatpush1.bf16.msra.mxu0 %v1230
    %2658 = vmatprep.subr.bf16.mxu0 %v1239
    %2659 = vmatpush1.bf16.msra.mxu0 %v1238
    %2660 = vmatprep.subr.bf16.mxu0 %v1247
    %2661 = vmatpush1.bf16.msra.mxu0 %v1246
    %2662 = vmatprep.mubr.bf16.mxu0 %v345
    %2663 = vmatmul.mubr.bf16.gmra.mrb[0].mxu0 %v344
    %v2664 = vpop.f32.mrb[0].mxu0
    %v2665 = vadd.f32 %v2624, %v2664
    %v2666 = vpop.f32.mrb[0].mxu0
    %v2667 = vadd.f32 %v2626, %v2666
    %v2668 = vpop.f32.mrb[0].mxu0
    %v2669 = vpop.f32.mrb[0].mxu0
    %2670 = vdwg.mxu0
    %2671 = vmatprep.subr.bf16.mxu0 %v1255
    %2672 = vmatpush1.bf16.msra.mxu0 %v1254
    %2673 = vmatprep.subr.bf16.mxu0 %v1263
    %2674 = vmatpush1.bf16.msra.mxu0 %v1262
    %2675 = vmatprep.subr.bf16.mxu0 %v1271
    %2676 = vmatpush1.bf16.msra.mxu0 %v1270
    %2677 = vmatprep.subr.bf16.mxu0 %v1279
    %2678 = vmatpush1.bf16.msra.mxu0 %v1278
    %2679 = vmatprep.subr.bf16.mxu0 %v1287
    %2680 = vmatpush1.bf16.msra.mxu0 %v1286
    %2681 = vmatprep.subr.bf16.mxu0 %v1295
    %2682 = vmatpush1.bf16.msra.mxu0 %v1294
    %2683 = vmatprep.subr.bf16.mxu0 %v1303
    %2684 = vmatpush1.bf16.msra.mxu0 %v1302
    %2685 = vmatprep.subr.bf16.mxu0 %v1311
    %2686 = vmatpush1.bf16.msra.mxu0 %v1310
    %2687 = vmatprep.subr.bf16.mxu0 %v1319
    %2688 = vmatpush1.bf16.msra.mxu0 %v1318
    %2689 = vmatprep.subr.bf16.mxu0 %v1327
    %2690 = vmatpush1.bf16.msra.mxu0 %v1326
    %2691 = vmatprep.subr.bf16.mxu0 %v1335
    %2692 = vmatpush1.bf16.msra.mxu0 %v1334
    %2693 = vmatprep.subr.bf16.mxu0 %v1343
    %2694 = vmatpush1.bf16.msra.mxu0 %v1342
    %2695 = vmatprep.subr.bf16.mxu0 %v1351
    %2696 = vmatpush1.bf16.msra.mxu0 %v1350
    %2697 = vmatprep.subr.bf16.mxu0 %v1359
    %2698 = vmatpush1.bf16.msra.mxu0 %v1358
    %2699 = vmatprep.subr.bf16.mxu0 %v1367
    %2700 = vmatpush1.bf16.msra.mxu0 %v1366
    %2701 = vmatprep.subr.bf16.mxu0 %v1375
    %2702 = vmatpush1.bf16.msra.mxu0 %v1374
    %2703 = vmatprep.mubr.bf16.mxu0 %v347
    %2704 = vmatmul.mubr.bf16.gmra.mrb[0].mxu0 %v346
    %v2705 = vpop.f32.mrb[0].mxu0
    %v2706 = vadd.f32 %v2665, %v2705
    %v2707 = vpop.f32.mrb[0].mxu0
    %v2708 = vadd.f32 %v2667, %v2707
    %v2709 = vpop.f32.mrb[0].mxu0
    %v2710 = vpop.f32.mrb[0].mxu0
    %2711 = vdwg.mxu0
    %2712 = vmatprep.subr.bf16.mxu0 %v1383
    %2713 = vmatpush1.bf16.msra.mxu0 %v1382
    %2714 = vmatprep.subr.bf16.mxu0 %v1391
    %2715 = vmatpush1.bf16.msra.mxu0 %v1390
    %2716 = vmatprep.subr.bf16.mxu0 %v1399
    %2717 = vmatpush1.bf16.msra.mxu0 %v1398
    %2718 = vmatprep.subr.bf16.mxu0 %v1407
    %2719 = vmatpush1.bf16.msra.mxu0 %v1406
    %2720 = vmatprep.subr.bf16.mxu0 %v1415
    %2721 = vmatpush1.bf16.msra.mxu0 %v1414
    %2722 = vmatprep.subr.bf16.mxu0 %v1423
    %2723 = vmatpush1.bf16.msra.mxu0 %v1422
    %2724 = vmatprep.subr.bf16.mxu0 %v1431
    %2725 = vmatpush1.bf16.msra.mxu0 %v1430
    %2726 = vmatprep.subr.bf16.mxu0 %v1439
    %2727 = vmatpush1.bf16.msra.mxu0 %v1438
    %2728 = vmatprep.subr.bf16.mxu0 %v1447
    %2729 = vmatpush1.bf16.msra.mxu0 %v1446
    %2730 = vmatprep.subr.bf16.mxu0 %v1455
    %2731 = vmatpush1.bf16.msra.mxu0 %v1454
    %2732 = vmatprep.subr.bf16.mxu0 %v1463
    %2733 = vmatpush1.bf16.msra.mxu0 %v1462
    %2734 = vmatprep.subr.bf16.mxu0 %v1471
    %2735 = vmatpush1.bf16.msra.mxu0 %v1470
    %2736 = vmatprep.subr.bf16.mxu0 %v1479
    %2737 = vmatpush1.bf16.msra.mxu0 %v1478
    %2738 = vmatprep.subr.bf16.mxu0 %v1487
    %2739 = vmatpush1.bf16.msra.mxu0 %v1486
    %2740 = vmatprep.subr.bf16.mxu0 %v1495
    %2741 = vmatpush1.bf16.msra.mxu0 %v1494
    %2742 = vmatprep.subr.bf16.mxu0 %v1503
    %2743 = vmatpush1.bf16.msra.mxu0 %v1502
    %2744 = vmatprep.mubr.bf16.mxu0 %v349
    %2745 = vmatmul.mubr.bf16.gmra.mrb[0].mxu0 %v348
    %v2746 = vpop.f32.mrb[0].mxu0
    %v2747 = vadd.f32 %v2706, %v2746
    %v2748 = vpop.f32.mrb[0].mxu0
    %v2749 = vadd.f32 %v2708, %v2748
    %v2750 = vpop.f32.mrb[0].mxu0
    %v2751 = vpop.f32.mrb[0].mxu0
    %2752 = vdwg.mxu0
    %2753 = vmatprep.subr.bf16.mxu0 %v1511
    %2754 = vmatpush1.bf16.msra.mxu0 %v1510
    %2755 = vmatprep.subr.bf16.mxu0 %v1519
    %2756 = vmatpush1.bf16.msra.mxu0 %v1518
    %2757 = vmatprep.subr.bf16.mxu0 %v1527
    %2758 = vmatpush1.bf16.msra.mxu0 %v1526
    %2759 = vmatprep.subr.bf16.mxu0 %v1535
    %2760 = vmatpush1.bf16.msra.mxu0 %v1534
    %2761 = vmatprep.subr.bf16.mxu0 %v1543
    %2762 = vmatpush1.bf16.msra.mxu0 %v1542
    %2763 = vmatprep.subr.bf16.mxu0 %v1551
    %2764 = vmatpush1.bf16.msra.mxu0 %v1550
    %2765 = vmatprep.subr.bf16.mxu0 %v1559
    %2766 = vmatpush1.bf16.msra.mxu0 %v1558
    %2767 = vmatprep.subr.bf16.mxu0 %v1567
    %2768 = vmatpush1.bf16.msra.mxu0 %v1566
    %2769 = vmatprep.subr.bf16.mxu0 %v1575
    %2770 = vmatpush1.bf16.msra.mxu0 %v1574
    %2771 = vmatprep.subr.bf16.mxu0 %v1583
    %2772 = vmatpush1.bf16.msra.mxu0 %v1582
    %2773 = vmatprep.subr.bf16.mxu0 %v1591
    %2774 = vmatpush1.bf16.msra.mxu0 %v1590
    %2775 = vmatprep.subr.bf16.mxu0 %v1599
    %2776 = vmatpush1.bf16.msra.mxu0 %v1598
    %2777 = vmatprep.subr.bf16.mxu0 %v1607
    %2778 = vmatpush1.bf16.msra.mxu0 %v1606
    %2779 = vmatprep.subr.bf16.mxu0 %v1615
    %2780 = vmatpush1.bf16.msra.mxu0 %v1614
    %2781 = vmatprep.subr.bf16.mxu0 %v1623
    %2782 = vmatpush1.bf16.msra.mxu0 %v1622
    %2783 = vmatprep.subr.bf16.mxu0 %v1631
    %2784 = vmatpush1.bf16.msra.mxu0 %v1630
    %2785 = vmatprep.mubr.bf16.mxu0 %v351
    %2786 = vmatmul.mubr.bf16.gmra.mrb[0].mxu0 %v350
    %v2787 = vpop.f32.mrb[0].mxu0
    %v2788 = vadd.f32 %v2747, %v2787
    %v2789 = vpop.f32.mrb[0].mxu0
    %v2790 = vadd.f32 %v2749, %v2789
    %v2791 = vpop.f32.mrb[0].mxu0
    %v2792 = vpop.f32.mrb[0].mxu0
    %2793 = vdwg.mxu0
    %2794 = vmatprep.subr.bf16.mxu0 %v1639
    %2795 = vmatpush1.bf16.msra.mxu0 %v1638
    %2796 = vmatprep.subr.bf16.mxu0 %v1647
    %2797 = vmatpush1.bf16.msra.mxu0 %v1646
    %2798 = vmatprep.subr.bf16.mxu0 %v1655
    %2799 = vmatpush1.bf16.msra.mxu0 %v1654
    %2800 = vmatprep.subr.bf16.mxu0 %v1663
    %2801 = vmatpush1.bf16.msra.mxu0 %v1662
    %2802 = vmatprep.subr.bf16.mxu0 %v1671
    %2803 = vmatpush1.bf16.msra.mxu0 %v1670
    %2804 = vmatprep.subr.bf16.mxu0 %v1679
    %2805 = vmatpush1.bf16.msra.mxu0 %v1678
    %2806 = vmatprep.subr.bf16.mxu0 %v1687
    %2807 = vmatpush1.bf16.msra.mxu0 %v1686
    %2808 = vmatprep.subr.bf16.mxu0 %v1695
    %2809 = vmatpush1.bf16.msra.mxu0 %v1694
    %2810 = vmatprep.subr.bf16.mxu0 %v1703
    %2811 = vmatpush1.bf16.msra.mxu0 %v1702
    %2812 = vmatprep.subr.bf16.mxu0 %v1711
    %2813 = vmatpush1.bf16.msra.mxu0 %v1710
    %2814 = vmatprep.subr.bf16.mxu0 %v1719
    %2815 = vmatpush1.bf16.msra.mxu0 %v1718
    %2816 = vmatprep.subr.bf16.mxu0 %v1727
    %2817 = vmatpush1.bf16.msra.mxu0 %v1726
    %2818 = vmatprep.subr.bf16.mxu0 %v1735
    %2819 = vmatpush1.bf16.msra.mxu0 %v1734
    %2820 = vmatprep.subr.bf16.mxu0 %v1743
    %2821 = vmatpush1.bf16.msra.mxu0 %v1742
    %2822 = vmatprep.subr.bf16.mxu0 %v1751
    %2823 = vmatpush1.bf16.msra.mxu0 %v1750
    %2824 = vmatprep.subr.bf16.mxu0 %v1759
    %2825 = vmatpush1.bf16.msra.mxu0 %v1758
    %2826 = vmatprep.mubr.bf16.mxu0 %v353
    %2827 = vmatmul.mubr.bf16.gmra.mrb[0].mxu0 %v352
    %v2828 = vpop.f32.mrb[0].mxu0
    %v2829 = vadd.f32 %v2788, %v2828
    %v2830 = vpop.f32.mrb[0].mxu0
    %v2831 = vadd.f32 %v2790, %v2830
    %v2832 = vpop.f32.mrb[0].mxu0
    %v2833 = vpop.f32.mrb[0].mxu0
    %2834 = vdwg.mxu0
    %2835 = vmatprep.subr.bf16.mxu0 %v1767
    %2836 = vmatpush1.bf16.msra.mxu0 %v1766
    %2837 = vmatprep.subr.bf16.mxu0 %v1775
    %2838 = vmatpush1.bf16.msra.mxu0 %v1774
    %2839 = vmatprep.subr.bf16.mxu0 %v1783
    %2840 = vmatpush1.bf16.msra.mxu0 %v1782
    %2841 = vmatprep.subr.bf16.mxu0 %v1791
    %2842 = vmatpush1.bf16.msra.mxu0 %v1790
    %2843 = vmatprep.subr.bf16.mxu0 %v1799
    %2844 = vmatpush1.bf16.msra.mxu0 %v1798
    %2845 = vmatprep.subr.bf16.mxu0 %v1807
    %2846 = vmatpush1.bf16.msra.mxu0 %v1806
    %2847 = vmatprep.subr.bf16.mxu0 %v1815
    %2848 = vmatpush1.bf16.msra.mxu0 %v1814
    %2849 = vmatprep.subr.bf16.mxu0 %v1823
    %2850 = vmatpush1.bf16.msra.mxu0 %v1822
    %2851 = vmatprep.subr.bf16.mxu0 %v1831
    %2852 = vmatpush1.bf16.msra.mxu0 %v1830
    %2853 = vmatprep.subr.bf16.mxu0 %v1839
    %2854 = vmatpush1.bf16.msra.mxu0 %v1838
    %2855 = vmatprep.subr.bf16.mxu0 %v1847
    %2856 = vmatpush1.bf16.msra.mxu0 %v1846
    %2857 = vmatprep.subr.bf16.mxu0 %v1855
    %2858 = vmatpush1.bf16.msra.mxu0 %v1854
    %2859 = vmatprep.subr.bf16.mxu0 %v1863
    %2860 = vmatpush1.bf16.msra.mxu0 %v1862
    %2861 = vmatprep.subr.bf16.mxu0 %v1871
    %2862 = vmatpush1.bf16.msra.mxu0 %v1870
    %2863 = vmatprep.subr.bf16.mxu0 %v1879
    %2864 = vmatpush1.bf16.msra.mxu0 %v1878
    %2865 = vmatprep.subr.bf16.mxu0 %v1887
    %2866 = vmatpush1.bf16.msra.mxu0 %v1886
    %2867 = vmatprep.mubr.bf16.mxu0 %v355
    %2868 = vmatmul.mubr.bf16.gmra.mrb[0].mxu0 %v354
    %v2869 = vpop.f32.mrb[0].mxu0
    %v2870 = vadd.f32 %v2829, %v2869
    %v2871 = vpop.f32.mrb[0].mxu0
    %v2872 = vadd.f32 %v2831, %v2871
    %v2873 = vpop.f32.mrb[0].mxu0
    %v2874 = vpop.f32.mrb[0].mxu0
    %2875 = vdwg.mxu0
    %2876 = vmatprep.subr.bf16.mxu0 %v361
    %2877 = vmatpush1.bf16.msra.mxu0 %v360
    %2878 = vmatprep.subr.bf16.mxu0 %v369
    %2879 = vmatpush1.bf16.msra.mxu0 %v368
    %2880 = vmatprep.subr.bf16.mxu0 %v377
    %2881 = vmatpush1.bf16.msra.mxu0 %v376
    %2882 = vmatprep.subr.bf16.mxu0 %v385
    %2883 = vmatpush1.bf16.msra.mxu0 %v384
    %2884 = vmatprep.subr.bf16.mxu0 %v393
    %2885 = vmatpush1.bf16.msra.mxu0 %v392
    %2886 = vmatprep.subr.bf16.mxu0 %v401
    %2887 = vmatpush1.bf16.msra.mxu0 %v400
    %2888 = vmatprep.subr.bf16.mxu0 %v409
    %2889 = vmatpush1.bf16.msra.mxu0 %v408
    %2890 = vmatprep.subr.bf16.mxu0 %v417
    %2891 = vmatpush1.bf16.msra.mxu0 %v416
    %2892 = vmatprep.subr.bf16.mxu0 %v425
    %2893 = vmatpush1.bf16.msra.mxu0 %v424
    %2894 = vmatprep.subr.bf16.mxu0 %v433
    %2895 = vmatpush1.bf16.msra.mxu0 %v432
    %2896 = vmatprep.subr.bf16.mxu0 %v441
    %2897 = vmatpush1.bf16.msra.mxu0 %v440
    %2898 = vmatprep.subr.bf16.mxu0 %v449
    %2899 = vmatpush1.bf16.msra.mxu0 %v448
    %2900 = vmatprep.subr.bf16.mxu0 %v457
    %2901 = vmatpush1.bf16.msra.mxu0 %v456
    %2902 = vmatprep.subr.bf16.mxu0 %v465
    %2903 = vmatpush1.bf16.msra.mxu0 %v464
    %2904 = vmatprep.subr.bf16.mxu0 %v473
    %2905 = vmatpush1.bf16.msra.mxu0 %v472
    %2906 = vmatprep.subr.bf16.mxu0 %v481
    %2907 = vmatpush1.bf16.msra.mxu0 %v480
    %2908 = vmatprep.mubr.bf16.mxu0 %v333
    %2909 = vmatmul.mubr.bf16.gmra.mrb[0].mxu0 %v332
    %v2910 = vpop.f32.mrb[0].mxu0
    %v2911 = vadd.f32 0.0, %v2910
    %v2912 = vpop.f32.mrb[0].mxu0
    %v2913 = vadd.f32 0.0, %v2912
    %v2914 = vpop.f32.mrb[0].mxu0
    %v2915 = vpop.f32.mrb[0].mxu0
    %2916 = vdwg.mxu0
    %2917 = vmatprep.subr.bf16.mxu0 %v489
    %2918 = vmatpush1.bf16.msra.mxu0 %v488
    %2919 = vmatprep.subr.bf16.mxu0 %v497
    %2920 = vmatpush1.bf16.msra.mxu0 %v496
    %2921 = vmatprep.subr.bf16.mxu0 %v505
    %2922 = vmatpush1.bf16.msra.mxu0 %v504
    %2923 = vmatprep.subr.bf16.mxu0 %v513
    %2924 = vmatpush1.bf16.msra.mxu0 %v512
    %2925 = vmatprep.subr.bf16.mxu0 %v521
    %2926 = vmatpush1.bf16.msra.mxu0 %v520
    %2927 = vmatprep.subr.bf16.mxu0 %v529
    %2928 = vmatpush1.bf16.msra.mxu0 %v528
    %2929 = vmatprep.subr.bf16.mxu0 %v537
    %2930 = vmatpush1.bf16.msra.mxu0 %v536
    %2931 = vmatprep.subr.bf16.mxu0 %v545
    %2932 = vmatpush1.bf16.msra.mxu0 %v544
    %2933 = vmatprep.subr.bf16.mxu0 %v553
    %2934 = vmatpush1.bf16.msra.mxu0 %v552
    %2935 = vmatprep.subr.bf16.mxu0 %v561
    %2936 = vmatpush1.bf16.msra.mxu0 %v560
    %2937 = vmatprep.subr.bf16.mxu0 %v569
    %2938 = vmatpush1.bf16.msra.mxu0 %v568
    %2939 = vmatprep.subr.bf16.mxu0 %v577
    %2940 = vmatpush1.bf16.msra.mxu0 %v576
    %2941 = vmatprep.subr.bf16.mxu0 %v585
    %2942 = vmatpush1.bf16.msra.mxu0 %v584
    %2943 = vmatprep.subr.bf16.mxu0 %v593
    %2944 = vmatpush1.bf16.msra.mxu0 %v592
    %2945 = vmatprep.subr.bf16.mxu0 %v601
    %2946 = vmatpush1.bf16.msra.mxu0 %v600
    %2947 = vmatprep.subr.bf16.mxu0 %v609
    %2948 = vmatpush1.bf16.msra.mxu0 %v608
    %2949 = vmatprep.mubr.bf16.mxu0 %v335
    %2950 = vmatmul.mubr.bf16.gmra.mrb[0].mxu0 %v334
    %v2951 = vpop.f32.mrb[0].mxu0
    %v2952 = vadd.f32 %v2911, %v2951
    %v2953 = vpop.f32.mrb[0].mxu0
    %v2954 = vadd.f32 %v2913, %v2953
    %v2955 = vpop.f32.mrb[0].mxu0
    %v2956 = vpop.f32.mrb[0].mxu0
    %2957 = vdwg.mxu0
    %2958 = vmatprep.subr.bf16.mxu0 %v617
    %2959 = vmatpush1.bf16.msra.mxu0 %v616
    %2960 = vmatprep.subr.bf16.mxu0 %v625
    %2961 = vmatpush1.bf16.msra.mxu0 %v624
    %2962 = vmatprep.subr.bf16.mxu0 %v633
    %2963 = vmatpush1.bf16.msra.mxu0 %v632
    %2964 = vmatprep.subr.bf16.mxu0 %v641
    %2965 = vmatpush1.bf16.msra.mxu0 %v640
    %2966 = vmatprep.subr.bf16.mxu0 %v649
    %2967 = vmatpush1.bf16.msra.mxu0 %v648
    %2968 = vmatprep.subr.bf16.mxu0 %v657
    %2969 = vmatpush1.bf16.msra.mxu0 %v656
    %2970 = vmatprep.subr.bf16.mxu0 %v665
    %2971 = vmatpush1.bf16.msra.mxu0 %v664
    %2972 = vmatprep.subr.bf16.mxu0 %v673
    %2973 = vmatpush1.bf16.msra.mxu0 %v672
    %2974 = vmatprep.subr.bf16.mxu0 %v681
    %2975 = vmatpush1.bf16.msra.mxu0 %v680
    %2976 = vmatprep.subr.bf16.mxu0 %v689
    %2977 = vmatpush1.bf16.msra.mxu0 %v688
    %2978 = vmatprep.subr.bf16.mxu0 %v697
    %2979 = vmatpush1.bf16.msra.mxu0 %v696
    %2980 = vmatprep.subr.bf16.mxu0 %v705
    %2981 = vmatpush1.bf16.msra.mxu0 %v704
    %2982 = vmatprep.subr.bf16.mxu0 %v713
    %2983 = vmatpush1.bf16.msra.mxu0 %v712
    %2984 = vmatprep.subr.bf16.mxu0 %v721
    %2985 = vmatpush1.bf16.msra.mxu0 %v720
    %2986 = vmatprep.subr.bf16.mxu0 %v729
    %2987 = vmatpush1.bf16.msra.mxu0 %v728
    %2988 = vmatprep.subr.bf16.mxu0 %v737
    %2989 = vmatpush1.bf16.msra.mxu0 %v736
    %2990 = vmatprep.mubr.bf16.mxu0 %v337
    %2991 = vmatmul.mubr.bf16.gmra.mrb[0].mxu0 %v336
    %v2992 = vpop.f32.mrb[0].mxu0
    %v2993 = vadd.f32 %v2952, %v2992
    %v2994 = vpop.f32.mrb[0].mxu0
    %v2995 = vadd.f32 %v2954, %v2994
    %v2996 = vpop.f32.mrb[0].mxu0
    %v2997 = vpop.f32.mrb[0].mxu0
    %2998 = vdwg.mxu0
    %2999 = vmatprep.subr.bf16.mxu0 %v745
    %3000 = vmatpush1.bf16.msra.mxu0 %v744
    %3001 = vmatprep.subr.bf16.mxu0 %v753
    %3002 = vmatpush1.bf16.msra.mxu0 %v752
    %3003 = vmatprep.subr.bf16.mxu0 %v761
    %3004 = vmatpush1.bf16.msra.mxu0 %v760
    %3005 = vmatprep.subr.bf16.mxu0 %v769
    %3006 = vmatpush1.bf16.msra.mxu0 %v768
    %3007 = vmatprep.subr.bf16.mxu0 %v777
    %3008 = vmatpush1.bf16.msra.mxu0 %v776
    %3009 = vmatprep.subr.bf16.mxu0 %v785
    %3010 = vmatpush1.bf16.msra.mxu0 %v784
    %3011 = vmatprep.subr.bf16.mxu0 %v793
    %3012 = vmatpush1.bf16.msra.mxu0 %v792
    %3013 = vmatprep.subr.bf16.mxu0 %v801
    %3014 = vmatpush1.bf16.msra.mxu0 %v800
    %3015 = vmatprep.subr.bf16.mxu0 %v809
    %3016 = vmatpush1.bf16.msra.mxu0 %v808
    %3017 = vmatprep.subr.bf16.mxu0 %v817
    %3018 = vmatpush1.bf16.msra.mxu0 %v816
    %3019 = vmatprep.subr.bf16.mxu0 %v825
    %3020 = vmatpush1.bf16.msra.mxu0 %v824
    %3021 = vmatprep.subr.bf16.mxu0 %v833
    %3022 = vmatpush1.bf16.msra.mxu0 %v832
    %3023 = vmatprep.subr.bf16.mxu0 %v841
    %3024 = vmatpush1.bf16.msra.mxu0 %v840
    %3025 = vmatprep.subr.bf16.mxu0 %v849
    %3026 = vmatpush1.bf16.msra.mxu0 %v848
    %3027 = vmatprep.subr.bf16.mxu0 %v857
    %3028 = vmatpush1.bf16.msra.mxu0 %v856
    %3029 = vmatprep.subr.bf16.mxu0 %v865
    %3030 = vmatpush1.bf16.msra.mxu0 %v864
    %3031 = vmatprep.mubr.bf16.mxu0 %v339
    %3032 = vmatmul.mubr.bf16.gmra.mrb[0].mxu0 %v338
    %v3033 = vpop.f32.mrb[0].mxu0
    %v3034 = vadd.f32 %v2993, %v3033
    %v3035 = vpop.f32.mrb[0].mxu0
    %v3036 = vadd.f32 %v2995, %v3035
    %v3037 = vpop.f32.mrb[0].mxu0
    %v3038 = vpop.f32.mrb[0].mxu0
    %3039 = vdwg.mxu0
    %3040 = vmatprep.subr.bf16.mxu0 %v873
    %3041 = vmatpush1.bf16.msra.mxu0 %v872
    %3042 = vmatprep.subr.bf16.mxu0 %v881
    %3043 = vmatpush1.bf16.msra.mxu0 %v880
    %3044 = vmatprep.subr.bf16.mxu0 %v889
    %3045 = vmatpush1.bf16.msra.mxu0 %v888
    %3046 = vmatprep.subr.bf16.mxu0 %v897
    %3047 = vmatpush1.bf16.msra.mxu0 %v896
    %3048 = vmatprep.subr.bf16.mxu0 %v905
    %3049 = vmatpush1.bf16.msra.mxu0 %v904
    %3050 = vmatprep.subr.bf16.mxu0 %v913
    %3051 = vmatpush1.bf16.msra.mxu0 %v912
    %3052 = vmatprep.subr.bf16.mxu0 %v921
    %3053 = vmatpush1.bf16.msra.mxu0 %v920
    %3054 = vmatprep.subr.bf16.mxu0 %v929
    %3055 = vmatpush1.bf16.msra.mxu0 %v928
    %3056 = vmatprep.subr.bf16.mxu0 %v937
    %3057 = vmatpush1.bf16.msra.mxu0 %v936
    %3058 = vmatprep.subr.bf16.mxu0 %v945
    %3059 = vmatpush1.bf16.msra.mxu0 %v944
    %3060 = vmatprep.subr.bf16.mxu0 %v953
    %3061 = vmatpush1.bf16.msra.mxu0 %v952
    %3062 = vmatprep.subr.bf16.mxu0 %v961
    %3063 = vmatpush1.bf16.msra.mxu0 %v960
    %3064 = vmatprep.subr.bf16.mxu0 %v969
    %3065 = vmatpush1.bf16.msra.mxu0 %v968
    %3066 = vmatprep.subr.bf16.mxu0 %v977
    %3067 = vmatpush1.bf16.msra.mxu0 %v976
    %3068 = vmatprep.subr.bf16.mxu0 %v985
    %3069 = vmatpush1.bf16.msra.mxu0 %v984
    %3070 = vmatprep.subr.bf16.mxu0 %v993
    %3071 = vmatpush1.bf16.msra.mxu0 %v992
    %3072 = vmatprep.mubr.bf16.mxu0 %v341
    %3073 = vmatmul.mubr.bf16.gmra.mrb[0].mxu0 %v340
    %v3074 = vpop.f32.mrb[0].mxu0
    %v3075 = vadd.f32 %v3034, %v3074
    %v3076 = vpop.f32.mrb[0].mxu0
    %v3077 = vadd.f32 %v3036, %v3076
    %v3078 = vpop.f32.mrb[0].mxu0
    %v3079 = vpop.f32.mrb[0].mxu0
    %3080 = vdwg.mxu0
    %3081 = vmatprep.subr.bf16.mxu0 %v1001
    %3082 = vmatpush1.bf16.msra.mxu0 %v1000
    %3083 = vmatprep.subr.bf16.mxu0 %v1009
    %3084 = vmatpush1.bf16.msra.mxu0 %v1008
    %3085 = vmatprep.subr.bf16.mxu0 %v1017
    %3086 = vmatpush1.bf16.msra.mxu0 %v1016
    %3087 = vmatprep.subr.bf16.mxu0 %v1025
    %3088 = vmatpush1.bf16.msra.mxu0 %v1024
    %3089 = vmatprep.subr.bf16.mxu0 %v1033
    %3090 = vmatpush1.bf16.msra.mxu0 %v1032
    %3091 = vmatprep.subr.bf16.mxu0 %v1041
    %3092 = vmatpush1.bf16.msra.mxu0 %v1040
    %3093 = vmatprep.subr.bf16.mxu0 %v1049
    %3094 = vmatpush1.bf16.msra.mxu0 %v1048
    %3095 = vmatprep.subr.bf16.mxu0 %v1057
    %3096 = vmatpush1.bf16.msra.mxu0 %v1056
    %3097 = vmatprep.subr.bf16.mxu0 %v1065
    %3098 = vmatpush1.bf16.msra.mxu0 %v1064
    %3099 = vmatprep.subr.bf16.mxu0 %v1073
    %3100 = vmatpush1.bf16.msra.mxu0 %v1072
    %3101 = vmatprep.subr.bf16.mxu0 %v1081
    %3102 = vmatpush1.bf16.msra.mxu0 %v1080
    %3103 = vmatprep.subr.bf16.mxu0 %v1089
    %3104 = vmatpush1.bf16.msra.mxu0 %v1088
    %3105 = vmatprep.subr.bf16.mxu0 %v1097
    %3106 = vmatpush1.bf16.msra.mxu0 %v1096
    %3107 = vmatprep.subr.bf16.mxu0 %v1105
    %3108 = vmatpush1.bf16.msra.mxu0 %v1104
    %3109 = vmatprep.subr.bf16.mxu0 %v1113
    %3110 = vmatpush1.bf16.msra.mxu0 %v1112
    %3111 = vmatprep.subr.bf16.mxu0 %v1121
    %3112 = vmatpush1.bf16.msra.mxu0 %v1120
    %3113 = vmatprep.mubr.bf16.mxu0 %v343
    %3114 = vmatmul.mubr.bf16.gmra.mrb[0].mxu0 %v342
    %v3115 = vpop.f32.mrb[0].mxu0
    %v3116 = vadd.f32 %v3075, %v3115
    %v3117 = vpop.f32.mrb[0].mxu0
    %v3118 = vadd.f32 %v3077, %v3117
    %v3119 = vpop.f32.mrb[0].mxu0
    %v3120 = vpop.f32.mrb[0].mxu0
    %3121 = vdwg.mxu0
    %3122 = vmatprep.subr.bf16.mxu0 %v1129
    %3123 = vmatpush1.bf16.msra.mxu0 %v1128
    %3124 = vmatprep.subr.bf16.mxu0 %v1137
    %3125 = vmatpush1.bf16.msra.mxu0 %v1136
    %3126 = vmatprep.subr.bf16.mxu0 %v1145
    %3127 = vmatpush1.bf16.msra.mxu0 %v1144
    %3128 = vmatprep.subr.bf16.mxu0 %v1153
    %3129 = vmatpush1.bf16.msra.mxu0 %v1152
    %3130 = vmatprep.subr.bf16.mxu0 %v1161
    %3131 = vmatpush1.bf16.msra.mxu0 %v1160
    %3132 = vmatprep.subr.bf16.mxu0 %v1169
    %3133 = vmatpush1.bf16.msra.mxu0 %v1168
    %3134 = vmatprep.subr.bf16.mxu0 %v1177
    %3135 = vmatpush1.bf16.msra.mxu0 %v1176
    %3136 = vmatprep.subr.bf16.mxu0 %v1185
    %3137 = vmatpush1.bf16.msra.mxu0 %v1184
    %3138 = vmatprep.subr.bf16.mxu0 %v1193
    %3139 = vmatpush1.bf16.msra.mxu0 %v1192
    %3140 = vmatprep.subr.bf16.mxu0 %v1201
    %3141 = vmatpush1.bf16.msra.mxu0 %v1200
    %3142 = vmatprep.subr.bf16.mxu0 %v1209
    %3143 = vmatpush1.bf16.msra.mxu0 %v1208
    %3144 = vmatprep.subr.bf16.mxu0 %v1217
    %3145 = vmatpush1.bf16.msra.mxu0 %v1216
    %3146 = vmatprep.subr.bf16.mxu0 %v1225
    %3147 = vmatpush1.bf16.msra.mxu0 %v1224
    %3148 = vmatprep.subr.bf16.mxu0 %v1233
    %3149 = vmatpush1.bf16.msra.mxu0 %v1232
    %3150 = vmatprep.subr.bf16.mxu0 %v1241
    %3151 = vmatpush1.bf16.msra.mxu0 %v1240
    %3152 = vmatprep.subr.bf16.mxu0 %v1249
    %3153 = vmatpush1.bf16.msra.mxu0 %v1248
    %3154 = vmatprep.mubr.bf16.mxu0 %v345
    %3155 = vmatmul.mubr.bf16.gmra.mrb[0].mxu0 %v344
    %v3156 = vpop.f32.mrb[0].mxu0
    %v3157 = vadd.f32 %v3116, %v3156
    %v3158 = vpop.f32.mrb[0].mxu0
    %v3159 = vadd.f32 %v3118, %v3158
    %v3160 = vpop.f32.mrb[0].mxu0
    %v3161 = vpop.f32.mrb[0].mxu0
    %3162 = vdwg.mxu0
    %3163 = vmatprep.subr.bf16.mxu0 %v1257
    %3164 = vmatpush1.bf16.msra.mxu0 %v1256
    %3165 = vmatprep.subr.bf16.mxu0 %v1265
    %3166 = vmatpush1.bf16.msra.mxu0 %v1264
    %3167 = vmatprep.subr.bf16.mxu0 %v1273
    %3168 = vmatpush1.bf16.msra.mxu0 %v1272
    %3169 = vmatprep.subr.bf16.mxu0 %v1281
    %3170 = vmatpush1.bf16.msra.mxu0 %v1280
    %3171 = vmatprep.subr.bf16.mxu0 %v1289
    %3172 = vmatpush1.bf16.msra.mxu0 %v1288
    %3173 = vmatprep.subr.bf16.mxu0 %v1297
    %3174 = vmatpush1.bf16.msra.mxu0 %v1296
    %3175 = vmatprep.subr.bf16.mxu0 %v1305
    %3176 = vmatpush1.bf16.msra.mxu0 %v1304
    %3177 = vmatprep.subr.bf16.mxu0 %v1313
    %3178 = vmatpush1.bf16.msra.mxu0 %v1312
    %3179 = vmatprep.subr.bf16.mxu0 %v1321
    %3180 = vmatpush1.bf16.msra.mxu0 %v1320
    %3181 = vmatprep.subr.bf16.mxu0 %v1329
    %3182 = vmatpush1.bf16.msra.mxu0 %v1328
    %3183 = vmatprep.subr.bf16.mxu0 %v1337
    %3184 = vmatpush1.bf16.msra.mxu0 %v1336
    %3185 = vmatprep.subr.bf16.mxu0 %v1345
    %3186 = vmatpush1.bf16.msra.mxu0 %v1344
    %3187 = vmatprep.subr.bf16.mxu0 %v1353
    %3188 = vmatpush1.bf16.msra.mxu0 %v1352
    %3189 = vmatprep.subr.bf16.mxu0 %v1361
    %3190 = vmatpush1.bf16.msra.mxu0 %v1360
    %3191 = vmatprep.subr.bf16.mxu0 %v1369
    %3192 = vmatpush1.bf16.msra.mxu0 %v1368
    %3193 = vmatprep.subr.bf16.mxu0 %v1377
    %3194 = vmatpush1.bf16.msra.mxu0 %v1376
    %3195 = vmatprep.mubr.bf16.mxu0 %v347
    %3196 = vmatmul.mubr.bf16.gmra.mrb[0].mxu0 %v346
    %v3197 = vpop.f32.mrb[0].mxu0
    %v3198 = vadd.f32 %v3157, %v3197
    %v3199 = vpop.f32.mrb[0].mxu0
    %v3200 = vadd.f32 %v3159, %v3199
    %v3201 = vpop.f32.mrb[0].mxu0
    %v3202 = vpop.f32.mrb[0].mxu0
    %3203 = vdwg.mxu0
    %3204 = vmatprep.subr.bf16.mxu0 %v1385
    %3205 = vmatpush1.bf16.msra.mxu0 %v1384
    %3206 = vmatprep.subr.bf16.mxu0 %v1393
    %3207 = vmatpush1.bf16.msra.mxu0 %v1392
    %3208 = vmatprep.subr.bf16.mxu0 %v1401
    %3209 = vmatpush1.bf16.msra.mxu0 %v1400
    %3210 = vmatprep.subr.bf16.mxu0 %v1409
    %3211 = vmatpush1.bf16.msra.mxu0 %v1408
    %3212 = vmatprep.subr.bf16.mxu0 %v1417
    %3213 = vmatpush1.bf16.msra.mxu0 %v1416
    %3214 = vmatprep.subr.bf16.mxu0 %v1425
    %3215 = vmatpush1.bf16.msra.mxu0 %v1424
    %3216 = vmatprep.subr.bf16.mxu0 %v1433
    %3217 = vmatpush1.bf16.msra.mxu0 %v1432
    %3218 = vmatprep.subr.bf16.mxu0 %v1441
    %3219 = vmatpush1.bf16.msra.mxu0 %v1440
    %3220 = vmatprep.subr.bf16.mxu0 %v1449
    %3221 = vmatpush1.bf16.msra.mxu0 %v1448
    %3222 = vmatprep.subr.bf16.mxu0 %v1457
    %3223 = vmatpush1.bf16.msra.mxu0 %v1456
    %3224 = vmatprep.subr.bf16.mxu0 %v1465
    %3225 = vmatpush1.bf16.msra.mxu0 %v1464
    %3226 = vmatprep.subr.bf16.mxu0 %v1473
    %3227 = vmatpush1.bf16.msra.mxu0 %v1472
    %3228 = vmatprep.subr.bf16.mxu0 %v1481
    %3229 = vmatpush1.bf16.msra.mxu0 %v1480
    %3230 = vmatprep.subr.bf16.mxu0 %v1489
    %3231 = vmatpush1.bf16.msra.mxu0 %v1488
    %3232 = vmatprep.subr.bf16.mxu0 %v1497
    %3233 = vmatpush1.bf16.msra.mxu0 %v1496
    %3234 = vmatprep.subr.bf16.mxu0 %v1505
    %3235 = vmatpush1.bf16.msra.mxu0 %v1504
    %3236 = vmatprep.mubr.bf16.mxu0 %v349
    %3237 = vmatmul.mubr.bf16.gmra.mrb[0].mxu0 %v348
    %v3238 = vpop.f32.mrb[0].mxu0
    %v3239 = vadd.f32 %v3198, %v3238
    %v3240 = vpop.f32.mrb[0].mxu0
    %v3241 = vadd.f32 %v3200, %v3240
    %v3242 = vpop.f32.mrb[0].mxu0
    %v3243 = vpop.f32.mrb[0].mxu0
    %3244 = vdwg.mxu0
    %3245 = vmatprep.subr.bf16.mxu0 %v1513
    %3246 = vmatpush1.bf16.msra.mxu0 %v1512
    %3247 = vmatprep.subr.bf16.mxu0 %v1521
    %3248 = vmatpush1.bf16.msra.mxu0 %v1520
    %3249 = vmatprep.subr.bf16.mxu0 %v1529
    %3250 = vmatpush1.bf16.msra.mxu0 %v1528
    %3251 = vmatprep.subr.bf16.mxu0 %v1537
    %3252 = vmatpush1.bf16.msra.mxu0 %v1536
    %3253 = vmatprep.subr.bf16.mxu0 %v1545
    %3254 = vmatpush1.bf16.msra.mxu0 %v1544
    %3255 = vmatprep.subr.bf16.mxu0 %v1553
    %3256 = vmatpush1.bf16.msra.mxu0 %v1552
    %3257 = vmatprep.subr.bf16.mxu0 %v1561
    %3258 = vmatpush1.bf16.msra.mxu0 %v1560
    %3259 = vmatprep.subr.bf16.mxu0 %v1569
    %3260 = vmatpush1.bf16.msra.mxu0 %v1568
    %3261 = vmatprep.subr.bf16.mxu0 %v1577
    %3262 = vmatpush1.bf16.msra.mxu0 %v1576
    %3263 = vmatprep.subr.bf16.mxu0 %v1585
    %3264 = vmatpush1.bf16.msra.mxu0 %v1584
    %3265 = vmatprep.subr.bf16.mxu0 %v1593
    %3266 = vmatpush1.bf16.msra.mxu0 %v1592
    %3267 = vmatprep.subr.bf16.mxu0 %v1601
    %3268 = vmatpush1.bf16.msra.mxu0 %v1600
    %3269 = vmatprep.subr.bf16.mxu0 %v1609
    %3270 = vmatpush1.bf16.msra.mxu0 %v1608
    %3271 = vmatprep.subr.bf16.mxu0 %v1617
    %3272 = vmatpush1.bf16.msra.mxu0 %v1616
    %3273 = vmatprep.subr.bf16.mxu0 %v1625
    %3274 = vmatpush1.bf16.msra.mxu0 %v1624
    %3275 = vmatprep.subr.bf16.mxu0 %v1633
    %3276 = vmatpush1.bf16.msra.mxu0 %v1632
    %3277 = vmatprep.mubr.bf16.mxu0 %v351
    %3278 = vmatmul.mubr.bf16.gmra.mrb[0].mxu0 %v350
    %v3279 = vpop.f32.mrb[0].mxu0
    %v3280 = vadd.f32 %v3239, %v3279
    %v3281 = vpop.f32.mrb[0].mxu0
    %v3282 = vadd.f32 %v3241, %v3281
    %v3283 = vpop.f32.mrb[0].mxu0
    %v3284 = vpop.f32.mrb[0].mxu0
    %3285 = vdwg.mxu0
    %3286 = vmatprep.subr.bf16.mxu0 %v1641
    %3287 = vmatpush1.bf16.msra.mxu0 %v1640
    %3288 = vmatprep.subr.bf16.mxu0 %v1649
    %3289 = vmatpush1.bf16.msra.mxu0 %v1648
    %3290 = vmatprep.subr.bf16.mxu0 %v1657
    %3291 = vmatpush1.bf16.msra.mxu0 %v1656
    %3292 = vmatprep.subr.bf16.mxu0 %v1665
    %3293 = vmatpush1.bf16.msra.mxu0 %v1664
    %3294 = vmatprep.subr.bf16.mxu0 %v1673
    %3295 = vmatpush1.bf16.msra.mxu0 %v1672
    %3296 = vmatprep.subr.bf16.mxu0 %v1681
    %3297 = vmatpush1.bf16.msra.mxu0 %v1680
    %3298 = vmatprep.subr.bf16.mxu0 %v1689
    %3299 = vmatpush1.bf16.msra.mxu0 %v1688
    %3300 = vmatprep.subr.bf16.mxu0 %v1697
    %3301 = vmatpush1.bf16.msra.mxu0 %v1696
    %3302 = vmatprep.subr.bf16.mxu0 %v1705
    %3303 = vmatpush1.bf16.msra.mxu0 %v1704
    %3304 = vmatprep.subr.bf16.mxu0 %v1713
    %3305 = vmatpush1.bf16.msra.mxu0 %v1712
    %3306 = vmatprep.subr.bf16.mxu0 %v1721
    %3307 = vmatpush1.bf16.msra.mxu0 %v1720
    %3308 = vmatprep.subr.bf16.mxu0 %v1729
    %3309 = vmatpush1.bf16.msra.mxu0 %v1728
    %3310 = vmatprep.subr.bf16.mxu0 %v1737
    %3311 = vmatpush1.bf16.msra.mxu0 %v1736
    %3312 = vmatprep.subr.bf16.mxu0 %v1745
    %3313 = vmatpush1.bf16.msra.mxu0 %v1744
    %3314 = vmatprep.subr.bf16.mxu0 %v1753
    %3315 = vmatpush1.bf16.msra.mxu0 %v1752
    %3316 = vmatprep.subr.bf16.mxu0 %v1761
    %3317 = vmatpush1.bf16.msra.mxu0 %v1760
    %3318 = vmatprep.mubr.bf16.mxu0 %v353
    %3319 = vmatmul.mubr.bf16.gmra.mrb[0].mxu0 %v352
    %v3320 = vpop.f32.mrb[0].mxu0
    %v3321 = vadd.f32 %v3280, %v3320
    %v3322 = vpop.f32.mrb[0].mxu0
    %v3323 = vadd.f32 %v3282, %v3322
    %v3324 = vpop.f32.mrb[0].mxu0
    %v3325 = vpop.f32.mrb[0].mxu0
    %3326 = vdwg.mxu0
    %3327 = vmatprep.subr.bf16.mxu0 %v1769
    %3328 = vmatpush1.bf16.msra.mxu0 %v1768
    %3329 = vmatprep.subr.bf16.mxu0 %v1777
    %3330 = vmatpush1.bf16.msra.mxu0 %v1776
    %3331 = vmatprep.subr.bf16.mxu0 %v1785
    %3332 = vmatpush1.bf16.msra.mxu0 %v1784
    %3333 = vmatprep.subr.bf16.mxu0 %v1793
    %3334 = vmatpush1.bf16.msra.mxu0 %v1792
    %3335 = vmatprep.subr.bf16.mxu0 %v1801
    %3336 = vmatpush1.bf16.msra.mxu0 %v1800
    %3337 = vmatprep.subr.bf16.mxu0 %v1809
    %3338 = vmatpush1.bf16.msra.mxu0 %v1808
    %3339 = vmatprep.subr.bf16.mxu0 %v1817
    %3340 = vmatpush1.bf16.msra.mxu0 %v1816
    %3341 = vmatprep.subr.bf16.mxu0 %v1825
    %3342 = vmatpush1.bf16.msra.mxu0 %v1824
    %3343 = vmatprep.subr.bf16.mxu0 %v1833
    %3344 = vmatpush1.bf16.msra.mxu0 %v1832
    %3345 = vmatprep.subr.bf16.mxu0 %v1841
    %3346 = vmatpush1.bf16.msra.mxu0 %v1840
    %3347 = vmatprep.subr.bf16.mxu0 %v1849
    %3348 = vmatpush1.bf16.msra.mxu0 %v1848
    %3349 = vmatprep.subr.bf16.mxu0 %v1857
    %3350 = vmatpush1.bf16.msra.mxu0 %v1856
    %3351 = vmatprep.subr.bf16.mxu0 %v1865
    %3352 = vmatpush1.bf16.msra.mxu0 %v1864
    %3353 = vmatprep.subr.bf16.mxu0 %v1873
    %3354 = vmatpush1.bf16.msra.mxu0 %v1872
    %3355 = vmatprep.subr.bf16.mxu0 %v1881
    %3356 = vmatpush1.bf16.msra.mxu0 %v1880
    %3357 = vmatprep.subr.bf16.mxu0 %v1889
    %3358 = vmatpush1.bf16.msra.mxu0 %v1888
    %3359 = vmatprep.mubr.bf16.mxu0 %v355
    %3360 = vmatmul.mubr.bf16.gmra.mrb[0].mxu0 %v354
    %v3361 = vpop.f32.mrb[0].mxu0
    %v3362 = vadd.f32 %v3321, %v3361
    %v3363 = vpop.f32.mrb[0].mxu0
    %v3364 = vadd.f32 %v3323, %v3363
    %v3365 = vpop.f32.mrb[0].mxu0
    %v3366 = vpop.f32.mrb[0].mxu0
    %3367 = vdwg.mxu0
    %3368 = vmatprep.subr.bf16.mxu0 %v363
    %3369 = vmatpush1.bf16.msra.mxu0 %v362
    %3370 = vmatprep.subr.bf16.mxu0 %v371
    %3371 = vmatpush1.bf16.msra.mxu0 %v370
    %3372 = vmatprep.subr.bf16.mxu0 %v379
    %3373 = vmatpush1.bf16.msra.mxu0 %v378
    %3374 = vmatprep.subr.bf16.mxu0 %v387
    %3375 = vmatpush1.bf16.msra.mxu0 %v386
    %3376 = vmatprep.subr.bf16.mxu0 %v395
    %3377 = vmatpush1.bf16.msra.mxu0 %v394
    %3378 = vmatprep.subr.bf16.mxu0 %v403
    %3379 = vmatpush1.bf16.msra.mxu0 %v402
    %3380 = vmatprep.subr.bf16.mxu0 %v411
    %3381 = vmatpush1.bf16.msra.mxu0 %v410
    %3382 = vmatprep.subr.bf16.mxu0 %v419
    %3383 = vmatpush1.bf16.msra.mxu0 %v418
    %3384 = vmatprep.subr.bf16.mxu0 %v427
    %3385 = vmatpush1.bf16.msra.mxu0 %v426
    %3386 = vmatprep.subr.bf16.mxu0 %v435
    %3387 = vmatpush1.bf16.msra.mxu0 %v434
    %3388 = vmatprep.subr.bf16.mxu0 %v443
    %3389 = vmatpush1.bf16.msra.mxu0 %v442
    %3390 = vmatprep.subr.bf16.mxu0 %v451
    %3391 = vmatpush1.bf16.msra.mxu0 %v450
    %3392 = vmatprep.subr.bf16.mxu0 %v459
    %3393 = vmatpush1.bf16.msra.mxu0 %v458
    %3394 = vmatprep.subr.bf16.mxu0 %v467
    %3395 = vmatpush1.bf16.msra.mxu0 %v466
    %3396 = vmatprep.subr.bf16.mxu0 %v475
    %3397 = vmatpush1.bf16.msra.mxu0 %v474
    %3398 = vmatprep.subr.bf16.mxu0 %v483
    %3399 = vmatpush1.bf16.msra.mxu0 %v482
    %3400 = vmatprep.mubr.bf16.mxu0 %v333
    %3401 = vmatmul.mubr.bf16.gmra.mrb[0].mxu0 %v332
    %v3402 = vpop.f32.mrb[0].mxu0
    %v3403 = vadd.f32 0.0, %v3402
    %v3404 = vpop.f32.mrb[0].mxu0
    %v3405 = vadd.f32 0.0, %v3404
    %v3406 = vpop.f32.mrb[0].mxu0
    %v3407 = vpop.f32.mrb[0].mxu0
    %3408 = vdwg.mxu0
    %3409 = vmatprep.subr.bf16.mxu0 %v491
    %3410 = vmatpush1.bf16.msra.mxu0 %v490
    %3411 = vmatprep.subr.bf16.mxu0 %v499
    %3412 = vmatpush1.bf16.msra.mxu0 %v498
    %3413 = vmatprep.subr.bf16.mxu0 %v507
    %3414 = vmatpush1.bf16.msra.mxu0 %v506
    %3415 = vmatprep.subr.bf16.mxu0 %v515
    %3416 = vmatpush1.bf16.msra.mxu0 %v514
    %3417 = vmatprep.subr.bf16.mxu0 %v523
    %3418 = vmatpush1.bf16.msra.mxu0 %v522
    %3419 = vmatprep.subr.bf16.mxu0 %v531
    %3420 = vmatpush1.bf16.msra.mxu0 %v530
    %3421 = vmatprep.subr.bf16.mxu0 %v539
    %3422 = vmatpush1.bf16.msra.mxu0 %v538
    %3423 = vmatprep.subr.bf16.mxu0 %v547
    %3424 = vmatpush1.bf16.msra.mxu0 %v546
    %3425 = vmatprep.subr.bf16.mxu0 %v555
    %3426 = vmatpush1.bf16.msra.mxu0 %v554
    %3427 = vmatprep.subr.bf16.mxu0 %v563
    %3428 = vmatpush1.bf16.msra.mxu0 %v562
    %3429 = vmatprep.subr.bf16.mxu0 %v571
    %3430 = vmatpush1.bf16.msra.mxu0 %v570
    %3431 = vmatprep.subr.bf16.mxu0 %v579
    %3432 = vmatpush1.bf16.msra.mxu0 %v578
    %3433 = vmatprep.subr.bf16.mxu0 %v587
    %3434 = vmatpush1.bf16.msra.mxu0 %v586
    %3435 = vmatprep.subr.bf16.mxu0 %v595
    %3436 = vmatpush1.bf16.msra.mxu0 %v594
    %3437 = vmatprep.subr.bf16.mxu0 %v603
    %3438 = vmatpush1.bf16.msra.mxu0 %v602
    %3439 = vmatprep.subr.bf16.mxu0 %v611
    %3440 = vmatpush1.bf16.msra.mxu0 %v610
    %3441 = vmatprep.mubr.bf16.mxu0 %v335
    %3442 = vmatmul.mubr.bf16.gmra.mrb[0].mxu0 %v334
    %v3443 = vpop.f32.mrb[0].mxu0
    %v3444 = vadd.f32 %v3403, %v3443
    %v3445 = vpop.f32.mrb[0].mxu0
    %v3446 = vadd.f32 %v3405, %v3445
    %v3447 = vpop.f32.mrb[0].mxu0
    %v3448 = vpop.f32.mrb[0].mxu0
    %3449 = vdwg.mxu0
    %3450 = vmatprep.subr.bf16.mxu0 %v619
    %3451 = vmatpush1.bf16.msra.mxu0 %v618
    %3452 = vmatprep.subr.bf16.mxu0 %v627
    %3453 = vmatpush1.bf16.msra.mxu0 %v626
    %3454 = vmatprep.subr.bf16.mxu0 %v635
    %3455 = vmatpush1.bf16.msra.mxu0 %v634
    %3456 = vmatprep.subr.bf16.mxu0 %v643
    %3457 = vmatpush1.bf16.msra.mxu0 %v642
    %3458 = vmatprep.subr.bf16.mxu0 %v651
    %3459 = vmatpush1.bf16.msra.mxu0 %v650
    %3460 = vmatprep.subr.bf16.mxu0 %v659
    %3461 = vmatpush1.bf16.msra.mxu0 %v658
    %3462 = vmatprep.subr.bf16.mxu0 %v667
    %3463 = vmatpush1.bf16.msra.mxu0 %v666
    %3464 = vmatprep.subr.bf16.mxu0 %v675
    %3465 = vmatpush1.bf16.msra.mxu0 %v674
    %3466 = vmatprep.subr.bf16.mxu0 %v683
    %3467 = vmatpush1.bf16.msra.mxu0 %v682
    %3468 = vmatprep.subr.bf16.mxu0 %v691
    %3469 = vmatpush1.bf16.msra.mxu0 %v690
    %3470 = vmatprep.subr.bf16.mxu0 %v699
    %3471 = vmatpush1.bf16.msra.mxu0 %v698
    %3472 = vmatprep.subr.bf16.mxu0 %v707
    %3473 = vmatpush1.bf16.msra.mxu0 %v706
    %3474 = vmatprep.subr.bf16.mxu0 %v715
    %3475 = vmatpush1.bf16.msra.mxu0 %v714
    %3476 = vmatprep.subr.bf16.mxu0 %v723
    %3477 = vmatpush1.bf16.msra.mxu0 %v722
    %3478 = vmatprep.subr.bf16.mxu0 %v731
    %3479 = vmatpush1.bf16.msra.mxu0 %v730
    %3480 = vmatprep.subr.bf16.mxu0 %v739
    %3481 = vmatpush1.bf16.msra.mxu0 %v738
    %3482 = vmatprep.mubr.bf16.mxu0 %v337
    %3483 = vmatmul.mubr.bf16.gmra.mrb[0].mxu0 %v336
    %v3484 = vpop.f32.mrb[0].mxu0
    %v3485 = vadd.f32 %v3444, %v3484
    %v3486 = vpop.f32.mrb[0].mxu0
    %v3487 = vadd.f32 %v3446, %v3486
    %v3488 = vpop.f32.mrb[0].mxu0
    %v3489 = vpop.f32.mrb[0].mxu0
    %3490 = vdwg.mxu0
    %3491 = vmatprep.subr.bf16.mxu0 %v747
    %3492 = vmatpush1.bf16.msra.mxu0 %v746
    %3493 = vmatprep.subr.bf16.mxu0 %v755
    %3494 = vmatpush1.bf16.msra.mxu0 %v754
    %3495 = vmatprep.subr.bf16.mxu0 %v763
    %3496 = vmatpush1.bf16.msra.mxu0 %v762
    %3497 = vmatprep.subr.bf16.mxu0 %v771
    %3498 = vmatpush1.bf16.msra.mxu0 %v770
    %3499 = vmatprep.subr.bf16.mxu0 %v779
    %3500 = vmatpush1.bf16.msra.mxu0 %v778
    %3501 = vmatprep.subr.bf16.mxu0 %v787
    %3502 = vmatpush1.bf16.msra.mxu0 %v786
    %3503 = vmatprep.subr.bf16.mxu0 %v795
    %3504 = vmatpush1.bf16.msra.mxu0 %v794
    %3505 = vmatprep.subr.bf16.mxu0 %v803
    %3506 = vmatpush1.bf16.msra.mxu0 %v802
    %3507 = vmatprep.subr.bf16.mxu0 %v811
    %3508 = vmatpush1.bf16.msra.mxu0 %v810
    %3509 = vmatprep.subr.bf16.mxu0 %v819
    %3510 = vmatpush1.bf16.msra.mxu0 %v818
    %3511 = vmatprep.subr.bf16.mxu0 %v827
    %3512 = vmatpush1.bf16.msra.mxu0 %v826
    %3513 = vmatprep.subr.bf16.mxu0 %v835
    %3514 = vmatpush1.bf16.msra.mxu0 %v834
    %3515 = vmatprep.subr.bf16.mxu0 %v843
    %3516 = vmatpush1.bf16.msra.mxu0 %v842
    %3517 = vmatprep.subr.bf16.mxu0 %v851
    %3518 = vmatpush1.bf16.msra.mxu0 %v850
    %3519 = vmatprep.subr.bf16.mxu0 %v859
    %3520 = vmatpush1.bf16.msra.mxu0 %v858
    %3521 = vmatprep.subr.bf16.mxu0 %v867
    %3522 = vmatpush1.bf16.msra.mxu0 %v866
    %3523 = vmatprep.mubr.bf16.mxu0 %v339
    %3524 = vmatmul.mubr.bf16.gmra.mrb[0].mxu0 %v338
    %v3525 = vpop.f32.mrb[0].mxu0
    %v3526 = vadd.f32 %v3485, %v3525
    %v3527 = vpop.f32.mrb[0].mxu0
    %v3528 = vadd.f32 %v3487, %v3527
    %v3529 = vpop.f32.mrb[0].mxu0
    %v3530 = vpop.f32.mrb[0].mxu0
    %3531 = vdwg.mxu0
    %3532 = vmatprep.subr.bf16.mxu0 %v875
    %3533 = vmatpush1.bf16.msra.mxu0 %v874
    %3534 = vmatprep.subr.bf16.mxu0 %v883
    %3535 = vmatpush1.bf16.msra.mxu0 %v882
    %3536 = vmatprep.subr.bf16.mxu0 %v891
    %3537 = vmatpush1.bf16.msra.mxu0 %v890
    %3538 = vmatprep.subr.bf16.mxu0 %v899
    %3539 = vmatpush1.bf16.msra.mxu0 %v898
    %3540 = vmatprep.subr.bf16.mxu0 %v907
    %3541 = vmatpush1.bf16.msra.mxu0 %v906
    %3542 = vmatprep.subr.bf16.mxu0 %v915
    %3543 = vmatpush1.bf16.msra.mxu0 %v914
    %3544 = vmatprep.subr.bf16.mxu0 %v923
    %3545 = vmatpush1.bf16.msra.mxu0 %v922
    %3546 = vmatprep.subr.bf16.mxu0 %v931
    %3547 = vmatpush1.bf16.msra.mxu0 %v930
    %3548 = vmatprep.subr.bf16.mxu0 %v939
    %3549 = vmatpush1.bf16.msra.mxu0 %v938
    %3550 = vmatprep.subr.bf16.mxu0 %v947
    %3551 = vmatpush1.bf16.msra.mxu0 %v946
    %3552 = vmatprep.subr.bf16.mxu0 %v955
    %3553 = vmatpush1.bf16.msra.mxu0 %v954
    %3554 = vmatprep.subr.bf16.mxu0 %v963
    %3555 = vmatpush1.bf16.msra.mxu0 %v962
    %3556 = vmatprep.subr.bf16.mxu0 %v971
    %3557 = vmatpush1.bf16.msra.mxu0 %v970
    %3558 = vmatprep.subr.bf16.mxu0 %v979
    %3559 = vmatpush1.bf16.msra.mxu0 %v978
    %3560 = vmatprep.subr.bf16.mxu0 %v987
    %3561 = vmatpush1.bf16.msra.mxu0 %v986
    %3562 = vmatprep.subr.bf16.mxu0 %v995
    %3563 = vmatpush1.bf16.msra.mxu0 %v994
    %3564 = vmatprep.mubr.bf16.mxu0 %v341
    %3565 = vmatmul.mubr.bf16.gmra.mrb[0].mxu0 %v340
    %v3566 = vpop.f32.mrb[0].mxu0
    %v3567 = vadd.f32 %v3526, %v3566
    %v3568 = vpop.f32.mrb[0].mxu0
    %v3569 = vadd.f32 %v3528, %v3568
    %v3570 = vpop.f32.mrb[0].mxu0
    %v3571 = vpop.f32.mrb[0].mxu0
    %3572 = vdwg.mxu0
    %3573 = vmatprep.subr.bf16.mxu0 %v1003
    %3574 = vmatpush1.bf16.msra.mxu0 %v1002
    %3575 = vmatprep.subr.bf16.mxu0 %v1011
    %3576 = vmatpush1.bf16.msra.mxu0 %v1010
    %3577 = vmatprep.subr.bf16.mxu0 %v1019
    %3578 = vmatpush1.bf16.msra.mxu0 %v1018
    %3579 = vmatprep.subr.bf16.mxu0 %v1027
    %3580 = vmatpush1.bf16.msra.mxu0 %v1026
    %3581 = vmatprep.subr.bf16.mxu0 %v1035
    %3582 = vmatpush1.bf16.msra.mxu0 %v1034
    %3583 = vmatprep.subr.bf16.mxu0 %v1043
    %3584 = vmatpush1.bf16.msra.mxu0 %v1042
    %3585 = vmatprep.subr.bf16.mxu0 %v1051
    %3586 = vmatpush1.bf16.msra.mxu0 %v1050
    %3587 = vmatprep.subr.bf16.mxu0 %v1059
    %3588 = vmatpush1.bf16.msra.mxu0 %v1058
    %3589 = vmatprep.subr.bf16.mxu0 %v1067
    %3590 = vmatpush1.bf16.msra.mxu0 %v1066
    %3591 = vmatprep.subr.bf16.mxu0 %v1075
    %3592 = vmatpush1.bf16.msra.mxu0 %v1074
    %3593 = vmatprep.subr.bf16.mxu0 %v1083
    %3594 = vmatpush1.bf16.msra.mxu0 %v1082
    %3595 = vmatprep.subr.bf16.mxu0 %v1091
    %3596 = vmatpush1.bf16.msra.mxu0 %v1090
    %3597 = vmatprep.subr.bf16.mxu0 %v1099
    %3598 = vmatpush1.bf16.msra.mxu0 %v1098
    %3599 = vmatprep.subr.bf16.mxu0 %v1107
    %3600 = vmatpush1.bf16.msra.mxu0 %v1106
    %3601 = vmatprep.subr.bf16.mxu0 %v1115
    %3602 = vmatpush1.bf16.msra.mxu0 %v1114
    %3603 = vmatprep.subr.bf16.mxu0 %v1123
    %3604 = vmatpush1.bf16.msra.mxu0 %v1122
    %3605 = vmatprep.mubr.bf16.mxu0 %v343
    %3606 = vmatmul.mubr.bf16.gmra.mrb[0].mxu0 %v342
    %v3607 = vpop.f32.mrb[0].mxu0
    %v3608 = vadd.f32 %v3567, %v3607
    %v3609 = vpop.f32.mrb[0].mxu0
    %v3610 = vadd.f32 %v3569, %v3609
    %v3611 = vpop.f32.mrb[0].mxu0
    %v3612 = vpop.f32.mrb[0].mxu0
    %3613 = vdwg.mxu0
    %3614 = vmatprep.subr.bf16.mxu0 %v1131
    %3615 = vmatpush1.bf16.msra.mxu0 %v1130
    %3616 = vmatprep.subr.bf16.mxu0 %v1139
    %3617 = vmatpush1.bf16.msra.mxu0 %v1138
    %3618 = vmatprep.subr.bf16.mxu0 %v1147
    %3619 = vmatpush1.bf16.msra.mxu0 %v1146
    %3620 = vmatprep.subr.bf16.mxu0 %v1155
    %3621 = vmatpush1.bf16.msra.mxu0 %v1154
    %3622 = vmatprep.subr.bf16.mxu0 %v1163
    %3623 = vmatpush1.bf16.msra.mxu0 %v1162
    %3624 = vmatprep.subr.bf16.mxu0 %v1171
    %3625 = vmatpush1.bf16.msra.mxu0 %v1170
    %3626 = vmatprep.subr.bf16.mxu0 %v1179
    %3627 = vmatpush1.bf16.msra.mxu0 %v1178
    %3628 = vmatprep.subr.bf16.mxu0 %v1187
    %3629 = vmatpush1.bf16.msra.mxu0 %v1186
    %3630 = vmatprep.subr.bf16.mxu0 %v1195
    %3631 = vmatpush1.bf16.msra.mxu0 %v1194
    %3632 = vmatprep.subr.bf16.mxu0 %v1203
    %3633 = vmatpush1.bf16.msra.mxu0 %v1202
    %3634 = vmatprep.subr.bf16.mxu0 %v1211
    %3635 = vmatpush1.bf16.msra.mxu0 %v1210
    %3636 = vmatprep.subr.bf16.mxu0 %v1219
    %3637 = vmatpush1.bf16.msra.mxu0 %v1218
    %3638 = vmatprep.subr.bf16.mxu0 %v1227
    %3639 = vmatpush1.bf16.msra.mxu0 %v1226
    %3640 = vmatprep.subr.bf16.mxu0 %v1235
    %3641 = vmatpush1.bf16.msra.mxu0 %v1234
    %3642 = vmatprep.subr.bf16.mxu0 %v1243
    %3643 = vmatpush1.bf16.msra.mxu0 %v1242
    %3644 = vmatprep.subr.bf16.mxu0 %v1251
    %3645 = vmatpush1.bf16.msra.mxu0 %v1250
    %3646 = vmatprep.mubr.bf16.mxu0 %v345
    %3647 = vmatmul.mubr.bf16.gmra.mrb[0].mxu0 %v344
    %v3648 = vpop.f32.mrb[0].mxu0
    %v3649 = vadd.f32 %v3608, %v3648
    %v3650 = vpop.f32.mrb[0].mxu0
    %v3651 = vadd.f32 %v3610, %v3650
    %v3652 = vpop.f32.mrb[0].mxu0
    %v3653 = vpop.f32.mrb[0].mxu0
    %3654 = vdwg.mxu0
    %3655 = vmatprep.subr.bf16.mxu0 %v1259
    %3656 = vmatpush1.bf16.msra.mxu0 %v1258
    %3657 = vmatprep.subr.bf16.mxu0 %v1267
    %3658 = vmatpush1.bf16.msra.mxu0 %v1266
    %3659 = vmatprep.subr.bf16.mxu0 %v1275
    %3660 = vmatpush1.bf16.msra.mxu0 %v1274
    %3661 = vmatprep.subr.bf16.mxu0 %v1283
    %3662 = vmatpush1.bf16.msra.mxu0 %v1282
    %3663 = vmatprep.subr.bf16.mxu0 %v1291
    %3664 = vmatpush1.bf16.msra.mxu0 %v1290
    %3665 = vmatprep.subr.bf16.mxu0 %v1299
    %3666 = vmatpush1.bf16.msra.mxu0 %v1298
    %3667 = vmatprep.subr.bf16.mxu0 %v1307
    %3668 = vmatpush1.bf16.msra.mxu0 %v1306
    %3669 = vmatprep.subr.bf16.mxu0 %v1315
    %3670 = vmatpush1.bf16.msra.mxu0 %v1314
    %3671 = vmatprep.subr.bf16.mxu0 %v1323
    %3672 = vmatpush1.bf16.msra.mxu0 %v1322
    %3673 = vmatprep.subr.bf16.mxu0 %v1331
    %3674 = vmatpush1.bf16.msra.mxu0 %v1330
    %3675 = vmatprep.subr.bf16.mxu0 %v1339
    %3676 = vmatpush1.bf16.msra.mxu0 %v1338
    %3677 = vmatprep.subr.bf16.mxu0 %v1347
    %3678 = vmatpush1.bf16.msra.mxu0 %v1346
    %3679 = vmatprep.subr.bf16.mxu0 %v1355
    %3680 = vmatpush1.bf16.msra.mxu0 %v1354
    %3681 = vmatprep.subr.bf16.mxu0 %v1363
    %3682 = vmatpush1.bf16.msra.mxu0 %v1362
    %3683 = vmatprep.subr.bf16.mxu0 %v1371
    %3684 = vmatpush1.bf16.msra.mxu0 %v1370
    %3685 = vmatprep.subr.bf16.mxu0 %v1379
    %3686 = vmatpush1.bf16.msra.mxu0 %v1378
    %3687 = vmatprep.mubr.bf16.mxu0 %v347
    %3688 = vmatmul.mubr.bf16.gmra.mrb[0].mxu0 %v346
    %v3689 = vpop.f32.mrb[0].mxu0
    %v3690 = vadd.f32 %v3649, %v3689
    %v3691 = vpop.f32.mrb[0].mxu0
    %v3692 = vadd.f32 %v3651, %v3691
    %v3693 = vpop.f32.mrb[0].mxu0
    %v3694 = vpop.f32.mrb[0].mxu0
    %3695 = vdwg.mxu0
    %3696 = vmatprep.subr.bf16.mxu0 %v1387
    %3697 = vmatpush1.bf16.msra.mxu0 %v1386
    %3698 = vmatprep.subr.bf16.mxu0 %v1395
    %3699 = vmatpush1.bf16.msra.mxu0 %v1394
    %3700 = vmatprep.subr.bf16.mxu0 %v1403
    %3701 = vmatpush1.bf16.msra.mxu0 %v1402
    %3702 = vmatprep.subr.bf16.mxu0 %v1411
    %3703 = vmatpush1.bf16.msra.mxu0 %v1410
    %3704 = vmatprep.subr.bf16.mxu0 %v1419
    %3705 = vmatpush1.bf16.msra.mxu0 %v1418
    %3706 = vmatprep.subr.bf16.mxu0 %v1427
    %3707 = vmatpush1.bf16.msra.mxu0 %v1426
    %3708 = vmatprep.subr.bf16.mxu0 %v1435
    %3709 = vmatpush1.bf16.msra.mxu0 %v1434
    %3710 = vmatprep.subr.bf16.mxu0 %v1443
    %3711 = vmatpush1.bf16.msra.mxu0 %v1442
    %3712 = vmatprep.subr.bf16.mxu0 %v1451
    %3713 = vmatpush1.bf16.msra.mxu0 %v1450
    %3714 = vmatprep.subr.bf16.mxu0 %v1459
    %3715 = vmatpush1.bf16.msra.mxu0 %v1458
    %3716 = vmatprep.subr.bf16.mxu0 %v1467
    %3717 = vmatpush1.bf16.msra.mxu0 %v1466
    %3718 = vmatprep.subr.bf16.mxu0 %v1475
    %3719 = vmatpush1.bf16.msra.mxu0 %v1474
    %3720 = vmatprep.subr.bf16.mxu0 %v1483
    %3721 = vmatpush1.bf16.msra.mxu0 %v1482
    %3722 = vmatprep.subr.bf16.mxu0 %v1491
    %3723 = vmatpush1.bf16.msra.mxu0 %v1490
    %3724 = vmatprep.subr.bf16.mxu0 %v1499
    %3725 = vmatpush1.bf16.msra.mxu0 %v1498
    %3726 = vmatprep.subr.bf16.mxu0 %v1507
    %3727 = vmatpush1.bf16.msra.mxu0 %v1506
    %3728 = vmatprep.mubr.bf16.mxu0 %v349
    %3729 = vmatmul.mubr.bf16.gmra.mrb[0].mxu0 %v348
    %v3730 = vpop.f32.mrb[0].mxu0
    %v3731 = vadd.f32 %v3690, %v3730
    %v3732 = vpop.f32.mrb[0].mxu0
    %v3733 = vadd.f32 %v3692, %v3732
    %v3734 = vpop.f32.mrb[0].mxu0
    %v3735 = vpop.f32.mrb[0].mxu0
    %3736 = vdwg.mxu0
    %3737 = vmatprep.subr.bf16.mxu0 %v1515
    %3738 = vmatpush1.bf16.msra.mxu0 %v1514
    %3739 = vmatprep.subr.bf16.mxu0 %v1523
    %3740 = vmatpush1.bf16.msra.mxu0 %v1522
    %3741 = vmatprep.subr.bf16.mxu0 %v1531
    %3742 = vmatpush1.bf16.msra.mxu0 %v1530
    %3743 = vmatprep.subr.bf16.mxu0 %v1539
    %3744 = vmatpush1.bf16.msra.mxu0 %v1538
    %3745 = vmatprep.subr.bf16.mxu0 %v1547
    %3746 = vmatpush1.bf16.msra.mxu0 %v1546
    %3747 = vmatprep.subr.bf16.mxu0 %v1555
    %3748 = vmatpush1.bf16.msra.mxu0 %v1554
    %3749 = vmatprep.subr.bf16.mxu0 %v1563
    %3750 = vmatpush1.bf16.msra.mxu0 %v1562
    %3751 = vmatprep.subr.bf16.mxu0 %v1571
    %3752 = vmatpush1.bf16.msra.mxu0 %v1570
    %3753 = vmatprep.subr.bf16.mxu0 %v1579
    %3754 = vmatpush1.bf16.msra.mxu0 %v1578
    %3755 = vmatprep.subr.bf16.mxu0 %v1587
    %3756 = vmatpush1.bf16.msra.mxu0 %v1586
    %3757 = vmatprep.subr.bf16.mxu0 %v1595
    %3758 = vmatpush1.bf16.msra.mxu0 %v1594
    %3759 = vmatprep.subr.bf16.mxu0 %v1603
    %3760 = vmatpush1.bf16.msra.mxu0 %v1602
    %3761 = vmatprep.subr.bf16.mxu0 %v1611
    %3762 = vmatpush1.bf16.msra.mxu0 %v1610
    %3763 = vmatprep.subr.bf16.mxu0 %v1619
    %3764 = vmatpush1.bf16.msra.mxu0 %v1618
    %3765 = vmatprep.subr.bf16.mxu0 %v1627
    %3766 = vmatpush1.bf16.msra.mxu0 %v1626
    %3767 = vmatprep.subr.bf16.mxu0 %v1635
    %3768 = vmatpush1.bf16.msra.mxu0 %v1634
    %3769 = vmatprep.mubr.bf16.mxu0 %v351
    %3770 = vmatmul.mubr.bf16.gmra.mrb[0].mxu0 %v350
    %v3771 = vpop.f32.mrb[0].mxu0
    %v3772 = vadd.f32 %v3731, %v3771
    %v3773 = vpop.f32.mrb[0].mxu0
    %v3774 = vadd.f32 %v3733, %v3773
    %v3775 = vpop.f32.mrb[0].mxu0
    %v3776 = vpop.f32.mrb[0].mxu0
    %3777 = vdwg.mxu0
    %3778 = vmatprep.subr.bf16.mxu0 %v1643
    %3779 = vmatpush1.bf16.msra.mxu0 %v1642
    %3780 = vmatprep.subr.bf16.mxu0 %v1651
    %3781 = vmatpush1.bf16.msra.mxu0 %v1650
    %3782 = vmatprep.subr.bf16.mxu0 %v1659
    %3783 = vmatpush1.bf16.msra.mxu0 %v1658
    %3784 = vmatprep.subr.bf16.mxu0 %v1667
    %3785 = vmatpush1.bf16.msra.mxu0 %v1666
    %3786 = vmatprep.subr.bf16.mxu0 %v1675
    %3787 = vmatpush1.bf16.msra.mxu0 %v1674
    %3788 = vmatprep.subr.bf16.mxu0 %v1683
    %3789 = vmatpush1.bf16.msra.mxu0 %v1682
    %3790 = vmatprep.subr.bf16.mxu0 %v1691
    %3791 = vmatpush1.bf16.msra.mxu0 %v1690
    %3792 = vmatprep.subr.bf16.mxu0 %v1699
    %3793 = vmatpush1.bf16.msra.mxu0 %v1698
    %3794 = vmatprep.subr.bf16.mxu0 %v1707
    %3795 = vmatpush1.bf16.msra.mxu0 %v1706
    %3796 = vmatprep.subr.bf16.mxu0 %v1715
    %3797 = vmatpush1.bf16.msra.mxu0 %v1714
    %3798 = vmatprep.subr.bf16.mxu0 %v1723
    %3799 = vmatpush1.bf16.msra.mxu0 %v1722
    %3800 = vmatprep.subr.bf16.mxu0 %v1731
    %3801 = vmatpush1.bf16.msra.mxu0 %v1730
    %3802 = vmatprep.subr.bf16.mxu0 %v1739
    %3803 = vmatpush1.bf16.msra.mxu0 %v1738
    %3804 = vmatprep.subr.bf16.mxu0 %v1747
    %3805 = vmatpush1.bf16.msra.mxu0 %v1746
    %3806 = vmatprep.subr.bf16.mxu0 %v1755
    %3807 = vmatpush1.bf16.msra.mxu0 %v1754
    %3808 = vmatprep.subr.bf16.mxu0 %v1763
    %3809 = vmatpush1.bf16.msra.mxu0 %v1762
    %3810 = vmatprep.mubr.bf16.mxu0 %v353
    %3811 = vmatmul.mubr.bf16.gmra.mrb[0].mxu0 %v352
    %v3812 = vpop.f32.mrb[0].mxu0
    %v3813 = vadd.f32 %v3772, %v3812
    %v3814 = vpop.f32.mrb[0].mxu0
    %v3815 = vadd.f32 %v3774, %v3814
    %v3816 = vpop.f32.mrb[0].mxu0
    %v3817 = vpop.f32.mrb[0].mxu0
    %3818 = vdwg.mxu0
    %3819 = vmatprep.subr.bf16.mxu0 %v1771
    %3820 = vmatpush1.bf16.msra.mxu0 %v1770
    %3821 = vmatprep.subr.bf16.mxu0 %v1779
    %3822 = vmatpush1.bf16.msra.mxu0 %v1778
    %3823 = vmatprep.subr.bf16.mxu0 %v1787
    %3824 = vmatpush1.bf16.msra.mxu0 %v1786
    %3825 = vmatprep.subr.bf16.mxu0 %v1795
    %3826 = vmatpush1.bf16.msra.mxu0 %v1794
    %3827 = vmatprep.subr.bf16.mxu0 %v1803
    %3828 = vmatpush1.bf16.msra.mxu0 %v1802
    %3829 = vmatprep.subr.bf16.mxu0 %v1811
    %3830 = vmatpush1.bf16.msra.mxu0 %v1810
    %3831 = vmatprep.subr.bf16.mxu0 %v1819
    %3832 = vmatpush1.bf16.msra.mxu0 %v1818
    %3833 = vmatprep.subr.bf16.mxu0 %v1827
    %3834 = vmatpush1.bf16.msra.mxu0 %v1826
    %3835 = vmatprep.subr.bf16.mxu0 %v1835
    %3836 = vmatpush1.bf16.msra.mxu0 %v1834
    %3837 = vmatprep.subr.bf16.mxu0 %v1843
    %3838 = vmatpush1.bf16.msra.mxu0 %v1842
    %3839 = vmatprep.subr.bf16.mxu0 %v1851
    %3840 = vmatpush1.bf16.msra.mxu0 %v1850
    %3841 = vmatprep.subr.bf16.mxu0 %v1859
    %3842 = vmatpush1.bf16.msra.mxu0 %v1858
    %3843 = vmatprep.subr.bf16.mxu0 %v1867
    %3844 = vmatpush1.bf16.msra.mxu0 %v1866
    %3845 = vmatprep.subr.bf16.mxu0 %v1875
    %3846 = vmatpush1.bf16.msra.mxu0 %v1874
    %3847 = vmatprep.subr.bf16.mxu0 %v1883
    %3848 = vmatpush1.bf16.msra.mxu0 %v1882
    %3849 = vmatprep.subr.bf16.mxu0 %v1891
    %3850 = vmatpush1.bf16.msra.mxu0 %v1890
    %3851 = vmatprep.mubr.bf16.mxu0 %v355
    %3852 = vmatmul.mubr.bf16.gmra.mrb[0].mxu0 %v354
    %v3853 = vpop.f32.mrb[0].mxu0
    %v3854 = vadd.f32 %v3813, %v3853
    %v3855 = vpop.f32.mrb[0].mxu0
    %v3856 = vadd.f32 %v3815, %v3855
    %v3857 = vpop.f32.mrb[0].mxu0
    %v3858 = vpop.f32.mrb[0].mxu0
    %3859 = vdwg.mxu0
    %v3860 = vtanh.pop %v2378
    %v3861 = vtanh.pop %v2380
    %v3862 = vtanh.pop %v2870
    %v3863 = vtanh.pop %v2872
    %v3864 = vtanh.pop %v3362
    %v3865 = vtanh.pop %v3364
    %v3866 = vtanh.pop %v3854
    %v3867 = vtanh.pop %v3856
    // Predicated region
    $region54: #{auto_forward.1} parent=1 // pred_check
      %p3868 = pneg %p87
    $region55: #{auto_forward.1} parent=1 // pred_check_branch
      %3870 = sbr.rel (%p3868) target = $region57
    $region56: #{auto_forward.1} parent=1 // pred_region
      %s3871 = scalar_lea.sflag [#allocation8], 1
      %s3872 = smul.u32 4, 128
      %s3873 = smul.u32 %s3872, 4
      %s3874 = sshll.u32 %s3873, 4
      %3875 = dma.done %s3871, %s3874
    $region57: #{auto_forward.1} parent=1 // pred_fallthru
      _
    %v3876 = vpack.c.bf16 %v3860, %v3860
    %v3877 = vpack.c.bf16 %v3861, %v3861
    %v3878 = vpack.c.bf16 %v3862, %v3862
    %v3879 = vpack.c.bf16 %v3863, %v3863
    %v3880 = vpack.c.bf16 %v3864, %v3864
    %v3881 = vpack.c.bf16 %v3865, %v3865
    %v3882 = vpack.c.bf16 %v3866, %v3866
    %v3883 = vpack.c.bf16 %v3867, %v3867
    %v3884 = vld [vmem:[#allocation3] sm:$0xff]
    %v3885 = vld [vmem:[#allocation3 + $0x8] sm:$0xff]
    %v3886 = vld [vmem:[#allocation3 + $0x10] sm:$0xff]
    %v3887 = vld [vmem:[#allocation3 + $0x18] sm:$0xff]
    %v3888 = vld [vmem:[#allocation3 + $0x20] sm:$0xff]
    %v3889 = vld [vmem:[#allocation3 + $0x28] sm:$0xff]
    %v3890 = vld [vmem:[#allocation3 + $0x30] sm:$0xff]
    %v3891 = vld [vmem:[#allocation3 + $0x38] sm:$0xff]
    %v3892 = vld [vmem:[#allocation3 + $0x40] sm:$0xff]
    %v3893 = vld [vmem:[#allocation3 + $0x48] sm:$0xff]
    %v3894 = vld [vmem:[#allocation3 + $0x50] sm:$0xff]
    %v3895 = vld [vmem:[#allocation3 + $0x58] sm:$0xff]
    %v3896 = vld [vmem:[#allocation3 + $0x60] sm:$0xff]
    %v3897 = vld [vmem:[#allocation3 + $0x68] sm:$0xff]
    %v3898 = vld [vmem:[#allocation3 + $0x70] sm:$0xff]
    %v3899 = vld [vmem:[#allocation3 + $0x78] sm:$0xff]
    %v3900 = vld [vmem:[#allocation3 + $0x80] sm:$0xff]
    %v3901 = vld [vmem:[#allocation3 + $0x88] sm:$0xff]
    %v3902 = vld [vmem:[#allocation3 + $0x90] sm:$0xff]
    %v3903 = vld [vmem:[#allocation3 + $0x98] sm:$0xff]
    %v3904 = vld [vmem:[#allocation3 + $0xa0] sm:$0xff]
    %v3905 = vld [vmem:[#allocation3 + $0xa8] sm:$0xff]
    %v3906 = vld [vmem:[#allocation3 + $0xb0] sm:$0xff]
    %v3907 = vld [vmem:[#allocation3 + $0xb8] sm:$0xff]
    %v3908 = vld [vmem:[#allocation3 + $0xc0] sm:$0xff]
    %v3909 = vld [vmem:[#allocation3 + $0xc8] sm:$0xff]
    %v3910 = vld [vmem:[#allocation3 + $0xd0] sm:$0xff]
    %v3911 = vld [vmem:[#allocation3 + $0xd8] sm:$0xff]
    %v3912 = vld [vmem:[#allocation3 + $0xe0] sm:$0xff]
    %v3913 = vld [vmem:[#allocation3 + $0xe8] sm:$0xff]
    %v3914 = vld [vmem:[#allocation3 + $0xf0] sm:$0xff]
    %v3915 = vld [vmem:[#allocation3 + $0xf8] sm:$0xff]
    %v3916 = vld [vmem:[#allocation3 + $0x100] sm:$0xff]
    %v3917 = vld [vmem:[#allocation3 + $0x108] sm:$0xff]
    %v3918 = vld [vmem:[#allocation3 + $0x110] sm:$0xff]
    %v3919 = vld [vmem:[#allocation3 + $0x118] sm:$0xff]
    %v3920 = vld [vmem:[#allocation3 + $0x120] sm:$0xff]
    %v3921 = vld [vmem:[#allocation3 + $0x128] sm:$0xff]
    %v3922 = vld [vmem:[#allocation3 + $0x130] sm:$0xff]
    %v3923 = vld [vmem:[#allocation3 + $0x138] sm:$0xff]
    %v3924 = vld [vmem:[#allocation3 + $0x140] sm:$0xff]
    %v3925 = vld [vmem:[#allocation3 + $0x148] sm:$0xff]
    %v3926 = vld [vmem:[#allocation3 + $0x150] sm:$0xff]
    %v3927 = vld [vmem:[#allocation3 + $0x158] sm:$0xff]
    %v3928 = vld [vmem:[#allocation3 + $0x160] sm:$0xff]
    %v3929 = vld [vmem:[#allocation3 + $0x168] sm:$0xff]
    %v3930 = vld [vmem:[#allocation3 + $0x170] sm:$0xff]
    %v3931 = vld [vmem:[#allocation3 + $0x178] sm:$0xff]
    %v3932 = vld [vmem:[#allocation3 + $0x180] sm:$0xff]
    %v3933 = vld [vmem:[#allocation3 + $0x188] sm:$0xff]
    %v3934 = vld [vmem:[#allocation3 + $0x190] sm:$0xff]
    %v3935 = vld [vmem:[#allocation3 + $0x198] sm:$0xff]
    %v3936 = vld [vmem:[#allocation3 + $0x1a0] sm:$0xff]
    %v3937 = vld [vmem:[#allocation3 + $0x1a8] sm:$0xff]
    %v3938 = vld [vmem:[#allocation3 + $0x1b0] sm:$0xff]
    %v3939 = vld [vmem:[#allocation3 + $0x1b8] sm:$0xff]
    %v3940 = vld [vmem:[#allocation3 + $0x1c0] sm:$0xff]
    %v3941 = vld [vmem:[#allocation3 + $0x1c8] sm:$0xff]
    %v3942 = vld [vmem:[#allocation3 + $0x1d0] sm:$0xff]
    %v3943 = vld [vmem:[#allocation3 + $0x1d8] sm:$0xff]
    %v3944 = vld [vmem:[#allocation3 + $0x1e0] sm:$0xff]
    %v3945 = vld [vmem:[#allocation3 + $0x1e8] sm:$0xff]
    %v3946 = vld [vmem:[#allocation3 + $0x1f0] sm:$0xff]
    %v3947 = vld [vmem:[#allocation3 + $0x1f8] sm:$0xff]
    %v3948 = vld [vmem:[#allocation3 + $0x200] sm:$0xff]
    %v3949 = vld [vmem:[#allocation3 + $0x208] sm:$0xff]
    %v3950 = vld [vmem:[#allocation3 + $0x210] sm:$0xff]
    %v3951 = vld [vmem:[#allocation3 + $0x218] sm:$0xff]
    %v3952 = vld [vmem:[#allocation3 + $0x220] sm:$0xff]
    %v3953 = vld [vmem:[#allocation3 + $0x228] sm:$0xff]
    %v3954 = vld [vmem:[#allocation3 + $0x230] sm:$0xff]
    %v3955 = vld [vmem:[#allocation3 + $0x238] sm:$0xff]
    %v3956 = vld [vmem:[#allocation3 + $0x240] sm:$0xff]
    %v3957 = vld [vmem:[#allocation3 + $0x248] sm:$0xff]
    %v3958 = vld [vmem:[#allocation3 + $0x250] sm:$0xff]
    %v3959 = vld [vmem:[#allocation3 + $0x258] sm:$0xff]
    %v3960 = vld [vmem:[#allocation3 + $0x260] sm:$0xff]
    %v3961 = vld [vmem:[#allocation3 + $0x268] sm:$0xff]
    %v3962 = vld [vmem:[#allocation3 + $0x270] sm:$0xff]
    %v3963 = vld [vmem:[#allocation3 + $0x278] sm:$0xff]
    %v3964 = vld [vmem:[#allocation3 + $0x280] sm:$0xff]
    %v3965 = vld [vmem:[#allocation3 + $0x288] sm:$0xff]
    %v3966 = vld [vmem:[#allocation3 + $0x290] sm:$0xff]
    %v3967 = vld [vmem:[#allocation3 + $0x298] sm:$0xff]
    %v3968 = vld [vmem:[#allocation3 + $0x2a0] sm:$0xff]
    %v3969 = vld [vmem:[#allocation3 + $0x2a8] sm:$0xff]
    %v3970 = vld [vmem:[#allocation3 + $0x2b0] sm:$0xff]
    %v3971 = vld [vmem:[#allocation3 + $0x2b8] sm:$0xff]
    %v3972 = vld [vmem:[#allocation3 + $0x2c0] sm:$0xff]
    %v3973 = vld [vmem:[#allocation3 + $0x2c8] sm:$0xff]
    %v3974 = vld [vmem:[#allocation3 + $0x2d0] sm:$0xff]
    %v3975 = vld [vmem:[#allocation3 + $0x2d8] sm:$0xff]
    %v3976 = vld [vmem:[#allocation3 + $0x2e0] sm:$0xff]
    %v3977 = vld [vmem:[#allocation3 + $0x2e8] sm:$0xff]
    %v3978 = vld [vmem:[#allocation3 + $0x2f0] sm:$0xff]
    %v3979 = vld [vmem:[#allocation3 + $0x2f8] sm:$0xff]
    %v3980 = vld [vmem:[#allocation3 + $0x300] sm:$0xff]
    %v3981 = vld [vmem:[#allocation3 + $0x308] sm:$0xff]
    %v3982 = vld [vmem:[#allocation3 + $0x310] sm:$0xff]
    %v3983 = vld [vmem:[#allocation3 + $0x318] sm:$0xff]
    %v3984 = vld [vmem:[#allocation3 + $0x320] sm:$0xff]
    %v3985 = vld [vmem:[#allocation3 + $0x328] sm:$0xff]
    %v3986 = vld [vmem:[#allocation3 + $0x330] sm:$0xff]
    %v3987 = vld [vmem:[#allocation3 + $0x338] sm:$0xff]
    %v3988 = vld [vmem:[#allocation3 + $0x340] sm:$0xff]
    %v3989 = vld [vmem:[#allocation3 + $0x348] sm:$0xff]
    %v3990 = vld [vmem:[#allocation3 + $0x350] sm:$0xff]
    %v3991 = vld [vmem:[#allocation3 + $0x358] sm:$0xff]
    %v3992 = vld [vmem:[#allocation3 + $0x360] sm:$0xff]
    %v3993 = vld [vmem:[#allocation3 + $0x368] sm:$0xff]
    %v3994 = vld [vmem:[#allocation3 + $0x370] sm:$0xff]
    %v3995 = vld [vmem:[#allocation3 + $0x378] sm:$0xff]
    %v3996 = vld [vmem:[#allocation3 + $0x380] sm:$0xff]
    %v3997 = vld [vmem:[#allocation3 + $0x388] sm:$0xff]
    %v3998 = vld [vmem:[#allocation3 + $0x390] sm:$0xff]
    %v3999 = vld [vmem:[#allocation3 + $0x398] sm:$0xff]
    %v4000 = vld [vmem:[#allocation3 + $0x3a0] sm:$0xff]
    %v4001 = vld [vmem:[#allocation3 + $0x3a8] sm:$0xff]
    %v4002 = vld [vmem:[#allocation3 + $0x3b0] sm:$0xff]
    %v4003 = vld [vmem:[#allocation3 + $0x3b8] sm:$0xff]
    %v4004 = vld [vmem:[#allocation3 + $0x3c0] sm:$0xff]
    %v4005 = vld [vmem:[#allocation3 + $0x3c8] sm:$0xff]
    %v4006 = vld [vmem:[#allocation3 + $0x3d0] sm:$0xff]
    %v4007 = vld [vmem:[#allocation3 + $0x3d8] sm:$0xff]
    %v4008 = vld [vmem:[#allocation3 + $0x3e0] sm:$0xff]
    %v4009 = vld [vmem:[#allocation3 + $0x3e8] sm:$0xff]
    %v4010 = vld [vmem:[#allocation3 + $0x3f0] sm:$0xff]
    %v4011 = vld [vmem:[#allocation3 + $0x3f8] sm:$0xff]
    %v4012 = vld [vmem:[#allocation3 + $0x400] sm:$0xff]
    %v4013 = vld [vmem:[#allocation3 + $0x408] sm:$0xff]
    %v4014 = vld [vmem:[#allocation3 + $0x410] sm:$0xff]
    %v4015 = vld [vmem:[#allocation3 + $0x418] sm:$0xff]
    %v4016 = vld [vmem:[#allocation3 + $0x420] sm:$0xff]
    %v4017 = vld [vmem:[#allocation3 + $0x428] sm:$0xff]
    %v4018 = vld [vmem:[#allocation3 + $0x430] sm:$0xff]
    %v4019 = vld [vmem:[#allocation3 + $0x438] sm:$0xff]
    %v4020 = vld [vmem:[#allocation3 + $0x440] sm:$0xff]
    %v4021 = vld [vmem:[#allocation3 + $0x448] sm:$0xff]
    %v4022 = vld [vmem:[#allocation3 + $0x450] sm:$0xff]
    %v4023 = vld [vmem:[#allocation3 + $0x458] sm:$0xff]
    %v4024 = vld [vmem:[#allocation3 + $0x460] sm:$0xff]
    %v4025 = vld [vmem:[#allocation3 + $0x468] sm:$0xff]
    %v4026 = vld [vmem:[#allocation3 + $0x470] sm:$0xff]
    %v4027 = vld [vmem:[#allocation3 + $0x478] sm:$0xff]
    %v4028 = vld [vmem:[#allocation3 + $0x480] sm:$0xff]
    %v4029 = vld [vmem:[#allocation3 + $0x488] sm:$0xff]
    %v4030 = vld [vmem:[#allocation3 + $0x490] sm:$0xff]
    %v4031 = vld [vmem:[#allocation3 + $0x498] sm:$0xff]
    %v4032 = vld [vmem:[#allocation3 + $0x4a0] sm:$0xff]
    %v4033 = vld [vmem:[#allocation3 + $0x4a8] sm:$0xff]
    %v4034 = vld [vmem:[#allocation3 + $0x4b0] sm:$0xff]
    %v4035 = vld [vmem:[#allocation3 + $0x4b8] sm:$0xff]
    %v4036 = vld [vmem:[#allocation3 + $0x4c0] sm:$0xff]
    %v4037 = vld [vmem:[#allocation3 + $0x4c8] sm:$0xff]
    %v4038 = vld [vmem:[#allocation3 + $0x4d0] sm:$0xff]
    %v4039 = vld [vmem:[#allocation3 + $0x4d8] sm:$0xff]
    %v4040 = vld [vmem:[#allocation3 + $0x4e0] sm:$0xff]
    %v4041 = vld [vmem:[#allocation3 + $0x4e8] sm:$0xff]
    %v4042 = vld [vmem:[#allocation3 + $0x4f0] sm:$0xff]
    %v4043 = vld [vmem:[#allocation3 + $0x4f8] sm:$0xff]
    %v4044 = vld [vmem:[#allocation3 + $0x500] sm:$0xff]
    %v4045 = vld [vmem:[#allocation3 + $0x508] sm:$0xff]
    %v4046 = vld [vmem:[#allocation3 + $0x510] sm:$0xff]
    %v4047 = vld [vmem:[#allocation3 + $0x518] sm:$0xff]
    %v4048 = vld [vmem:[#allocation3 + $0x520] sm:$0xff]
    %v4049 = vld [vmem:[#allocation3 + $0x528] sm:$0xff]
    %v4050 = vld [vmem:[#allocation3 + $0x530] sm:$0xff]
    %v4051 = vld [vmem:[#allocation3 + $0x538] sm:$0xff]
    %v4052 = vld [vmem:[#allocation3 + $0x540] sm:$0xff]
    %v4053 = vld [vmem:[#allocation3 + $0x548] sm:$0xff]
    %v4054 = vld [vmem:[#allocation3 + $0x550] sm:$0xff]
    %v4055 = vld [vmem:[#allocation3 + $0x558] sm:$0xff]
    %v4056 = vld [vmem:[#allocation3 + $0x560] sm:$0xff]
    %v4057 = vld [vmem:[#allocation3 + $0x568] sm:$0xff]
    %v4058 = vld [vmem:[#allocation3 + $0x570] sm:$0xff]
    %v4059 = vld [vmem:[#allocation3 + $0x578] sm:$0xff]
    %v4060 = vld [vmem:[#allocation3 + $0x580] sm:$0xff]
    %v4061 = vld [vmem:[#allocation3 + $0x588] sm:$0xff]
    %v4062 = vld [vmem:[#allocation3 + $0x590] sm:$0xff]
    %v4063 = vld [vmem:[#allocation3 + $0x598] sm:$0xff]
    %v4064 = vld [vmem:[#allocation3 + $0x5a0] sm:$0xff]
    %v4065 = vld [vmem:[#allocation3 + $0x5a8] sm:$0xff]
    %v4066 = vld [vmem:[#allocation3 + $0x5b0] sm:$0xff]
    %v4067 = vld [vmem:[#allocation3 + $0x5b8] sm:$0xff]
    %v4068 = vld [vmem:[#allocation3 + $0x5c0] sm:$0xff]
    %v4069 = vld [vmem:[#allocation3 + $0x5c8] sm:$0xff]
    %v4070 = vld [vmem:[#allocation3 + $0x5d0] sm:$0xff]
    %v4071 = vld [vmem:[#allocation3 + $0x5d8] sm:$0xff]
    %v4072 = vld [vmem:[#allocation3 + $0x5e0] sm:$0xff]
    %v4073 = vld [vmem:[#allocation3 + $0x5e8] sm:$0xff]
    %v4074 = vld [vmem:[#allocation3 + $0x5f0] sm:$0xff]
    %v4075 = vld [vmem:[#allocation3 + $0x5f8] sm:$0xff]
    %v4076 = vld [vmem:[#allocation3 + $0x600] sm:$0xff]
    %v4077 = vld [vmem:[#allocation3 + $0x608] sm:$0xff]
    %v4078 = vld [vmem:[#allocation3 + $0x610] sm:$0xff]
    %v4079 = vld [vmem:[#allocation3 + $0x618] sm:$0xff]
    %v4080 = vld [vmem:[#allocation3 + $0x620] sm:$0xff]
    %v4081 = vld [vmem:[#allocation3 + $0x628] sm:$0xff]
    %v4082 = vld [vmem:[#allocation3 + $0x630] sm:$0xff]
    %v4083 = vld [vmem:[#allocation3 + $0x638] sm:$0xff]
    %v4084 = vld [vmem:[#allocation3 + $0x640] sm:$0xff]
    %v4085 = vld [vmem:[#allocation3 + $0x648] sm:$0xff]
    %v4086 = vld [vmem:[#allocation3 + $0x650] sm:$0xff]
    %v4087 = vld [vmem:[#allocation3 + $0x658] sm:$0xff]
    %v4088 = vld [vmem:[#allocation3 + $0x660] sm:$0xff]
    %v4089 = vld [vmem:[#allocation3 + $0x668] sm:$0xff]
    %v4090 = vld [vmem:[#allocation3 + $0x670] sm:$0xff]
    %v4091 = vld [vmem:[#allocation3 + $0x678] sm:$0xff]
    %v4092 = vld [vmem:[#allocation3 + $0x680] sm:$0xff]
    %v4093 = vld [vmem:[#allocation3 + $0x688] sm:$0xff]
    %v4094 = vld [vmem:[#allocation3 + $0x690] sm:$0xff]
    %v4095 = vld [vmem:[#allocation3 + $0x698] sm:$0xff]
    %v4096 = vld [vmem:[#allocation3 + $0x6a0] sm:$0xff]
    %v4097 = vld [vmem:[#allocation3 + $0x6a8] sm:$0xff]
    %v4098 = vld [vmem:[#allocation3 + $0x6b0] sm:$0xff]
    %v4099 = vld [vmem:[#allocation3 + $0x6b8] sm:$0xff]
    %v4100 = vld [vmem:[#allocation3 + $0x6c0] sm:$0xff]
    %v4101 = vld [vmem:[#allocation3 + $0x6c8] sm:$0xff]
    %v4102 = vld [vmem:[#allocation3 + $0x6d0] sm:$0xff]
    %v4103 = vld [vmem:[#allocation3 + $0x6d8] sm:$0xff]
    %v4104 = vld [vmem:[#allocation3 + $0x6e0] sm:$0xff]
    %v4105 = vld [vmem:[#allocation3 + $0x6e8] sm:$0xff]
    %v4106 = vld [vmem:[#allocation3 + $0x6f0] sm:$0xff]
    %v4107 = vld [vmem:[#allocation3 + $0x6f8] sm:$0xff]
    %v4108 = vld [vmem:[#allocation3 + $0x700] sm:$0xff]
    %v4109 = vld [vmem:[#allocation3 + $0x708] sm:$0xff]
    %v4110 = vld [vmem:[#allocation3 + $0x710] sm:$0xff]
    %v4111 = vld [vmem:[#allocation3 + $0x718] sm:$0xff]
    %v4112 = vld [vmem:[#allocation3 + $0x720] sm:$0xff]
    %v4113 = vld [vmem:[#allocation3 + $0x728] sm:$0xff]
    %v4114 = vld [vmem:[#allocation3 + $0x730] sm:$0xff]
    %v4115 = vld [vmem:[#allocation3 + $0x738] sm:$0xff]
    %v4116 = vld [vmem:[#allocation3 + $0x740] sm:$0xff]
    %v4117 = vld [vmem:[#allocation3 + $0x748] sm:$0xff]
    %v4118 = vld [vmem:[#allocation3 + $0x750] sm:$0xff]
    %v4119 = vld [vmem:[#allocation3 + $0x758] sm:$0xff]
    %v4120 = vld [vmem:[#allocation3 + $0x760] sm:$0xff]
    %v4121 = vld [vmem:[#allocation3 + $0x768] sm:$0xff]
    %v4122 = vld [vmem:[#allocation3 + $0x770] sm:$0xff]
    %v4123 = vld [vmem:[#allocation3 + $0x778] sm:$0xff]
    %v4124 = vld [vmem:[#allocation3 + $0x780] sm:$0xff]
    %v4125 = vld [vmem:[#allocation3 + $0x788] sm:$0xff]
    %v4126 = vld [vmem:[#allocation3 + $0x790] sm:$0xff]
    %v4127 = vld [vmem:[#allocation3 + $0x798] sm:$0xff]
    %v4128 = vld [vmem:[#allocation3 + $0x7a0] sm:$0xff]
    %v4129 = vld [vmem:[#allocation3 + $0x7a8] sm:$0xff]
    %v4130 = vld [vmem:[#allocation3 + $0x7b0] sm:$0xff]
    %v4131 = vld [vmem:[#allocation3 + $0x7b8] sm:$0xff]
    %v4132 = vld [vmem:[#allocation3 + $0x7c0] sm:$0xff]
    %v4133 = vld [vmem:[#allocation3 + $0x7c8] sm:$0xff]
    %v4134 = vld [vmem:[#allocation3 + $0x7d0] sm:$0xff]
    %v4135 = vld [vmem:[#allocation3 + $0x7d8] sm:$0xff]
    %v4136 = vld [vmem:[#allocation3 + $0x7e0] sm:$0xff]
    %v4137 = vld [vmem:[#allocation3 + $0x7e8] sm:$0xff]
    %v4138 = vld [vmem:[#allocation3 + $0x7f0] sm:$0xff]
    %v4139 = vld [vmem:[#allocation3 + $0x7f8] sm:$0xff]
    %v4140 = vld [vmem:[#allocation9] sm:$0xf]
    %v4142 = vlaneseq
    %v4143 = vshrl.u32 %v4142, 7
    %v4144 = vsub.s32 0, %v4143
    %v4145 = vrot.slane %v4140, %v4144
    %v4146 = vlaneseq
    %v4147 = vshrl.u32 %v4146, 7
    %v4148 = vsub.s32 1, %v4147
    %v4149 = vrot.slane %v4140, %v4148
    %v4150 = vlaneseq
    %v4151 = vshrl.u32 %v4150, 7
    %v4152 = vsub.s32 2, %v4151
    %v4153 = vrot.slane %v4140, %v4152
    %v4154 = vlaneseq
    %v4155 = vshrl.u32 %v4154, 7
    %v4156 = vsub.s32 3, %v4155
    %v4157 = vrot.slane %v4140, %v4156
    %4162 = vmatprep.subr.bf16.mxu0 %v3885
    %4163 = vmatpush1.bf16.msra.mxu0 %v3884
    %4164 = vmatprep.subr.bf16.mxu0 %v3889
    %4165 = vmatpush1.bf16.msra.mxu0 %v3888
    %4166 = vmatprep.subr.bf16.mxu0 %v3893
    %4167 = vmatpush1.bf16.msra.mxu0 %v3892
    %4168 = vmatprep.subr.bf16.mxu0 %v3897
    %4169 = vmatpush1.bf16.msra.mxu0 %v3896
    %4170 = vmatprep.subr.bf16.mxu0 %v3901
    %4171 = vmatpush1.bf16.msra.mxu0 %v3900
    %4172 = vmatprep.subr.bf16.mxu0 %v3905
    %4173 = vmatpush1.bf16.msra.mxu0 %v3904
    %4174 = vmatprep.subr.bf16.mxu0 %v3909
    %4175 = vmatpush1.bf16.msra.mxu0 %v3908
    %4176 = vmatprep.subr.bf16.mxu0 %v3913
    %4177 = vmatpush1.bf16.msra.mxu0 %v3912
    %4178 = vmatprep.subr.bf16.mxu0 %v3917
    %4179 = vmatpush1.bf16.msra.mxu0 %v3916
    %4180 = vmatprep.subr.bf16.mxu0 %v3921
    %4181 = vmatpush1.bf16.msra.mxu0 %v3920
    %4182 = vmatprep.subr.bf16.mxu0 %v3925
    %4183 = vmatpush1.bf16.msra.mxu0 %v3924
    %4184 = vmatprep.subr.bf16.mxu0 %v3929
    %4185 = vmatpush1.bf16.msra.mxu0 %v3928
    %4186 = vmatprep.subr.bf16.mxu0 %v3933
    %4187 = vmatpush1.bf16.msra.mxu0 %v3932
    %4188 = vmatprep.subr.bf16.mxu0 %v3937
    %4189 = vmatpush1.bf16.msra.mxu0 %v3936
    %4190 = vmatprep.subr.bf16.mxu0 %v3941
    %4191 = vmatpush1.bf16.msra.mxu0 %v3940
    %4192 = vmatprep.subr.bf16.mxu0 %v3945
    %4193 = vmatpush1.bf16.msra.mxu0 %v3944
    %4194 = vmatprep.mubr.bf16.mxu0 %v3877
    %4195 = vmatmul.mubr.bf16.gmra.mrb[0].mxu0 %v3876
    %v4196 = vpop.f32.mrb[0].mxu0
    %v4197 = vadd.f32 %v4145, %v4196
    %v4198 = vpop.f32.mrb[0].mxu0
    %v4199 = vadd.f32 %v4149, %v4198
    %v4200 = vpop.f32.mrb[0].mxu0
    %v4201 = vpop.f32.mrb[0].mxu0
    %4202 = vdwg.mxu0
    %4203 = vmatprep.subr.bf16.mxu0 %v3949
    %4204 = vmatpush1.bf16.msra.mxu0 %v3948
    %4205 = vmatprep.subr.bf16.mxu0 %v3953
    %4206 = vmatpush1.bf16.msra.mxu0 %v3952
    %4207 = vmatprep.subr.bf16.mxu0 %v3957
    %4208 = vmatpush1.bf16.msra.mxu0 %v3956
    %4209 = vmatprep.subr.bf16.mxu0 %v3961
    %4210 = vmatpush1.bf16.msra.mxu0 %v3960
    %4211 = vmatprep.subr.bf16.mxu0 %v3965
    %4212 = vmatpush1.bf16.msra.mxu0 %v3964
    %4213 = vmatprep.subr.bf16.mxu0 %v3969
    %4214 = vmatpush1.bf16.msra.mxu0 %v3968
    %4215 = vmatprep.subr.bf16.mxu0 %v3973
    %4216 = vmatpush1.bf16.msra.mxu0 %v3972
    %4217 = vmatprep.subr.bf16.mxu0 %v3977
    %4218 = vmatpush1.bf16.msra.mxu0 %v3976
    %4219 = vmatprep.subr.bf16.mxu0 %v3981
    %4220 = vmatpush1.bf16.msra.mxu0 %v3980
    %4221 = vmatprep.subr.bf16.mxu0 %v3985
    %4222 = vmatpush1.bf16.msra.mxu0 %v3984
    %4223 = vmatprep.subr.bf16.mxu0 %v3989
    %4224 = vmatpush1.bf16.msra.mxu0 %v3988
    %4225 = vmatprep.subr.bf16.mxu0 %v3993
    %4226 = vmatpush1.bf16.msra.mxu0 %v3992
    %4227 = vmatprep.subr.bf16.mxu0 %v3997
    %4228 = vmatpush1.bf16.msra.mxu0 %v3996
    %4229 = vmatprep.subr.bf16.mxu0 %v4001
    %4230 = vmatpush1.bf16.msra.mxu0 %v4000
    %4231 = vmatprep.subr.bf16.mxu0 %v4005
    %4232 = vmatpush1.bf16.msra.mxu0 %v4004
    %4233 = vmatprep.subr.bf16.mxu0 %v4009
    %4234 = vmatpush1.bf16.msra.mxu0 %v4008
    %4235 = vmatprep.mubr.bf16.mxu0 %v3879
    %4236 = vmatmul.mubr.bf16.gmra.mrb[0].mxu0 %v3878
    %v4237 = vpop.f32.mrb[0].mxu0
    %v4238 = vadd.f32 %v4197, %v4237
    %v4239 = vpop.f32.mrb[0].mxu0
    %v4240 = vadd.f32 %v4199, %v4239
    %v4241 = vpop.f32.mrb[0].mxu0
    %v4242 = vpop.f32.mrb[0].mxu0
    %4243 = vdwg.mxu0
    %4244 = vmatprep.subr.bf16.mxu0 %v4013
    %4245 = vmatpush1.bf16.msra.mxu0 %v4012
    %4246 = vmatprep.subr.bf16.mxu0 %v4017
    %4247 = vmatpush1.bf16.msra.mxu0 %v4016
    %4248 = vmatprep.subr.bf16.mxu0 %v4021
    %4249 = vmatpush1.bf16.msra.mxu0 %v4020
    %4250 = vmatprep.subr.bf16.mxu0 %v4025
    %4251 = vmatpush1.bf16.msra.mxu0 %v4024
    %4252 = vmatprep.subr.bf16.mxu0 %v4029
    %4253 = vmatpush1.bf16.msra.mxu0 %v4028
    %4254 = vmatprep.subr.bf16.mxu0 %v4033
    %4255 = vmatpush1.bf16.msra.mxu0 %v4032
    %4256 = vmatprep.subr.bf16.mxu0 %v4037
    %4257 = vmatpush1.bf16.msra.mxu0 %v4036
    %4258 = vmatprep.subr.bf16.mxu0 %v4041
    %4259 = vmatpush1.bf16.msra.mxu0 %v4040
    %4260 = vmatprep.subr.bf16.mxu0 %v4045
    %4261 = vmatpush1.bf16.msra.mxu0 %v4044
    %4262 = vmatprep.subr.bf16.mxu0 %v4049
    %4263 = vmatpush1.bf16.msra.mxu0 %v4048
    %4264 = vmatprep.subr.bf16.mxu0 %v4053
    %4265 = vmatpush1.bf16.msra.mxu0 %v4052
    %4266 = vmatprep.subr.bf16.mxu0 %v4057
    %4267 = vmatpush1.bf16.msra.mxu0 %v4056
    %4268 = vmatprep.subr.bf16.mxu0 %v4061
    %4269 = vmatpush1.bf16.msra.mxu0 %v4060
    %4270 = vmatprep.subr.bf16.mxu0 %v4065
    %4271 = vmatpush1.bf16.msra.mxu0 %v4064
    %4272 = vmatprep.subr.bf16.mxu0 %v4069
    %4273 = vmatpush1.bf16.msra.mxu0 %v4068
    %4274 = vmatprep.subr.bf16.mxu0 %v4073
    %4275 = vmatpush1.bf16.msra.mxu0 %v4072
    %4276 = vmatprep.mubr.bf16.mxu0 %v3881
    %4277 = vmatmul.mubr.bf16.gmra.mrb[0].mxu0 %v3880
    %v4278 = vpop.f32.mrb[0].mxu0
    %v4279 = vadd.f32 %v4238, %v4278
    %v4280 = vpop.f32.mrb[0].mxu0
    %v4281 = vadd.f32 %v4240, %v4280
    %v4282 = vpop.f32.mrb[0].mxu0
    %v4283 = vpop.f32.mrb[0].mxu0
    %4284 = vdwg.mxu0
    %4285 = vmatprep.subr.bf16.mxu0 %v4077
    %4286 = vmatpush1.bf16.msra.mxu0 %v4076
    %4287 = vmatprep.subr.bf16.mxu0 %v4081
    %4288 = vmatpush1.bf16.msra.mxu0 %v4080
    %4289 = vmatprep.subr.bf16.mxu0 %v4085
    %4290 = vmatpush1.bf16.msra.mxu0 %v4084
    %4291 = vmatprep.subr.bf16.mxu0 %v4089
    %4292 = vmatpush1.bf16.msra.mxu0 %v4088
    %4293 = vmatprep.subr.bf16.mxu0 %v4093
    %4294 = vmatpush1.bf16.msra.mxu0 %v4092
    %4295 = vmatprep.subr.bf16.mxu0 %v4097
    %4296 = vmatpush1.bf16.msra.mxu0 %v4096
    %4297 = vmatprep.subr.bf16.mxu0 %v4101
    %4298 = vmatpush1.bf16.msra.mxu0 %v4100
    %4299 = vmatprep.subr.bf16.mxu0 %v4105
    %4300 = vmatpush1.bf16.msra.mxu0 %v4104
    %4301 = vmatprep.subr.bf16.mxu0 %v4109
    %4302 = vmatpush1.bf16.msra.mxu0 %v4108
    %4303 = vmatprep.subr.bf16.mxu0 %v4113
    %4304 = vmatpush1.bf16.msra.mxu0 %v4112
    %4305 = vmatprep.subr.bf16.mxu0 %v4117
    %4306 = vmatpush1.bf16.msra.mxu0 %v4116
    %4307 = vmatprep.subr.bf16.mxu0 %v4121
    %4308 = vmatpush1.bf16.msra.mxu0 %v4120
    %4309 = vmatprep.subr.bf16.mxu0 %v4125
    %4310 = vmatpush1.bf16.msra.mxu0 %v4124
    %4311 = vmatprep.subr.bf16.mxu0 %v4129
    %4312 = vmatpush1.bf16.msra.mxu0 %v4128
    %4313 = vmatprep.subr.bf16.mxu0 %v4133
    %4314 = vmatpush1.bf16.msra.mxu0 %v4132
    %4315 = vmatprep.subr.bf16.mxu0 %v4137
    %4316 = vmatpush1.bf16.msra.mxu0 %v4136
    %4317 = vmatprep.mubr.bf16.mxu0 %v3883
    %4318 = vmatmul.mubr.bf16.gmra.mrb[0].mxu0 %v3882
    %v4319 = vpop.f32.mrb[0].mxu0
    %v4320 = vadd.f32 %v4279, %v4319
    %v4321 = vpop.f32.mrb[0].mxu0
    %v4322 = vadd.f32 %v4281, %v4321
    %v4323 = vpop.f32.mrb[0].mxu0
    %v4324 = vpop.f32.mrb[0].mxu0
    %4325 = vdwg.mxu0
    %4326 = vmatprep.subr.bf16.mxu0 %v3887
    %4327 = vmatpush1.bf16.msra.mxu0 %v3886
    %4328 = vmatprep.subr.bf16.mxu0 %v3891
    %4329 = vmatpush1.bf16.msra.mxu0 %v3890
    %4330 = vmatprep.subr.bf16.mxu0 %v3895
    %4331 = vmatpush1.bf16.msra.mxu0 %v3894
    %4332 = vmatprep.subr.bf16.mxu0 %v3899
    %4333 = vmatpush1.bf16.msra.mxu0 %v3898
    %4334 = vmatprep.subr.bf16.mxu0 %v3903
    %4335 = vmatpush1.bf16.msra.mxu0 %v3902
    %4336 = vmatprep.subr.bf16.mxu0 %v3907
    %4337 = vmatpush1.bf16.msra.mxu0 %v3906
    %4338 = vmatprep.subr.bf16.mxu0 %v3911
    %4339 = vmatpush1.bf16.msra.mxu0 %v3910
    %4340 = vmatprep.subr.bf16.mxu0 %v3915
    %4341 = vmatpush1.bf16.msra.mxu0 %v3914
    %4342 = vmatprep.subr.bf16.mxu0 %v3919
    %4343 = vmatpush1.bf16.msra.mxu0 %v3918
    %4344 = vmatprep.subr.bf16.mxu0 %v3923
    %4345 = vmatpush1.bf16.msra.mxu0 %v3922
    %4346 = vmatprep.subr.bf16.mxu0 %v3927
    %4347 = vmatpush1.bf16.msra.mxu0 %v3926
    %4348 = vmatprep.subr.bf16.mxu0 %v3931
    %4349 = vmatpush1.bf16.msra.mxu0 %v3930
    %4350 = vmatprep.subr.bf16.mxu0 %v3935
    %4351 = vmatpush1.bf16.msra.mxu0 %v3934
    %4352 = vmatprep.subr.bf16.mxu0 %v3939
    %4353 = vmatpush1.bf16.msra.mxu0 %v3938
    %4354 = vmatprep.subr.bf16.mxu0 %v3943
    %4355 = vmatpush1.bf16.msra.mxu0 %v3942
    %4356 = vmatprep.subr.bf16.mxu0 %v3947
    %4357 = vmatpush1.bf16.msra.mxu0 %v3946
    %4358 = vmatprep.mubr.bf16.mxu0 %v3877
    %4359 = vmatmul.mubr.bf16.gmra.mrb[0].mxu0 %v3876
    %v4360 = vpop.f32.mrb[0].mxu0
    %v4361 = vadd.f32 %v4153, %v4360
    %v4362 = vpop.f32.mrb[0].mxu0
    %v4363 = vadd.f32 %v4157, %v4362
    %v4364 = vpop.f32.mrb[0].mxu0
    %v4365 = vpop.f32.mrb[0].mxu0
    %4366 = vdwg.mxu0
    %4367 = vmatprep.subr.bf16.mxu0 %v3951
    %4368 = vmatpush1.bf16.msra.mxu0 %v3950
    %4369 = vmatprep.subr.bf16.mxu0 %v3955
    %4370 = vmatpush1.bf16.msra.mxu0 %v3954
    %4371 = vmatprep.subr.bf16.mxu0 %v3959
    %4372 = vmatpush1.bf16.msra.mxu0 %v3958
    %4373 = vmatprep.subr.bf16.mxu0 %v3963
    %4374 = vmatpush1.bf16.msra.mxu0 %v3962
    %4375 = vmatprep.subr.bf16.mxu0 %v3967
    %4376 = vmatpush1.bf16.msra.mxu0 %v3966
    %4377 = vmatprep.subr.bf16.mxu0 %v3971
    %4378 = vmatpush1.bf16.msra.mxu0 %v3970
    %4379 = vmatprep.subr.bf16.mxu0 %v3975
    %4380 = vmatpush1.bf16.msra.mxu0 %v3974
    %4381 = vmatprep.subr.bf16.mxu0 %v3979
    %4382 = vmatpush1.bf16.msra.mxu0 %v3978
    %4383 = vmatprep.subr.bf16.mxu0 %v3983
    %4384 = vmatpush1.bf16.msra.mxu0 %v3982
    %4385 = vmatprep.subr.bf16.mxu0 %v3987
    %4386 = vmatpush1.bf16.msra.mxu0 %v3986
    %4387 = vmatprep.subr.bf16.mxu0 %v3991
    %4388 = vmatpush1.bf16.msra.mxu0 %v3990
    %4389 = vmatprep.subr.bf16.mxu0 %v3995
    %4390 = vmatpush1.bf16.msra.mxu0 %v3994
    %4391 = vmatprep.subr.bf16.mxu0 %v3999
    %4392 = vmatpush1.bf16.msra.mxu0 %v3998
    %4393 = vmatprep.subr.bf16.mxu0 %v4003
    %4394 = vmatpush1.bf16.msra.mxu0 %v4002
    %4395 = vmatprep.subr.bf16.mxu0 %v4007
    %4396 = vmatpush1.bf16.msra.mxu0 %v4006
    %4397 = vmatprep.subr.bf16.mxu0 %v4011
    %4398 = vmatpush1.bf16.msra.mxu0 %v4010
    %4399 = vmatprep.mubr.bf16.mxu0 %v3879
    %4400 = vmatmul.mubr.bf16.gmra.mrb[0].mxu0 %v3878
    %v4401 = vpop.f32.mrb[0].mxu0
    %v4402 = vadd.f32 %v4361, %v4401
    %v4403 = vpop.f32.mrb[0].mxu0
    %v4404 = vadd.f32 %v4363, %v4403
    %v4405 = vpop.f32.mrb[0].mxu0
    %v4406 = vpop.f32.mrb[0].mxu0
    %4407 = vdwg.mxu0
    %4408 = vmatprep.subr.bf16.mxu0 %v4015
    %4409 = vmatpush1.bf16.msra.mxu0 %v4014
    %4410 = vmatprep.subr.bf16.mxu0 %v4019
    %4411 = vmatpush1.bf16.msra.mxu0 %v4018
    %4412 = vmatprep.subr.bf16.mxu0 %v4023
    %4413 = vmatpush1.bf16.msra.mxu0 %v4022
    %4414 = vmatprep.subr.bf16.mxu0 %v4027
    %4415 = vmatpush1.bf16.msra.mxu0 %v4026
    %4416 = vmatprep.subr.bf16.mxu0 %v4031
    %4417 = vmatpush1.bf16.msra.mxu0 %v4030
    %4418 = vmatprep.subr.bf16.mxu0 %v4035
    %4419 = vmatpush1.bf16.msra.mxu0 %v4034
    %4420 = vmatprep.subr.bf16.mxu0 %v4039
    %4421 = vmatpush1.bf16.msra.mxu0 %v4038
    %4422 = vmatprep.subr.bf16.mxu0 %v4043
    %4423 = vmatpush1.bf16.msra.mxu0 %v4042
    %4424 = vmatprep.subr.bf16.mxu0 %v4047
    %4425 = vmatpush1.bf16.msra.mxu0 %v4046
    %4426 = vmatprep.subr.bf16.mxu0 %v4051
    %4427 = vmatpush1.bf16.msra.mxu0 %v4050
    %4428 = vmatprep.subr.bf16.mxu0 %v4055
    %4429 = vmatpush1.bf16.msra.mxu0 %v4054
    %4430 = vmatprep.subr.bf16.mxu0 %v4059
    %4431 = vmatpush1.bf16.msra.mxu0 %v4058
    %4432 = vmatprep.subr.bf16.mxu0 %v4063
    %4433 = vmatpush1.bf16.msra.mxu0 %v4062
    %4434 = vmatprep.subr.bf16.mxu0 %v4067
    %4435 = vmatpush1.bf16.msra.mxu0 %v4066
    %4436 = vmatprep.subr.bf16.mxu0 %v4071
    %4437 = vmatpush1.bf16.msra.mxu0 %v4070
    %4438 = vmatprep.subr.bf16.mxu0 %v4075
    %4439 = vmatpush1.bf16.msra.mxu0 %v4074
    %4440 = vmatprep.mubr.bf16.mxu0 %v3881
    %4441 = vmatmul.mubr.bf16.gmra.mrb[0].mxu0 %v3880
    %v4442 = vpop.f32.mrb[0].mxu0
    %v4443 = vadd.f32 %v4402, %v4442
    %v4444 = vpop.f32.mrb[0].mxu0
    %v4445 = vadd.f32 %v4404, %v4444
    %v4446 = vpop.f32.mrb[0].mxu0
    %v4447 = vpop.f32.mrb[0].mxu0
    %4448 = vdwg.mxu0
    %4449 = vmatprep.subr.bf16.mxu0 %v4079
    %4450 = vmatpush1.bf16.msra.mxu0 %v4078
    %4451 = vmatprep.subr.bf16.mxu0 %v4083
    %4452 = vmatpush1.bf16.msra.mxu0 %v4082
    %4453 = vmatprep.subr.bf16.mxu0 %v4087
    %4454 = vmatpush1.bf16.msra.mxu0 %v4086
    %4455 = vmatprep.subr.bf16.mxu0 %v4091
    %4456 = vmatpush1.bf16.msra.mxu0 %v4090
    %4457 = vmatprep.subr.bf16.mxu0 %v4095
    %4458 = vmatpush1.bf16.msra.mxu0 %v4094
    %4459 = vmatprep.subr.bf16.mxu0 %v4099
    %4460 = vmatpush1.bf16.msra.mxu0 %v4098
    %4461 = vmatprep.subr.bf16.mxu0 %v4103
    %4462 = vmatpush1.bf16.msra.mxu0 %v4102
    %4463 = vmatprep.subr.bf16.mxu0 %v4107
    %4464 = vmatpush1.bf16.msra.mxu0 %v4106
    %4465 = vmatprep.subr.bf16.mxu0 %v4111
    %4466 = vmatpush1.bf16.msra.mxu0 %v4110
    %4467 = vmatprep.subr.bf16.mxu0 %v4115
    %4468 = vmatpush1.bf16.msra.mxu0 %v4114
    %4469 = vmatprep.subr.bf16.mxu0 %v4119
    %4470 = vmatpush1.bf16.msra.mxu0 %v4118
    %4471 = vmatprep.subr.bf16.mxu0 %v4123
    %4472 = vmatpush1.bf16.msra.mxu0 %v4122
    %4473 = vmatprep.subr.bf16.mxu0 %v4127
    %4474 = vmatpush1.bf16.msra.mxu0 %v4126
    %4475 = vmatprep.subr.bf16.mxu0 %v4131
    %4476 = vmatpush1.bf16.msra.mxu0 %v4130
    %4477 = vmatprep.subr.bf16.mxu0 %v4135
    %4478 = vmatpush1.bf16.msra.mxu0 %v4134
    %4479 = vmatprep.subr.bf16.mxu0 %v4139
    %4480 = vmatpush1.bf16.msra.mxu0 %v4138
    %4481 = vmatprep.mubr.bf16.mxu0 %v3883
    %4482 = vmatmul.mubr.bf16.gmra.mrb[0].mxu0 %v3882
    %v4483 = vpop.f32.mrb[0].mxu0
    %v4484 = vadd.f32 %v4443, %v4483
    %v4485 = vpop.f32.mrb[0].mxu0
    %v4486 = vadd.f32 %v4445, %v4485
    %v4487 = vpop.f32.mrb[0].mxu0
    %v4488 = vpop.f32.mrb[0].mxu0
    %4489 = vdwg.mxu0
    %v4490 = vtanh.pop %v4320
    %v4491 = vtanh.pop %v4322
    %v4492 = vtanh.pop %v4484
    %v4493 = vtanh.pop %v4486
    // Predicated region
    $region58: #{auto_forward.1} parent=1 // pred_check
      %p4494 = pneg %p87
    $region59: #{auto_forward.1} parent=1 // pred_check_branch
      %4496 = sbr.rel (%p4494) target = $region61
    $region60: #{auto_forward.1} parent=1 // pred_region
      %s4497 = scalar_lea.sflag [#allocation8], 2
      %s4498 = smul.u32 4, 64
      %s4499 = smul.u32 %s4498, 2
      %s4500 = sshll.u32 %s4499, 4
      %4501 = dma.done %s4497, %s4500
    $region61: #{auto_forward.1} parent=1 // pred_fallthru
      _
    %v4502 = vpack.c.bf16 %v4490, %v4490
    %v4503 = vpack.c.bf16 %v4491, %v4491
    %v4504 = vpack.c.bf16 %v4492, %v4492
    %v4505 = vpack.c.bf16 %v4493, %v4493
    %v4506 = vld [vmem:[#allocation4] sm:$0xff]
    %v4507 = vld [vmem:[#allocation4 + $0x8] sm:$0xff]
    %v4508 = vld [vmem:[#allocation4 + $0x10] sm:$0xff]
    %v4509 = vld [vmem:[#allocation4 + $0x18] sm:$0xff]
    %v4510 = vld [vmem:[#allocation4 + $0x20] sm:$0xff]
    %v4511 = vld [vmem:[#allocation4 + $0x28] sm:$0xff]
    %v4512 = vld [vmem:[#allocation4 + $0x30] sm:$0xff]
    %v4513 = vld [vmem:[#allocation4 + $0x38] sm:$0xff]
    %v4514 = vld [vmem:[#allocation4 + $0x40] sm:$0xff]
    %v4515 = vld [vmem:[#allocation4 + $0x48] sm:$0xff]
    %v4516 = vld [vmem:[#allocation4 + $0x50] sm:$0xff]
    %v4517 = vld [vmem:[#allocation4 + $0x58] sm:$0xff]
    %v4518 = vld [vmem:[#allocation4 + $0x60] sm:$0xff]
    %v4519 = vld [vmem:[#allocation4 + $0x68] sm:$0xff]
    %v4520 = vld [vmem:[#allocation4 + $0x70] sm:$0xff]
    %v4521 = vld [vmem:[#allocation4 + $0x78] sm:$0xff]
    %v4522 = vld [vmem:[#allocation4 + $0x80] sm:$0xff]
    %v4523 = vld [vmem:[#allocation4 + $0x88] sm:$0xff]
    %v4524 = vld [vmem:[#allocation4 + $0x90] sm:$0xff]
    %v4525 = vld [vmem:[#allocation4 + $0x98] sm:$0xff]
    %v4526 = vld [vmem:[#allocation4 + $0xa0] sm:$0xff]
    %v4527 = vld [vmem:[#allocation4 + $0xa8] sm:$0xff]
    %v4528 = vld [vmem:[#allocation4 + $0xb0] sm:$0xff]
    %v4529 = vld [vmem:[#allocation4 + $0xb8] sm:$0xff]
    %v4530 = vld [vmem:[#allocation4 + $0xc0] sm:$0xff]
    %v4531 = vld [vmem:[#allocation4 + $0xc8] sm:$0xff]
    %v4532 = vld [vmem:[#allocation4 + $0xd0] sm:$0xff]
    %v4533 = vld [vmem:[#allocation4 + $0xd8] sm:$0xff]
    %v4534 = vld [vmem:[#allocation4 + $0xe0] sm:$0xff]
    %v4535 = vld [vmem:[#allocation4 + $0xe8] sm:$0xff]
    %v4536 = vld [vmem:[#allocation4 + $0xf0] sm:$0xff]
    %v4537 = vld [vmem:[#allocation4 + $0xf8] sm:$0xff]
    %v4538 = vld [vmem:[#allocation4 + $0x100] sm:$0xff]
    %v4539 = vld [vmem:[#allocation4 + $0x108] sm:$0xff]
    %v4540 = vld [vmem:[#allocation4 + $0x110] sm:$0xff]
    %v4541 = vld [vmem:[#allocation4 + $0x118] sm:$0xff]
    %v4542 = vld [vmem:[#allocation4 + $0x120] sm:$0xff]
    %v4543 = vld [vmem:[#allocation4 + $0x128] sm:$0xff]
    %v4544 = vld [vmem:[#allocation4 + $0x130] sm:$0xff]
    %v4545 = vld [vmem:[#allocation4 + $0x138] sm:$0xff]
    %v4546 = vld [vmem:[#allocation4 + $0x140] sm:$0xff]
    %v4547 = vld [vmem:[#allocation4 + $0x148] sm:$0xff]
    %v4548 = vld [vmem:[#allocation4 + $0x150] sm:$0xff]
    %v4549 = vld [vmem:[#allocation4 + $0x158] sm:$0xff]
    %v4550 = vld [vmem:[#allocation4 + $0x160] sm:$0xff]
    %v4551 = vld [vmem:[#allocation4 + $0x168] sm:$0xff]
    %v4552 = vld [vmem:[#allocation4 + $0x170] sm:$0xff]
    %v4553 = vld [vmem:[#allocation4 + $0x178] sm:$0xff]
    %v4554 = vld [vmem:[#allocation4 + $0x180] sm:$0xff]
    %v4555 = vld [vmem:[#allocation4 + $0x188] sm:$0xff]
    %v4556 = vld [vmem:[#allocation4 + $0x190] sm:$0xff]
    %v4557 = vld [vmem:[#allocation4 + $0x198] sm:$0xff]
    %v4558 = vld [vmem:[#allocation4 + $0x1a0] sm:$0xff]
    %v4559 = vld [vmem:[#allocation4 + $0x1a8] sm:$0xff]
    %v4560 = vld [vmem:[#allocation4 + $0x1b0] sm:$0xff]
    %v4561 = vld [vmem:[#allocation4 + $0x1b8] sm:$0xff]
    %v4562 = vld [vmem:[#allocation4 + $0x1c0] sm:$0xff]
    %v4563 = vld [vmem:[#allocation4 + $0x1c8] sm:$0xff]
    %v4564 = vld [vmem:[#allocation4 + $0x1d0] sm:$0xff]
    %v4565 = vld [vmem:[#allocation4 + $0x1d8] sm:$0xff]
    %v4566 = vld [vmem:[#allocation4 + $0x1e0] sm:$0xff]
    %v4567 = vld [vmem:[#allocation4 + $0x1e8] sm:$0xff]
    %v4568 = vld [vmem:[#allocation4 + $0x1f0] sm:$0xff]
    %v4569 = vld [vmem:[#allocation4 + $0x1f8] sm:$0xff]
    %v4570 = vld [vmem:[#allocation11] sm:$0x3]
    %v4572 = vlaneseq
    %v4573 = vshrl.u32 %v4572, 7
    %v4574 = vsub.s32 0, %v4573
    %v4575 = vrot.slane %v4570, %v4574
    %v4576 = vlaneseq
    %v4577 = vshrl.u32 %v4576, 7
    %v4578 = vsub.s32 1, %v4577
    %v4579 = vrot.slane %v4570, %v4578
    %4582 = vmatprep.subr.bf16.mxu0 %v4507
    %4583 = vmatpush1.bf16.msra.mxu0 %v4506
    %4584 = vmatprep.subr.bf16.mxu0 %v4509
    %4585 = vmatpush1.bf16.msra.mxu0 %v4508
    %4586 = vmatprep.subr.bf16.mxu0 %v4511
    %4587 = vmatpush1.bf16.msra.mxu0 %v4510
    %4588 = vmatprep.subr.bf16.mxu0 %v4513
    %4589 = vmatpush1.bf16.msra.mxu0 %v4512
    %4590 = vmatprep.subr.bf16.mxu0 %v4515
    %4591 = vmatpush1.bf16.msra.mxu0 %v4514
    %4592 = vmatprep.subr.bf16.mxu0 %v4517
    %4593 = vmatpush1.bf16.msra.mxu0 %v4516
    %4594 = vmatprep.subr.bf16.mxu0 %v4519
    %4595 = vmatpush1.bf16.msra.mxu0 %v4518
    %4596 = vmatprep.subr.bf16.mxu0 %v4521
    %4597 = vmatpush1.bf16.msra.mxu0 %v4520
    %4598 = vmatprep.subr.bf16.mxu0 %v4523
    %4599 = vmatpush1.bf16.msra.mxu0 %v4522
    %4600 = vmatprep.subr.bf16.mxu0 %v4525
    %4601 = vmatpush1.bf16.msra.mxu0 %v4524
    %4602 = vmatprep.subr.bf16.mxu0 %v4527
    %4603 = vmatpush1.bf16.msra.mxu0 %v4526
    %4604 = vmatprep.subr.bf16.mxu0 %v4529
    %4605 = vmatpush1.bf16.msra.mxu0 %v4528
    %4606 = vmatprep.subr.bf16.mxu0 %v4531
    %4607 = vmatpush1.bf16.msra.mxu0 %v4530
    %4608 = vmatprep.subr.bf16.mxu0 %v4533
    %4609 = vmatpush1.bf16.msra.mxu0 %v4532
    %4610 = vmatprep.subr.bf16.mxu0 %v4535
    %4611 = vmatpush1.bf16.msra.mxu0 %v4534
    %4612 = vmatprep.subr.bf16.mxu0 %v4537
    %4613 = vmatpush1.bf16.msra.mxu0 %v4536
    %4614 = vmatprep.mubr.bf16.mxu0 %v4503
    %4615 = vmatmul.mubr.bf16.gmra.mrb[0].mxu0 %v4502
    %v4616 = vpop.f32.mrb[0].mxu0
    %v4617 = vadd.f32 %v4575, %v4616
    %v4618 = vpop.f32.mrb[0].mxu0
    %v4619 = vadd.f32 %v4579, %v4618
    %v4620 = vpop.f32.mrb[0].mxu0
    %v4621 = vpop.f32.mrb[0].mxu0
    %4622 = vdwg.mxu0
    %4623 = vmatprep.subr.bf16.mxu0 %v4539
    %4624 = vmatpush1.bf16.msra.mxu0 %v4538
    %4625 = vmatprep.subr.bf16.mxu0 %v4541
    %4626 = vmatpush1.bf16.msra.mxu0 %v4540
    %4627 = vmatprep.subr.bf16.mxu0 %v4543
    %4628 = vmatpush1.bf16.msra.mxu0 %v4542
    %4629 = vmatprep.subr.bf16.mxu0 %v4545
    %4630 = vmatpush1.bf16.msra.mxu0 %v4544
    %4631 = vmatprep.subr.bf16.mxu0 %v4547
    %4632 = vmatpush1.bf16.msra.mxu0 %v4546
    %4633 = vmatprep.subr.bf16.mxu0 %v4549
    %4634 = vmatpush1.bf16.msra.mxu0 %v4548
    %4635 = vmatprep.subr.bf16.mxu0 %v4551
    %4636 = vmatpush1.bf16.msra.mxu0 %v4550
    %4637 = vmatprep.subr.bf16.mxu0 %v4553
    %4638 = vmatpush1.bf16.msra.mxu0 %v4552
    %4639 = vmatprep.subr.bf16.mxu0 %v4555
    %4640 = vmatpush1.bf16.msra.mxu0 %v4554
    %4641 = vmatprep.subr.bf16.mxu0 %v4557
    %4642 = vmatpush1.bf16.msra.mxu0 %v4556
    %4643 = vmatprep.subr.bf16.mxu0 %v4559
    %4644 = vmatpush1.bf16.msra.mxu0 %v4558
    %4645 = vmatprep.subr.bf16.mxu0 %v4561
    %4646 = vmatpush1.bf16.msra.mxu0 %v4560
    %4647 = vmatprep.subr.bf16.mxu0 %v4563
    %4648 = vmatpush1.bf16.msra.mxu0 %v4562
    %4649 = vmatprep.subr.bf16.mxu0 %v4565
    %4650 = vmatpush1.bf16.msra.mxu0 %v4564
    %4651 = vmatprep.subr.bf16.mxu0 %v4567
    %4652 = vmatpush1.bf16.msra.mxu0 %v4566
    %4653 = vmatprep.subr.bf16.mxu0 %v4569
    %4654 = vmatpush1.bf16.msra.mxu0 %v4568
    %4655 = vmatprep.mubr.bf16.mxu0 %v4505
    %4656 = vmatmul.mubr.bf16.gmra.mrb[0].mxu0 %v4504
    %v4657 = vpop.f32.mrb[0].mxu0
    %v4658 = vadd.f32 %v4617, %v4657
    %v4659 = vpop.f32.mrb[0].mxu0
    %v4660 = vadd.f32 %v4619, %v4659
    %v4661 = vpop.f32.mrb[0].mxu0
    %v4662 = vpop.f32.mrb[0].mxu0
    %4663 = vdwg.mxu0
    %v4664 = vtanh.pop %v4658
    %v4665 = vtanh.pop %v4660
    // Predicated region
    $region62: #{auto_forward.1} parent=1 // pred_check
      %p4666 = pneg %p87
    $region63: #{auto_forward.1} parent=1 // pred_check_branch
      %4668 = sbr.rel (%p4666) target = $region65
    $region64: #{auto_forward.1} parent=1 // pred_region
      %s4669 = scalar_lea.sflag [#allocation8], 3
      %s4670 = smul.u32 4, 32
      %s4671 = smul.u32 %s4670, 4
      %s4672 = sshll.u32 %s4671, 4
      %4673 = dma.done %s4669, %s4672
    $region65: #{auto_forward.1} parent=1 // pred_fallthru
      _
    %v4674 = vpack.c.bf16 %v4664, %v4664
    %v4675 = vpack.c.bf16 %v4665, %v4665
    %v4676 = vld [vmem:[#allocation5] sm:$0xff]
    %v4677 = vld [vmem:[#allocation5 + $0x8] sm:$0xff]
    %v4678 = vld [vmem:[#allocation5 + $0x10] sm:$0xff]
    %v4679 = vld [vmem:[#allocation5 + $0x18] sm:$0xff]
    %v4680 = vld [vmem:[#allocation5 + $0x20] sm:$0xff]
    %v4681 = vld [vmem:[#allocation5 + $0x28] sm:$0xff]
    %v4682 = vld [vmem:[#allocation5 + $0x30] sm:$0xff]
    %v4683 = vld [vmem:[#allocation5 + $0x38] sm:$0xff]
    %v4684 = vld [vmem:[#allocation5 + $0x40] sm:$0xff]
    %v4685 = vld [vmem:[#allocation5 + $0x48] sm:$0xff]
    %v4686 = vld [vmem:[#allocation5 + $0x50] sm:$0xff]
    %v4687 = vld [vmem:[#allocation5 + $0x58] sm:$0xff]
    %v4688 = vld [vmem:[#allocation5 + $0x60] sm:$0xff]
    %v4689 = vld [vmem:[#allocation5 + $0x68] sm:$0xff]
    %v4690 = vld [vmem:[#allocation5 + $0x70] sm:$0xff]
    %v4691 = vld [vmem:[#allocation5 + $0x78] sm:$0xff]
    %v4692 = vld [vmem:[#allocation5 + $0x80] sm:$0xff]
    %v4693 = vld [vmem:[#allocation5 + $0x88] sm:$0xff]
    %v4694 = vld [vmem:[#allocation5 + $0x90] sm:$0xff]
    %v4695 = vld [vmem:[#allocation5 + $0x98] sm:$0xff]
    %v4696 = vld [vmem:[#allocation5 + $0xa0] sm:$0xff]
    %v4697 = vld [vmem:[#allocation5 + $0xa8] sm:$0xff]
    %v4698 = vld [vmem:[#allocation5 + $0xb0] sm:$0xff]
    %v4699 = vld [vmem:[#allocation5 + $0xb8] sm:$0xff]
    %v4700 = vld [vmem:[#allocation5 + $0xc0] sm:$0xff]
    %v4701 = vld [vmem:[#allocation5 + $0xc8] sm:$0xff]
    %v4702 = vld [vmem:[#allocation5 + $0xd0] sm:$0xff]
    %v4703 = vld [vmem:[#allocation5 + $0xd8] sm:$0xff]
    %v4704 = vld [vmem:[#allocation5 + $0xe0] sm:$0xff]
    %v4705 = vld [vmem:[#allocation5 + $0xe8] sm:$0xff]
    %v4706 = vld [vmem:[#allocation5 + $0xf0] sm:$0xff]
    %v4707 = vld [vmem:[#allocation5 + $0xf8] sm:$0xff]
    %v4708 = vld [vmem:[#allocation5 + $0x100] sm:$0xff]
    %v4709 = vld [vmem:[#allocation5 + $0x108] sm:$0xff]
    %v4710 = vld [vmem:[#allocation5 + $0x110] sm:$0xff]
    %v4711 = vld [vmem:[#allocation5 + $0x118] sm:$0xff]
    %v4712 = vld [vmem:[#allocation5 + $0x120] sm:$0xff]
    %v4713 = vld [vmem:[#allocation5 + $0x128] sm:$0xff]
    %v4714 = vld [vmem:[#allocation5 + $0x130] sm:$0xff]
    %v4715 = vld [vmem:[#allocation5 + $0x138] sm:$0xff]
    %v4716 = vld [vmem:[#allocation5 + $0x140] sm:$0xff]
    %v4717 = vld [vmem:[#allocation5 + $0x148] sm:$0xff]
    %v4718 = vld [vmem:[#allocation5 + $0x150] sm:$0xff]
    %v4719 = vld [vmem:[#allocation5 + $0x158] sm:$0xff]
    %v4720 = vld [vmem:[#allocation5 + $0x160] sm:$0xff]
    %v4721 = vld [vmem:[#allocation5 + $0x168] sm:$0xff]
    %v4722 = vld [vmem:[#allocation5 + $0x170] sm:$0xff]
    %v4723 = vld [vmem:[#allocation5 + $0x178] sm:$0xff]
    %v4724 = vld [vmem:[#allocation5 + $0x180] sm:$0xff]
    %v4725 = vld [vmem:[#allocation5 + $0x188] sm:$0xff]
    %v4726 = vld [vmem:[#allocation5 + $0x190] sm:$0xff]
    %v4727 = vld [vmem:[#allocation5 + $0x198] sm:$0xff]
    %v4728 = vld [vmem:[#allocation5 + $0x1a0] sm:$0xff]
    %v4729 = vld [vmem:[#allocation5 + $0x1a8] sm:$0xff]
    %v4730 = vld [vmem:[#allocation5 + $0x1b0] sm:$0xff]
    %v4731 = vld [vmem:[#allocation5 + $0x1b8] sm:$0xff]
    %v4732 = vld [vmem:[#allocation5 + $0x1c0] sm:$0xff]
    %v4733 = vld [vmem:[#allocation5 + $0x1c8] sm:$0xff]
    %v4734 = vld [vmem:[#allocation5 + $0x1d0] sm:$0xff]
    %v4735 = vld [vmem:[#allocation5 + $0x1d8] sm:$0xff]
    %v4736 = vld [vmem:[#allocation5 + $0x1e0] sm:$0xff]
    %v4737 = vld [vmem:[#allocation5 + $0x1e8] sm:$0xff]
    %v4738 = vld [vmem:[#allocation5 + $0x1f0] sm:$0xff]
    %v4739 = vld [vmem:[#allocation5 + $0x1f8] sm:$0xff]
    %v4740 = vld [vmem:[#allocation13] sm:$0xf]
    %v4742 = vlaneseq
    %v4743 = vshrl.u32 %v4742, 7
    %v4744 = vsub.s32 0, %v4743
    %v4745 = vrot.slane %v4740, %v4744
    %v4746 = vlaneseq
    %v4747 = vshrl.u32 %v4746, 7
    %v4748 = vsub.s32 1, %v4747
    %v4749 = vrot.slane %v4740, %v4748
    %v4750 = vlaneseq
    %v4751 = vshrl.u32 %v4750, 7
    %v4752 = vsub.s32 2, %v4751
    %v4753 = vrot.slane %v4740, %v4752
    %v4754 = vlaneseq
    %v4755 = vshrl.u32 %v4754, 7
    %v4756 = vsub.s32 3, %v4755
    %v4757 = vrot.slane %v4740, %v4756
    %4762 = vmatprep.subr.bf16.mxu0 %v4677
    %4763 = vmatpush1.bf16.msra.mxu0 %v4676
    %4764 = vmatprep.subr.bf16.mxu0 %v4681
    %4765 = vmatpush1.bf16.msra.mxu0 %v4680
    %4766 = vmatprep.subr.bf16.mxu0 %v4685
    %4767 = vmatpush1.bf16.msra.mxu0 %v4684
    %4768 = vmatprep.subr.bf16.mxu0 %v4689
    %4769 = vmatpush1.bf16.msra.mxu0 %v4688
    %4770 = vmatprep.subr.bf16.mxu0 %v4693
    %4771 = vmatpush1.bf16.msra.mxu0 %v4692
    %4772 = vmatprep.subr.bf16.mxu0 %v4697
    %4773 = vmatpush1.bf16.msra.mxu0 %v4696
    %4774 = vmatprep.subr.bf16.mxu0 %v4701
    %4775 = vmatpush1.bf16.msra.mxu0 %v4700
    %4776 = vmatprep.subr.bf16.mxu0 %v4705
    %4777 = vmatpush1.bf16.msra.mxu0 %v4704
    %4778 = vmatprep.subr.bf16.mxu0 %v4709
    %4779 = vmatpush1.bf16.msra.mxu0 %v4708
    %4780 = vmatprep.subr.bf16.mxu0 %v4713
    %4781 = vmatpush1.bf16.msra.mxu0 %v4712
    %4782 = vmatprep.subr.bf16.mxu0 %v4717
    %4783 = vmatpush1.bf16.msra.mxu0 %v4716
    %4784 = vmatprep.subr.bf16.mxu0 %v4721
    %4785 = vmatpush1.bf16.msra.mxu0 %v4720
    %4786 = vmatprep.subr.bf16.mxu0 %v4725
    %4787 = vmatpush1.bf16.msra.mxu0 %v4724
    %4788 = vmatprep.subr.bf16.mxu0 %v4729
    %4789 = vmatpush1.bf16.msra.mxu0 %v4728
    %4790 = vmatprep.subr.bf16.mxu0 %v4733
    %4791 = vmatpush1.bf16.msra.mxu0 %v4732
    %4792 = vmatprep.subr.bf16.mxu0 %v4737
    %4793 = vmatpush1.bf16.msra.mxu0 %v4736
    %4794 = vmatprep.mubr.bf16.mxu0 %v4675
    %4795 = vmatmul.mubr.bf16.gmra.mrb[0].mxu0 %v4674
    %v4796 = vpop.f32.mrb[0].mxu0
    %v4797 = vadd.f32 %v4745, %v4796
    %v4798 = vpop.f32.mrb[0].mxu0
    %v4799 = vadd.f32 %v4749, %v4798
    %v4800 = vpop.f32.mrb[0].mxu0
    %v4801 = vpop.f32.mrb[0].mxu0
    %4802 = vdwg.mxu0
    %4803 = vmatprep.subr.bf16.mxu0 %v4679
    %4804 = vmatpush1.bf16.msra.mxu0 %v4678
    %4805 = vmatprep.subr.bf16.mxu0 %v4683
    %4806 = vmatpush1.bf16.msra.mxu0 %v4682
    %4807 = vmatprep.subr.bf16.mxu0 %v4687
    %4808 = vmatpush1.bf16.msra.mxu0 %v4686
    %4809 = vmatprep.subr.bf16.mxu0 %v4691
    %4810 = vmatpush1.bf16.msra.mxu0 %v4690
    %4811 = vmatprep.subr.bf16.mxu0 %v4695
    %4812 = vmatpush1.bf16.msra.mxu0 %v4694
    %4813 = vmatprep.subr.bf16.mxu0 %v4699
    %4814 = vmatpush1.bf16.msra.mxu0 %v4698
    %4815 = vmatprep.subr.bf16.mxu0 %v4703
    %4816 = vmatpush1.bf16.msra.mxu0 %v4702
    %4817 = vmatprep.subr.bf16.mxu0 %v4707
    %4818 = vmatpush1.bf16.msra.mxu0 %v4706
    %4819 = vmatprep.subr.bf16.mxu0 %v4711
    %4820 = vmatpush1.bf16.msra.mxu0 %v4710
    %4821 = vmatprep.subr.bf16.mxu0 %v4715
    %4822 = vmatpush1.bf16.msra.mxu0 %v4714
    %4823 = vmatprep.subr.bf16.mxu0 %v4719
    %4824 = vmatpush1.bf16.msra.mxu0 %v4718
    %4825 = vmatprep.subr.bf16.mxu0 %v4723
    %4826 = vmatpush1.bf16.msra.mxu0 %v4722
    %4827 = vmatprep.subr.bf16.mxu0 %v4727
    %4828 = vmatpush1.bf16.msra.mxu0 %v4726
    %4829 = vmatprep.subr.bf16.mxu0 %v4731
    %4830 = vmatpush1.bf16.msra.mxu0 %v4730
    %4831 = vmatprep.subr.bf16.mxu0 %v4735
    %4832 = vmatpush1.bf16.msra.mxu0 %v4734
    %4833 = vmatprep.subr.bf16.mxu0 %v4739
    %4834 = vmatpush1.bf16.msra.mxu0 %v4738
    %4835 = vmatprep.mubr.bf16.mxu0 %v4675
    %4836 = vmatmul.mubr.bf16.gmra.mrb[0].mxu0 %v4674
    %v4837 = vpop.f32.mrb[0].mxu0
    %v4838 = vadd.f32 %v4753, %v4837
    %v4839 = vpop.f32.mrb[0].mxu0
    %v4840 = vadd.f32 %v4757, %v4839
    %v4841 = vpop.f32.mrb[0].mxu0
    %v4842 = vpop.f32.mrb[0].mxu0
    %4843 = vdwg.mxu0
    %v4844 = vtanh.pop %v4797
    %v4845 = vtanh.pop %v4799
    %v4846 = vtanh.pop %v4838
    %v4847 = vtanh.pop %v4840
    // Predicated region
    $region66: #{auto_forward.1} parent=1 // pred_check
      %p4848 = pneg %p87
    $region67: #{auto_forward.1} parent=1 // pred_check_branch
      %4850 = sbr.rel (%p4848) target = $region69
    $region68: #{auto_forward.1} parent=1 // pred_region
      %s4851 = scalar_lea.sflag [#allocation8], 4
      %s4852 = smul.u32 4, 64
      %s4853 = smul.u32 %s4852, 8
      %s4854 = sshll.u32 %s4853, 4
      %4855 = dma.done %s4851, %s4854
    $region69: #{auto_forward.1} parent=1 // pred_fallthru
      _
    %v4856 = vpack.c.bf16 %v4844, %v4844
    %v4857 = vpack.c.bf16 %v4845, %v4845
    %v4858 = vpack.c.bf16 %v4846, %v4846
    %v4859 = vpack.c.bf16 %v4847, %v4847
    %v4860 = vld [vmem:[#allocation6] sm:$0xff]
    %v4861 = vld [vmem:[#allocation6 + $0x8] sm:$0xff]
    %v4862 = vld [vmem:[#allocation6 + $0x10] sm:$0xff]
    %v4863 = vld [vmem:[#allocation6 + $0x18] sm:$0xff]
    %v4864 = vld [vmem:[#allocation6 + $0x20] sm:$0xff]
    %v4865 = vld [vmem:[#allocation6 + $0x28] sm:$0xff]
    %v4866 = vld [vmem:[#allocation6 + $0x30] sm:$0xff]
    %v4867 = vld [vmem:[#allocation6 + $0x38] sm:$0xff]
    %v4868 = vld [vmem:[#allocation6 + $0x40] sm:$0xff]
    %v4869 = vld [vmem:[#allocation6 + $0x48] sm:$0xff]
    %v4870 = vld [vmem:[#allocation6 + $0x50] sm:$0xff]
    %v4871 = vld [vmem:[#allocation6 + $0x58] sm:$0xff]
    %v4872 = vld [vmem:[#allocation6 + $0x60] sm:$0xff]
    %v4873 = vld [vmem:[#allocation6 + $0x68] sm:$0xff]
    %v4874 = vld [vmem:[#allocation6 + $0x70] sm:$0xff]
    %v4875 = vld [vmem:[#allocation6 + $0x78] sm:$0xff]
    %v4876 = vld [vmem:[#allocation6 + $0x80] sm:$0xff]
    %v4877 = vld [vmem:[#allocation6 + $0x88] sm:$0xff]
    %v4878 = vld [vmem:[#allocation6 + $0x90] sm:$0xff]
    %v4879 = vld [vmem:[#allocation6 + $0x98] sm:$0xff]
    %v4880 = vld [vmem:[#allocation6 + $0xa0] sm:$0xff]
    %v4881 = vld [vmem:[#allocation6 + $0xa8] sm:$0xff]
    %v4882 = vld [vmem:[#allocation6 + $0xb0] sm:$0xff]
    %v4883 = vld [vmem:[#allocation6 + $0xb8] sm:$0xff]
    %v4884 = vld [vmem:[#allocation6 + $0xc0] sm:$0xff]
    %v4885 = vld [vmem:[#allocation6 + $0xc8] sm:$0xff]
    %v4886 = vld [vmem:[#allocation6 + $0xd0] sm:$0xff]
    %v4887 = vld [vmem:[#allocation6 + $0xd8] sm:$0xff]
    %v4888 = vld [vmem:[#allocation6 + $0xe0] sm:$0xff]
    %v4889 = vld [vmem:[#allocation6 + $0xe8] sm:$0xff]
    %v4890 = vld [vmem:[#allocation6 + $0xf0] sm:$0xff]
    %v4891 = vld [vmem:[#allocation6 + $0xf8] sm:$0xff]
    %v4892 = vld [vmem:[#allocation6 + $0x100] sm:$0xff]
    %v4893 = vld [vmem:[#allocation6 + $0x108] sm:$0xff]
    %v4894 = vld [vmem:[#allocation6 + $0x110] sm:$0xff]
    %v4895 = vld [vmem:[#allocation6 + $0x118] sm:$0xff]
    %v4896 = vld [vmem:[#allocation6 + $0x120] sm:$0xff]
    %v4897 = vld [vmem:[#allocation6 + $0x128] sm:$0xff]
    %v4898 = vld [vmem:[#allocation6 + $0x130] sm:$0xff]
    %v4899 = vld [vmem:[#allocation6 + $0x138] sm:$0xff]
    %v4900 = vld [vmem:[#allocation6 + $0x140] sm:$0xff]
    %v4901 = vld [vmem:[#allocation6 + $0x148] sm:$0xff]
    %v4902 = vld [vmem:[#allocation6 + $0x150] sm:$0xff]
    %v4903 = vld [vmem:[#allocation6 + $0x158] sm:$0xff]
    %v4904 = vld [vmem:[#allocation6 + $0x160] sm:$0xff]
    %v4905 = vld [vmem:[#allocation6 + $0x168] sm:$0xff]
    %v4906 = vld [vmem:[#allocation6 + $0x170] sm:$0xff]
    %v4907 = vld [vmem:[#allocation6 + $0x178] sm:$0xff]
    %v4908 = vld [vmem:[#allocation6 + $0x180] sm:$0xff]
    %v4909 = vld [vmem:[#allocation6 + $0x188] sm:$0xff]
    %v4910 = vld [vmem:[#allocation6 + $0x190] sm:$0xff]
    %v4911 = vld [vmem:[#allocation6 + $0x198] sm:$0xff]
    %v4912 = vld [vmem:[#allocation6 + $0x1a0] sm:$0xff]
    %v4913 = vld [vmem:[#allocation6 + $0x1a8] sm:$0xff]
    %v4914 = vld [vmem:[#allocation6 + $0x1b0] sm:$0xff]
    %v4915 = vld [vmem:[#allocation6 + $0x1b8] sm:$0xff]
    %v4916 = vld [vmem:[#allocation6 + $0x1c0] sm:$0xff]
    %v4917 = vld [vmem:[#allocation6 + $0x1c8] sm:$0xff]
    %v4918 = vld [vmem:[#allocation6 + $0x1d0] sm:$0xff]
    %v4919 = vld [vmem:[#allocation6 + $0x1d8] sm:$0xff]
    %v4920 = vld [vmem:[#allocation6 + $0x1e0] sm:$0xff]
    %v4921 = vld [vmem:[#allocation6 + $0x1e8] sm:$0xff]
    %v4922 = vld [vmem:[#allocation6 + $0x1f0] sm:$0xff]
    %v4923 = vld [vmem:[#allocation6 + $0x1f8] sm:$0xff]
    %v4924 = vld [vmem:[#allocation6 + $0x200] sm:$0xff]
    %v4925 = vld [vmem:[#allocation6 + $0x208] sm:$0xff]
    %v4926 = vld [vmem:[#allocation6 + $0x210] sm:$0xff]
    %v4927 = vld [vmem:[#allocation6 + $0x218] sm:$0xff]
    %v4928 = vld [vmem:[#allocation6 + $0x220] sm:$0xff]
    %v4929 = vld [vmem:[#allocation6 + $0x228] sm:$0xff]
    %v4930 = vld [vmem:[#allocation6 + $0x230] sm:$0xff]
    %v4931 = vld [vmem:[#allocation6 + $0x238] sm:$0xff]
    %v4932 = vld [vmem:[#allocation6 + $0x240] sm:$0xff]
    %v4933 = vld [vmem:[#allocation6 + $0x248] sm:$0xff]
    %v4934 = vld [vmem:[#allocation6 + $0x250] sm:$0xff]
    %v4935 = vld [vmem:[#allocation6 + $0x258] sm:$0xff]
    %v4936 = vld [vmem:[#allocation6 + $0x260] sm:$0xff]
    %v4937 = vld [vmem:[#allocation6 + $0x268] sm:$0xff]
    %v4938 = vld [vmem:[#allocation6 + $0x270] sm:$0xff]
    %v4939 = vld [vmem:[#allocation6 + $0x278] sm:$0xff]
    %v4940 = vld [vmem:[#allocation6 + $0x280] sm:$0xff]
    %v4941 = vld [vmem:[#allocation6 + $0x288] sm:$0xff]
    %v4942 = vld [vmem:[#allocation6 + $0x290] sm:$0xff]
    %v4943 = vld [vmem:[#allocation6 + $0x298] sm:$0xff]
    %v4944 = vld [vmem:[#allocation6 + $0x2a0] sm:$0xff]
    %v4945 = vld [vmem:[#allocation6 + $0x2a8] sm:$0xff]
    %v4946 = vld [vmem:[#allocation6 + $0x2b0] sm:$0xff]
    %v4947 = vld [vmem:[#allocation6 + $0x2b8] sm:$0xff]
    %v4948 = vld [vmem:[#allocation6 + $0x2c0] sm:$0xff]
    %v4949 = vld [vmem:[#allocation6 + $0x2c8] sm:$0xff]
    %v4950 = vld [vmem:[#allocation6 + $0x2d0] sm:$0xff]
    %v4951 = vld [vmem:[#allocation6 + $0x2d8] sm:$0xff]
    %v4952 = vld [vmem:[#allocation6 + $0x2e0] sm:$0xff]
    %v4953 = vld [vmem:[#allocation6 + $0x2e8] sm:$0xff]
    %v4954 = vld [vmem:[#allocation6 + $0x2f0] sm:$0xff]
    %v4955 = vld [vmem:[#allocation6 + $0x2f8] sm:$0xff]
    %v4956 = vld [vmem:[#allocation6 + $0x300] sm:$0xff]
    %v4957 = vld [vmem:[#allocation6 + $0x308] sm:$0xff]
    %v4958 = vld [vmem:[#allocation6 + $0x310] sm:$0xff]
    %v4959 = vld [vmem:[#allocation6 + $0x318] sm:$0xff]
    %v4960 = vld [vmem:[#allocation6 + $0x320] sm:$0xff]
    %v4961 = vld [vmem:[#allocation6 + $0x328] sm:$0xff]
    %v4962 = vld [vmem:[#allocation6 + $0x330] sm:$0xff]
    %v4963 = vld [vmem:[#allocation6 + $0x338] sm:$0xff]
    %v4964 = vld [vmem:[#allocation6 + $0x340] sm:$0xff]
    %v4965 = vld [vmem:[#allocation6 + $0x348] sm:$0xff]
    %v4966 = vld [vmem:[#allocation6 + $0x350] sm:$0xff]
    %v4967 = vld [vmem:[#allocation6 + $0x358] sm:$0xff]
    %v4968 = vld [vmem:[#allocation6 + $0x360] sm:$0xff]
    %v4969 = vld [vmem:[#allocation6 + $0x368] sm:$0xff]
    %v4970 = vld [vmem:[#allocation6 + $0x370] sm:$0xff]
    %v4971 = vld [vmem:[#allocation6 + $0x378] sm:$0xff]
    %v4972 = vld [vmem:[#allocation6 + $0x380] sm:$0xff]
    %v4973 = vld [vmem:[#allocation6 + $0x388] sm:$0xff]
    %v4974 = vld [vmem:[#allocation6 + $0x390] sm:$0xff]
    %v4975 = vld [vmem:[#allocation6 + $0x398] sm:$0xff]
    %v4976 = vld [vmem:[#allocation6 + $0x3a0] sm:$0xff]
    %v4977 = vld [vmem:[#allocation6 + $0x3a8] sm:$0xff]
    %v4978 = vld [vmem:[#allocation6 + $0x3b0] sm:$0xff]
    %v4979 = vld [vmem:[#allocation6 + $0x3b8] sm:$0xff]
    %v4980 = vld [vmem:[#allocation6 + $0x3c0] sm:$0xff]
    %v4981 = vld [vmem:[#allocation6 + $0x3c8] sm:$0xff]
    %v4982 = vld [vmem:[#allocation6 + $0x3d0] sm:$0xff]
    %v4983 = vld [vmem:[#allocation6 + $0x3d8] sm:$0xff]
    %v4984 = vld [vmem:[#allocation6 + $0x3e0] sm:$0xff]
    %v4985 = vld [vmem:[#allocation6 + $0x3e8] sm:$0xff]
    %v4986 = vld [vmem:[#allocation6 + $0x3f0] sm:$0xff]
    %v4987 = vld [vmem:[#allocation6 + $0x3f8] sm:$0xff]
    %v4988 = vld [vmem:[#allocation6 + $0x400] sm:$0xff]
    %v4989 = vld [vmem:[#allocation6 + $0x408] sm:$0xff]
    %v4990 = vld [vmem:[#allocation6 + $0x410] sm:$0xff]
    %v4991 = vld [vmem:[#allocation6 + $0x418] sm:$0xff]
    %v4992 = vld [vmem:[#allocation6 + $0x420] sm:$0xff]
    %v4993 = vld [vmem:[#allocation6 + $0x428] sm:$0xff]
    %v4994 = vld [vmem:[#allocation6 + $0x430] sm:$0xff]
    %v4995 = vld [vmem:[#allocation6 + $0x438] sm:$0xff]
    %v4996 = vld [vmem:[#allocation6 + $0x440] sm:$0xff]
    %v4997 = vld [vmem:[#allocation6 + $0x448] sm:$0xff]
    %v4998 = vld [vmem:[#allocation6 + $0x450] sm:$0xff]
    %v4999 = vld [vmem:[#allocation6 + $0x458] sm:$0xff]
    %v5000 = vld [vmem:[#allocation6 + $0x460] sm:$0xff]
    %v5001 = vld [vmem:[#allocation6 + $0x468] sm:$0xff]
    %v5002 = vld [vmem:[#allocation6 + $0x470] sm:$0xff]
    %v5003 = vld [vmem:[#allocation6 + $0x478] sm:$0xff]
    %v5004 = vld [vmem:[#allocation6 + $0x480] sm:$0xff]
    %v5005 = vld [vmem:[#allocation6 + $0x488] sm:$0xff]
    %v5006 = vld [vmem:[#allocation6 + $0x490] sm:$0xff]
    %v5007 = vld [vmem:[#allocation6 + $0x498] sm:$0xff]
    %v5008 = vld [vmem:[#allocation6 + $0x4a0] sm:$0xff]
    %v5009 = vld [vmem:[#allocation6 + $0x4a8] sm:$0xff]
    %v5010 = vld [vmem:[#allocation6 + $0x4b0] sm:$0xff]
    %v5011 = vld [vmem:[#allocation6 + $0x4b8] sm:$0xff]
    %v5012 = vld [vmem:[#allocation6 + $0x4c0] sm:$0xff]
    %v5013 = vld [vmem:[#allocation6 + $0x4c8] sm:$0xff]
    %v5014 = vld [vmem:[#allocation6 + $0x4d0] sm:$0xff]
    %v5015 = vld [vmem:[#allocation6 + $0x4d8] sm:$0xff]
    %v5016 = vld [vmem:[#allocation6 + $0x4e0] sm:$0xff]
    %v5017 = vld [vmem:[#allocation6 + $0x4e8] sm:$0xff]
    %v5018 = vld [vmem:[#allocation6 + $0x4f0] sm:$0xff]
    %v5019 = vld [vmem:[#allocation6 + $0x4f8] sm:$0xff]
    %v5020 = vld [vmem:[#allocation6 + $0x500] sm:$0xff]
    %v5021 = vld [vmem:[#allocation6 + $0x508] sm:$0xff]
    %v5022 = vld [vmem:[#allocation6 + $0x510] sm:$0xff]
    %v5023 = vld [vmem:[#allocation6 + $0x518] sm:$0xff]
    %v5024 = vld [vmem:[#allocation6 + $0x520] sm:$0xff]
    %v5025 = vld [vmem:[#allocation6 + $0x528] sm:$0xff]
    %v5026 = vld [vmem:[#allocation6 + $0x530] sm:$0xff]
    %v5027 = vld [vmem:[#allocation6 + $0x538] sm:$0xff]
    %v5028 = vld [vmem:[#allocation6 + $0x540] sm:$0xff]
    %v5029 = vld [vmem:[#allocation6 + $0x548] sm:$0xff]
    %v5030 = vld [vmem:[#allocation6 + $0x550] sm:$0xff]
    %v5031 = vld [vmem:[#allocation6 + $0x558] sm:$0xff]
    %v5032 = vld [vmem:[#allocation6 + $0x560] sm:$0xff]
    %v5033 = vld [vmem:[#allocation6 + $0x568] sm:$0xff]
    %v5034 = vld [vmem:[#allocation6 + $0x570] sm:$0xff]
    %v5035 = vld [vmem:[#allocation6 + $0x578] sm:$0xff]
    %v5036 = vld [vmem:[#allocation6 + $0x580] sm:$0xff]
    %v5037 = vld [vmem:[#allocation6 + $0x588] sm:$0xff]
    %v5038 = vld [vmem:[#allocation6 + $0x590] sm:$0xff]
    %v5039 = vld [vmem:[#allocation6 + $0x598] sm:$0xff]
    %v5040 = vld [vmem:[#allocation6 + $0x5a0] sm:$0xff]
    %v5041 = vld [vmem:[#allocation6 + $0x5a8] sm:$0xff]
    %v5042 = vld [vmem:[#allocation6 + $0x5b0] sm:$0xff]
    %v5043 = vld [vmem:[#allocation6 + $0x5b8] sm:$0xff]
    %v5044 = vld [vmem:[#allocation6 + $0x5c0] sm:$0xff]
    %v5045 = vld [vmem:[#allocation6 + $0x5c8] sm:$0xff]
    %v5046 = vld [vmem:[#allocation6 + $0x5d0] sm:$0xff]
    %v5047 = vld [vmem:[#allocation6 + $0x5d8] sm:$0xff]
    %v5048 = vld [vmem:[#allocation6 + $0x5e0] sm:$0xff]
    %v5049 = vld [vmem:[#allocation6 + $0x5e8] sm:$0xff]
    %v5050 = vld [vmem:[#allocation6 + $0x5f0] sm:$0xff]
    %v5051 = vld [vmem:[#allocation6 + $0x5f8] sm:$0xff]
    %v5052 = vld [vmem:[#allocation6 + $0x600] sm:$0xff]
    %v5053 = vld [vmem:[#allocation6 + $0x608] sm:$0xff]
    %v5054 = vld [vmem:[#allocation6 + $0x610] sm:$0xff]
    %v5055 = vld [vmem:[#allocation6 + $0x618] sm:$0xff]
    %v5056 = vld [vmem:[#allocation6 + $0x620] sm:$0xff]
    %v5057 = vld [vmem:[#allocation6 + $0x628] sm:$0xff]
    %v5058 = vld [vmem:[#allocation6 + $0x630] sm:$0xff]
    %v5059 = vld [vmem:[#allocation6 + $0x638] sm:$0xff]
    %v5060 = vld [vmem:[#allocation6 + $0x640] sm:$0xff]
    %v5061 = vld [vmem:[#allocation6 + $0x648] sm:$0xff]
    %v5062 = vld [vmem:[#allocation6 + $0x650] sm:$0xff]
    %v5063 = vld [vmem:[#allocation6 + $0x658] sm:$0xff]
    %v5064 = vld [vmem:[#allocation6 + $0x660] sm:$0xff]
    %v5065 = vld [vmem:[#allocation6 + $0x668] sm:$0xff]
    %v5066 = vld [vmem:[#allocation6 + $0x670] sm:$0xff]
    %v5067 = vld [vmem:[#allocation6 + $0x678] sm:$0xff]
    %v5068 = vld [vmem:[#allocation6 + $0x680] sm:$0xff]
    %v5069 = vld [vmem:[#allocation6 + $0x688] sm:$0xff]
    %v5070 = vld [vmem:[#allocation6 + $0x690] sm:$0xff]
    %v5071 = vld [vmem:[#allocation6 + $0x698] sm:$0xff]
    %v5072 = vld [vmem:[#allocation6 + $0x6a0] sm:$0xff]
    %v5073 = vld [vmem:[#allocation6 + $0x6a8] sm:$0xff]
    %v5074 = vld [vmem:[#allocation6 + $0x6b0] sm:$0xff]
    %v5075 = vld [vmem:[#allocation6 + $0x6b8] sm:$0xff]
    %v5076 = vld [vmem:[#allocation6 + $0x6c0] sm:$0xff]
    %v5077 = vld [vmem:[#allocation6 + $0x6c8] sm:$0xff]
    %v5078 = vld [vmem:[#allocation6 + $0x6d0] sm:$0xff]
    %v5079 = vld [vmem:[#allocation6 + $0x6d8] sm:$0xff]
    %v5080 = vld [vmem:[#allocation6 + $0x6e0] sm:$0xff]
    %v5081 = vld [vmem:[#allocation6 + $0x6e8] sm:$0xff]
    %v5082 = vld [vmem:[#allocation6 + $0x6f0] sm:$0xff]
    %v5083 = vld [vmem:[#allocation6 + $0x6f8] sm:$0xff]
    %v5084 = vld [vmem:[#allocation6 + $0x700] sm:$0xff]
    %v5085 = vld [vmem:[#allocation6 + $0x708] sm:$0xff]
    %v5086 = vld [vmem:[#allocation6 + $0x710] sm:$0xff]
    %v5087 = vld [vmem:[#allocation6 + $0x718] sm:$0xff]
    %v5088 = vld [vmem:[#allocation6 + $0x720] sm:$0xff]
    %v5089 = vld [vmem:[#allocation6 + $0x728] sm:$0xff]
    %v5090 = vld [vmem:[#allocation6 + $0x730] sm:$0xff]
    %v5091 = vld [vmem:[#allocation6 + $0x738] sm:$0xff]
    %v5092 = vld [vmem:[#allocation6 + $0x740] sm:$0xff]
    %v5093 = vld [vmem:[#allocation6 + $0x748] sm:$0xff]
    %v5094 = vld [vmem:[#allocation6 + $0x750] sm:$0xff]
    %v5095 = vld [vmem:[#allocation6 + $0x758] sm:$0xff]
    %v5096 = vld [vmem:[#allocation6 + $0x760] sm:$0xff]
    %v5097 = vld [vmem:[#allocation6 + $0x768] sm:$0xff]
    %v5098 = vld [vmem:[#allocation6 + $0x770] sm:$0xff]
    %v5099 = vld [vmem:[#allocation6 + $0x778] sm:$0xff]
    %v5100 = vld [vmem:[#allocation6 + $0x780] sm:$0xff]
    %v5101 = vld [vmem:[#allocation6 + $0x788] sm:$0xff]
    %v5102 = vld [vmem:[#allocation6 + $0x790] sm:$0xff]
    %v5103 = vld [vmem:[#allocation6 + $0x798] sm:$0xff]
    %v5104 = vld [vmem:[#allocation6 + $0x7a0] sm:$0xff]
    %v5105 = vld [vmem:[#allocation6 + $0x7a8] sm:$0xff]
    %v5106 = vld [vmem:[#allocation6 + $0x7b0] sm:$0xff]
    %v5107 = vld [vmem:[#allocation6 + $0x7b8] sm:$0xff]
    %v5108 = vld [vmem:[#allocation6 + $0x7c0] sm:$0xff]
    %v5109 = vld [vmem:[#allocation6 + $0x7c8] sm:$0xff]
    %v5110 = vld [vmem:[#allocation6 + $0x7d0] sm:$0xff]
    %v5111 = vld [vmem:[#allocation6 + $0x7d8] sm:$0xff]
    %v5112 = vld [vmem:[#allocation6 + $0x7e0] sm:$0xff]
    %v5113 = vld [vmem:[#allocation6 + $0x7e8] sm:$0xff]
    %v5114 = vld [vmem:[#allocation6 + $0x7f0] sm:$0xff]
    %v5115 = vld [vmem:[#allocation6 + $0x7f8] sm:$0xff]
    %v5116 = vld [vmem:[#allocation14] sm:$0xff]
    %v5118 = vlaneseq
    %v5119 = vshrl.u32 %v5118, 7
    %v5120 = vsub.s32 0, %v5119
    %v5121 = vrot.slane %v5116, %v5120
    %v5122 = vlaneseq
    %v5123 = vshrl.u32 %v5122, 7
    %v5124 = vsub.s32 1, %v5123
    %v5125 = vrot.slane %v5116, %v5124
    %v5126 = vlaneseq
    %v5127 = vshrl.u32 %v5126, 7
    %v5128 = vsub.s32 2, %v5127
    %v5129 = vrot.slane %v5116, %v5128
    %v5130 = vlaneseq
    %v5131 = vshrl.u32 %v5130, 7
    %v5132 = vsub.s32 3, %v5131
    %v5133 = vrot.slane %v5116, %v5132
    %v5134 = vlaneseq
    %v5135 = vshrl.u32 %v5134, 7
    %v5136 = vsub.s32 4, %v5135
    %v5137 = vrot.slane %v5116, %v5136
    %v5138 = vlaneseq
    %v5139 = vshrl.u32 %v5138, 7
    %v5140 = vsub.s32 5, %v5139
    %v5141 = vrot.slane %v5116, %v5140
    %v5142 = vlaneseq
    %v5143 = vshrl.u32 %v5142, 7
    %v5144 = vsub.s32 6, %v5143
    %v5145 = vrot.slane %v5116, %v5144
    %v5146 = vlaneseq
    %v5147 = vshrl.u32 %v5146, 7
    %v5148 = vsub.s32 7, %v5147
    %v5149 = vrot.slane %v5116, %v5148
    %5158 = vmatprep.subr.bf16.mxu0 %v4861
    %5159 = vmatpush1.bf16.msra.mxu0 %v4860
    %5160 = vmatprep.subr.bf16.mxu0 %v4869
    %5161 = vmatpush1.bf16.msra.mxu0 %v4868
    %5162 = vmatprep.subr.bf16.mxu0 %v4877
    %5163 = vmatpush1.bf16.msra.mxu0 %v4876
    %5164 = vmatprep.subr.bf16.mxu0 %v4885
    %5165 = vmatpush1.bf16.msra.mxu0 %v4884
    %5166 = vmatprep.subr.bf16.mxu0 %v4893
    %5167 = vmatpush1.bf16.msra.mxu0 %v4892
    %5168 = vmatprep.subr.bf16.mxu0 %v4901
    %5169 = vmatpush1.bf16.msra.mxu0 %v4900
    %5170 = vmatprep.subr.bf16.mxu0 %v4909
    %5171 = vmatpush1.bf16.msra.mxu0 %v4908
    %5172 = vmatprep.subr.bf16.mxu0 %v4917
    %5173 = vmatpush1.bf16.msra.mxu0 %v4916
    %5174 = vmatprep.subr.bf16.mxu0 %v4925
    %5175 = vmatpush1.bf16.msra.mxu0 %v4924
    %5176 = vmatprep.subr.bf16.mxu0 %v4933
    %5177 = vmatpush1.bf16.msra.mxu0 %v4932
    %5178 = vmatprep.subr.bf16.mxu0 %v4941
    %5179 = vmatpush1.bf16.msra.mxu0 %v4940
    %5180 = vmatprep.subr.bf16.mxu0 %v4949
    %5181 = vmatpush1.bf16.msra.mxu0 %v4948
    %5182 = vmatprep.subr.bf16.mxu0 %v4957
    %5183 = vmatpush1.bf16.msra.mxu0 %v4956
    %5184 = vmatprep.subr.bf16.mxu0 %v4965
    %5185 = vmatpush1.bf16.msra.mxu0 %v4964
    %5186 = vmatprep.subr.bf16.mxu0 %v4973
    %5187 = vmatpush1.bf16.msra.mxu0 %v4972
    %5188 = vmatprep.subr.bf16.mxu0 %v4981
    %5189 = vmatpush1.bf16.msra.mxu0 %v4980
    %5190 = vmatprep.mubr.bf16.mxu0 %v4857
    %5191 = vmatmul.mubr.bf16.gmra.mrb[0].mxu0 %v4856
    %v5192 = vpop.f32.mrb[0].mxu0
    %v5193 = vadd.f32 %v5121, %v5192
    %v5194 = vpop.f32.mrb[0].mxu0
    %v5195 = vadd.f32 %v5125, %v5194
    %v5196 = vpop.f32.mrb[0].mxu0
    %v5197 = vpop.f32.mrb[0].mxu0
    %5198 = vdwg.mxu0
    %5199 = vmatprep.subr.bf16.mxu0 %v4989
    %5200 = vmatpush1.bf16.msra.mxu0 %v4988
    %5201 = vmatprep.subr.bf16.mxu0 %v4997
    %5202 = vmatpush1.bf16.msra.mxu0 %v4996
    %5203 = vmatprep.subr.bf16.mxu0 %v5005
    %5204 = vmatpush1.bf16.msra.mxu0 %v5004
    %5205 = vmatprep.subr.bf16.mxu0 %v5013
    %5206 = vmatpush1.bf16.msra.mxu0 %v5012
    %5207 = vmatprep.subr.bf16.mxu0 %v5021
    %5208 = vmatpush1.bf16.msra.mxu0 %v5020
    %5209 = vmatprep.subr.bf16.mxu0 %v5029
    %5210 = vmatpush1.bf16.msra.mxu0 %v5028
    %5211 = vmatprep.subr.bf16.mxu0 %v5037
    %5212 = vmatpush1.bf16.msra.mxu0 %v5036
    %5213 = vmatprep.subr.bf16.mxu0 %v5045
    %5214 = vmatpush1.bf16.msra.mxu0 %v5044
    %5215 = vmatprep.subr.bf16.mxu0 %v5053
    %5216 = vmatpush1.bf16.msra.mxu0 %v5052
    %5217 = vmatprep.subr.bf16.mxu0 %v5061
    %5218 = vmatpush1.bf16.msra.mxu0 %v5060
    %5219 = vmatprep.subr.bf16.mxu0 %v5069
    %5220 = vmatpush1.bf16.msra.mxu0 %v5068
    %5221 = vmatprep.subr.bf16.mxu0 %v5077
    %5222 = vmatpush1.bf16.msra.mxu0 %v5076
    %5223 = vmatprep.subr.bf16.mxu0 %v5085
    %5224 = vmatpush1.bf16.msra.mxu0 %v5084
    %5225 = vmatprep.subr.bf16.mxu0 %v5093
    %5226 = vmatpush1.bf16.msra.mxu0 %v5092
    %5227 = vmatprep.subr.bf16.mxu0 %v5101
    %5228 = vmatpush1.bf16.msra.mxu0 %v5100
    %5229 = vmatprep.subr.bf16.mxu0 %v5109
    %5230 = vmatpush1.bf16.msra.mxu0 %v5108
    %5231 = vmatprep.mubr.bf16.mxu0 %v4859
    %5232 = vmatmul.mubr.bf16.gmra.mrb[0].mxu0 %v4858
    %v5233 = vpop.f32.mrb[0].mxu0
    %v5234 = vadd.f32 %v5193, %v5233
    %v5235 = vpop.f32.mrb[0].mxu0
    %v5236 = vadd.f32 %v5195, %v5235
    %v5237 = vpop.f32.mrb[0].mxu0
    %v5238 = vpop.f32.mrb[0].mxu0
    %5239 = vdwg.mxu0
    %5240 = vmatprep.subr.bf16.mxu0 %v4863
    %5241 = vmatpush1.bf16.msra.mxu0 %v4862
    %5242 = vmatprep.subr.bf16.mxu0 %v4871
    %5243 = vmatpush1.bf16.msra.mxu0 %v4870
    %5244 = vmatprep.subr.bf16.mxu0 %v4879
    %5245 = vmatpush1.bf16.msra.mxu0 %v4878
    %5246 = vmatprep.subr.bf16.mxu0 %v4887
    %5247 = vmatpush1.bf16.msra.mxu0 %v4886
    %5248 = vmatprep.subr.bf16.mxu0 %v4895
    %5249 = vmatpush1.bf16.msra.mxu0 %v4894
    %5250 = vmatprep.subr.bf16.mxu0 %v4903
    %5251 = vmatpush1.bf16.msra.mxu0 %v4902
    %5252 = vmatprep.subr.bf16.mxu0 %v4911
    %5253 = vmatpush1.bf16.msra.mxu0 %v4910
    %5254 = vmatprep.subr.bf16.mxu0 %v4919
    %5255 = vmatpush1.bf16.msra.mxu0 %v4918
    %5256 = vmatprep.subr.bf16.mxu0 %v4927
    %5257 = vmatpush1.bf16.msra.mxu0 %v4926
    %5258 = vmatprep.subr.bf16.mxu0 %v4935
    %5259 = vmatpush1.bf16.msra.mxu0 %v4934
    %5260 = vmatprep.subr.bf16.mxu0 %v4943
    %5261 = vmatpush1.bf16.msra.mxu0 %v4942
    %5262 = vmatprep.subr.bf16.mxu0 %v4951
    %5263 = vmatpush1.bf16.msra.mxu0 %v4950
    %5264 = vmatprep.subr.bf16.mxu0 %v4959
    %5265 = vmatpush1.bf16.msra.mxu0 %v4958
    %5266 = vmatprep.subr.bf16.mxu0 %v4967
    %5267 = vmatpush1.bf16.msra.mxu0 %v4966
    %5268 = vmatprep.subr.bf16.mxu0 %v4975
    %5269 = vmatpush1.bf16.msra.mxu0 %v4974
    %5270 = vmatprep.subr.bf16.mxu0 %v4983
    %5271 = vmatpush1.bf16.msra.mxu0 %v4982
    %5272 = vmatprep.mubr.bf16.mxu0 %v4857
    %5273 = vmatmul.mubr.bf16.gmra.mrb[0].mxu0 %v4856
    %v5274 = vpop.f32.mrb[0].mxu0
    %v5275 = vadd.f32 %v5129, %v5274
    %v5276 = vpop.f32.mrb[0].mxu0
    %v5277 = vadd.f32 %v5133, %v5276
    %v5278 = vpop.f32.mrb[0].mxu0
    %v5279 = vpop.f32.mrb[0].mxu0
    %5280 = vdwg.mxu0
    %5281 = vmatprep.subr.bf16.mxu0 %v4991
    %5282 = vmatpush1.bf16.msra.mxu0 %v4990
    %5283 = vmatprep.subr.bf16.mxu0 %v4999
    %5284 = vmatpush1.bf16.msra.mxu0 %v4998
    %5285 = vmatprep.subr.bf16.mxu0 %v5007
    %5286 = vmatpush1.bf16.msra.mxu0 %v5006
    %5287 = vmatprep.subr.bf16.mxu0 %v5015
    %5288 = vmatpush1.bf16.msra.mxu0 %v5014
    %5289 = vmatprep.subr.bf16.mxu0 %v5023
    %5290 = vmatpush1.bf16.msra.mxu0 %v5022
    %5291 = vmatprep.subr.bf16.mxu0 %v5031
    %5292 = vmatpush1.bf16.msra.mxu0 %v5030
    %5293 = vmatprep.subr.bf16.mxu0 %v5039
    %5294 = vmatpush1.bf16.msra.mxu0 %v5038
    %5295 = vmatprep.subr.bf16.mxu0 %v5047
    %5296 = vmatpush1.bf16.msra.mxu0 %v5046
    %5297 = vmatprep.subr.bf16.mxu0 %v5055
    %5298 = vmatpush1.bf16.msra.mxu0 %v5054
    %5299 = vmatprep.subr.bf16.mxu0 %v5063
    %5300 = vmatpush1.bf16.msra.mxu0 %v5062
    %5301 = vmatprep.subr.bf16.mxu0 %v5071
    %5302 = vmatpush1.bf16.msra.mxu0 %v5070
    %5303 = vmatprep.subr.bf16.mxu0 %v5079
    %5304 = vmatpush1.bf16.msra.mxu0 %v5078
    %5305 = vmatprep.subr.bf16.mxu0 %v5087
    %5306 = vmatpush1.bf16.msra.mxu0 %v5086
    %5307 = vmatprep.subr.bf16.mxu0 %v5095
    %5308 = vmatpush1.bf16.msra.mxu0 %v5094
    %5309 = vmatprep.subr.bf16.mxu0 %v5103
    %5310 = vmatpush1.bf16.msra.mxu0 %v5102
    %5311 = vmatprep.subr.bf16.mxu0 %v5111
    %5312 = vmatpush1.bf16.msra.mxu0 %v5110
    %5313 = vmatprep.mubr.bf16.mxu0 %v4859
    %5314 = vmatmul.mubr.bf16.gmra.mrb[0].mxu0 %v4858
    %v5315 = vpop.f32.mrb[0].mxu0
    %v5316 = vadd.f32 %v5275, %v5315
    %v5317 = vpop.f32.mrb[0].mxu0
    %v5318 = vadd.f32 %v5277, %v5317
    %v5319 = vpop.f32.mrb[0].mxu0
    %v5320 = vpop.f32.mrb[0].mxu0
    %5321 = vdwg.mxu0
    %5322 = vmatprep.subr.bf16.mxu0 %v4865
    %5323 = vmatpush1.bf16.msra.mxu0 %v4864
    %5324 = vmatprep.subr.bf16.mxu0 %v4873
    %5325 = vmatpush1.bf16.msra.mxu0 %v4872
    %5326 = vmatprep.subr.bf16.mxu0 %v4881
    %5327 = vmatpush1.bf16.msra.mxu0 %v4880
    %5328 = vmatprep.subr.bf16.mxu0 %v4889
    %5329 = vmatpush1.bf16.msra.mxu0 %v4888
    %5330 = vmatprep.subr.bf16.mxu0 %v4897
    %5331 = vmatpush1.bf16.msra.mxu0 %v4896
    %5332 = vmatprep.subr.bf16.mxu0 %v4905
    %5333 = vmatpush1.bf16.msra.mxu0 %v4904
    %5334 = vmatprep.subr.bf16.mxu0 %v4913
    %5335 = vmatpush1.bf16.msra.mxu0 %v4912
    %5336 = vmatprep.subr.bf16.mxu0 %v4921
    %5337 = vmatpush1.bf16.msra.mxu0 %v4920
    %5338 = vmatprep.subr.bf16.mxu0 %v4929
    %5339 = vmatpush1.bf16.msra.mxu0 %v4928
    %5340 = vmatprep.subr.bf16.mxu0 %v4937
    %5341 = vmatpush1.bf16.msra.mxu0 %v4936
    %5342 = vmatprep.subr.bf16.mxu0 %v4945
    %5343 = vmatpush1.bf16.msra.mxu0 %v4944
    %5344 = vmatprep.subr.bf16.mxu0 %v4953
    %5345 = vmatpush1.bf16.msra.mxu0 %v4952
    %5346 = vmatprep.subr.bf16.mxu0 %v4961
    %5347 = vmatpush1.bf16.msra.mxu0 %v4960
    %5348 = vmatprep.subr.bf16.mxu0 %v4969
    %5349 = vmatpush1.bf16.msra.mxu0 %v4968
    %5350 = vmatprep.subr.bf16.mxu0 %v4977
    %5351 = vmatpush1.bf16.msra.mxu0 %v4976
    %5352 = vmatprep.subr.bf16.mxu0 %v4985
    %5353 = vmatpush1.bf16.msra.mxu0 %v4984
    %5354 = vmatprep.mubr.bf16.mxu0 %v4857
    %5355 = vmatmul.mubr.bf16.gmra.mrb[0].mxu0 %v4856
    %v5356 = vpop.f32.mrb[0].mxu0
    %v5357 = vadd.f32 %v5137, %v5356
    %v5358 = vpop.f32.mrb[0].mxu0
    %v5359 = vadd.f32 %v5141, %v5358
    %v5360 = vpop.f32.mrb[0].mxu0
    %v5361 = vpop.f32.mrb[0].mxu0
    %5362 = vdwg.mxu0
    %5363 = vmatprep.subr.bf16.mxu0 %v4993
    %5364 = vmatpush1.bf16.msra.mxu0 %v4992
    %5365 = vmatprep.subr.bf16.mxu0 %v5001
    %5366 = vmatpush1.bf16.msra.mxu0 %v5000
    %5367 = vmatprep.subr.bf16.mxu0 %v5009
    %5368 = vmatpush1.bf16.msra.mxu0 %v5008
    %5369 = vmatprep.subr.bf16.mxu0 %v5017
    %5370 = vmatpush1.bf16.msra.mxu0 %v5016
    %5371 = vmatprep.subr.bf16.mxu0 %v5025
    %5372 = vmatpush1.bf16.msra.mxu0 %v5024
    %5373 = vmatprep.subr.bf16.mxu0 %v5033
    %5374 = vmatpush1.bf16.msra.mxu0 %v5032
    %5375 = vmatprep.subr.bf16.mxu0 %v5041
    %5376 = vmatpush1.bf16.msra.mxu0 %v5040
    %5377 = vmatprep.subr.bf16.mxu0 %v5049
    %5378 = vmatpush1.bf16.msra.mxu0 %v5048
    %5379 = vmatprep.subr.bf16.mxu0 %v5057
    %5380 = vmatpush1.bf16.msra.mxu0 %v5056
    %5381 = vmatprep.subr.bf16.mxu0 %v5065
    %5382 = vmatpush1.bf16.msra.mxu0 %v5064
    %5383 = vmatprep.subr.bf16.mxu0 %v5073
    %5384 = vmatpush1.bf16.msra.mxu0 %v5072
    %5385 = vmatprep.subr.bf16.mxu0 %v5081
    %5386 = vmatpush1.bf16.msra.mxu0 %v5080
    %5387 = vmatprep.subr.bf16.mxu0 %v5089
    %5388 = vmatpush1.bf16.msra.mxu0 %v5088
    %5389 = vmatprep.subr.bf16.mxu0 %v5097
    %5390 = vmatpush1.bf16.msra.mxu0 %v5096
    %5391 = vmatprep.subr.bf16.mxu0 %v5105
    %5392 = vmatpush1.bf16.msra.mxu0 %v5104
    %5393 = vmatprep.subr.bf16.mxu0 %v5113
    %5394 = vmatpush1.bf16.msra.mxu0 %v5112
    %5395 = vmatprep.mubr.bf16.mxu0 %v4859
    %5396 = vmatmul.mubr.bf16.gmra.mrb[0].mxu0 %v4858
    %v5397 = vpop.f32.mrb[0].mxu0
    %v5398 = vadd.f32 %v5357, %v5397
    %v5399 = vpop.f32.mrb[0].mxu0
    %v5400 = vadd.f32 %v5359, %v5399
    %v5401 = vpop.f32.mrb[0].mxu0
    %v5402 = vpop.f32.mrb[0].mxu0
    %5403 = vdwg.mxu0
    %5404 = vmatprep.subr.bf16.mxu0 %v4867
    %5405 = vmatpush1.bf16.msra.mxu0 %v4866
    %5406 = vmatprep.subr.bf16.mxu0 %v4875
    %5407 = vmatpush1.bf16.msra.mxu0 %v4874
    %5408 = vmatprep.subr.bf16.mxu0 %v4883
    %5409 = vmatpush1.bf16.msra.mxu0 %v4882
    %5410 = vmatprep.subr.bf16.mxu0 %v4891
    %5411 = vmatpush1.bf16.msra.mxu0 %v4890
    %5412 = vmatprep.subr.bf16.mxu0 %v4899
    %5413 = vmatpush1.bf16.msra.mxu0 %v4898
    %5414 = vmatprep.subr.bf16.mxu0 %v4907
    %5415 = vmatpush1.bf16.msra.mxu0 %v4906
    %5416 = vmatprep.subr.bf16.mxu0 %v4915
    %5417 = vmatpush1.bf16.msra.mxu0 %v4914
    %5418 = vmatprep.subr.bf16.mxu0 %v4923
    %5419 = vmatpush1.bf16.msra.mxu0 %v4922
    %5420 = vmatprep.subr.bf16.mxu0 %v4931
    %5421 = vmatpush1.bf16.msra.mxu0 %v4930
    %5422 = vmatprep.subr.bf16.mxu0 %v4939
    %5423 = vmatpush1.bf16.msra.mxu0 %v4938
    %5424 = vmatprep.subr.bf16.mxu0 %v4947
    %5425 = vmatpush1.bf16.msra.mxu0 %v4946
    %5426 = vmatprep.subr.bf16.mxu0 %v4955
    %5427 = vmatpush1.bf16.msra.mxu0 %v4954
    %5428 = vmatprep.subr.bf16.mxu0 %v4963
    %5429 = vmatpush1.bf16.msra.mxu0 %v4962
    %5430 = vmatprep.subr.bf16.mxu0 %v4971
    %5431 = vmatpush1.bf16.msra.mxu0 %v4970
    %5432 = vmatprep.subr.bf16.mxu0 %v4979
    %5433 = vmatpush1.bf16.msra.mxu0 %v4978
    %5434 = vmatprep.subr.bf16.mxu0 %v4987
    %5435 = vmatpush1.bf16.msra.mxu0 %v4986
    %5436 = vmatprep.mubr.bf16.mxu0 %v4857
    %5437 = vmatmul.mubr.bf16.gmra.mrb[0].mxu0 %v4856
    %v5438 = vpop.f32.mrb[0].mxu0
    %v5439 = vadd.f32 %v5145, %v5438
    %v5440 = vpop.f32.mrb[0].mxu0
    %v5441 = vadd.f32 %v5149, %v5440
    %v5442 = vpop.f32.mrb[0].mxu0
    %v5443 = vpop.f32.mrb[0].mxu0
    %5444 = vdwg.mxu0
    %5445 = vmatprep.subr.bf16.mxu0 %v4995
    %5446 = vmatpush1.bf16.msra.mxu0 %v4994
    %5447 = vmatprep.subr.bf16.mxu0 %v5003
    %5448 = vmatpush1.bf16.msra.mxu0 %v5002
    %5449 = vmatprep.subr.bf16.mxu0 %v5011
    %5450 = vmatpush1.bf16.msra.mxu0 %v5010
    %5451 = vmatprep.subr.bf16.mxu0 %v5019
    %5452 = vmatpush1.bf16.msra.mxu0 %v5018
    %5453 = vmatprep.subr.bf16.mxu0 %v5027
    %5454 = vmatpush1.bf16.msra.mxu0 %v5026
    %5455 = vmatprep.subr.bf16.mxu0 %v5035
    %5456 = vmatpush1.bf16.msra.mxu0 %v5034
    %5457 = vmatprep.subr.bf16.mxu0 %v5043
    %5458 = vmatpush1.bf16.msra.mxu0 %v5042
    %5459 = vmatprep.subr.bf16.mxu0 %v5051
    %5460 = vmatpush1.bf16.msra.mxu0 %v5050
    %5461 = vmatprep.subr.bf16.mxu0 %v5059
    %5462 = vmatpush1.bf16.msra.mxu0 %v5058
    %5463 = vmatprep.subr.bf16.mxu0 %v5067
    %5464 = vmatpush1.bf16.msra.mxu0 %v5066
    %5465 = vmatprep.subr.bf16.mxu0 %v5075
    %5466 = vmatpush1.bf16.msra.mxu0 %v5074
    %5467 = vmatprep.subr.bf16.mxu0 %v5083
    %5468 = vmatpush1.bf16.msra.mxu0 %v5082
    %5469 = vmatprep.subr.bf16.mxu0 %v5091
    %5470 = vmatpush1.bf16.msra.mxu0 %v5090
    %5471 = vmatprep.subr.bf16.mxu0 %v5099
    %5472 = vmatpush1.bf16.msra.mxu0 %v5098
    %5473 = vmatprep.subr.bf16.mxu0 %v5107
    %5474 = vmatpush1.bf16.msra.mxu0 %v5106
    %5475 = vmatprep.subr.bf16.mxu0 %v5115
    %5476 = vmatpush1.bf16.msra.mxu0 %v5114
    %5477 = vmatprep.mubr.bf16.mxu0 %v4859
    %5478 = vmatmul.mubr.bf16.gmra.mrb[0].mxu0 %v4858
    %v5479 = vpop.f32.mrb[0].mxu0
    %v5480 = vadd.f32 %v5439, %v5479
    %v5481 = vpop.f32.mrb[0].mxu0
    %v5482 = vadd.f32 %v5441, %v5481
    %v5483 = vpop.f32.mrb[0].mxu0
    %v5484 = vpop.f32.mrb[0].mxu0
    %5485 = vdwg.mxu0
    %v5486 = vtanh.pop %v5234
    %v5487 = vtanh.pop %v5236
    %v5488 = vtanh.pop %v5316
    %v5489 = vtanh.pop %v5318
    %v5490 = vtanh.pop %v5398
    %v5491 = vtanh.pop %v5400
    %v5492 = vtanh.pop %v5480
    %v5493 = vtanh.pop %v5482
    // Predicated region
    $region70: #{auto_forward.1} parent=1 // pred_check
      %p5494 = pneg %p87
    $region71: #{auto_forward.1} parent=1 // pred_check_branch
      %5496 = sbr.rel (%p5494) target = $region73
    $region72: #{auto_forward.1} parent=1 // pred_region
      %s5497 = scalar_lea.sflag [#allocation8], 5
      %s5498 = smul.u32 4, 128
      %s5499 = smul.u32 %s5498, 24
      %s5500 = sshll.u32 %s5499, 4
      %5501 = dma.done %s5497, %s5500
    $region73: #{auto_forward.1} parent=1 // pred_fallthru
      _
    %v5502 = vpack.c.bf16 %v5486, %v5486
    %v5503 = vpack.c.bf16 %v5487, %v5487
    %v5504 = vpack.c.bf16 %v5488, %v5488
    %v5505 = vpack.c.bf16 %v5489, %v5489
    %v5506 = vpack.c.bf16 %v5490, %v5490
    %v5507 = vpack.c.bf16 %v5491, %v5491
    %v5508 = vpack.c.bf16 %v5492, %v5492
    %v5509 = vpack.c.bf16 %v5493, %v5493
    %v5510 = vld [vmem:[#allocation7] sm:$0xff]
    %v5511 = vld [vmem:[#allocation7 + $0x8] sm:$0xff]
    %v5512 = vld [vmem:[#allocation7 + $0x10] sm:$0xff]
    %v5513 = vld [vmem:[#allocation7 + $0x18] sm:$0xff]
    %v5514 = vld [vmem:[#allocation7 + $0x20] sm:$0xff]
    %v5515 = vld [vmem:[#allocation7 + $0x28] sm:$0xff]
    %v5516 = vld [vmem:[#allocation7 + $0x30] sm:$0xff]
    %v5517 = vld [vmem:[#allocation7 + $0x38] sm:$0xff]
    %v5518 = vld [vmem:[#allocation7 + $0x40] sm:$0xff]
    %v5519 = vld [vmem:[#allocation7 + $0x48] sm:$0xff]
    %v5520 = vld [vmem:[#allocation7 + $0x50] sm:$0xff]
    %v5521 = vld [vmem:[#allocation7 + $0x58] sm:$0xff]
    %v5522 = vld [vmem:[#allocation7 + $0x60] sm:$0xff]
    %v5523 = vld [vmem:[#allocation7 + $0x68] sm:$0xff]
    %v5524 = vld [vmem:[#allocation7 + $0x70] sm:$0xff]
    %v5525 = vld [vmem:[#allocation7 + $0x78] sm:$0xff]
    %v5526 = vld [vmem:[#allocation7 + $0x80] sm:$0xff]
    %v5527 = vld [vmem:[#allocation7 + $0x88] sm:$0xff]
    %v5528 = vld [vmem:[#allocation7 + $0x90] sm:$0xff]
    %v5529 = vld [vmem:[#allocation7 + $0x98] sm:$0xff]
    %v5530 = vld [vmem:[#allocation7 + $0xa0] sm:$0xff]
    %v5531 = vld [vmem:[#allocation7 + $0xa8] sm:$0xff]
    %v5532 = vld [vmem:[#allocation7 + $0xb0] sm:$0xff]
    %v5533 = vld [vmem:[#allocation7 + $0xb8] sm:$0xff]
    %v5534 = vld [vmem:[#allocation7 + $0xc0] sm:$0xff]
    %v5535 = vld [vmem:[#allocation7 + $0xc8] sm:$0xff]
    %v5536 = vld [vmem:[#allocation7 + $0xd0] sm:$0xff]
    %v5537 = vld [vmem:[#allocation7 + $0xd8] sm:$0xff]
    %v5538 = vld [vmem:[#allocation7 + $0xe0] sm:$0xff]
    %v5539 = vld [vmem:[#allocation7 + $0xe8] sm:$0xff]
    %v5540 = vld [vmem:[#allocation7 + $0xf0] sm:$0xff]
    %v5541 = vld [vmem:[#allocation7 + $0xf8] sm:$0xff]
    %v5542 = vld [vmem:[#allocation7 + $0x100] sm:$0xff]
    %v5543 = vld [vmem:[#allocation7 + $0x108] sm:$0xff]
    %v5544 = vld [vmem:[#allocation7 + $0x110] sm:$0xff]
    %v5545 = vld [vmem:[#allocation7 + $0x118] sm:$0xff]
    %v5546 = vld [vmem:[#allocation7 + $0x120] sm:$0xff]
    %v5547 = vld [vmem:[#allocation7 + $0x128] sm:$0xff]
    %v5548 = vld [vmem:[#allocation7 + $0x130] sm:$0xff]
    %v5549 = vld [vmem:[#allocation7 + $0x138] sm:$0xff]
    %v5550 = vld [vmem:[#allocation7 + $0x140] sm:$0xff]
    %v5551 = vld [vmem:[#allocation7 + $0x148] sm:$0xff]
    %v5552 = vld [vmem:[#allocation7 + $0x150] sm:$0xff]
    %v5553 = vld [vmem:[#allocation7 + $0x158] sm:$0xff]
    %v5554 = vld [vmem:[#allocation7 + $0x160] sm:$0xff]
    %v5555 = vld [vmem:[#allocation7 + $0x168] sm:$0xff]
    %v5556 = vld [vmem:[#allocation7 + $0x170] sm:$0xff]
    %v5557 = vld [vmem:[#allocation7 + $0x178] sm:$0xff]
    %v5558 = vld [vmem:[#allocation7 + $0x180] sm:$0xff]
    %v5559 = vld [vmem:[#allocation7 + $0x188] sm:$0xff]
    %v5560 = vld [vmem:[#allocation7 + $0x190] sm:$0xff]
    %v5561 = vld [vmem:[#allocation7 + $0x198] sm:$0xff]
    %v5562 = vld [vmem:[#allocation7 + $0x1a0] sm:$0xff]
    %v5563 = vld [vmem:[#allocation7 + $0x1a8] sm:$0xff]
    %v5564 = vld [vmem:[#allocation7 + $0x1b0] sm:$0xff]
    %v5565 = vld [vmem:[#allocation7 + $0x1b8] sm:$0xff]
    %v5566 = vld [vmem:[#allocation7 + $0x1c0] sm:$0xff]
    %v5567 = vld [vmem:[#allocation7 + $0x1c8] sm:$0xff]
    %v5568 = vld [vmem:[#allocation7 + $0x1d0] sm:$0xff]
    %v5569 = vld [vmem:[#allocation7 + $0x1d8] sm:$0xff]
    %v5570 = vld [vmem:[#allocation7 + $0x1e0] sm:$0xff]
    %v5571 = vld [vmem:[#allocation7 + $0x1e8] sm:$0xff]
    %v5572 = vld [vmem:[#allocation7 + $0x1f0] sm:$0xff]
    %v5573 = vld [vmem:[#allocation7 + $0x1f8] sm:$0xff]
    %v5574 = vld [vmem:[#allocation7 + $0x200] sm:$0xff]
    %v5575 = vld [vmem:[#allocation7 + $0x208] sm:$0xff]
    %v5576 = vld [vmem:[#allocation7 + $0x210] sm:$0xff]
    %v5577 = vld [vmem:[#allocation7 + $0x218] sm:$0xff]
    %v5578 = vld [vmem:[#allocation7 + $0x220] sm:$0xff]
    %v5579 = vld [vmem:[#allocation7 + $0x228] sm:$0xff]
    %v5580 = vld [vmem:[#allocation7 + $0x230] sm:$0xff]
    %v5581 = vld [vmem:[#allocation7 + $0x238] sm:$0xff]
    %v5582 = vld [vmem:[#allocation7 + $0x240] sm:$0xff]
    %v5583 = vld [vmem:[#allocation7 + $0x248] sm:$0xff]
    %v5584 = vld [vmem:[#allocation7 + $0x250] sm:$0xff]
    %v5585 = vld [vmem:[#allocation7 + $0x258] sm:$0xff]
    %v5586 = vld [vmem:[#allocation7 + $0x260] sm:$0xff]
    %v5587 = vld [vmem:[#allocation7 + $0x268] sm:$0xff]
    %v5588 = vld [vmem:[#allocation7 + $0x270] sm:$0xff]
    %v5589 = vld [vmem:[#allocation7 + $0x278] sm:$0xff]
    %v5590 = vld [vmem:[#allocation7 + $0x280] sm:$0xff]
    %v5591 = vld [vmem:[#allocation7 + $0x288] sm:$0xff]
    %v5592 = vld [vmem:[#allocation7 + $0x290] sm:$0xff]
    %v5593 = vld [vmem:[#allocation7 + $0x298] sm:$0xff]
    %v5594 = vld [vmem:[#allocation7 + $0x2a0] sm:$0xff]
    %v5595 = vld [vmem:[#allocation7 + $0x2a8] sm:$0xff]
    %v5596 = vld [vmem:[#allocation7 + $0x2b0] sm:$0xff]
    %v5597 = vld [vmem:[#allocation7 + $0x2b8] sm:$0xff]
    %v5598 = vld [vmem:[#allocation7 + $0x2c0] sm:$0xff]
    %v5599 = vld [vmem:[#allocation7 + $0x2c8] sm:$0xff]
    %v5600 = vld [vmem:[#allocation7 + $0x2d0] sm:$0xff]
    %v5601 = vld [vmem:[#allocation7 + $0x2d8] sm:$0xff]
    %v5602 = vld [vmem:[#allocation7 + $0x2e0] sm:$0xff]
    %v5603 = vld [vmem:[#allocation7 + $0x2e8] sm:$0xff]
    %v5604 = vld [vmem:[#allocation7 + $0x2f0] sm:$0xff]
    %v5605 = vld [vmem:[#allocation7 + $0x2f8] sm:$0xff]
    %v5606 = vld [vmem:[#allocation7 + $0x300] sm:$0xff]
    %v5607 = vld [vmem:[#allocation7 + $0x308] sm:$0xff]
    %v5608 = vld [vmem:[#allocation7 + $0x310] sm:$0xff]
    %v5609 = vld [vmem:[#allocation7 + $0x318] sm:$0xff]
    %v5610 = vld [vmem:[#allocation7 + $0x320] sm:$0xff]
    %v5611 = vld [vmem:[#allocation7 + $0x328] sm:$0xff]
    %v5612 = vld [vmem:[#allocation7 + $0x330] sm:$0xff]
    %v5613 = vld [vmem:[#allocation7 + $0x338] sm:$0xff]
    %v5614 = vld [vmem:[#allocation7 + $0x340] sm:$0xff]
    %v5615 = vld [vmem:[#allocation7 + $0x348] sm:$0xff]
    %v5616 = vld [vmem:[#allocation7 + $0x350] sm:$0xff]
    %v5617 = vld [vmem:[#allocation7 + $0x358] sm:$0xff]
    %v5618 = vld [vmem:[#allocation7 + $0x360] sm:$0xff]
    %v5619 = vld [vmem:[#allocation7 + $0x368] sm:$0xff]
    %v5620 = vld [vmem:[#allocation7 + $0x370] sm:$0xff]
    %v5621 = vld [vmem:[#allocation7 + $0x378] sm:$0xff]
    %v5622 = vld [vmem:[#allocation7 + $0x380] sm:$0xff]
    %v5623 = vld [vmem:[#allocation7 + $0x388] sm:$0xff]
    %v5624 = vld [vmem:[#allocation7 + $0x390] sm:$0xff]
    %v5625 = vld [vmem:[#allocation7 + $0x398] sm:$0xff]
    %v5626 = vld [vmem:[#allocation7 + $0x3a0] sm:$0xff]
    %v5627 = vld [vmem:[#allocation7 + $0x3a8] sm:$0xff]
    %v5628 = vld [vmem:[#allocation7 + $0x3b0] sm:$0xff]
    %v5629 = vld [vmem:[#allocation7 + $0x3b8] sm:$0xff]
    %v5630 = vld [vmem:[#allocation7 + $0x3c0] sm:$0xff]
    %v5631 = vld [vmem:[#allocation7 + $0x3c8] sm:$0xff]
    %v5632 = vld [vmem:[#allocation7 + $0x3d0] sm:$0xff]
    %v5633 = vld [vmem:[#allocation7 + $0x3d8] sm:$0xff]
    %v5634 = vld [vmem:[#allocation7 + $0x3e0] sm:$0xff]
    %v5635 = vld [vmem:[#allocation7 + $0x3e8] sm:$0xff]
    %v5636 = vld [vmem:[#allocation7 + $0x3f0] sm:$0xff]
    %v5637 = vld [vmem:[#allocation7 + $0x3f8] sm:$0xff]
    %v5638 = vld [vmem:[#allocation7 + $0x400] sm:$0xff]
    %v5639 = vld [vmem:[#allocation7 + $0x408] sm:$0xff]
    %v5640 = vld [vmem:[#allocation7 + $0x410] sm:$0xff]
    %v5641 = vld [vmem:[#allocation7 + $0x418] sm:$0xff]
    %v5642 = vld [vmem:[#allocation7 + $0x420] sm:$0xff]
    %v5643 = vld [vmem:[#allocation7 + $0x428] sm:$0xff]
    %v5644 = vld [vmem:[#allocation7 + $0x430] sm:$0xff]
    %v5645 = vld [vmem:[#allocation7 + $0x438] sm:$0xff]
    %v5646 = vld [vmem:[#allocation7 + $0x440] sm:$0xff]
    %v5647 = vld [vmem:[#allocation7 + $0x448] sm:$0xff]
    %v5648 = vld [vmem:[#allocation7 + $0x450] sm:$0xff]
    %v5649 = vld [vmem:[#allocation7 + $0x458] sm:$0xff]
    %v5650 = vld [vmem:[#allocation7 + $0x460] sm:$0xff]
    %v5651 = vld [vmem:[#allocation7 + $0x468] sm:$0xff]
    %v5652 = vld [vmem:[#allocation7 + $0x470] sm:$0xff]
    %v5653 = vld [vmem:[#allocation7 + $0x478] sm:$0xff]
    %v5654 = vld [vmem:[#allocation7 + $0x480] sm:$0xff]
    %v5655 = vld [vmem:[#allocation7 + $0x488] sm:$0xff]
    %v5656 = vld [vmem:[#allocation7 + $0x490] sm:$0xff]
    %v5657 = vld [vmem:[#allocation7 + $0x498] sm:$0xff]
    %v5658 = vld [vmem:[#allocation7 + $0x4a0] sm:$0xff]
    %v5659 = vld [vmem:[#allocation7 + $0x4a8] sm:$0xff]
    %v5660 = vld [vmem:[#allocation7 + $0x4b0] sm:$0xff]
    %v5661 = vld [vmem:[#allocation7 + $0x4b8] sm:$0xff]
    %v5662 = vld [vmem:[#allocation7 + $0x4c0] sm:$0xff]
    %v5663 = vld [vmem:[#allocation7 + $0x4c8] sm:$0xff]
    %v5664 = vld [vmem:[#allocation7 + $0x4d0] sm:$0xff]
    %v5665 = vld [vmem:[#allocation7 + $0x4d8] sm:$0xff]
    %v5666 = vld [vmem:[#allocation7 + $0x4e0] sm:$0xff]
    %v5667 = vld [vmem:[#allocation7 + $0x4e8] sm:$0xff]
    %v5668 = vld [vmem:[#allocation7 + $0x4f0] sm:$0xff]
    %v5669 = vld [vmem:[#allocation7 + $0x4f8] sm:$0xff]
    %v5670 = vld [vmem:[#allocation7 + $0x500] sm:$0xff]
    %v5671 = vld [vmem:[#allocation7 + $0x508] sm:$0xff]
    %v5672 = vld [vmem:[#allocation7 + $0x510] sm:$0xff]
    %v5673 = vld [vmem:[#allocation7 + $0x518] sm:$0xff]
    %v5674 = vld [vmem:[#allocation7 + $0x520] sm:$0xff]
    %v5675 = vld [vmem:[#allocation7 + $0x528] sm:$0xff]
    %v5676 = vld [vmem:[#allocation7 + $0x530] sm:$0xff]
    %v5677 = vld [vmem:[#allocation7 + $0x538] sm:$0xff]
    %v5678 = vld [vmem:[#allocation7 + $0x540] sm:$0xff]
    %v5679 = vld [vmem:[#allocation7 + $0x548] sm:$0xff]
    %v5680 = vld [vmem:[#allocation7 + $0x550] sm:$0xff]
    %v5681 = vld [vmem:[#allocation7 + $0x558] sm:$0xff]
    %v5682 = vld [vmem:[#allocation7 + $0x560] sm:$0xff]
    %v5683 = vld [vmem:[#allocation7 + $0x568] sm:$0xff]
    %v5684 = vld [vmem:[#allocation7 + $0x570] sm:$0xff]
    %v5685 = vld [vmem:[#allocation7 + $0x578] sm:$0xff]
    %v5686 = vld [vmem:[#allocation7 + $0x580] sm:$0xff]
    %v5687 = vld [vmem:[#allocation7 + $0x588] sm:$0xff]
    %v5688 = vld [vmem:[#allocation7 + $0x590] sm:$0xff]
    %v5689 = vld [vmem:[#allocation7 + $0x598] sm:$0xff]
    %v5690 = vld [vmem:[#allocation7 + $0x5a0] sm:$0xff]
    %v5691 = vld [vmem:[#allocation7 + $0x5a8] sm:$0xff]
    %v5692 = vld [vmem:[#allocation7 + $0x5b0] sm:$0xff]
    %v5693 = vld [vmem:[#allocation7 + $0x5b8] sm:$0xff]
    %v5694 = vld [vmem:[#allocation7 + $0x5c0] sm:$0xff]
    %v5695 = vld [vmem:[#allocation7 + $0x5c8] sm:$0xff]
    %v5696 = vld [vmem:[#allocation7 + $0x5d0] sm:$0xff]
    %v5697 = vld [vmem:[#allocation7 + $0x5d8] sm:$0xff]
    %v5698 = vld [vmem:[#allocation7 + $0x5e0] sm:$0xff]
    %v5699 = vld [vmem:[#allocation7 + $0x5e8] sm:$0xff]
    %v5700 = vld [vmem:[#allocation7 + $0x5f0] sm:$0xff]
    %v5701 = vld [vmem:[#allocation7 + $0x5f8] sm:$0xff]
    %v5702 = vld [vmem:[#allocation7 + $0x600] sm:$0xff]
    %v5703 = vld [vmem:[#allocation7 + $0x608] sm:$0xff]
    %v5704 = vld [vmem:[#allocation7 + $0x610] sm:$0xff]
    %v5705 = vld [vmem:[#allocation7 + $0x618] sm:$0xff]
    %v5706 = vld [vmem:[#allocation7 + $0x620] sm:$0xff]
    %v5707 = vld [vmem:[#allocation7 + $0x628] sm:$0xff]
    %v5708 = vld [vmem:[#allocation7 + $0x630] sm:$0xff]
    %v5709 = vld [vmem:[#allocation7 + $0x638] sm:$0xff]
    %v5710 = vld [vmem:[#allocation7 + $0x640] sm:$0xff]
    %v5711 = vld [vmem:[#allocation7 + $0x648] sm:$0xff]
    %v5712 = vld [vmem:[#allocation7 + $0x650] sm:$0xff]
    %v5713 = vld [vmem:[#allocation7 + $0x658] sm:$0xff]
    %v5714 = vld [vmem:[#allocation7 + $0x660] sm:$0xff]
    %v5715 = vld [vmem:[#allocation7 + $0x668] sm:$0xff]
    %v5716 = vld [vmem:[#allocation7 + $0x670] sm:$0xff]
    %v5717 = vld [vmem:[#allocation7 + $0x678] sm:$0xff]
    %v5718 = vld [vmem:[#allocation7 + $0x680] sm:$0xff]
    %v5719 = vld [vmem:[#allocation7 + $0x688] sm:$0xff]
    %v5720 = vld [vmem:[#allocation7 + $0x690] sm:$0xff]
    %v5721 = vld [vmem:[#allocation7 + $0x698] sm:$0xff]
    %v5722 = vld [vmem:[#allocation7 + $0x6a0] sm:$0xff]
    %v5723 = vld [vmem:[#allocation7 + $0x6a8] sm:$0xff]
    %v5724 = vld [vmem:[#allocation7 + $0x6b0] sm:$0xff]
    %v5725 = vld [vmem:[#allocation7 + $0x6b8] sm:$0xff]
    %v5726 = vld [vmem:[#allocation7 + $0x6c0] sm:$0xff]
    %v5727 = vld [vmem:[#allocation7 + $0x6c8] sm:$0xff]
    %v5728 = vld [vmem:[#allocation7 + $0x6d0] sm:$0xff]
    %v5729 = vld [vmem:[#allocation7 + $0x6d8] sm:$0xff]
    %v5730 = vld [vmem:[#allocation7 + $0x6e0] sm:$0xff]
    %v5731 = vld [vmem:[#allocation7 + $0x6e8] sm:$0xff]
    %v5732 = vld [vmem:[#allocation7 + $0x6f0] sm:$0xff]
    %v5733 = vld [vmem:[#allocation7 + $0x6f8] sm:$0xff]
    %v5734 = vld [vmem:[#allocation7 + $0x700] sm:$0xff]
    %v5735 = vld [vmem:[#allocation7 + $0x708] sm:$0xff]
    %v5736 = vld [vmem:[#allocation7 + $0x710] sm:$0xff]
    %v5737 = vld [vmem:[#allocation7 + $0x718] sm:$0xff]
    %v5738 = vld [vmem:[#allocation7 + $0x720] sm:$0xff]
    %v5739 = vld [vmem:[#allocation7 + $0x728] sm:$0xff]
    %v5740 = vld [vmem:[#allocation7 + $0x730] sm:$0xff]
    %v5741 = vld [vmem:[#allocation7 + $0x738] sm:$0xff]
    %v5742 = vld [vmem:[#allocation7 + $0x740] sm:$0xff]
    %v5743 = vld [vmem:[#allocation7 + $0x748] sm:$0xff]
    %v5744 = vld [vmem:[#allocation7 + $0x750] sm:$0xff]
    %v5745 = vld [vmem:[#allocation7 + $0x758] sm:$0xff]
    %v5746 = vld [vmem:[#allocation7 + $0x760] sm:$0xff]
    %v5747 = vld [vmem:[#allocation7 + $0x768] sm:$0xff]
    %v5748 = vld [vmem:[#allocation7 + $0x770] sm:$0xff]
    %v5749 = vld [vmem:[#allocation7 + $0x778] sm:$0xff]
    %v5750 = vld [vmem:[#allocation7 + $0x780] sm:$0xff]
    %v5751 = vld [vmem:[#allocation7 + $0x788] sm:$0xff]
    %v5752 = vld [vmem:[#allocation7 + $0x790] sm:$0xff]
    %v5753 = vld [vmem:[#allocation7 + $0x798] sm:$0xff]
    %v5754 = vld [vmem:[#allocation7 + $0x7a0] sm:$0xff]
    %v5755 = vld [vmem:[#allocation7 + $0x7a8] sm:$0xff]
    %v5756 = vld [vmem:[#allocation7 + $0x7b0] sm:$0xff]
    %v5757 = vld [vmem:[#allocation7 + $0x7b8] sm:$0xff]
    %v5758 = vld [vmem:[#allocation7 + $0x7c0] sm:$0xff]
    %v5759 = vld [vmem:[#allocation7 + $0x7c8] sm:$0xff]
    %v5760 = vld [vmem:[#allocation7 + $0x7d0] sm:$0xff]
    %v5761 = vld [vmem:[#allocation7 + $0x7d8] sm:$0xff]
    %v5762 = vld [vmem:[#allocation7 + $0x7e0] sm:$0xff]
    %v5763 = vld [vmem:[#allocation7 + $0x7e8] sm:$0xff]
    %v5764 = vld [vmem:[#allocation7 + $0x7f0] sm:$0xff]
    %v5765 = vld [vmem:[#allocation7 + $0x7f8] sm:$0xff]
    %v5766 = vld [vmem:[#allocation7 + $0x800] sm:$0xff]
    %v5767 = vld [vmem:[#allocation7 + $0x808] sm:$0xff]
    %v5768 = vld [vmem:[#allocation7 + $0x810] sm:$0xff]
    %v5769 = vld [vmem:[#allocation7 + $0x818] sm:$0xff]
    %v5770 = vld [vmem:[#allocation7 + $0x820] sm:$0xff]
    %v5771 = vld [vmem:[#allocation7 + $0x828] sm:$0xff]
    %v5772 = vld [vmem:[#allocation7 + $0x830] sm:$0xff]
    %v5773 = vld [vmem:[#allocation7 + $0x838] sm:$0xff]
    %v5774 = vld [vmem:[#allocation7 + $0x840] sm:$0xff]
    %v5775 = vld [vmem:[#allocation7 + $0x848] sm:$0xff]
    %v5776 = vld [vmem:[#allocation7 + $0x850] sm:$0xff]
    %v5777 = vld [vmem:[#allocation7 + $0x858] sm:$0xff]
    %v5778 = vld [vmem:[#allocation7 + $0x860] sm:$0xff]
    %v5779 = vld [vmem:[#allocation7 + $0x868] sm:$0xff]
    %v5780 = vld [vmem:[#allocation7 + $0x870] sm:$0xff]
    %v5781 = vld [vmem:[#allocation7 + $0x878] sm:$0xff]
    %v5782 = vld [vmem:[#allocation7 + $0x880] sm:$0xff]
    %v5783 = vld [vmem:[#allocation7 + $0x888] sm:$0xff]
    %v5784 = vld [vmem:[#allocation7 + $0x890] sm:$0xff]
    %v5785 = vld [vmem:[#allocation7 + $0x898] sm:$0xff]
    %v5786 = vld [vmem:[#allocation7 + $0x8a0] sm:$0xff]
    %v5787 = vld [vmem:[#allocation7 + $0x8a8] sm:$0xff]
    %v5788 = vld [vmem:[#allocation7 + $0x8b0] sm:$0xff]
    %v5789 = vld [vmem:[#allocation7 + $0x8b8] sm:$0xff]
    %v5790 = vld [vmem:[#allocation7 + $0x8c0] sm:$0xff]
    %v5791 = vld [vmem:[#allocation7 + $0x8c8] sm:$0xff]
    %v5792 = vld [vmem:[#allocation7 + $0x8d0] sm:$0xff]
    %v5793 = vld [vmem:[#allocation7 + $0x8d8] sm:$0xff]
    %v5794 = vld [vmem:[#allocation7 + $0x8e0] sm:$0xff]
    %v5795 = vld [vmem:[#allocation7 + $0x8e8] sm:$0xff]
    %v5796 = vld [vmem:[#allocation7 + $0x8f0] sm:$0xff]
    %v5797 = vld [vmem:[#allocation7 + $0x8f8] sm:$0xff]
    %v5798 = vld [vmem:[#allocation7 + $0x900] sm:$0xff]
    %v5799 = vld [vmem:[#allocation7 + $0x908] sm:$0xff]
    %v5800 = vld [vmem:[#allocation7 + $0x910] sm:$0xff]
    %v5801 = vld [vmem:[#allocation7 + $0x918] sm:$0xff]
    %v5802 = vld [vmem:[#allocation7 + $0x920] sm:$0xff]
    %v5803 = vld [vmem:[#allocation7 + $0x928] sm:$0xff]
    %v5804 = vld [vmem:[#allocation7 + $0x930] sm:$0xff]
    %v5805 = vld [vmem:[#allocation7 + $0x938] sm:$0xff]
    %v5806 = vld [vmem:[#allocation7 + $0x940] sm:$0xff]
    %v5807 = vld [vmem:[#allocation7 + $0x948] sm:$0xff]
    %v5808 = vld [vmem:[#allocation7 + $0x950] sm:$0xff]
    %v5809 = vld [vmem:[#allocation7 + $0x958] sm:$0xff]
    %v5810 = vld [vmem:[#allocation7 + $0x960] sm:$0xff]
    %v5811 = vld [vmem:[#allocation7 + $0x968] sm:$0xff]
    %v5812 = vld [vmem:[#allocation7 + $0x970] sm:$0xff]
    %v5813 = vld [vmem:[#allocation7 + $0x978] sm:$0xff]
    %v5814 = vld [vmem:[#allocation7 + $0x980] sm:$0xff]
    %v5815 = vld [vmem:[#allocation7 + $0x988] sm:$0xff]
    %v5816 = vld [vmem:[#allocation7 + $0x990] sm:$0xff]
    %v5817 = vld [vmem:[#allocation7 + $0x998] sm:$0xff]
    %v5818 = vld [vmem:[#allocation7 + $0x9a0] sm:$0xff]
    %v5819 = vld [vmem:[#allocation7 + $0x9a8] sm:$0xff]
    %v5820 = vld [vmem:[#allocation7 + $0x9b0] sm:$0xff]
    %v5821 = vld [vmem:[#allocation7 + $0x9b8] sm:$0xff]
    %v5822 = vld [vmem:[#allocation7 + $0x9c0] sm:$0xff]
    %v5823 = vld [vmem:[#allocation7 + $0x9c8] sm:$0xff]
    %v5824 = vld [vmem:[#allocation7 + $0x9d0] sm:$0xff]
    %v5825 = vld [vmem:[#allocation7 + $0x9d8] sm:$0xff]
    %v5826 = vld [vmem:[#allocation7 + $0x9e0] sm:$0xff]
    %v5827 = vld [vmem:[#allocation7 + $0x9e8] sm:$0xff]
    %v5828 = vld [vmem:[#allocation7 + $0x9f0] sm:$0xff]
    %v5829 = vld [vmem:[#allocation7 + $0x9f8] sm:$0xff]
    %v5830 = vld [vmem:[#allocation7 + $0xa00] sm:$0xff]
    %v5831 = vld [vmem:[#allocation7 + $0xa08] sm:$0xff]
    %v5832 = vld [vmem:[#allocation7 + $0xa10] sm:$0xff]
    %v5833 = vld [vmem:[#allocation7 + $0xa18] sm:$0xff]
    %v5834 = vld [vmem:[#allocation7 + $0xa20] sm:$0xff]
    %v5835 = vld [vmem:[#allocation7 + $0xa28] sm:$0xff]
    %v5836 = vld [vmem:[#allocation7 + $0xa30] sm:$0xff]
    %v5837 = vld [vmem:[#allocation7 + $0xa38] sm:$0xff]
    %v5838 = vld [vmem:[#allocation7 + $0xa40] sm:$0xff]
    %v5839 = vld [vmem:[#allocation7 + $0xa48] sm:$0xff]
    %v5840 = vld [vmem:[#allocation7 + $0xa50] sm:$0xff]
    %v5841 = vld [vmem:[#allocation7 + $0xa58] sm:$0xff]
    %v5842 = vld [vmem:[#allocation7 + $0xa60] sm:$0xff]
    %v5843 = vld [vmem:[#allocation7 + $0xa68] sm:$0xff]
    %v5844 = vld [vmem:[#allocation7 + $0xa70] sm:$0xff]
    %v5845 = vld [vmem:[#allocation7 + $0xa78] sm:$0xff]
    %v5846 = vld [vmem:[#allocation7 + $0xa80] sm:$0xff]
    %v5847 = vld [vmem:[#allocation7 + $0xa88] sm:$0xff]
    %v5848 = vld [vmem:[#allocation7 + $0xa90] sm:$0xff]
    %v5849 = vld [vmem:[#allocation7 + $0xa98] sm:$0xff]
    %v5850 = vld [vmem:[#allocation7 + $0xaa0] sm:$0xff]
    %v5851 = vld [vmem:[#allocation7 + $0xaa8] sm:$0xff]
    %v5852 = vld [vmem:[#allocation7 + $0xab0] sm:$0xff]
    %v5853 = vld [vmem:[#allocation7 + $0xab8] sm:$0xff]
    %v5854 = vld [vmem:[#allocation7 + $0xac0] sm:$0xff]
    %v5855 = vld [vmem:[#allocation7 + $0xac8] sm:$0xff]
    %v5856 = vld [vmem:[#allocation7 + $0xad0] sm:$0xff]
    %v5857 = vld [vmem:[#allocation7 + $0xad8] sm:$0xff]
    %v5858 = vld [vmem:[#allocation7 + $0xae0] sm:$0xff]
    %v5859 = vld [vmem:[#allocation7 + $0xae8] sm:$0xff]
    %v5860 = vld [vmem:[#allocation7 + $0xaf0] sm:$0xff]
    %v5861 = vld [vmem:[#allocation7 + $0xaf8] sm:$0xff]
    %v5862 = vld [vmem:[#allocation7 + $0xb00] sm:$0xff]
    %v5863 = vld [vmem:[#allocation7 + $0xb08] sm:$0xff]
    %v5864 = vld [vmem:[#allocation7 + $0xb10] sm:$0xff]
    %v5865 = vld [vmem:[#allocation7 + $0xb18] sm:$0xff]
    %v5866 = vld [vmem:[#allocation7 + $0xb20] sm:$0xff]
    %v5867 = vld [vmem:[#allocation7 + $0xb28] sm:$0xff]
    %v5868 = vld [vmem:[#allocation7 + $0xb30] sm:$0xff]
    %v5869 = vld [vmem:[#allocation7 + $0xb38] sm:$0xff]
    %v5870 = vld [vmem:[#allocation7 + $0xb40] sm:$0xff]
    %v5871 = vld [vmem:[#allocation7 + $0xb48] sm:$0xff]
    %v5872 = vld [vmem:[#allocation7 + $0xb50] sm:$0xff]
    %v5873 = vld [vmem:[#allocation7 + $0xb58] sm:$0xff]
    %v5874 = vld [vmem:[#allocation7 + $0xb60] sm:$0xff]
    %v5875 = vld [vmem:[#allocation7 + $0xb68] sm:$0xff]
    %v5876 = vld [vmem:[#allocation7 + $0xb70] sm:$0xff]
    %v5877 = vld [vmem:[#allocation7 + $0xb78] sm:$0xff]
    %v5878 = vld [vmem:[#allocation7 + $0xb80] sm:$0xff]
    %v5879 = vld [vmem:[#allocation7 + $0xb88] sm:$0xff]
    %v5880 = vld [vmem:[#allocation7 + $0xb90] sm:$0xff]
    %v5881 = vld [vmem:[#allocation7 + $0xb98] sm:$0xff]
    %v5882 = vld [vmem:[#allocation7 + $0xba0] sm:$0xff]
    %v5883 = vld [vmem:[#allocation7 + $0xba8] sm:$0xff]
    %v5884 = vld [vmem:[#allocation7 + $0xbb0] sm:$0xff]
    %v5885 = vld [vmem:[#allocation7 + $0xbb8] sm:$0xff]
    %v5886 = vld [vmem:[#allocation7 + $0xbc0] sm:$0xff]
    %v5887 = vld [vmem:[#allocation7 + $0xbc8] sm:$0xff]
    %v5888 = vld [vmem:[#allocation7 + $0xbd0] sm:$0xff]
    %v5889 = vld [vmem:[#allocation7 + $0xbd8] sm:$0xff]
    %v5890 = vld [vmem:[#allocation7 + $0xbe0] sm:$0xff]
    %v5891 = vld [vmem:[#allocation7 + $0xbe8] sm:$0xff]
    %v5892 = vld [vmem:[#allocation7 + $0xbf0] sm:$0xff]
    %v5893 = vld [vmem:[#allocation7 + $0xbf8] sm:$0xff]
    %v5894 = vld [vmem:[#allocation7 + $0xc00] sm:$0xff]
    %v5895 = vld [vmem:[#allocation7 + $0xc08] sm:$0xff]
    %v5896 = vld [vmem:[#allocation7 + $0xc10] sm:$0xff]
    %v5897 = vld [vmem:[#allocation7 + $0xc18] sm:$0xff]
    %v5898 = vld [vmem:[#allocation7 + $0xc20] sm:$0xff]
    %v5899 = vld [vmem:[#allocation7 + $0xc28] sm:$0xff]
    %v5900 = vld [vmem:[#allocation7 + $0xc30] sm:$0xff]
    %v5901 = vld [vmem:[#allocation7 + $0xc38] sm:$0xff]
    %v5902 = vld [vmem:[#allocation7 + $0xc40] sm:$0xff]
    %v5903 = vld [vmem:[#allocation7 + $0xc48] sm:$0xff]
    %v5904 = vld [vmem:[#allocation7 + $0xc50] sm:$0xff]
    %v5905 = vld [vmem:[#allocation7 + $0xc58] sm:$0xff]
    %v5906 = vld [vmem:[#allocation7 + $0xc60] sm:$0xff]
    %v5907 = vld [vmem:[#allocation7 + $0xc68] sm:$0xff]
    %v5908 = vld [vmem:[#allocation7 + $0xc70] sm:$0xff]
    %v5909 = vld [vmem:[#allocation7 + $0xc78] sm:$0xff]
    %v5910 = vld [vmem:[#allocation7 + $0xc80] sm:$0xff]
    %v5911 = vld [vmem:[#allocation7 + $0xc88] sm:$0xff]
    %v5912 = vld [vmem:[#allocation7 + $0xc90] sm:$0xff]
    %v5913 = vld [vmem:[#allocation7 + $0xc98] sm:$0xff]
    %v5914 = vld [vmem:[#allocation7 + $0xca0] sm:$0xff]
    %v5915 = vld [vmem:[#allocation7 + $0xca8] sm:$0xff]
    %v5916 = vld [vmem:[#allocation7 + $0xcb0] sm:$0xff]
    %v5917 = vld [vmem:[#allocation7 + $0xcb8] sm:$0xff]
    %v5918 = vld [vmem:[#allocation7 + $0xcc0] sm:$0xff]
    %v5919 = vld [vmem:[#allocation7 + $0xcc8] sm:$0xff]
    %v5920 = vld [vmem:[#allocation7 + $0xcd0] sm:$0xff]
    %v5921 = vld [vmem:[#allocation7 + $0xcd8] sm:$0xff]
    %v5922 = vld [vmem:[#allocation7 + $0xce0] sm:$0xff]
    %v5923 = vld [vmem:[#allocation7 + $0xce8] sm:$0xff]
    %v5924 = vld [vmem:[#allocation7 + $0xcf0] sm:$0xff]
    %v5925 = vld [vmem:[#allocation7 + $0xcf8] sm:$0xff]
    %v5926 = vld [vmem:[#allocation7 + $0xd00] sm:$0xff]
    %v5927 = vld [vmem:[#allocation7 + $0xd08] sm:$0xff]
    %v5928 = vld [vmem:[#allocation7 + $0xd10] sm:$0xff]
    %v5929 = vld [vmem:[#allocation7 + $0xd18] sm:$0xff]
    %v5930 = vld [vmem:[#allocation7 + $0xd20] sm:$0xff]
    %v5931 = vld [vmem:[#allocation7 + $0xd28] sm:$0xff]
    %v5932 = vld [vmem:[#allocation7 + $0xd30] sm:$0xff]
    %v5933 = vld [vmem:[#allocation7 + $0xd38] sm:$0xff]
    %v5934 = vld [vmem:[#allocation7 + $0xd40] sm:$0xff]
    %v5935 = vld [vmem:[#allocation7 + $0xd48] sm:$0xff]
    %v5936 = vld [vmem:[#allocation7 + $0xd50] sm:$0xff]
    %v5937 = vld [vmem:[#allocation7 + $0xd58] sm:$0xff]
    %v5938 = vld [vmem:[#allocation7 + $0xd60] sm:$0xff]
    %v5939 = vld [vmem:[#allocation7 + $0xd68] sm:$0xff]
    %v5940 = vld [vmem:[#allocation7 + $0xd70] sm:$0xff]
    %v5941 = vld [vmem:[#allocation7 + $0xd78] sm:$0xff]
    %v5942 = vld [vmem:[#allocation7 + $0xd80] sm:$0xff]
    %v5943 = vld [vmem:[#allocation7 + $0xd88] sm:$0xff]
    %v5944 = vld [vmem:[#allocation7 + $0xd90] sm:$0xff]
    %v5945 = vld [vmem:[#allocation7 + $0xd98] sm:$0xff]
    %v5946 = vld [vmem:[#allocation7 + $0xda0] sm:$0xff]
    %v5947 = vld [vmem:[#allocation7 + $0xda8] sm:$0xff]
    %v5948 = vld [vmem:[#allocation7 + $0xdb0] sm:$0xff]
    %v5949 = vld [vmem:[#allocation7 + $0xdb8] sm:$0xff]
    %v5950 = vld [vmem:[#allocation7 + $0xdc0] sm:$0xff]
    %v5951 = vld [vmem:[#allocation7 + $0xdc8] sm:$0xff]
    %v5952 = vld [vmem:[#allocation7 + $0xdd0] sm:$0xff]
    %v5953 = vld [vmem:[#allocation7 + $0xdd8] sm:$0xff]
    %v5954 = vld [vmem:[#allocation7 + $0xde0] sm:$0xff]
    %v5955 = vld [vmem:[#allocation7 + $0xde8] sm:$0xff]
    %v5956 = vld [vmem:[#allocation7 + $0xdf0] sm:$0xff]
    %v5957 = vld [vmem:[#allocation7 + $0xdf8] sm:$0xff]
    %v5958 = vld [vmem:[#allocation7 + $0xe00] sm:$0xff]
    %v5959 = vld [vmem:[#allocation7 + $0xe08] sm:$0xff]
    %v5960 = vld [vmem:[#allocation7 + $0xe10] sm:$0xff]
    %v5961 = vld [vmem:[#allocation7 + $0xe18] sm:$0xff]
    %v5962 = vld [vmem:[#allocation7 + $0xe20] sm:$0xff]
    %v5963 = vld [vmem:[#allocation7 + $0xe28] sm:$0xff]
    %v5964 = vld [vmem:[#allocation7 + $0xe30] sm:$0xff]
    %v5965 = vld [vmem:[#allocation7 + $0xe38] sm:$0xff]
    %v5966 = vld [vmem:[#allocation7 + $0xe40] sm:$0xff]
    %v5967 = vld [vmem:[#allocation7 + $0xe48] sm:$0xff]
    %v5968 = vld [vmem:[#allocation7 + $0xe50] sm:$0xff]
    %v5969 = vld [vmem:[#allocation7 + $0xe58] sm:$0xff]
    %v5970 = vld [vmem:[#allocation7 + $0xe60] sm:$0xff]
    %v5971 = vld [vmem:[#allocation7 + $0xe68] sm:$0xff]
    %v5972 = vld [vmem:[#allocation7 + $0xe70] sm:$0xff]
    %v5973 = vld [vmem:[#allocation7 + $0xe78] sm:$0xff]
    %v5974 = vld [vmem:[#allocation7 + $0xe80] sm:$0xff]
    %v5975 = vld [vmem:[#allocation7 + $0xe88] sm:$0xff]
    %v5976 = vld [vmem:[#allocation7 + $0xe90] sm:$0xff]
    %v5977 = vld [vmem:[#allocation7 + $0xe98] sm:$0xff]
    %v5978 = vld [vmem:[#allocation7 + $0xea0] sm:$0xff]
    %v5979 = vld [vmem:[#allocation7 + $0xea8] sm:$0xff]
    %v5980 = vld [vmem:[#allocation7 + $0xeb0] sm:$0xff]
    %v5981 = vld [vmem:[#allocation7 + $0xeb8] sm:$0xff]
    %v5982 = vld [vmem:[#allocation7 + $0xec0] sm:$0xff]
    %v5983 = vld [vmem:[#allocation7 + $0xec8] sm:$0xff]
    %v5984 = vld [vmem:[#allocation7 + $0xed0] sm:$0xff]
    %v5985 = vld [vmem:[#allocation7 + $0xed8] sm:$0xff]
    %v5986 = vld [vmem:[#allocation7 + $0xee0] sm:$0xff]
    %v5987 = vld [vmem:[#allocation7 + $0xee8] sm:$0xff]
    %v5988 = vld [vmem:[#allocation7 + $0xef0] sm:$0xff]
    %v5989 = vld [vmem:[#allocation7 + $0xef8] sm:$0xff]
    %v5990 = vld [vmem:[#allocation7 + $0xf00] sm:$0xff]
    %v5991 = vld [vmem:[#allocation7 + $0xf08] sm:$0xff]
    %v5992 = vld [vmem:[#allocation7 + $0xf10] sm:$0xff]
    %v5993 = vld [vmem:[#allocation7 + $0xf18] sm:$0xff]
    %v5994 = vld [vmem:[#allocation7 + $0xf20] sm:$0xff]
    %v5995 = vld [vmem:[#allocation7 + $0xf28] sm:$0xff]
    %v5996 = vld [vmem:[#allocation7 + $0xf30] sm:$0xff]
    %v5997 = vld [vmem:[#allocation7 + $0xf38] sm:$0xff]
    %v5998 = vld [vmem:[#allocation7 + $0xf40] sm:$0xff]
    %v5999 = vld [vmem:[#allocation7 + $0xf48] sm:$0xff]
    %v6000 = vld [vmem:[#allocation7 + $0xf50] sm:$0xff]
    %v6001 = vld [vmem:[#allocation7 + $0xf58] sm:$0xff]
    %v6002 = vld [vmem:[#allocation7 + $0xf60] sm:$0xff]
    %v6003 = vld [vmem:[#allocation7 + $0xf68] sm:$0xff]
    %v6004 = vld [vmem:[#allocation7 + $0xf70] sm:$0xff]
    %v6005 = vld [vmem:[#allocation7 + $0xf78] sm:$0xff]
    %v6006 = vld [vmem:[#allocation7 + $0xf80] sm:$0xff]
    %v6007 = vld [vmem:[#allocation7 + $0xf88] sm:$0xff]
    %v6008 = vld [vmem:[#allocation7 + $0xf90] sm:$0xff]
    %v6009 = vld [vmem:[#allocation7 + $0xf98] sm:$0xff]
    %v6010 = vld [vmem:[#allocation7 + $0xfa0] sm:$0xff]
    %v6011 = vld [vmem:[#allocation7 + $0xfa8] sm:$0xff]
    %v6012 = vld [vmem:[#allocation7 + $0xfb0] sm:$0xff]
    %v6013 = vld [vmem:[#allocation7 + $0xfb8] sm:$0xff]
    %v6014 = vld [vmem:[#allocation7 + $0xfc0] sm:$0xff]
    %v6015 = vld [vmem:[#allocation7 + $0xfc8] sm:$0xff]
    %v6016 = vld [vmem:[#allocation7 + $0xfd0] sm:$0xff]
    %v6017 = vld [vmem:[#allocation7 + $0xfd8] sm:$0xff]
    %v6018 = vld [vmem:[#allocation7 + $0xfe0] sm:$0xff]
    %v6019 = vld [vmem:[#allocation7 + $0xfe8] sm:$0xff]
    %v6020 = vld [vmem:[#allocation7 + $0xff0] sm:$0xff]
    %v6021 = vld [vmem:[#allocation7 + $0xff8] sm:$0xff]
    %v6022 = vld [vmem:[#allocation7 + $0x1000] sm:$0xff]
    %v6023 = vld [vmem:[#allocation7 + $0x1008] sm:$0xff]
    %v6024 = vld [vmem:[#allocation7 + $0x1010] sm:$0xff]
    %v6025 = vld [vmem:[#allocation7 + $0x1018] sm:$0xff]
    %v6026 = vld [vmem:[#allocation7 + $0x1020] sm:$0xff]
    %v6027 = vld [vmem:[#allocation7 + $0x1028] sm:$0xff]
    %v6028 = vld [vmem:[#allocation7 + $0x1030] sm:$0xff]
    %v6029 = vld [vmem:[#allocation7 + $0x1038] sm:$0xff]
    %v6030 = vld [vmem:[#allocation7 + $0x1040] sm:$0xff]
    %v6031 = vld [vmem:[#allocation7 + $0x1048] sm:$0xff]
    %v6032 = vld [vmem:[#allocation7 + $0x1050] sm:$0xff]
    %v6033 = vld [vmem:[#allocation7 + $0x1058] sm:$0xff]
    %v6034 = vld [vmem:[#allocation7 + $0x1060] sm:$0xff]
    %v6035 = vld [vmem:[#allocation7 + $0x1068] sm:$0xff]
    %v6036 = vld [vmem:[#allocation7 + $0x1070] sm:$0xff]
    %v6037 = vld [vmem:[#allocation7 + $0x1078] sm:$0xff]
    %v6038 = vld [vmem:[#allocation7 + $0x1080] sm:$0xff]
    %v6039 = vld [vmem:[#allocation7 + $0x1088] sm:$0xff]
    %v6040 = vld [vmem:[#allocation7 + $0x1090] sm:$0xff]
    %v6041 = vld [vmem:[#allocation7 + $0x1098] sm:$0xff]
    %v6042 = vld [vmem:[#allocation7 + $0x10a0] sm:$0xff]
    %v6043 = vld [vmem:[#allocation7 + $0x10a8] sm:$0xff]
    %v6044 = vld [vmem:[#allocation7 + $0x10b0] sm:$0xff]
    %v6045 = vld [vmem:[#allocation7 + $0x10b8] sm:$0xff]
    %v6046 = vld [vmem:[#allocation7 + $0x10c0] sm:$0xff]
    %v6047 = vld [vmem:[#allocation7 + $0x10c8] sm:$0xff]
    %v6048 = vld [vmem:[#allocation7 + $0x10d0] sm:$0xff]
    %v6049 = vld [vmem:[#allocation7 + $0x10d8] sm:$0xff]
    %v6050 = vld [vmem:[#allocation7 + $0x10e0] sm:$0xff]
    %v6051 = vld [vmem:[#allocation7 + $0x10e8] sm:$0xff]
    %v6052 = vld [vmem:[#allocation7 + $0x10f0] sm:$0xff]
    %v6053 = vld [vmem:[#allocation7 + $0x10f8] sm:$0xff]
    %v6054 = vld [vmem:[#allocation7 + $0x1100] sm:$0xff]
    %v6055 = vld [vmem:[#allocation7 + $0x1108] sm:$0xff]
    %v6056 = vld [vmem:[#allocation7 + $0x1110] sm:$0xff]
    %v6057 = vld [vmem:[#allocation7 + $0x1118] sm:$0xff]
    %v6058 = vld [vmem:[#allocation7 + $0x1120] sm:$0xff]
    %v6059 = vld [vmem:[#allocation7 + $0x1128] sm:$0xff]
    %v6060 = vld [vmem:[#allocation7 + $0x1130] sm:$0xff]
    %v6061 = vld [vmem:[#allocation7 + $0x1138] sm:$0xff]
    %v6062 = vld [vmem:[#allocation7 + $0x1140] sm:$0xff]
    %v6063 = vld [vmem:[#allocation7 + $0x1148] sm:$0xff]
    %v6064 = vld [vmem:[#allocation7 + $0x1150] sm:$0xff]
    %v6065 = vld [vmem:[#allocation7 + $0x1158] sm:$0xff]
    %v6066 = vld [vmem:[#allocation7 + $0x1160] sm:$0xff]
    %v6067 = vld [vmem:[#allocation7 + $0x1168] sm:$0xff]
    %v6068 = vld [vmem:[#allocation7 + $0x1170] sm:$0xff]
    %v6069 = vld [vmem:[#allocation7 + $0x1178] sm:$0xff]
    %v6070 = vld [vmem:[#allocation7 + $0x1180] sm:$0xff]
    %v6071 = vld [vmem:[#allocation7 + $0x1188] sm:$0xff]
    %v6072 = vld [vmem:[#allocation7 + $0x1190] sm:$0xff]
    %v6073 = vld [vmem:[#allocation7 + $0x1198] sm:$0xff]
    %v6074 = vld [vmem:[#allocation7 + $0x11a0] sm:$0xff]
    %v6075 = vld [vmem:[#allocation7 + $0x11a8] sm:$0xff]
    %v6076 = vld [vmem:[#allocation7 + $0x11b0] sm:$0xff]
    %v6077 = vld [vmem:[#allocation7 + $0x11b8] sm:$0xff]
    %v6078 = vld [vmem:[#allocation7 + $0x11c0] sm:$0xff]
    %v6079 = vld [vmem:[#allocation7 + $0x11c8] sm:$0xff]
    %v6080 = vld [vmem:[#allocation7 + $0x11d0] sm:$0xff]
    %v6081 = vld [vmem:[#allocation7 + $0x11d8] sm:$0xff]
    %v6082 = vld [vmem:[#allocation7 + $0x11e0] sm:$0xff]
    %v6083 = vld [vmem:[#allocation7 + $0x11e8] sm:$0xff]
    %v6084 = vld [vmem:[#allocation7 + $0x11f0] sm:$0xff]
    %v6085 = vld [vmem:[#allocation7 + $0x11f8] sm:$0xff]
    %v6086 = vld [vmem:[#allocation7 + $0x1200] sm:$0xff]
    %v6087 = vld [vmem:[#allocation7 + $0x1208] sm:$0xff]
    %v6088 = vld [vmem:[#allocation7 + $0x1210] sm:$0xff]
    %v6089 = vld [vmem:[#allocation7 + $0x1218] sm:$0xff]
    %v6090 = vld [vmem:[#allocation7 + $0x1220] sm:$0xff]
    %v6091 = vld [vmem:[#allocation7 + $0x1228] sm:$0xff]
    %v6092 = vld [vmem:[#allocation7 + $0x1230] sm:$0xff]
    %v6093 = vld [vmem:[#allocation7 + $0x1238] sm:$0xff]
    %v6094 = vld [vmem:[#allocation7 + $0x1240] sm:$0xff]
    %v6095 = vld [vmem:[#allocation7 + $0x1248] sm:$0xff]
    %v6096 = vld [vmem:[#allocation7 + $0x1250] sm:$0xff]
    %v6097 = vld [vmem:[#allocation7 + $0x1258] sm:$0xff]
    %v6098 = vld [vmem:[#allocation7 + $0x1260] sm:$0xff]
    %v6099 = vld [vmem:[#allocation7 + $0x1268] sm:$0xff]
    %v6100 = vld [vmem:[#allocation7 + $0x1270] sm:$0xff]
    %v6101 = vld [vmem:[#allocation7 + $0x1278] sm:$0xff]
    %v6102 = vld [vmem:[#allocation7 + $0x1280] sm:$0xff]
    %v6103 = vld [vmem:[#allocation7 + $0x1288] sm:$0xff]
    %v6104 = vld [vmem:[#allocation7 + $0x1290] sm:$0xff]
    %v6105 = vld [vmem:[#allocation7 + $0x1298] sm:$0xff]
    %v6106 = vld [vmem:[#allocation7 + $0x12a0] sm:$0xff]
    %v6107 = vld [vmem:[#allocation7 + $0x12a8] sm:$0xff]
    %v6108 = vld [vmem:[#allocation7 + $0x12b0] sm:$0xff]
    %v6109 = vld [vmem:[#allocation7 + $0x12b8] sm:$0xff]
    %v6110 = vld [vmem:[#allocation7 + $0x12c0] sm:$0xff]
    %v6111 = vld [vmem:[#allocation7 + $0x12c8] sm:$0xff]
    %v6112 = vld [vmem:[#allocation7 + $0x12d0] sm:$0xff]
    %v6113 = vld [vmem:[#allocation7 + $0x12d8] sm:$0xff]
    %v6114 = vld [vmem:[#allocation7 + $0x12e0] sm:$0xff]
    %v6115 = vld [vmem:[#allocation7 + $0x12e8] sm:$0xff]
    %v6116 = vld [vmem:[#allocation7 + $0x12f0] sm:$0xff]
    %v6117 = vld [vmem:[#allocation7 + $0x12f8] sm:$0xff]
    %v6118 = vld [vmem:[#allocation7 + $0x1300] sm:$0xff]
    %v6119 = vld [vmem:[#allocation7 + $0x1308] sm:$0xff]
    %v6120 = vld [vmem:[#allocation7 + $0x1310] sm:$0xff]
    %v6121 = vld [vmem:[#allocation7 + $0x1318] sm:$0xff]
    %v6122 = vld [vmem:[#allocation7 + $0x1320] sm:$0xff]
    %v6123 = vld [vmem:[#allocation7 + $0x1328] sm:$0xff]
    %v6124 = vld [vmem:[#allocation7 + $0x1330] sm:$0xff]
    %v6125 = vld [vmem:[#allocation7 + $0x1338] sm:$0xff]
    %v6126 = vld [vmem:[#allocation7 + $0x1340] sm:$0xff]
    %v6127 = vld [vmem:[#allocation7 + $0x1348] sm:$0xff]
    %v6128 = vld [vmem:[#allocation7 + $0x1350] sm:$0xff]
    %v6129 = vld [vmem:[#allocation7 + $0x1358] sm:$0xff]
    %v6130 = vld [vmem:[#allocation7 + $0x1360] sm:$0xff]
    %v6131 = vld [vmem:[#allocation7 + $0x1368] sm:$0xff]
    %v6132 = vld [vmem:[#allocation7 + $0x1370] sm:$0xff]
    %v6133 = vld [vmem:[#allocation7 + $0x1378] sm:$0xff]
    %v6134 = vld [vmem:[#allocation7 + $0x1380] sm:$0xff]
    %v6135 = vld [vmem:[#allocation7 + $0x1388] sm:$0xff]
    %v6136 = vld [vmem:[#allocation7 + $0x1390] sm:$0xff]
    %v6137 = vld [vmem:[#allocation7 + $0x1398] sm:$0xff]
    %v6138 = vld [vmem:[#allocation7 + $0x13a0] sm:$0xff]
    %v6139 = vld [vmem:[#allocation7 + $0x13a8] sm:$0xff]
    %v6140 = vld [vmem:[#allocation7 + $0x13b0] sm:$0xff]
    %v6141 = vld [vmem:[#allocation7 + $0x13b8] sm:$0xff]
    %v6142 = vld [vmem:[#allocation7 + $0x13c0] sm:$0xff]
    %v6143 = vld [vmem:[#allocation7 + $0x13c8] sm:$0xff]
    %v6144 = vld [vmem:[#allocation7 + $0x13d0] sm:$0xff]
    %v6145 = vld [vmem:[#allocation7 + $0x13d8] sm:$0xff]
    %v6146 = vld [vmem:[#allocation7 + $0x13e0] sm:$0xff]
    %v6147 = vld [vmem:[#allocation7 + $0x13e8] sm:$0xff]
    %v6148 = vld [vmem:[#allocation7 + $0x13f0] sm:$0xff]
    %v6149 = vld [vmem:[#allocation7 + $0x13f8] sm:$0xff]
    %v6150 = vld [vmem:[#allocation7 + $0x1400] sm:$0xff]
    %v6151 = vld [vmem:[#allocation7 + $0x1408] sm:$0xff]
    %v6152 = vld [vmem:[#allocation7 + $0x1410] sm:$0xff]
    %v6153 = vld [vmem:[#allocation7 + $0x1418] sm:$0xff]
    %v6154 = vld [vmem:[#allocation7 + $0x1420] sm:$0xff]
    %v6155 = vld [vmem:[#allocation7 + $0x1428] sm:$0xff]
    %v6156 = vld [vmem:[#allocation7 + $0x1430] sm:$0xff]
    %v6157 = vld [vmem:[#allocation7 + $0x1438] sm:$0xff]
    %v6158 = vld [vmem:[#allocation7 + $0x1440] sm:$0xff]
    %v6159 = vld [vmem:[#allocation7 + $0x1448] sm:$0xff]
    %v6160 = vld [vmem:[#allocation7 + $0x1450] sm:$0xff]
    %v6161 = vld [vmem:[#allocation7 + $0x1458] sm:$0xff]
    %v6162 = vld [vmem:[#allocation7 + $0x1460] sm:$0xff]
    %v6163 = vld [vmem:[#allocation7 + $0x1468] sm:$0xff]
    %v6164 = vld [vmem:[#allocation7 + $0x1470] sm:$0xff]
    %v6165 = vld [vmem:[#allocation7 + $0x1478] sm:$0xff]
    %v6166 = vld [vmem:[#allocation7 + $0x1480] sm:$0xff]
    %v6167 = vld [vmem:[#allocation7 + $0x1488] sm:$0xff]
    %v6168 = vld [vmem:[#allocation7 + $0x1490] sm:$0xff]
    %v6169 = vld [vmem:[#allocation7 + $0x1498] sm:$0xff]
    %v6170 = vld [vmem:[#allocation7 + $0x14a0] sm:$0xff]
    %v6171 = vld [vmem:[#allocation7 + $0x14a8] sm:$0xff]
    %v6172 = vld [vmem:[#allocation7 + $0x14b0] sm:$0xff]
    %v6173 = vld [vmem:[#allocation7 + $0x14b8] sm:$0xff]
    %v6174 = vld [vmem:[#allocation7 + $0x14c0] sm:$0xff]
    %v6175 = vld [vmem:[#allocation7 + $0x14c8] sm:$0xff]
    %v6176 = vld [vmem:[#allocation7 + $0x14d0] sm:$0xff]
    %v6177 = vld [vmem:[#allocation7 + $0x14d8] sm:$0xff]
    %v6178 = vld [vmem:[#allocation7 + $0x14e0] sm:$0xff]
    %v6179 = vld [vmem:[#allocation7 + $0x14e8] sm:$0xff]
    %v6180 = vld [vmem:[#allocation7 + $0x14f0] sm:$0xff]
    %v6181 = vld [vmem:[#allocation7 + $0x14f8] sm:$0xff]
    %v6182 = vld [vmem:[#allocation7 + $0x1500] sm:$0xff]
    %v6183 = vld [vmem:[#allocation7 + $0x1508] sm:$0xff]
    %v6184 = vld [vmem:[#allocation7 + $0x1510] sm:$0xff]
    %v6185 = vld [vmem:[#allocation7 + $0x1518] sm:$0xff]
    %v6186 = vld [vmem:[#allocation7 + $0x1520] sm:$0xff]
    %v6187 = vld [vmem:[#allocation7 + $0x1528] sm:$0xff]
    %v6188 = vld [vmem:[#allocation7 + $0x1530] sm:$0xff]
    %v6189 = vld [vmem:[#allocation7 + $0x1538] sm:$0xff]
    %v6190 = vld [vmem:[#allocation7 + $0x1540] sm:$0xff]
    %v6191 = vld [vmem:[#allocation7 + $0x1548] sm:$0xff]
    %v6192 = vld [vmem:[#allocation7 + $0x1550] sm:$0xff]
    %v6193 = vld [vmem:[#allocation7 + $0x1558] sm:$0xff]
    %v6194 = vld [vmem:[#allocation7 + $0x1560] sm:$0xff]
    %v6195 = vld [vmem:[#allocation7 + $0x1568] sm:$0xff]
    %v6196 = vld [vmem:[#allocation7 + $0x1570] sm:$0xff]
    %v6197 = vld [vmem:[#allocation7 + $0x1578] sm:$0xff]
    %v6198 = vld [vmem:[#allocation7 + $0x1580] sm:$0xff]
    %v6199 = vld [vmem:[#allocation7 + $0x1588] sm:$0xff]
    %v6200 = vld [vmem:[#allocation7 + $0x1590] sm:$0xff]
    %v6201 = vld [vmem:[#allocation7 + $0x1598] sm:$0xff]
    %v6202 = vld [vmem:[#allocation7 + $0x15a0] sm:$0xff]
    %v6203 = vld [vmem:[#allocation7 + $0x15a8] sm:$0xff]
    %v6204 = vld [vmem:[#allocation7 + $0x15b0] sm:$0xff]
    %v6205 = vld [vmem:[#allocation7 + $0x15b8] sm:$0xff]
    %v6206 = vld [vmem:[#allocation7 + $0x15c0] sm:$0xff]
    %v6207 = vld [vmem:[#allocation7 + $0x15c8] sm:$0xff]
    %v6208 = vld [vmem:[#allocation7 + $0x15d0] sm:$0xff]
    %v6209 = vld [vmem:[#allocation7 + $0x15d8] sm:$0xff]
    %v6210 = vld [vmem:[#allocation7 + $0x15e0] sm:$0xff]
    %v6211 = vld [vmem:[#allocation7 + $0x15e8] sm:$0xff]
    %v6212 = vld [vmem:[#allocation7 + $0x15f0] sm:$0xff]
    %v6213 = vld [vmem:[#allocation7 + $0x15f8] sm:$0xff]
    %v6214 = vld [vmem:[#allocation7 + $0x1600] sm:$0xff]
    %v6215 = vld [vmem:[#allocation7 + $0x1608] sm:$0xff]
    %v6216 = vld [vmem:[#allocation7 + $0x1610] sm:$0xff]
    %v6217 = vld [vmem:[#allocation7 + $0x1618] sm:$0xff]
    %v6218 = vld [vmem:[#allocation7 + $0x1620] sm:$0xff]
    %v6219 = vld [vmem:[#allocation7 + $0x1628] sm:$0xff]
    %v6220 = vld [vmem:[#allocation7 + $0x1630] sm:$0xff]
    %v6221 = vld [vmem:[#allocation7 + $0x1638] sm:$0xff]
    %v6222 = vld [vmem:[#allocation7 + $0x1640] sm:$0xff]
    %v6223 = vld [vmem:[#allocation7 + $0x1648] sm:$0xff]
    %v6224 = vld [vmem:[#allocation7 + $0x1650] sm:$0xff]
    %v6225 = vld [vmem:[#allocation7 + $0x1658] sm:$0xff]
    %v6226 = vld [vmem:[#allocation7 + $0x1660] sm:$0xff]
    %v6227 = vld [vmem:[#allocation7 + $0x1668] sm:$0xff]
    %v6228 = vld [vmem:[#allocation7 + $0x1670] sm:$0xff]
    %v6229 = vld [vmem:[#allocation7 + $0x1678] sm:$0xff]
    %v6230 = vld [vmem:[#allocation7 + $0x1680] sm:$0xff]
    %v6231 = vld [vmem:[#allocation7 + $0x1688] sm:$0xff]
    %v6232 = vld [vmem:[#allocation7 + $0x1690] sm:$0xff]
    %v6233 = vld [vmem:[#allocation7 + $0x1698] sm:$0xff]
    %v6234 = vld [vmem:[#allocation7 + $0x16a0] sm:$0xff]
    %v6235 = vld [vmem:[#allocation7 + $0x16a8] sm:$0xff]
    %v6236 = vld [vmem:[#allocation7 + $0x16b0] sm:$0xff]
    %v6237 = vld [vmem:[#allocation7 + $0x16b8] sm:$0xff]
    %v6238 = vld [vmem:[#allocation7 + $0x16c0] sm:$0xff]
    %v6239 = vld [vmem:[#allocation7 + $0x16c8] sm:$0xff]
    %v6240 = vld [vmem:[#allocation7 + $0x16d0] sm:$0xff]
    %v6241 = vld [vmem:[#allocation7 + $0x16d8] sm:$0xff]
    %v6242 = vld [vmem:[#allocation7 + $0x16e0] sm:$0xff]
    %v6243 = vld [vmem:[#allocation7 + $0x16e8] sm:$0xff]
    %v6244 = vld [vmem:[#allocation7 + $0x16f0] sm:$0xff]
    %v6245 = vld [vmem:[#allocation7 + $0x16f8] sm:$0xff]
    %v6246 = vld [vmem:[#allocation7 + $0x1700] sm:$0xff]
    %v6247 = vld [vmem:[#allocation7 + $0x1708] sm:$0xff]
    %v6248 = vld [vmem:[#allocation7 + $0x1710] sm:$0xff]
    %v6249 = vld [vmem:[#allocation7 + $0x1718] sm:$0xff]
    %v6250 = vld [vmem:[#allocation7 + $0x1720] sm:$0xff]
    %v6251 = vld [vmem:[#allocation7 + $0x1728] sm:$0xff]
    %v6252 = vld [vmem:[#allocation7 + $0x1730] sm:$0xff]
    %v6253 = vld [vmem:[#allocation7 + $0x1738] sm:$0xff]
    %v6254 = vld [vmem:[#allocation7 + $0x1740] sm:$0xff]
    %v6255 = vld [vmem:[#allocation7 + $0x1748] sm:$0xff]
    %v6256 = vld [vmem:[#allocation7 + $0x1750] sm:$0xff]
    %v6257 = vld [vmem:[#allocation7 + $0x1758] sm:$0xff]
    %v6258 = vld [vmem:[#allocation7 + $0x1760] sm:$0xff]
    %v6259 = vld [vmem:[#allocation7 + $0x1768] sm:$0xff]
    %v6260 = vld [vmem:[#allocation7 + $0x1770] sm:$0xff]
    %v6261 = vld [vmem:[#allocation7 + $0x1778] sm:$0xff]
    %v6262 = vld [vmem:[#allocation7 + $0x1780] sm:$0xff]
    %v6263 = vld [vmem:[#allocation7 + $0x1788] sm:$0xff]
    %v6264 = vld [vmem:[#allocation7 + $0x1790] sm:$0xff]
    %v6265 = vld [vmem:[#allocation7 + $0x1798] sm:$0xff]
    %v6266 = vld [vmem:[#allocation7 + $0x17a0] sm:$0xff]
    %v6267 = vld [vmem:[#allocation7 + $0x17a8] sm:$0xff]
    %v6268 = vld [vmem:[#allocation7 + $0x17b0] sm:$0xff]
    %v6269 = vld [vmem:[#allocation7 + $0x17b8] sm:$0xff]
    %v6270 = vld [vmem:[#allocation7 + $0x17c0] sm:$0xff]
    %v6271 = vld [vmem:[#allocation7 + $0x17c8] sm:$0xff]
    %v6272 = vld [vmem:[#allocation7 + $0x17d0] sm:$0xff]
    %v6273 = vld [vmem:[#allocation7 + $0x17d8] sm:$0xff]
    %v6274 = vld [vmem:[#allocation7 + $0x17e0] sm:$0xff]
    %v6275 = vld [vmem:[#allocation7 + $0x17e8] sm:$0xff]
    %v6276 = vld [vmem:[#allocation7 + $0x17f0] sm:$0xff]
    %v6277 = vld [vmem:[#allocation7 + $0x17f8] sm:$0xff]
    %v6278 = vld [vmem:[#allocation7 + $0x1800] sm:$0xff]
    %v6279 = vld [vmem:[#allocation7 + $0x1808] sm:$0xff]
    %v6280 = vld [vmem:[#allocation7 + $0x1810] sm:$0xff]
    %v6281 = vld [vmem:[#allocation7 + $0x1818] sm:$0xff]
    %v6282 = vld [vmem:[#allocation7 + $0x1820] sm:$0xff]
    %v6283 = vld [vmem:[#allocation7 + $0x1828] sm:$0xff]
    %v6284 = vld [vmem:[#allocation7 + $0x1830] sm:$0xff]
    %v6285 = vld [vmem:[#allocation7 + $0x1838] sm:$0xff]
    %v6286 = vld [vmem:[#allocation7 + $0x1840] sm:$0xff]
    %v6287 = vld [vmem:[#allocation7 + $0x1848] sm:$0xff]
    %v6288 = vld [vmem:[#allocation7 + $0x1850] sm:$0xff]
    %v6289 = vld [vmem:[#allocation7 + $0x1858] sm:$0xff]
    %v6290 = vld [vmem:[#allocation7 + $0x1860] sm:$0xff]
    %v6291 = vld [vmem:[#allocation7 + $0x1868] sm:$0xff]
    %v6292 = vld [vmem:[#allocation7 + $0x1870] sm:$0xff]
    %v6293 = vld [vmem:[#allocation7 + $0x1878] sm:$0xff]
    %v6294 = vld [vmem:[#allocation7 + $0x1880] sm:$0xff]
    %v6295 = vld [vmem:[#allocation7 + $0x1888] sm:$0xff]
    %v6296 = vld [vmem:[#allocation7 + $0x1890] sm:$0xff]
    %v6297 = vld [vmem:[#allocation7 + $0x1898] sm:$0xff]
    %v6298 = vld [vmem:[#allocation7 + $0x18a0] sm:$0xff]
    %v6299 = vld [vmem:[#allocation7 + $0x18a8] sm:$0xff]
    %v6300 = vld [vmem:[#allocation7 + $0x18b0] sm:$0xff]
    %v6301 = vld [vmem:[#allocation7 + $0x18b8] sm:$0xff]
    %v6302 = vld [vmem:[#allocation7 + $0x18c0] sm:$0xff]
    %v6303 = vld [vmem:[#allocation7 + $0x18c8] sm:$0xff]
    %v6304 = vld [vmem:[#allocation7 + $0x18d0] sm:$0xff]
    %v6305 = vld [vmem:[#allocation7 + $0x18d8] sm:$0xff]
    %v6306 = vld [vmem:[#allocation7 + $0x18e0] sm:$0xff]
    %v6307 = vld [vmem:[#allocation7 + $0x18e8] sm:$0xff]
    %v6308 = vld [vmem:[#allocation7 + $0x18f0] sm:$0xff]
    %v6309 = vld [vmem:[#allocation7 + $0x18f8] sm:$0xff]
    %v6310 = vld [vmem:[#allocation7 + $0x1900] sm:$0xff]
    %v6311 = vld [vmem:[#allocation7 + $0x1908] sm:$0xff]
    %v6312 = vld [vmem:[#allocation7 + $0x1910] sm:$0xff]
    %v6313 = vld [vmem:[#allocation7 + $0x1918] sm:$0xff]
    %v6314 = vld [vmem:[#allocation7 + $0x1920] sm:$0xff]
    %v6315 = vld [vmem:[#allocation7 + $0x1928] sm:$0xff]
    %v6316 = vld [vmem:[#allocation7 + $0x1930] sm:$0xff]
    %v6317 = vld [vmem:[#allocation7 + $0x1938] sm:$0xff]
    %v6318 = vld [vmem:[#allocation7 + $0x1940] sm:$0xff]
    %v6319 = vld [vmem:[#allocation7 + $0x1948] sm:$0xff]
    %v6320 = vld [vmem:[#allocation7 + $0x1950] sm:$0xff]
    %v6321 = vld [vmem:[#allocation7 + $0x1958] sm:$0xff]
    %v6322 = vld [vmem:[#allocation7 + $0x1960] sm:$0xff]
    %v6323 = vld [vmem:[#allocation7 + $0x1968] sm:$0xff]
    %v6324 = vld [vmem:[#allocation7 + $0x1970] sm:$0xff]
    %v6325 = vld [vmem:[#allocation7 + $0x1978] sm:$0xff]
    %v6326 = vld [vmem:[#allocation7 + $0x1980] sm:$0xff]
    %v6327 = vld [vmem:[#allocation7 + $0x1988] sm:$0xff]
    %v6328 = vld [vmem:[#allocation7 + $0x1990] sm:$0xff]
    %v6329 = vld [vmem:[#allocation7 + $0x1998] sm:$0xff]
    %v6330 = vld [vmem:[#allocation7 + $0x19a0] sm:$0xff]
    %v6331 = vld [vmem:[#allocation7 + $0x19a8] sm:$0xff]
    %v6332 = vld [vmem:[#allocation7 + $0x19b0] sm:$0xff]
    %v6333 = vld [vmem:[#allocation7 + $0x19b8] sm:$0xff]
    %v6334 = vld [vmem:[#allocation7 + $0x19c0] sm:$0xff]
    %v6335 = vld [vmem:[#allocation7 + $0x19c8] sm:$0xff]
    %v6336 = vld [vmem:[#allocation7 + $0x19d0] sm:$0xff]
    %v6337 = vld [vmem:[#allocation7 + $0x19d8] sm:$0xff]
    %v6338 = vld [vmem:[#allocation7 + $0x19e0] sm:$0xff]
    %v6339 = vld [vmem:[#allocation7 + $0x19e8] sm:$0xff]
    %v6340 = vld [vmem:[#allocation7 + $0x19f0] sm:$0xff]
    %v6341 = vld [vmem:[#allocation7 + $0x19f8] sm:$0xff]
    %v6342 = vld [vmem:[#allocation7 + $0x1a00] sm:$0xff]
    %v6343 = vld [vmem:[#allocation7 + $0x1a08] sm:$0xff]
    %v6344 = vld [vmem:[#allocation7 + $0x1a10] sm:$0xff]
    %v6345 = vld [vmem:[#allocation7 + $0x1a18] sm:$0xff]
    %v6346 = vld [vmem:[#allocation7 + $0x1a20] sm:$0xff]
    %v6347 = vld [vmem:[#allocation7 + $0x1a28] sm:$0xff]
    %v6348 = vld [vmem:[#allocation7 + $0x1a30] sm:$0xff]
    %v6349 = vld [vmem:[#allocation7 + $0x1a38] sm:$0xff]
    %v6350 = vld [vmem:[#allocation7 + $0x1a40] sm:$0xff]
    %v6351 = vld [vmem:[#allocation7 + $0x1a48] sm:$0xff]
    %v6352 = vld [vmem:[#allocation7 + $0x1a50] sm:$0xff]
    %v6353 = vld [vmem:[#allocation7 + $0x1a58] sm:$0xff]
    %v6354 = vld [vmem:[#allocation7 + $0x1a60] sm:$0xff]
    %v6355 = vld [vmem:[#allocation7 + $0x1a68] sm:$0xff]
    %v6356 = vld [vmem:[#allocation7 + $0x1a70] sm:$0xff]
    %v6357 = vld [vmem:[#allocation7 + $0x1a78] sm:$0xff]
    %v6358 = vld [vmem:[#allocation7 + $0x1a80] sm:$0xff]
    %v6359 = vld [vmem:[#allocation7 + $0x1a88] sm:$0xff]
    %v6360 = vld [vmem:[#allocation7 + $0x1a90] sm:$0xff]
    %v6361 = vld [vmem:[#allocation7 + $0x1a98] sm:$0xff]
    %v6362 = vld [vmem:[#allocation7 + $0x1aa0] sm:$0xff]
    %v6363 = vld [vmem:[#allocation7 + $0x1aa8] sm:$0xff]
    %v6364 = vld [vmem:[#allocation7 + $0x1ab0] sm:$0xff]
    %v6365 = vld [vmem:[#allocation7 + $0x1ab8] sm:$0xff]
    %v6366 = vld [vmem:[#allocation7 + $0x1ac0] sm:$0xff]
    %v6367 = vld [vmem:[#allocation7 + $0x1ac8] sm:$0xff]
    %v6368 = vld [vmem:[#allocation7 + $0x1ad0] sm:$0xff]
    %v6369 = vld [vmem:[#allocation7 + $0x1ad8] sm:$0xff]
    %v6370 = vld [vmem:[#allocation7 + $0x1ae0] sm:$0xff]
    %v6371 = vld [vmem:[#allocation7 + $0x1ae8] sm:$0xff]
    %v6372 = vld [vmem:[#allocation7 + $0x1af0] sm:$0xff]
    %v6373 = vld [vmem:[#allocation7 + $0x1af8] sm:$0xff]
    %v6374 = vld [vmem:[#allocation7 + $0x1b00] sm:$0xff]
    %v6375 = vld [vmem:[#allocation7 + $0x1b08] sm:$0xff]
    %v6376 = vld [vmem:[#allocation7 + $0x1b10] sm:$0xff]
    %v6377 = vld [vmem:[#allocation7 + $0x1b18] sm:$0xff]
    %v6378 = vld [vmem:[#allocation7 + $0x1b20] sm:$0xff]
    %v6379 = vld [vmem:[#allocation7 + $0x1b28] sm:$0xff]
    %v6380 = vld [vmem:[#allocation7 + $0x1b30] sm:$0xff]
    %v6381 = vld [vmem:[#allocation7 + $0x1b38] sm:$0xff]
    %v6382 = vld [vmem:[#allocation7 + $0x1b40] sm:$0xff]
    %v6383 = vld [vmem:[#allocation7 + $0x1b48] sm:$0xff]
    %v6384 = vld [vmem:[#allocation7 + $0x1b50] sm:$0xff]
    %v6385 = vld [vmem:[#allocation7 + $0x1b58] sm:$0xff]
    %v6386 = vld [vmem:[#allocation7 + $0x1b60] sm:$0xff]
    %v6387 = vld [vmem:[#allocation7 + $0x1b68] sm:$0xff]
    %v6388 = vld [vmem:[#allocation7 + $0x1b70] sm:$0xff]
    %v6389 = vld [vmem:[#allocation7 + $0x1b78] sm:$0xff]
    %v6390 = vld [vmem:[#allocation7 + $0x1b80] sm:$0xff]
    %v6391 = vld [vmem:[#allocation7 + $0x1b88] sm:$0xff]
    %v6392 = vld [vmem:[#allocation7 + $0x1b90] sm:$0xff]
    %v6393 = vld [vmem:[#allocation7 + $0x1b98] sm:$0xff]
    %v6394 = vld [vmem:[#allocation7 + $0x1ba0] sm:$0xff]
    %v6395 = vld [vmem:[#allocation7 + $0x1ba8] sm:$0xff]
    %v6396 = vld [vmem:[#allocation7 + $0x1bb0] sm:$0xff]
    %v6397 = vld [vmem:[#allocation7 + $0x1bb8] sm:$0xff]
    %v6398 = vld [vmem:[#allocation7 + $0x1bc0] sm:$0xff]
    %v6399 = vld [vmem:[#allocation7 + $0x1bc8] sm:$0xff]
    %v6400 = vld [vmem:[#allocation7 + $0x1bd0] sm:$0xff]
    %v6401 = vld [vmem:[#allocation7 + $0x1bd8] sm:$0xff]
    %v6402 = vld [vmem:[#allocation7 + $0x1be0] sm:$0xff]
    %v6403 = vld [vmem:[#allocation7 + $0x1be8] sm:$0xff]
    %v6404 = vld [vmem:[#allocation7 + $0x1bf0] sm:$0xff]
    %v6405 = vld [vmem:[#allocation7 + $0x1bf8] sm:$0xff]
    %v6406 = vld [vmem:[#allocation7 + $0x1c00] sm:$0xff]
    %v6407 = vld [vmem:[#allocation7 + $0x1c08] sm:$0xff]
    %v6408 = vld [vmem:[#allocation7 + $0x1c10] sm:$0xff]
    %v6409 = vld [vmem:[#allocation7 + $0x1c18] sm:$0xff]
    %v6410 = vld [vmem:[#allocation7 + $0x1c20] sm:$0xff]
    %v6411 = vld [vmem:[#allocation7 + $0x1c28] sm:$0xff]
    %v6412 = vld [vmem:[#allocation7 + $0x1c30] sm:$0xff]
    %v6413 = vld [vmem:[#allocation7 + $0x1c38] sm:$0xff]
    %v6414 = vld [vmem:[#allocation7 + $0x1c40] sm:$0xff]
    %v6415 = vld [vmem:[#allocation7 + $0x1c48] sm:$0xff]
    %v6416 = vld [vmem:[#allocation7 + $0x1c50] sm:$0xff]
    %v6417 = vld [vmem:[#allocation7 + $0x1c58] sm:$0xff]
    %v6418 = vld [vmem:[#allocation7 + $0x1c60] sm:$0xff]
    %v6419 = vld [vmem:[#allocation7 + $0x1c68] sm:$0xff]
    %v6420 = vld [vmem:[#allocation7 + $0x1c70] sm:$0xff]
    %v6421 = vld [vmem:[#allocation7 + $0x1c78] sm:$0xff]
    %v6422 = vld [vmem:[#allocation7 + $0x1c80] sm:$0xff]
    %v6423 = vld [vmem:[#allocation7 + $0x1c88] sm:$0xff]
    %v6424 = vld [vmem:[#allocation7 + $0x1c90] sm:$0xff]
    %v6425 = vld [vmem:[#allocation7 + $0x1c98] sm:$0xff]
    %v6426 = vld [vmem:[#allocation7 + $0x1ca0] sm:$0xff]
    %v6427 = vld [vmem:[#allocation7 + $0x1ca8] sm:$0xff]
    %v6428 = vld [vmem:[#allocation7 + $0x1cb0] sm:$0xff]
    %v6429 = vld [vmem:[#allocation7 + $0x1cb8] sm:$0xff]
    %v6430 = vld [vmem:[#allocation7 + $0x1cc0] sm:$0xff]
    %v6431 = vld [vmem:[#allocation7 + $0x1cc8] sm:$0xff]
    %v6432 = vld [vmem:[#allocation7 + $0x1cd0] sm:$0xff]
    %v6433 = vld [vmem:[#allocation7 + $0x1cd8] sm:$0xff]
    %v6434 = vld [vmem:[#allocation7 + $0x1ce0] sm:$0xff]
    %v6435 = vld [vmem:[#allocation7 + $0x1ce8] sm:$0xff]
    %v6436 = vld [vmem:[#allocation7 + $0x1cf0] sm:$0xff]
    %v6437 = vld [vmem:[#allocation7 + $0x1cf8] sm:$0xff]
    %v6438 = vld [vmem:[#allocation7 + $0x1d00] sm:$0xff]
    %v6439 = vld [vmem:[#allocation7 + $0x1d08] sm:$0xff]
    %v6440 = vld [vmem:[#allocation7 + $0x1d10] sm:$0xff]
    %v6441 = vld [vmem:[#allocation7 + $0x1d18] sm:$0xff]
    %v6442 = vld [vmem:[#allocation7 + $0x1d20] sm:$0xff]
    %v6443 = vld [vmem:[#allocation7 + $0x1d28] sm:$0xff]
    %v6444 = vld [vmem:[#allocation7 + $0x1d30] sm:$0xff]
    %v6445 = vld [vmem:[#allocation7 + $0x1d38] sm:$0xff]
    %v6446 = vld [vmem:[#allocation7 + $0x1d40] sm:$0xff]
    %v6447 = vld [vmem:[#allocation7 + $0x1d48] sm:$0xff]
    %v6448 = vld [vmem:[#allocation7 + $0x1d50] sm:$0xff]
    %v6449 = vld [vmem:[#allocation7 + $0x1d58] sm:$0xff]
    %v6450 = vld [vmem:[#allocation7 + $0x1d60] sm:$0xff]
    %v6451 = vld [vmem:[#allocation7 + $0x1d68] sm:$0xff]
    %v6452 = vld [vmem:[#allocation7 + $0x1d70] sm:$0xff]
    %v6453 = vld [vmem:[#allocation7 + $0x1d78] sm:$0xff]
    %v6454 = vld [vmem:[#allocation7 + $0x1d80] sm:$0xff]
    %v6455 = vld [vmem:[#allocation7 + $0x1d88] sm:$0xff]
    %v6456 = vld [vmem:[#allocation7 + $0x1d90] sm:$0xff]
    %v6457 = vld [vmem:[#allocation7 + $0x1d98] sm:$0xff]
    %v6458 = vld [vmem:[#allocation7 + $0x1da0] sm:$0xff]
    %v6459 = vld [vmem:[#allocation7 + $0x1da8] sm:$0xff]
    %v6460 = vld [vmem:[#allocation7 + $0x1db0] sm:$0xff]
    %v6461 = vld [vmem:[#allocation7 + $0x1db8] sm:$0xff]
    %v6462 = vld [vmem:[#allocation7 + $0x1dc0] sm:$0xff]
    %v6463 = vld [vmem:[#allocation7 + $0x1dc8] sm:$0xff]
    %v6464 = vld [vmem:[#allocation7 + $0x1dd0] sm:$0xff]
    %v6465 = vld [vmem:[#allocation7 + $0x1dd8] sm:$0xff]
    %v6466 = vld [vmem:[#allocation7 + $0x1de0] sm:$0xff]
    %v6467 = vld [vmem:[#allocation7 + $0x1de8] sm:$0xff]
    %v6468 = vld [vmem:[#allocation7 + $0x1df0] sm:$0xff]
    %v6469 = vld [vmem:[#allocation7 + $0x1df8] sm:$0xff]
    %v6470 = vld [vmem:[#allocation7 + $0x1e00] sm:$0xff]
    %v6471 = vld [vmem:[#allocation7 + $0x1e08] sm:$0xff]
    %v6472 = vld [vmem:[#allocation7 + $0x1e10] sm:$0xff]
    %v6473 = vld [vmem:[#allocation7 + $0x1e18] sm:$0xff]
    %v6474 = vld [vmem:[#allocation7 + $0x1e20] sm:$0xff]
    %v6475 = vld [vmem:[#allocation7 + $0x1e28] sm:$0xff]
    %v6476 = vld [vmem:[#allocation7 + $0x1e30] sm:$0xff]
    %v6477 = vld [vmem:[#allocation7 + $0x1e38] sm:$0xff]
    %v6478 = vld [vmem:[#allocation7 + $0x1e40] sm:$0xff]
    %v6479 = vld [vmem:[#allocation7 + $0x1e48] sm:$0xff]
    %v6480 = vld [vmem:[#allocation7 + $0x1e50] sm:$0xff]
    %v6481 = vld [vmem:[#allocation7 + $0x1e58] sm:$0xff]
    %v6482 = vld [vmem:[#allocation7 + $0x1e60] sm:$0xff]
    %v6483 = vld [vmem:[#allocation7 + $0x1e68] sm:$0xff]
    %v6484 = vld [vmem:[#allocation7 + $0x1e70] sm:$0xff]
    %v6485 = vld [vmem:[#allocation7 + $0x1e78] sm:$0xff]
    %v6486 = vld [vmem:[#allocation7 + $0x1e80] sm:$0xff]
    %v6487 = vld [vmem:[#allocation7 + $0x1e88] sm:$0xff]
    %v6488 = vld [vmem:[#allocation7 + $0x1e90] sm:$0xff]
    %v6489 = vld [vmem:[#allocation7 + $0x1e98] sm:$0xff]
    %v6490 = vld [vmem:[#allocation7 + $0x1ea0] sm:$0xff]
    %v6491 = vld [vmem:[#allocation7 + $0x1ea8] sm:$0xff]
    %v6492 = vld [vmem:[#allocation7 + $0x1eb0] sm:$0xff]
    %v6493 = vld [vmem:[#allocation7 + $0x1eb8] sm:$0xff]
    %v6494 = vld [vmem:[#allocation7 + $0x1ec0] sm:$0xff]
    %v6495 = vld [vmem:[#allocation7 + $0x1ec8] sm:$0xff]
    %v6496 = vld [vmem:[#allocation7 + $0x1ed0] sm:$0xff]
    %v6497 = vld [vmem:[#allocation7 + $0x1ed8] sm:$0xff]
    %v6498 = vld [vmem:[#allocation7 + $0x1ee0] sm:$0xff]
    %v6499 = vld [vmem:[#allocation7 + $0x1ee8] sm:$0xff]
    %v6500 = vld [vmem:[#allocation7 + $0x1ef0] sm:$0xff]
    %v6501 = vld [vmem:[#allocation7 + $0x1ef8] sm:$0xff]
    %v6502 = vld [vmem:[#allocation7 + $0x1f00] sm:$0xff]
    %v6503 = vld [vmem:[#allocation7 + $0x1f08] sm:$0xff]
    %v6504 = vld [vmem:[#allocation7 + $0x1f10] sm:$0xff]
    %v6505 = vld [vmem:[#allocation7 + $0x1f18] sm:$0xff]
    %v6506 = vld [vmem:[#allocation7 + $0x1f20] sm:$0xff]
    %v6507 = vld [vmem:[#allocation7 + $0x1f28] sm:$0xff]
    %v6508 = vld [vmem:[#allocation7 + $0x1f30] sm:$0xff]
    %v6509 = vld [vmem:[#allocation7 + $0x1f38] sm:$0xff]
    %v6510 = vld [vmem:[#allocation7 + $0x1f40] sm:$0xff]
    %v6511 = vld [vmem:[#allocation7 + $0x1f48] sm:$0xff]
    %v6512 = vld [vmem:[#allocation7 + $0x1f50] sm:$0xff]
    %v6513 = vld [vmem:[#allocation7 + $0x1f58] sm:$0xff]
    %v6514 = vld [vmem:[#allocation7 + $0x1f60] sm:$0xff]
    %v6515 = vld [vmem:[#allocation7 + $0x1f68] sm:$0xff]
    %v6516 = vld [vmem:[#allocation7 + $0x1f70] sm:$0xff]
    %v6517 = vld [vmem:[#allocation7 + $0x1f78] sm:$0xff]
    %v6518 = vld [vmem:[#allocation7 + $0x1f80] sm:$0xff]
    %v6519 = vld [vmem:[#allocation7 + $0x1f88] sm:$0xff]
    %v6520 = vld [vmem:[#allocation7 + $0x1f90] sm:$0xff]
    %v6521 = vld [vmem:[#allocation7 + $0x1f98] sm:$0xff]
    %v6522 = vld [vmem:[#allocation7 + $0x1fa0] sm:$0xff]
    %v6523 = vld [vmem:[#allocation7 + $0x1fa8] sm:$0xff]
    %v6524 = vld [vmem:[#allocation7 + $0x1fb0] sm:$0xff]
    %v6525 = vld [vmem:[#allocation7 + $0x1fb8] sm:$0xff]
    %v6526 = vld [vmem:[#allocation7 + $0x1fc0] sm:$0xff]
    %v6527 = vld [vmem:[#allocation7 + $0x1fc8] sm:$0xff]
    %v6528 = vld [vmem:[#allocation7 + $0x1fd0] sm:$0xff]
    %v6529 = vld [vmem:[#allocation7 + $0x1fd8] sm:$0xff]
    %v6530 = vld [vmem:[#allocation7 + $0x1fe0] sm:$0xff]
    %v6531 = vld [vmem:[#allocation7 + $0x1fe8] sm:$0xff]
    %v6532 = vld [vmem:[#allocation7 + $0x1ff0] sm:$0xff]
    %v6533 = vld [vmem:[#allocation7 + $0x1ff8] sm:$0xff]
    %v6534 = vld [vmem:[#allocation7 + $0x2000] sm:$0xff]
    %v6535 = vld [vmem:[#allocation7 + $0x2008] sm:$0xff]
    %v6536 = vld [vmem:[#allocation7 + $0x2010] sm:$0xff]
    %v6537 = vld [vmem:[#allocation7 + $0x2018] sm:$0xff]
    %v6538 = vld [vmem:[#allocation7 + $0x2020] sm:$0xff]
    %v6539 = vld [vmem:[#allocation7 + $0x2028] sm:$0xff]
    %v6540 = vld [vmem:[#allocation7 + $0x2030] sm:$0xff]
    %v6541 = vld [vmem:[#allocation7 + $0x2038] sm:$0xff]
    %v6542 = vld [vmem:[#allocation7 + $0x2040] sm:$0xff]
    %v6543 = vld [vmem:[#allocation7 + $0x2048] sm:$0xff]
    %v6544 = vld [vmem:[#allocation7 + $0x2050] sm:$0xff]
    %v6545 = vld [vmem:[#allocation7 + $0x2058] sm:$0xff]
    %v6546 = vld [vmem:[#allocation7 + $0x2060] sm:$0xff]
    %v6547 = vld [vmem:[#allocation7 + $0x2068] sm:$0xff]
    %v6548 = vld [vmem:[#allocation7 + $0x2070] sm:$0xff]
    %v6549 = vld [vmem:[#allocation7 + $0x2078] sm:$0xff]
    %v6550 = vld [vmem:[#allocation7 + $0x2080] sm:$0xff]
    %v6551 = vld [vmem:[#allocation7 + $0x2088] sm:$0xff]
    %v6552 = vld [vmem:[#allocation7 + $0x2090] sm:$0xff]
    %v6553 = vld [vmem:[#allocation7 + $0x2098] sm:$0xff]
    %v6554 = vld [vmem:[#allocation7 + $0x20a0] sm:$0xff]
    %v6555 = vld [vmem:[#allocation7 + $0x20a8] sm:$0xff]
    %v6556 = vld [vmem:[#allocation7 + $0x20b0] sm:$0xff]
    %v6557 = vld [vmem:[#allocation7 + $0x20b8] sm:$0xff]
    %v6558 = vld [vmem:[#allocation7 + $0x20c0] sm:$0xff]
    %v6559 = vld [vmem:[#allocation7 + $0x20c8] sm:$0xff]
    %v6560 = vld [vmem:[#allocation7 + $0x20d0] sm:$0xff]
    %v6561 = vld [vmem:[#allocation7 + $0x20d8] sm:$0xff]
    %v6562 = vld [vmem:[#allocation7 + $0x20e0] sm:$0xff]
    %v6563 = vld [vmem:[#allocation7 + $0x20e8] sm:$0xff]
    %v6564 = vld [vmem:[#allocation7 + $0x20f0] sm:$0xff]
    %v6565 = vld [vmem:[#allocation7 + $0x20f8] sm:$0xff]
    %v6566 = vld [vmem:[#allocation7 + $0x2100] sm:$0xff]
    %v6567 = vld [vmem:[#allocation7 + $0x2108] sm:$0xff]
    %v6568 = vld [vmem:[#allocation7 + $0x2110] sm:$0xff]
    %v6569 = vld [vmem:[#allocation7 + $0x2118] sm:$0xff]
    %v6570 = vld [vmem:[#allocation7 + $0x2120] sm:$0xff]
    %v6571 = vld [vmem:[#allocation7 + $0x2128] sm:$0xff]
    %v6572 = vld [vmem:[#allocation7 + $0x2130] sm:$0xff]
    %v6573 = vld [vmem:[#allocation7 + $0x2138] sm:$0xff]
    %v6574 = vld [vmem:[#allocation7 + $0x2140] sm:$0xff]
    %v6575 = vld [vmem:[#allocation7 + $0x2148] sm:$0xff]
    %v6576 = vld [vmem:[#allocation7 + $0x2150] sm:$0xff]
    %v6577 = vld [vmem:[#allocation7 + $0x2158] sm:$0xff]
    %v6578 = vld [vmem:[#allocation7 + $0x2160] sm:$0xff]
    %v6579 = vld [vmem:[#allocation7 + $0x2168] sm:$0xff]
    %v6580 = vld [vmem:[#allocation7 + $0x2170] sm:$0xff]
    %v6581 = vld [vmem:[#allocation7 + $0x2178] sm:$0xff]
    %v6582 = vld [vmem:[#allocation7 + $0x2180] sm:$0xff]
    %v6583 = vld [vmem:[#allocation7 + $0x2188] sm:$0xff]
    %v6584 = vld [vmem:[#allocation7 + $0x2190] sm:$0xff]
    %v6585 = vld [vmem:[#allocation7 + $0x2198] sm:$0xff]
    %v6586 = vld [vmem:[#allocation7 + $0x21a0] sm:$0xff]
    %v6587 = vld [vmem:[#allocation7 + $0x21a8] sm:$0xff]
    %v6588 = vld [vmem:[#allocation7 + $0x21b0] sm:$0xff]
    %v6589 = vld [vmem:[#allocation7 + $0x21b8] sm:$0xff]
    %v6590 = vld [vmem:[#allocation7 + $0x21c0] sm:$0xff]
    %v6591 = vld [vmem:[#allocation7 + $0x21c8] sm:$0xff]
    %v6592 = vld [vmem:[#allocation7 + $0x21d0] sm:$0xff]
    %v6593 = vld [vmem:[#allocation7 + $0x21d8] sm:$0xff]
    %v6594 = vld [vmem:[#allocation7 + $0x21e0] sm:$0xff]
    %v6595 = vld [vmem:[#allocation7 + $0x21e8] sm:$0xff]
    %v6596 = vld [vmem:[#allocation7 + $0x21f0] sm:$0xff]
    %v6597 = vld [vmem:[#allocation7 + $0x21f8] sm:$0xff]
    %v6598 = vld [vmem:[#allocation7 + $0x2200] sm:$0xff]
    %v6599 = vld [vmem:[#allocation7 + $0x2208] sm:$0xff]
    %v6600 = vld [vmem:[#allocation7 + $0x2210] sm:$0xff]
    %v6601 = vld [vmem:[#allocation7 + $0x2218] sm:$0xff]
    %v6602 = vld [vmem:[#allocation7 + $0x2220] sm:$0xff]
    %v6603 = vld [vmem:[#allocation7 + $0x2228] sm:$0xff]
    %v6604 = vld [vmem:[#allocation7 + $0x2230] sm:$0xff]
    %v6605 = vld [vmem:[#allocation7 + $0x2238] sm:$0xff]
    %v6606 = vld [vmem:[#allocation7 + $0x2240] sm:$0xff]
    %v6607 = vld [vmem:[#allocation7 + $0x2248] sm:$0xff]
    %v6608 = vld [vmem:[#allocation7 + $0x2250] sm:$0xff]
    %v6609 = vld [vmem:[#allocation7 + $0x2258] sm:$0xff]
    %v6610 = vld [vmem:[#allocation7 + $0x2260] sm:$0xff]
    %v6611 = vld [vmem:[#allocation7 + $0x2268] sm:$0xff]
    %v6612 = vld [vmem:[#allocation7 + $0x2270] sm:$0xff]
    %v6613 = vld [vmem:[#allocation7 + $0x2278] sm:$0xff]
    %v6614 = vld [vmem:[#allocation7 + $0x2280] sm:$0xff]
    %v6615 = vld [vmem:[#allocation7 + $0x2288] sm:$0xff]
    %v6616 = vld [vmem:[#allocation7 + $0x2290] sm:$0xff]
    %v6617 = vld [vmem:[#allocation7 + $0x2298] sm:$0xff]
    %v6618 = vld [vmem:[#allocation7 + $0x22a0] sm:$0xff]
    %v6619 = vld [vmem:[#allocation7 + $0x22a8] sm:$0xff]
    %v6620 = vld [vmem:[#allocation7 + $0x22b0] sm:$0xff]
    %v6621 = vld [vmem:[#allocation7 + $0x22b8] sm:$0xff]
    %v6622 = vld [vmem:[#allocation7 + $0x22c0] sm:$0xff]
    %v6623 = vld [vmem:[#allocation7 + $0x22c8] sm:$0xff]
    %v6624 = vld [vmem:[#allocation7 + $0x22d0] sm:$0xff]
    %v6625 = vld [vmem:[#allocation7 + $0x22d8] sm:$0xff]
    %v6626 = vld [vmem:[#allocation7 + $0x22e0] sm:$0xff]
    %v6627 = vld [vmem:[#allocation7 + $0x22e8] sm:$0xff]
    %v6628 = vld [vmem:[#allocation7 + $0x22f0] sm:$0xff]
    %v6629 = vld [vmem:[#allocation7 + $0x22f8] sm:$0xff]
    %v6630 = vld [vmem:[#allocation7 + $0x2300] sm:$0xff]
    %v6631 = vld [vmem:[#allocation7 + $0x2308] sm:$0xff]
    %v6632 = vld [vmem:[#allocation7 + $0x2310] sm:$0xff]
    %v6633 = vld [vmem:[#allocation7 + $0x2318] sm:$0xff]
    %v6634 = vld [vmem:[#allocation7 + $0x2320] sm:$0xff]
    %v6635 = vld [vmem:[#allocation7 + $0x2328] sm:$0xff]
    %v6636 = vld [vmem:[#allocation7 + $0x2330] sm:$0xff]
    %v6637 = vld [vmem:[#allocation7 + $0x2338] sm:$0xff]
    %v6638 = vld [vmem:[#allocation7 + $0x2340] sm:$0xff]
    %v6639 = vld [vmem:[#allocation7 + $0x2348] sm:$0xff]
    %v6640 = vld [vmem:[#allocation7 + $0x2350] sm:$0xff]
    %v6641 = vld [vmem:[#allocation7 + $0x2358] sm:$0xff]
    %v6642 = vld [vmem:[#allocation7 + $0x2360] sm:$0xff]
    %v6643 = vld [vmem:[#allocation7 + $0x2368] sm:$0xff]
    %v6644 = vld [vmem:[#allocation7 + $0x2370] sm:$0xff]
    %v6645 = vld [vmem:[#allocation7 + $0x2378] sm:$0xff]
    %v6646 = vld [vmem:[#allocation7 + $0x2380] sm:$0xff]
    %v6647 = vld [vmem:[#allocation7 + $0x2388] sm:$0xff]
    %v6648 = vld [vmem:[#allocation7 + $0x2390] sm:$0xff]
    %v6649 = vld [vmem:[#allocation7 + $0x2398] sm:$0xff]
    %v6650 = vld [vmem:[#allocation7 + $0x23a0] sm:$0xff]
    %v6651 = vld [vmem:[#allocation7 + $0x23a8] sm:$0xff]
    %v6652 = vld [vmem:[#allocation7 + $0x23b0] sm:$0xff]
    %v6653 = vld [vmem:[#allocation7 + $0x23b8] sm:$0xff]
    %v6654 = vld [vmem:[#allocation7 + $0x23c0] sm:$0xff]
    %v6655 = vld [vmem:[#allocation7 + $0x23c8] sm:$0xff]
    %v6656 = vld [vmem:[#allocation7 + $0x23d0] sm:$0xff]
    %v6657 = vld [vmem:[#allocation7 + $0x23d8] sm:$0xff]
    %v6658 = vld [vmem:[#allocation7 + $0x23e0] sm:$0xff]
    %v6659 = vld [vmem:[#allocation7 + $0x23e8] sm:$0xff]
    %v6660 = vld [vmem:[#allocation7 + $0x23f0] sm:$0xff]
    %v6661 = vld [vmem:[#allocation7 + $0x23f8] sm:$0xff]
    %v6662 = vld [vmem:[#allocation7 + $0x2400] sm:$0xff]
    %v6663 = vld [vmem:[#allocation7 + $0x2408] sm:$0xff]
    %v6664 = vld [vmem:[#allocation7 + $0x2410] sm:$0xff]
    %v6665 = vld [vmem:[#allocation7 + $0x2418] sm:$0xff]
    %v6666 = vld [vmem:[#allocation7 + $0x2420] sm:$0xff]
    %v6667 = vld [vmem:[#allocation7 + $0x2428] sm:$0xff]
    %v6668 = vld [vmem:[#allocation7 + $0x2430] sm:$0xff]
    %v6669 = vld [vmem:[#allocation7 + $0x2438] sm:$0xff]
    %v6670 = vld [vmem:[#allocation7 + $0x2440] sm:$0xff]
    %v6671 = vld [vmem:[#allocation7 + $0x2448] sm:$0xff]
    %v6672 = vld [vmem:[#allocation7 + $0x2450] sm:$0xff]
    %v6673 = vld [vmem:[#allocation7 + $0x2458] sm:$0xff]
    %v6674 = vld [vmem:[#allocation7 + $0x2460] sm:$0xff]
    %v6675 = vld [vmem:[#allocation7 + $0x2468] sm:$0xff]
    %v6676 = vld [vmem:[#allocation7 + $0x2470] sm:$0xff]
    %v6677 = vld [vmem:[#allocation7 + $0x2478] sm:$0xff]
    %v6678 = vld [vmem:[#allocation7 + $0x2480] sm:$0xff]
    %v6679 = vld [vmem:[#allocation7 + $0x2488] sm:$0xff]
    %v6680 = vld [vmem:[#allocation7 + $0x2490] sm:$0xff]
    %v6681 = vld [vmem:[#allocation7 + $0x2498] sm:$0xff]
    %v6682 = vld [vmem:[#allocation7 + $0x24a0] sm:$0xff]
    %v6683 = vld [vmem:[#allocation7 + $0x24a8] sm:$0xff]
    %v6684 = vld [vmem:[#allocation7 + $0x24b0] sm:$0xff]
    %v6685 = vld [vmem:[#allocation7 + $0x24b8] sm:$0xff]
    %v6686 = vld [vmem:[#allocation7 + $0x24c0] sm:$0xff]
    %v6687 = vld [vmem:[#allocation7 + $0x24c8] sm:$0xff]
    %v6688 = vld [vmem:[#allocation7 + $0x24d0] sm:$0xff]
    %v6689 = vld [vmem:[#allocation7 + $0x24d8] sm:$0xff]
    %v6690 = vld [vmem:[#allocation7 + $0x24e0] sm:$0xff]
    %v6691 = vld [vmem:[#allocation7 + $0x24e8] sm:$0xff]
    %v6692 = vld [vmem:[#allocation7 + $0x24f0] sm:$0xff]
    %v6693 = vld [vmem:[#allocation7 + $0x24f8] sm:$0xff]
    %v6694 = vld [vmem:[#allocation7 + $0x2500] sm:$0xff]
    %v6695 = vld [vmem:[#allocation7 + $0x2508] sm:$0xff]
    %v6696 = vld [vmem:[#allocation7 + $0x2510] sm:$0xff]
    %v6697 = vld [vmem:[#allocation7 + $0x2518] sm:$0xff]
    %v6698 = vld [vmem:[#allocation7 + $0x2520] sm:$0xff]
    %v6699 = vld [vmem:[#allocation7 + $0x2528] sm:$0xff]
    %v6700 = vld [vmem:[#allocation7 + $0x2530] sm:$0xff]
    %v6701 = vld [vmem:[#allocation7 + $0x2538] sm:$0xff]
    %v6702 = vld [vmem:[#allocation7 + $0x2540] sm:$0xff]
    %v6703 = vld [vmem:[#allocation7 + $0x2548] sm:$0xff]
    %v6704 = vld [vmem:[#allocation7 + $0x2550] sm:$0xff]
    %v6705 = vld [vmem:[#allocation7 + $0x2558] sm:$0xff]
    %v6706 = vld [vmem:[#allocation7 + $0x2560] sm:$0xff]
    %v6707 = vld [vmem:[#allocation7 + $0x2568] sm:$0xff]
    %v6708 = vld [vmem:[#allocation7 + $0x2570] sm:$0xff]
    %v6709 = vld [vmem:[#allocation7 + $0x2578] sm:$0xff]
    %v6710 = vld [vmem:[#allocation7 + $0x2580] sm:$0xff]
    %v6711 = vld [vmem:[#allocation7 + $0x2588] sm:$0xff]
    %v6712 = vld [vmem:[#allocation7 + $0x2590] sm:$0xff]
    %v6713 = vld [vmem:[#allocation7 + $0x2598] sm:$0xff]
    %v6714 = vld [vmem:[#allocation7 + $0x25a0] sm:$0xff]
    %v6715 = vld [vmem:[#allocation7 + $0x25a8] sm:$0xff]
    %v6716 = vld [vmem:[#allocation7 + $0x25b0] sm:$0xff]
    %v6717 = vld [vmem:[#allocation7 + $0x25b8] sm:$0xff]
    %v6718 = vld [vmem:[#allocation7 + $0x25c0] sm:$0xff]
    %v6719 = vld [vmem:[#allocation7 + $0x25c8] sm:$0xff]
    %v6720 = vld [vmem:[#allocation7 + $0x25d0] sm:$0xff]
    %v6721 = vld [vmem:[#allocation7 + $0x25d8] sm:$0xff]
    %v6722 = vld [vmem:[#allocation7 + $0x25e0] sm:$0xff]
    %v6723 = vld [vmem:[#allocation7 + $0x25e8] sm:$0xff]
    %v6724 = vld [vmem:[#allocation7 + $0x25f0] sm:$0xff]
    %v6725 = vld [vmem:[#allocation7 + $0x25f8] sm:$0xff]
    %v6726 = vld [vmem:[#allocation7 + $0x2600] sm:$0xff]
    %v6727 = vld [vmem:[#allocation7 + $0x2608] sm:$0xff]
    %v6728 = vld [vmem:[#allocation7 + $0x2610] sm:$0xff]
    %v6729 = vld [vmem:[#allocation7 + $0x2618] sm:$0xff]
    %v6730 = vld [vmem:[#allocation7 + $0x2620] sm:$0xff]
    %v6731 = vld [vmem:[#allocation7 + $0x2628] sm:$0xff]
    %v6732 = vld [vmem:[#allocation7 + $0x2630] sm:$0xff]
    %v6733 = vld [vmem:[#allocation7 + $0x2638] sm:$0xff]
    %v6734 = vld [vmem:[#allocation7 + $0x2640] sm:$0xff]
    %v6735 = vld [vmem:[#allocation7 + $0x2648] sm:$0xff]
    %v6736 = vld [vmem:[#allocation7 + $0x2650] sm:$0xff]
    %v6737 = vld [vmem:[#allocation7 + $0x2658] sm:$0xff]
    %v6738 = vld [vmem:[#allocation7 + $0x2660] sm:$0xff]
    %v6739 = vld [vmem:[#allocation7 + $0x2668] sm:$0xff]
    %v6740 = vld [vmem:[#allocation7 + $0x2670] sm:$0xff]
    %v6741 = vld [vmem:[#allocation7 + $0x2678] sm:$0xff]
    %v6742 = vld [vmem:[#allocation7 + $0x2680] sm:$0xff]
    %v6743 = vld [vmem:[#allocation7 + $0x2688] sm:$0xff]
    %v6744 = vld [vmem:[#allocation7 + $0x2690] sm:$0xff]
    %v6745 = vld [vmem:[#allocation7 + $0x2698] sm:$0xff]
    %v6746 = vld [vmem:[#allocation7 + $0x26a0] sm:$0xff]
    %v6747 = vld [vmem:[#allocation7 + $0x26a8] sm:$0xff]
    %v6748 = vld [vmem:[#allocation7 + $0x26b0] sm:$0xff]
    %v6749 = vld [vmem:[#allocation7 + $0x26b8] sm:$0xff]
    %v6750 = vld [vmem:[#allocation7 + $0x26c0] sm:$0xff]
    %v6751 = vld [vmem:[#allocation7 + $0x26c8] sm:$0xff]
    %v6752 = vld [vmem:[#allocation7 + $0x26d0] sm:$0xff]
    %v6753 = vld [vmem:[#allocation7 + $0x26d8] sm:$0xff]
    %v6754 = vld [vmem:[#allocation7 + $0x26e0] sm:$0xff]
    %v6755 = vld [vmem:[#allocation7 + $0x26e8] sm:$0xff]
    %v6756 = vld [vmem:[#allocation7 + $0x26f0] sm:$0xff]
    %v6757 = vld [vmem:[#allocation7 + $0x26f8] sm:$0xff]
    %v6758 = vld [vmem:[#allocation7 + $0x2700] sm:$0xff]
    %v6759 = vld [vmem:[#allocation7 + $0x2708] sm:$0xff]
    %v6760 = vld [vmem:[#allocation7 + $0x2710] sm:$0xff]
    %v6761 = vld [vmem:[#allocation7 + $0x2718] sm:$0xff]
    %v6762 = vld [vmem:[#allocation7 + $0x2720] sm:$0xff]
    %v6763 = vld [vmem:[#allocation7 + $0x2728] sm:$0xff]
    %v6764 = vld [vmem:[#allocation7 + $0x2730] sm:$0xff]
    %v6765 = vld [vmem:[#allocation7 + $0x2738] sm:$0xff]
    %v6766 = vld [vmem:[#allocation7 + $0x2740] sm:$0xff]
    %v6767 = vld [vmem:[#allocation7 + $0x2748] sm:$0xff]
    %v6768 = vld [vmem:[#allocation7 + $0x2750] sm:$0xff]
    %v6769 = vld [vmem:[#allocation7 + $0x2758] sm:$0xff]
    %v6770 = vld [vmem:[#allocation7 + $0x2760] sm:$0xff]
    %v6771 = vld [vmem:[#allocation7 + $0x2768] sm:$0xff]
    %v6772 = vld [vmem:[#allocation7 + $0x2770] sm:$0xff]
    %v6773 = vld [vmem:[#allocation7 + $0x2778] sm:$0xff]
    %v6774 = vld [vmem:[#allocation7 + $0x2780] sm:$0xff]
    %v6775 = vld [vmem:[#allocation7 + $0x2788] sm:$0xff]
    %v6776 = vld [vmem:[#allocation7 + $0x2790] sm:$0xff]
    %v6777 = vld [vmem:[#allocation7 + $0x2798] sm:$0xff]
    %v6778 = vld [vmem:[#allocation7 + $0x27a0] sm:$0xff]
    %v6779 = vld [vmem:[#allocation7 + $0x27a8] sm:$0xff]
    %v6780 = vld [vmem:[#allocation7 + $0x27b0] sm:$0xff]
    %v6781 = vld [vmem:[#allocation7 + $0x27b8] sm:$0xff]
    %v6782 = vld [vmem:[#allocation7 + $0x27c0] sm:$0xff]
    %v6783 = vld [vmem:[#allocation7 + $0x27c8] sm:$0xff]
    %v6784 = vld [vmem:[#allocation7 + $0x27d0] sm:$0xff]
    %v6785 = vld [vmem:[#allocation7 + $0x27d8] sm:$0xff]
    %v6786 = vld [vmem:[#allocation7 + $0x27e0] sm:$0xff]
    %v6787 = vld [vmem:[#allocation7 + $0x27e8] sm:$0xff]
    %v6788 = vld [vmem:[#allocation7 + $0x27f0] sm:$0xff]
    %v6789 = vld [vmem:[#allocation7 + $0x27f8] sm:$0xff]
    %v6790 = vld [vmem:[#allocation7 + $0x2800] sm:$0xff]
    %v6791 = vld [vmem:[#allocation7 + $0x2808] sm:$0xff]
    %v6792 = vld [vmem:[#allocation7 + $0x2810] sm:$0xff]
    %v6793 = vld [vmem:[#allocation7 + $0x2818] sm:$0xff]
    %v6794 = vld [vmem:[#allocation7 + $0x2820] sm:$0xff]
    %v6795 = vld [vmem:[#allocation7 + $0x2828] sm:$0xff]
    %v6796 = vld [vmem:[#allocation7 + $0x2830] sm:$0xff]
    %v6797 = vld [vmem:[#allocation7 + $0x2838] sm:$0xff]
    %v6798 = vld [vmem:[#allocation7 + $0x2840] sm:$0xff]
    %v6799 = vld [vmem:[#allocation7 + $0x2848] sm:$0xff]
    %v6800 = vld [vmem:[#allocation7 + $0x2850] sm:$0xff]
    %v6801 = vld [vmem:[#allocation7 + $0x2858] sm:$0xff]
    %v6802 = vld [vmem:[#allocation7 + $0x2860] sm:$0xff]
    %v6803 = vld [vmem:[#allocation7 + $0x2868] sm:$0xff]
    %v6804 = vld [vmem:[#allocation7 + $0x2870] sm:$0xff]
    %v6805 = vld [vmem:[#allocation7 + $0x2878] sm:$0xff]
    %v6806 = vld [vmem:[#allocation7 + $0x2880] sm:$0xff]
    %v6807 = vld [vmem:[#allocation7 + $0x2888] sm:$0xff]
    %v6808 = vld [vmem:[#allocation7 + $0x2890] sm:$0xff]
    %v6809 = vld [vmem:[#allocation7 + $0x2898] sm:$0xff]
    %v6810 = vld [vmem:[#allocation7 + $0x28a0] sm:$0xff]
    %v6811 = vld [vmem:[#allocation7 + $0x28a8] sm:$0xff]
    %v6812 = vld [vmem:[#allocation7 + $0x28b0] sm:$0xff]
    %v6813 = vld [vmem:[#allocation7 + $0x28b8] sm:$0xff]
    %v6814 = vld [vmem:[#allocation7 + $0x28c0] sm:$0xff]
    %v6815 = vld [vmem:[#allocation7 + $0x28c8] sm:$0xff]
    %v6816 = vld [vmem:[#allocation7 + $0x28d0] sm:$0xff]
    %v6817 = vld [vmem:[#allocation7 + $0x28d8] sm:$0xff]
    %v6818 = vld [vmem:[#allocation7 + $0x28e0] sm:$0xff]
    %v6819 = vld [vmem:[#allocation7 + $0x28e8] sm:$0xff]
    %v6820 = vld [vmem:[#allocation7 + $0x28f0] sm:$0xff]
    %v6821 = vld [vmem:[#allocation7 + $0x28f8] sm:$0xff]
    %v6822 = vld [vmem:[#allocation7 + $0x2900] sm:$0xff]
    %v6823 = vld [vmem:[#allocation7 + $0x2908] sm:$0xff]
    %v6824 = vld [vmem:[#allocation7 + $0x2910] sm:$0xff]
    %v6825 = vld [vmem:[#allocation7 + $0x2918] sm:$0xff]
    %v6826 = vld [vmem:[#allocation7 + $0x2920] sm:$0xff]
    %v6827 = vld [vmem:[#allocation7 + $0x2928] sm:$0xff]
    %v6828 = vld [vmem:[#allocation7 + $0x2930] sm:$0xff]
    %v6829 = vld [vmem:[#allocation7 + $0x2938] sm:$0xff]
    %v6830 = vld [vmem:[#allocation7 + $0x2940] sm:$0xff]
    %v6831 = vld [vmem:[#allocation7 + $0x2948] sm:$0xff]
    %v6832 = vld [vmem:[#allocation7 + $0x2950] sm:$0xff]
    %v6833 = vld [vmem:[#allocation7 + $0x2958] sm:$0xff]
    %v6834 = vld [vmem:[#allocation7 + $0x2960] sm:$0xff]
    %v6835 = vld [vmem:[#allocation7 + $0x2968] sm:$0xff]
    %v6836 = vld [vmem:[#allocation7 + $0x2970] sm:$0xff]
    %v6837 = vld [vmem:[#allocation7 + $0x2978] sm:$0xff]
    %v6838 = vld [vmem:[#allocation7 + $0x2980] sm:$0xff]
    %v6839 = vld [vmem:[#allocation7 + $0x2988] sm:$0xff]
    %v6840 = vld [vmem:[#allocation7 + $0x2990] sm:$0xff]
    %v6841 = vld [vmem:[#allocation7 + $0x2998] sm:$0xff]
    %v6842 = vld [vmem:[#allocation7 + $0x29a0] sm:$0xff]
    %v6843 = vld [vmem:[#allocation7 + $0x29a8] sm:$0xff]
    %v6844 = vld [vmem:[#allocation7 + $0x29b0] sm:$0xff]
    %v6845 = vld [vmem:[#allocation7 + $0x29b8] sm:$0xff]
    %v6846 = vld [vmem:[#allocation7 + $0x29c0] sm:$0xff]
    %v6847 = vld [vmem:[#allocation7 + $0x29c8] sm:$0xff]
    %v6848 = vld [vmem:[#allocation7 + $0x29d0] sm:$0xff]
    %v6849 = vld [vmem:[#allocation7 + $0x29d8] sm:$0xff]
    %v6850 = vld [vmem:[#allocation7 + $0x29e0] sm:$0xff]
    %v6851 = vld [vmem:[#allocation7 + $0x29e8] sm:$0xff]
    %v6852 = vld [vmem:[#allocation7 + $0x29f0] sm:$0xff]
    %v6853 = vld [vmem:[#allocation7 + $0x29f8] sm:$0xff]
    %v6854 = vld [vmem:[#allocation7 + $0x2a00] sm:$0xff]
    %v6855 = vld [vmem:[#allocation7 + $0x2a08] sm:$0xff]
    %v6856 = vld [vmem:[#allocation7 + $0x2a10] sm:$0xff]
    %v6857 = vld [vmem:[#allocation7 + $0x2a18] sm:$0xff]
    %v6858 = vld [vmem:[#allocation7 + $0x2a20] sm:$0xff]
    %v6859 = vld [vmem:[#allocation7 + $0x2a28] sm:$0xff]
    %v6860 = vld [vmem:[#allocation7 + $0x2a30] sm:$0xff]
    %v6861 = vld [vmem:[#allocation7 + $0x2a38] sm:$0xff]
    %v6862 = vld [vmem:[#allocation7 + $0x2a40] sm:$0xff]
    %v6863 = vld [vmem:[#allocation7 + $0x2a48] sm:$0xff]
    %v6864 = vld [vmem:[#allocation7 + $0x2a50] sm:$0xff]
    %v6865 = vld [vmem:[#allocation7 + $0x2a58] sm:$0xff]
    %v6866 = vld [vmem:[#allocation7 + $0x2a60] sm:$0xff]
    %v6867 = vld [vmem:[#allocation7 + $0x2a68] sm:$0xff]
    %v6868 = vld [vmem:[#allocation7 + $0x2a70] sm:$0xff]
    %v6869 = vld [vmem:[#allocation7 + $0x2a78] sm:$0xff]
    %v6870 = vld [vmem:[#allocation7 + $0x2a80] sm:$0xff]
    %v6871 = vld [vmem:[#allocation7 + $0x2a88] sm:$0xff]
    %v6872 = vld [vmem:[#allocation7 + $0x2a90] sm:$0xff]
    %v6873 = vld [vmem:[#allocation7 + $0x2a98] sm:$0xff]
    %v6874 = vld [vmem:[#allocation7 + $0x2aa0] sm:$0xff]
    %v6875 = vld [vmem:[#allocation7 + $0x2aa8] sm:$0xff]
    %v6876 = vld [vmem:[#allocation7 + $0x2ab0] sm:$0xff]
    %v6877 = vld [vmem:[#allocation7 + $0x2ab8] sm:$0xff]
    %v6878 = vld [vmem:[#allocation7 + $0x2ac0] sm:$0xff]
    %v6879 = vld [vmem:[#allocation7 + $0x2ac8] sm:$0xff]
    %v6880 = vld [vmem:[#allocation7 + $0x2ad0] sm:$0xff]
    %v6881 = vld [vmem:[#allocation7 + $0x2ad8] sm:$0xff]
    %v6882 = vld [vmem:[#allocation7 + $0x2ae0] sm:$0xff]
    %v6883 = vld [vmem:[#allocation7 + $0x2ae8] sm:$0xff]
    %v6884 = vld [vmem:[#allocation7 + $0x2af0] sm:$0xff]
    %v6885 = vld [vmem:[#allocation7 + $0x2af8] sm:$0xff]
    %v6886 = vld [vmem:[#allocation7 + $0x2b00] sm:$0xff]
    %v6887 = vld [vmem:[#allocation7 + $0x2b08] sm:$0xff]
    %v6888 = vld [vmem:[#allocation7 + $0x2b10] sm:$0xff]
    %v6889 = vld [vmem:[#allocation7 + $0x2b18] sm:$0xff]
    %v6890 = vld [vmem:[#allocation7 + $0x2b20] sm:$0xff]
    %v6891 = vld [vmem:[#allocation7 + $0x2b28] sm:$0xff]
    %v6892 = vld [vmem:[#allocation7 + $0x2b30] sm:$0xff]
    %v6893 = vld [vmem:[#allocation7 + $0x2b38] sm:$0xff]
    %v6894 = vld [vmem:[#allocation7 + $0x2b40] sm:$0xff]
    %v6895 = vld [vmem:[#allocation7 + $0x2b48] sm:$0xff]
    %v6896 = vld [vmem:[#allocation7 + $0x2b50] sm:$0xff]
    %v6897 = vld [vmem:[#allocation7 + $0x2b58] sm:$0xff]
    %v6898 = vld [vmem:[#allocation7 + $0x2b60] sm:$0xff]
    %v6899 = vld [vmem:[#allocation7 + $0x2b68] sm:$0xff]
    %v6900 = vld [vmem:[#allocation7 + $0x2b70] sm:$0xff]
    %v6901 = vld [vmem:[#allocation7 + $0x2b78] sm:$0xff]
    %v6902 = vld [vmem:[#allocation7 + $0x2b80] sm:$0xff]
    %v6903 = vld [vmem:[#allocation7 + $0x2b88] sm:$0xff]
    %v6904 = vld [vmem:[#allocation7 + $0x2b90] sm:$0xff]
    %v6905 = vld [vmem:[#allocation7 + $0x2b98] sm:$0xff]
    %v6906 = vld [vmem:[#allocation7 + $0x2ba0] sm:$0xff]
    %v6907 = vld [vmem:[#allocation7 + $0x2ba8] sm:$0xff]
    %v6908 = vld [vmem:[#allocation7 + $0x2bb0] sm:$0xff]
    %v6909 = vld [vmem:[#allocation7 + $0x2bb8] sm:$0xff]
    %v6910 = vld [vmem:[#allocation7 + $0x2bc0] sm:$0xff]
    %v6911 = vld [vmem:[#allocation7 + $0x2bc8] sm:$0xff]
    %v6912 = vld [vmem:[#allocation7 + $0x2bd0] sm:$0xff]
    %v6913 = vld [vmem:[#allocation7 + $0x2bd8] sm:$0xff]
    %v6914 = vld [vmem:[#allocation7 + $0x2be0] sm:$0xff]
    %v6915 = vld [vmem:[#allocation7 + $0x2be8] sm:$0xff]
    %v6916 = vld [vmem:[#allocation7 + $0x2bf0] sm:$0xff]
    %v6917 = vld [vmem:[#allocation7 + $0x2bf8] sm:$0xff]
    %v6918 = vld [vmem:[#allocation7 + $0x2c00] sm:$0xff]
    %v6919 = vld [vmem:[#allocation7 + $0x2c08] sm:$0xff]
    %v6920 = vld [vmem:[#allocation7 + $0x2c10] sm:$0xff]
    %v6921 = vld [vmem:[#allocation7 + $0x2c18] sm:$0xff]
    %v6922 = vld [vmem:[#allocation7 + $0x2c20] sm:$0xff]
    %v6923 = vld [vmem:[#allocation7 + $0x2c28] sm:$0xff]
    %v6924 = vld [vmem:[#allocation7 + $0x2c30] sm:$0xff]
    %v6925 = vld [vmem:[#allocation7 + $0x2c38] sm:$0xff]
    %v6926 = vld [vmem:[#allocation7 + $0x2c40] sm:$0xff]
    %v6927 = vld [vmem:[#allocation7 + $0x2c48] sm:$0xff]
    %v6928 = vld [vmem:[#allocation7 + $0x2c50] sm:$0xff]
    %v6929 = vld [vmem:[#allocation7 + $0x2c58] sm:$0xff]
    %v6930 = vld [vmem:[#allocation7 + $0x2c60] sm:$0xff]
    %v6931 = vld [vmem:[#allocation7 + $0x2c68] sm:$0xff]
    %v6932 = vld [vmem:[#allocation7 + $0x2c70] sm:$0xff]
    %v6933 = vld [vmem:[#allocation7 + $0x2c78] sm:$0xff]
    %v6934 = vld [vmem:[#allocation7 + $0x2c80] sm:$0xff]
    %v6935 = vld [vmem:[#allocation7 + $0x2c88] sm:$0xff]
    %v6936 = vld [vmem:[#allocation7 + $0x2c90] sm:$0xff]
    %v6937 = vld [vmem:[#allocation7 + $0x2c98] sm:$0xff]
    %v6938 = vld [vmem:[#allocation7 + $0x2ca0] sm:$0xff]
    %v6939 = vld [vmem:[#allocation7 + $0x2ca8] sm:$0xff]
    %v6940 = vld [vmem:[#allocation7 + $0x2cb0] sm:$0xff]
    %v6941 = vld [vmem:[#allocation7 + $0x2cb8] sm:$0xff]
    %v6942 = vld [vmem:[#allocation7 + $0x2cc0] sm:$0xff]
    %v6943 = vld [vmem:[#allocation7 + $0x2cc8] sm:$0xff]
    %v6944 = vld [vmem:[#allocation7 + $0x2cd0] sm:$0xff]
    %v6945 = vld [vmem:[#allocation7 + $0x2cd8] sm:$0xff]
    %v6946 = vld [vmem:[#allocation7 + $0x2ce0] sm:$0xff]
    %v6947 = vld [vmem:[#allocation7 + $0x2ce8] sm:$0xff]
    %v6948 = vld [vmem:[#allocation7 + $0x2cf0] sm:$0xff]
    %v6949 = vld [vmem:[#allocation7 + $0x2cf8] sm:$0xff]
    %v6950 = vld [vmem:[#allocation7 + $0x2d00] sm:$0xff]
    %v6951 = vld [vmem:[#allocation7 + $0x2d08] sm:$0xff]
    %v6952 = vld [vmem:[#allocation7 + $0x2d10] sm:$0xff]
    %v6953 = vld [vmem:[#allocation7 + $0x2d18] sm:$0xff]
    %v6954 = vld [vmem:[#allocation7 + $0x2d20] sm:$0xff]
    %v6955 = vld [vmem:[#allocation7 + $0x2d28] sm:$0xff]
    %v6956 = vld [vmem:[#allocation7 + $0x2d30] sm:$0xff]
    %v6957 = vld [vmem:[#allocation7 + $0x2d38] sm:$0xff]
    %v6958 = vld [vmem:[#allocation7 + $0x2d40] sm:$0xff]
    %v6959 = vld [vmem:[#allocation7 + $0x2d48] sm:$0xff]
    %v6960 = vld [vmem:[#allocation7 + $0x2d50] sm:$0xff]
    %v6961 = vld [vmem:[#allocation7 + $0x2d58] sm:$0xff]
    %v6962 = vld [vmem:[#allocation7 + $0x2d60] sm:$0xff]
    %v6963 = vld [vmem:[#allocation7 + $0x2d68] sm:$0xff]
    %v6964 = vld [vmem:[#allocation7 + $0x2d70] sm:$0xff]
    %v6965 = vld [vmem:[#allocation7 + $0x2d78] sm:$0xff]
    %v6966 = vld [vmem:[#allocation7 + $0x2d80] sm:$0xff]
    %v6967 = vld [vmem:[#allocation7 + $0x2d88] sm:$0xff]
    %v6968 = vld [vmem:[#allocation7 + $0x2d90] sm:$0xff]
    %v6969 = vld [vmem:[#allocation7 + $0x2d98] sm:$0xff]
    %v6970 = vld [vmem:[#allocation7 + $0x2da0] sm:$0xff]
    %v6971 = vld [vmem:[#allocation7 + $0x2da8] sm:$0xff]
    %v6972 = vld [vmem:[#allocation7 + $0x2db0] sm:$0xff]
    %v6973 = vld [vmem:[#allocation7 + $0x2db8] sm:$0xff]
    %v6974 = vld [vmem:[#allocation7 + $0x2dc0] sm:$0xff]
    %v6975 = vld [vmem:[#allocation7 + $0x2dc8] sm:$0xff]
    %v6976 = vld [vmem:[#allocation7 + $0x2dd0] sm:$0xff]
    %v6977 = vld [vmem:[#allocation7 + $0x2dd8] sm:$0xff]
    %v6978 = vld [vmem:[#allocation7 + $0x2de0] sm:$0xff]
    %v6979 = vld [vmem:[#allocation7 + $0x2de8] sm:$0xff]
    %v6980 = vld [vmem:[#allocation7 + $0x2df0] sm:$0xff]
    %v6981 = vld [vmem:[#allocation7 + $0x2df8] sm:$0xff]
    %v6982 = vld [vmem:[#allocation7 + $0x2e00] sm:$0xff]
    %v6983 = vld [vmem:[#allocation7 + $0x2e08] sm:$0xff]
    %v6984 = vld [vmem:[#allocation7 + $0x2e10] sm:$0xff]
    %v6985 = vld [vmem:[#allocation7 + $0x2e18] sm:$0xff]
    %v6986 = vld [vmem:[#allocation7 + $0x2e20] sm:$0xff]
    %v6987 = vld [vmem:[#allocation7 + $0x2e28] sm:$0xff]
    %v6988 = vld [vmem:[#allocation7 + $0x2e30] sm:$0xff]
    %v6989 = vld [vmem:[#allocation7 + $0x2e38] sm:$0xff]
    %v6990 = vld [vmem:[#allocation7 + $0x2e40] sm:$0xff]
    %v6991 = vld [vmem:[#allocation7 + $0x2e48] sm:$0xff]
    %v6992 = vld [vmem:[#allocation7 + $0x2e50] sm:$0xff]
    %v6993 = vld [vmem:[#allocation7 + $0x2e58] sm:$0xff]
    %v6994 = vld [vmem:[#allocation7 + $0x2e60] sm:$0xff]
    %v6995 = vld [vmem:[#allocation7 + $0x2e68] sm:$0xff]
    %v6996 = vld [vmem:[#allocation7 + $0x2e70] sm:$0xff]
    %v6997 = vld [vmem:[#allocation7 + $0x2e78] sm:$0xff]
    %v6998 = vld [vmem:[#allocation7 + $0x2e80] sm:$0xff]
    %v6999 = vld [vmem:[#allocation7 + $0x2e88] sm:$0xff]
    %v7000 = vld [vmem:[#allocation7 + $0x2e90] sm:$0xff]
    %v7001 = vld [vmem:[#allocation7 + $0x2e98] sm:$0xff]
    %v7002 = vld [vmem:[#allocation7 + $0x2ea0] sm:$0xff]
    %v7003 = vld [vmem:[#allocation7 + $0x2ea8] sm:$0xff]
    %v7004 = vld [vmem:[#allocation7 + $0x2eb0] sm:$0xff]
    %v7005 = vld [vmem:[#allocation7 + $0x2eb8] sm:$0xff]
    %v7006 = vld [vmem:[#allocation7 + $0x2ec0] sm:$0xff]
    %v7007 = vld [vmem:[#allocation7 + $0x2ec8] sm:$0xff]
    %v7008 = vld [vmem:[#allocation7 + $0x2ed0] sm:$0xff]
    %v7009 = vld [vmem:[#allocation7 + $0x2ed8] sm:$0xff]
    %v7010 = vld [vmem:[#allocation7 + $0x2ee0] sm:$0xff]
    %v7011 = vld [vmem:[#allocation7 + $0x2ee8] sm:$0xff]
    %v7012 = vld [vmem:[#allocation7 + $0x2ef0] sm:$0xff]
    %v7013 = vld [vmem:[#allocation7 + $0x2ef8] sm:$0xff]
    %v7014 = vld [vmem:[#allocation7 + $0x2f00] sm:$0xff]
    %v7015 = vld [vmem:[#allocation7 + $0x2f08] sm:$0xff]
    %v7016 = vld [vmem:[#allocation7 + $0x2f10] sm:$0xff]
    %v7017 = vld [vmem:[#allocation7 + $0x2f18] sm:$0xff]
    %v7018 = vld [vmem:[#allocation7 + $0x2f20] sm:$0xff]
    %v7019 = vld [vmem:[#allocation7 + $0x2f28] sm:$0xff]
    %v7020 = vld [vmem:[#allocation7 + $0x2f30] sm:$0xff]
    %v7021 = vld [vmem:[#allocation7 + $0x2f38] sm:$0xff]
    %v7022 = vld [vmem:[#allocation7 + $0x2f40] sm:$0xff]
    %v7023 = vld [vmem:[#allocation7 + $0x2f48] sm:$0xff]
    %v7024 = vld [vmem:[#allocation7 + $0x2f50] sm:$0xff]
    %v7025 = vld [vmem:[#allocation7 + $0x2f58] sm:$0xff]
    %v7026 = vld [vmem:[#allocation7 + $0x2f60] sm:$0xff]
    %v7027 = vld [vmem:[#allocation7 + $0x2f68] sm:$0xff]
    %v7028 = vld [vmem:[#allocation7 + $0x2f70] sm:$0xff]
    %v7029 = vld [vmem:[#allocation7 + $0x2f78] sm:$0xff]
    %v7030 = vld [vmem:[#allocation7 + $0x2f80] sm:$0xff]
    %v7031 = vld [vmem:[#allocation7 + $0x2f88] sm:$0xff]
    %v7032 = vld [vmem:[#allocation7 + $0x2f90] sm:$0xff]
    %v7033 = vld [vmem:[#allocation7 + $0x2f98] sm:$0xff]
    %v7034 = vld [vmem:[#allocation7 + $0x2fa0] sm:$0xff]
    %v7035 = vld [vmem:[#allocation7 + $0x2fa8] sm:$0xff]
    %v7036 = vld [vmem:[#allocation7 + $0x2fb0] sm:$0xff]
    %v7037 = vld [vmem:[#allocation7 + $0x2fb8] sm:$0xff]
    %v7038 = vld [vmem:[#allocation7 + $0x2fc0] sm:$0xff]
    %v7039 = vld [vmem:[#allocation7 + $0x2fc8] sm:$0xff]
    %v7040 = vld [vmem:[#allocation7 + $0x2fd0] sm:$0xff]
    %v7041 = vld [vmem:[#allocation7 + $0x2fd8] sm:$0xff]
    %v7042 = vld [vmem:[#allocation7 + $0x2fe0] sm:$0xff]
    %v7043 = vld [vmem:[#allocation7 + $0x2fe8] sm:$0xff]
    %v7044 = vld [vmem:[#allocation7 + $0x2ff0] sm:$0xff]
    %v7045 = vld [vmem:[#allocation7 + $0x2ff8] sm:$0xff]
    %v7046 = vld [vmem:[#allocation16] sm:$0xff]
    %v7047 = vld [vmem:[#allocation16 + $0x8] sm:$0xff]
    %v7048 = vld [vmem:[#allocation16 + $0x10] sm:$0xff]
    %v7052 = vlaneseq
    %v7053 = vshrl.u32 %v7052, 7
    %v7054 = vsub.s32 0, %v7053
    %v7055 = vrot.slane %v7046, %v7054
    %v7056 = vlaneseq
    %v7057 = vshrl.u32 %v7056, 7
    %v7058 = vsub.s32 1, %v7057
    %v7059 = vrot.slane %v7046, %v7058
    %v7060 = vlaneseq
    %v7061 = vshrl.u32 %v7060, 7
    %v7062 = vsub.s32 2, %v7061
    %v7063 = vrot.slane %v7046, %v7062
    %v7064 = vlaneseq
    %v7065 = vshrl.u32 %v7064, 7
    %v7066 = vsub.s32 3, %v7065
    %v7067 = vrot.slane %v7046, %v7066
    %v7068 = vlaneseq
    %v7069 = vshrl.u32 %v7068, 7
    %v7070 = vsub.s32 4, %v7069
    %v7071 = vrot.slane %v7046, %v7070
    %v7072 = vlaneseq
    %v7073 = vshrl.u32 %v7072, 7
    %v7074 = vsub.s32 5, %v7073
    %v7075 = vrot.slane %v7046, %v7074
    %v7076 = vlaneseq
    %v7077 = vshrl.u32 %v7076, 7
    %v7078 = vsub.s32 6, %v7077
    %v7079 = vrot.slane %v7046, %v7078
    %v7080 = vlaneseq
    %v7081 = vshrl.u32 %v7080, 7
    %v7082 = vsub.s32 7, %v7081
    %v7083 = vrot.slane %v7046, %v7082
    %v7084 = vlaneseq
    %v7085 = vshrl.u32 %v7084, 7
    %v7086 = vsub.s32 0, %v7085
    %v7087 = vrot.slane %v7047, %v7086
    %v7088 = vlaneseq
    %v7089 = vshrl.u32 %v7088, 7
    %v7090 = vsub.s32 1, %v7089
    %v7091 = vrot.slane %v7047, %v7090
    %v7092 = vlaneseq
    %v7093 = vshrl.u32 %v7092, 7
    %v7094 = vsub.s32 2, %v7093
    %v7095 = vrot.slane %v7047, %v7094
    %v7096 = vlaneseq
    %v7097 = vshrl.u32 %v7096, 7
    %v7098 = vsub.s32 3, %v7097
    %v7099 = vrot.slane %v7047, %v7098
    %v7100 = vlaneseq
    %v7101 = vshrl.u32 %v7100, 7
    %v7102 = vsub.s32 4, %v7101
    %v7103 = vrot.slane %v7047, %v7102
    %v7104 = vlaneseq
    %v7105 = vshrl.u32 %v7104, 7
    %v7106 = vsub.s32 5, %v7105
    %v7107 = vrot.slane %v7047, %v7106
    %v7108 = vlaneseq
    %v7109 = vshrl.u32 %v7108, 7
    %v7110 = vsub.s32 6, %v7109
    %v7111 = vrot.slane %v7047, %v7110
    %v7112 = vlaneseq
    %v7113 = vshrl.u32 %v7112, 7
    %v7114 = vsub.s32 7, %v7113
    %v7115 = vrot.slane %v7047, %v7114
    %v7116 = vlaneseq
    %v7117 = vshrl.u32 %v7116, 7
    %v7118 = vsub.s32 0, %v7117
    %v7119 = vrot.slane %v7048, %v7118
    %v7120 = vlaneseq
    %v7121 = vshrl.u32 %v7120, 7
    %v7122 = vsub.s32 1, %v7121
    %v7123 = vrot.slane %v7048, %v7122
    %v7124 = vlaneseq
    %v7125 = vshrl.u32 %v7124, 7
    %v7126 = vsub.s32 2, %v7125
    %v7127 = vrot.slane %v7048, %v7126
    %v7128 = vlaneseq
    %v7129 = vshrl.u32 %v7128, 7
    %v7130 = vsub.s32 3, %v7129
    %v7131 = vrot.slane %v7048, %v7130
    %v7132 = vlaneseq
    %v7133 = vshrl.u32 %v7132, 7
    %v7134 = vsub.s32 4, %v7133
    %v7135 = vrot.slane %v7048, %v7134
    %v7136 = vlaneseq
    %v7137 = vshrl.u32 %v7136, 7
    %v7138 = vsub.s32 5, %v7137
    %v7139 = vrot.slane %v7048, %v7138
    %v7140 = vlaneseq
    %v7141 = vshrl.u32 %v7140, 7
    %v7142 = vsub.s32 6, %v7141
    %v7143 = vrot.slane %v7048, %v7142
    %v7144 = vlaneseq
    %v7145 = vshrl.u32 %v7144, 7
    %v7146 = vsub.s32 7, %v7145
    %v7147 = vrot.slane %v7048, %v7146
    %7172 = vmatprep.subr.bf16.mxu0 %v5511
    %7173 = vmatpush1.bf16.msra.mxu0 %v5510
    %7174 = vmatprep.subr.bf16.mxu0 %v5535
    %7175 = vmatpush1.bf16.msra.mxu0 %v5534
    %7176 = vmatprep.subr.bf16.mxu0 %v5559
    %7177 = vmatpush1.bf16.msra.mxu0 %v5558
    %7178 = vmatprep.subr.bf16.mxu0 %v5583
    %7179 = vmatpush1.bf16.msra.mxu0 %v5582
    %7180 = vmatprep.subr.bf16.mxu0 %v5607
    %7181 = vmatpush1.bf16.msra.mxu0 %v5606
    %7182 = vmatprep.subr.bf16.mxu0 %v5631
    %7183 = vmatpush1.bf16.msra.mxu0 %v5630
    %7184 = vmatprep.subr.bf16.mxu0 %v5655
    %7185 = vmatpush1.bf16.msra.mxu0 %v5654
    %7186 = vmatprep.subr.bf16.mxu0 %v5679
    %7187 = vmatpush1.bf16.msra.mxu0 %v5678
    %7188 = vmatprep.subr.bf16.mxu0 %v5703
    %7189 = vmatpush1.bf16.msra.mxu0 %v5702
    %7190 = vmatprep.subr.bf16.mxu0 %v5727
    %7191 = vmatpush1.bf16.msra.mxu0 %v5726
    %7192 = vmatprep.subr.bf16.mxu0 %v5751
    %7193 = vmatpush1.bf16.msra.mxu0 %v5750
    %7194 = vmatprep.subr.bf16.mxu0 %v5775
    %7195 = vmatpush1.bf16.msra.mxu0 %v5774
    %7196 = vmatprep.subr.bf16.mxu0 %v5799
    %7197 = vmatpush1.bf16.msra.mxu0 %v5798
    %7198 = vmatprep.subr.bf16.mxu0 %v5823
    %7199 = vmatpush1.bf16.msra.mxu0 %v5822
    %7200 = vmatprep.subr.bf16.mxu0 %v5847
    %7201 = vmatpush1.bf16.msra.mxu0 %v5846
    %7202 = vmatprep.subr.bf16.mxu0 %v5871
    %7203 = vmatpush1.bf16.msra.mxu0 %v5870
    %7204 = vmatprep.mubr.bf16.mxu0 %v5503
    %7205 = vmatmul.mubr.bf16.gmra.mrb[0].mxu0 %v5502
    %v7206 = vpop.f32.mrb[0].mxu0
    %v7207 = vadd.f32 %v7055, %v7206
    %v7208 = vpop.f32.mrb[0].mxu0
    %v7209 = vadd.f32 %v7059, %v7208
    %v7210 = vpop.f32.mrb[0].mxu0
    %v7211 = vpop.f32.mrb[0].mxu0
    %7212 = vdwg.mxu0
    %7213 = vmatprep.subr.bf16.mxu0 %v5895
    %7214 = vmatpush1.bf16.msra.mxu0 %v5894
    %7215 = vmatprep.subr.bf16.mxu0 %v5919
    %7216 = vmatpush1.bf16.msra.mxu0 %v5918
    %7217 = vmatprep.subr.bf16.mxu0 %v5943
    %7218 = vmatpush1.bf16.msra.mxu0 %v5942
    %7219 = vmatprep.subr.bf16.mxu0 %v5967
    %7220 = vmatpush1.bf16.msra.mxu0 %v5966
    %7221 = vmatprep.subr.bf16.mxu0 %v5991
    %7222 = vmatpush1.bf16.msra.mxu0 %v5990
    %7223 = vmatprep.subr.bf16.mxu0 %v6015
    %7224 = vmatpush1.bf16.msra.mxu0 %v6014
    %7225 = vmatprep.subr.bf16.mxu0 %v6039
    %7226 = vmatpush1.bf16.msra.mxu0 %v6038
    %7227 = vmatprep.subr.bf16.mxu0 %v6063
    %7228 = vmatpush1.bf16.msra.mxu0 %v6062
    %7229 = vmatprep.subr.bf16.mxu0 %v6087
    %7230 = vmatpush1.bf16.msra.mxu0 %v6086
    %7231 = vmatprep.subr.bf16.mxu0 %v6111
    %7232 = vmatpush1.bf16.msra.mxu0 %v6110
    %7233 = vmatprep.subr.bf16.mxu0 %v6135
    %7234 = vmatpush1.bf16.msra.mxu0 %v6134
    %7235 = vmatprep.subr.bf16.mxu0 %v6159
    %7236 = vmatpush1.bf16.msra.mxu0 %v6158
    %7237 = vmatprep.subr.bf16.mxu0 %v6183
    %7238 = vmatpush1.bf16.msra.mxu0 %v6182
    %7239 = vmatprep.subr.bf16.mxu0 %v6207
    %7240 = vmatpush1.bf16.msra.mxu0 %v6206
    %7241 = vmatprep.subr.bf16.mxu0 %v6231
    %7242 = vmatpush1.bf16.msra.mxu0 %v6230
    %7243 = vmatprep.subr.bf16.mxu0 %v6255
    %7244 = vmatpush1.bf16.msra.mxu0 %v6254
    %7245 = vmatprep.mubr.bf16.mxu0 %v5505
    %7246 = vmatmul.mubr.bf16.gmra.mrb[0].mxu0 %v5504
    %v7247 = vpop.f32.mrb[0].mxu0
    %v7248 = vadd.f32 %v7207, %v7247
    %v7249 = vpop.f32.mrb[0].mxu0
    %v7250 = vadd.f32 %v7209, %v7249
    %v7251 = vpop.f32.mrb[0].mxu0
    %v7252 = vpop.f32.mrb[0].mxu0
    %7253 = vdwg.mxu0
    %7254 = vmatprep.subr.bf16.mxu0 %v6279
    %7255 = vmatpush1.bf16.msra.mxu0 %v6278
    %7256 = vmatprep.subr.bf16.mxu0 %v6303
    %7257 = vmatpush1.bf16.msra.mxu0 %v6302
    %7258 = vmatprep.subr.bf16.mxu0 %v6327
    %7259 = vmatpush1.bf16.msra.mxu0 %v6326
    %7260 = vmatprep.subr.bf16.mxu0 %v6351
    %7261 = vmatpush1.bf16.msra.mxu0 %v6350
    %7262 = vmatprep.subr.bf16.mxu0 %v6375
    %7263 = vmatpush1.bf16.msra.mxu0 %v6374
    %7264 = vmatprep.subr.bf16.mxu0 %v6399
    %7265 = vmatpush1.bf16.msra.mxu0 %v6398
    %7266 = vmatprep.subr.bf16.mxu0 %v6423
    %7267 = vmatpush1.bf16.msra.mxu0 %v6422
    %7268 = vmatprep.subr.bf16.mxu0 %v6447
    %7269 = vmatpush1.bf16.msra.mxu0 %v6446
    %7270 = vmatprep.subr.bf16.mxu0 %v6471
    %7271 = vmatpush1.bf16.msra.mxu0 %v6470
    %7272 = vmatprep.subr.bf16.mxu0 %v6495
    %7273 = vmatpush1.bf16.msra.mxu0 %v6494
    %7274 = vmatprep.subr.bf16.mxu0 %v6519
    %7275 = vmatpush1.bf16.msra.mxu0 %v6518
    %7276 = vmatprep.subr.bf16.mxu0 %v6543
    %7277 = vmatpush1.bf16.msra.mxu0 %v6542
    %7278 = vmatprep.subr.bf16.mxu0 %v6567
    %7279 = vmatpush1.bf16.msra.mxu0 %v6566
    %7280 = vmatprep.subr.bf16.mxu0 %v6591
    %7281 = vmatpush1.bf16.msra.mxu0 %v6590
    %7282 = vmatprep.subr.bf16.mxu0 %v6615
    %7283 = vmatpush1.bf16.msra.mxu0 %v6614
    %7284 = vmatprep.subr.bf16.mxu0 %v6639
    %7285 = vmatpush1.bf16.msra.mxu0 %v6638
    %7286 = vmatprep.mubr.bf16.mxu0 %v5507
    %7287 = vmatmul.mubr.bf16.gmra.mrb[0].mxu0 %v5506
    %v7288 = vpop.f32.mrb[0].mxu0
    %v7289 = vadd.f32 %v7248, %v7288
    %v7290 = vpop.f32.mrb[0].mxu0
    %v7291 = vadd.f32 %v7250, %v7290
    %v7292 = vpop.f32.mrb[0].mxu0
    %v7293 = vpop.f32.mrb[0].mxu0
    %7294 = vdwg.mxu0
    %7295 = vmatprep.subr.bf16.mxu0 %v6663
    %7296 = vmatpush1.bf16.msra.mxu0 %v6662
    %7297 = vmatprep.subr.bf16.mxu0 %v6687
    %7298 = vmatpush1.bf16.msra.mxu0 %v6686
    %7299 = vmatprep.subr.bf16.mxu0 %v6711
    %7300 = vmatpush1.bf16.msra.mxu0 %v6710
    %7301 = vmatprep.subr.bf16.mxu0 %v6735
    %7302 = vmatpush1.bf16.msra.mxu0 %v6734
    %7303 = vmatprep.subr.bf16.mxu0 %v6759
    %7304 = vmatpush1.bf16.msra.mxu0 %v6758
    %7305 = vmatprep.subr.bf16.mxu0 %v6783
    %7306 = vmatpush1.bf16.msra.mxu0 %v6782
    %7307 = vmatprep.subr.bf16.mxu0 %v6807
    %7308 = vmatpush1.bf16.msra.mxu0 %v6806
    %7309 = vmatprep.subr.bf16.mxu0 %v6831
    %7310 = vmatpush1.bf16.msra.mxu0 %v6830
    %7311 = vmatprep.subr.bf16.mxu0 %v6855
    %7312 = vmatpush1.bf16.msra.mxu0 %v6854
    %7313 = vmatprep.subr.bf16.mxu0 %v6879
    %7314 = vmatpush1.bf16.msra.mxu0 %v6878
    %7315 = vmatprep.subr.bf16.mxu0 %v6903
    %7316 = vmatpush1.bf16.msra.mxu0 %v6902
    %7317 = vmatprep.subr.bf16.mxu0 %v6927
    %7318 = vmatpush1.bf16.msra.mxu0 %v6926
    %7319 = vmatprep.subr.bf16.mxu0 %v6951
    %7320 = vmatpush1.bf16.msra.mxu0 %v6950
    %7321 = vmatprep.subr.bf16.mxu0 %v6975
    %7322 = vmatpush1.bf16.msra.mxu0 %v6974
    %7323 = vmatprep.subr.bf16.mxu0 %v6999
    %7324 = vmatpush1.bf16.msra.mxu0 %v6998
    %7325 = vmatprep.subr.bf16.mxu0 %v7023
    %7326 = vmatpush1.bf16.msra.mxu0 %v7022
    %7327 = vmatprep.mubr.bf16.mxu0 %v5509
    %7328 = vmatmul.mubr.bf16.gmra.mrb[0].mxu0 %v5508
    %v7329 = vpop.f32.mrb[0].mxu0
    %v7330 = vadd.f32 %v7289, %v7329
    %v7331 = vpop.f32.mrb[0].mxu0
    %v7332 = vadd.f32 %v7291, %v7331
    %v7333 = vpop.f32.mrb[0].mxu0
    %v7334 = vpop.f32.mrb[0].mxu0
    %7335 = vdwg.mxu0
    %7336 = vmatprep.subr.bf16.mxu0 %v5513
    %7337 = vmatpush1.bf16.msra.mxu0 %v5512
    %7338 = vmatprep.subr.bf16.mxu0 %v5537
    %7339 = vmatpush1.bf16.msra.mxu0 %v5536
    %7340 = vmatprep.subr.bf16.mxu0 %v5561
    %7341 = vmatpush1.bf16.msra.mxu0 %v5560
    %7342 = vmatprep.subr.bf16.mxu0 %v5585
    %7343 = vmatpush1.bf16.msra.mxu0 %v5584
    %7344 = vmatprep.subr.bf16.mxu0 %v5609
    %7345 = vmatpush1.bf16.msra.mxu0 %v5608
    %7346 = vmatprep.subr.bf16.mxu0 %v5633
    %7347 = vmatpush1.bf16.msra.mxu0 %v5632
    %7348 = vmatprep.subr.bf16.mxu0 %v5657
    %7349 = vmatpush1.bf16.msra.mxu0 %v5656
    %7350 = vmatprep.subr.bf16.mxu0 %v5681
    %7351 = vmatpush1.bf16.msra.mxu0 %v5680
    %7352 = vmatprep.subr.bf16.mxu0 %v5705
    %7353 = vmatpush1.bf16.msra.mxu0 %v5704
    %7354 = vmatprep.subr.bf16.mxu0 %v5729
    %7355 = vmatpush1.bf16.msra.mxu0 %v5728
    %7356 = vmatprep.subr.bf16.mxu0 %v5753
    %7357 = vmatpush1.bf16.msra.mxu0 %v5752
    %7358 = vmatprep.subr.bf16.mxu0 %v5777
    %7359 = vmatpush1.bf16.msra.mxu0 %v5776
    %7360 = vmatprep.subr.bf16.mxu0 %v5801
    %7361 = vmatpush1.bf16.msra.mxu0 %v5800
    %7362 = vmatprep.subr.bf16.mxu0 %v5825
    %7363 = vmatpush1.bf16.msra.mxu0 %v5824
    %7364 = vmatprep.subr.bf16.mxu0 %v5849
    %7365 = vmatpush1.bf16.msra.mxu0 %v5848
    %7366 = vmatprep.subr.bf16.mxu0 %v5873
    %7367 = vmatpush1.bf16.msra.mxu0 %v5872
    %7368 = vmatprep.mubr.bf16.mxu0 %v5503
    %7369 = vmatmul.mubr.bf16.gmra.mrb[0].mxu0 %v5502
    %v7370 = vpop.f32.mrb[0].mxu0
    %v7371 = vadd.f32 %v7063, %v7370
    %v7372 = vpop.f32.mrb[0].mxu0
    %v7373 = vadd.f32 %v7067, %v7372
    %v7374 = vpop.f32.mrb[0].mxu0
    %v7375 = vpop.f32.mrb[0].mxu0
    %7376 = vdwg.mxu0
    %7377 = vmatprep.subr.bf16.mxu0 %v5897
    %7378 = vmatpush1.bf16.msra.mxu0 %v5896
    %7379 = vmatprep.subr.bf16.mxu0 %v5921
    %7380 = vmatpush1.bf16.msra.mxu0 %v5920
    %7381 = vmatprep.subr.bf16.mxu0 %v5945
    %7382 = vmatpush1.bf16.msra.mxu0 %v5944
    %7383 = vmatprep.subr.bf16.mxu0 %v5969
    %7384 = vmatpush1.bf16.msra.mxu0 %v5968
    %7385 = vmatprep.subr.bf16.mxu0 %v5993
    %7386 = vmatpush1.bf16.msra.mxu0 %v5992
    %7387 = vmatprep.subr.bf16.mxu0 %v6017
    %7388 = vmatpush1.bf16.msra.mxu0 %v6016
    %7389 = vmatprep.subr.bf16.mxu0 %v6041
    %7390 = vmatpush1.bf16.msra.mxu0 %v6040
    %7391 = vmatprep.subr.bf16.mxu0 %v6065
    %7392 = vmatpush1.bf16.msra.mxu0 %v6064
    %7393 = vmatprep.subr.bf16.mxu0 %v6089
    %7394 = vmatpush1.bf16.msra.mxu0 %v6088
    %7395 = vmatprep.subr.bf16.mxu0 %v6113
    %7396 = vmatpush1.bf16.msra.mxu0 %v6112
    %7397 = vmatprep.subr.bf16.mxu0 %v6137
    %7398 = vmatpush1.bf16.msra.mxu0 %v6136
    %7399 = vmatprep.subr.bf16.mxu0 %v6161
    %7400 = vmatpush1.bf16.msra.mxu0 %v6160
    %7401 = vmatprep.subr.bf16.mxu0 %v6185
    %7402 = vmatpush1.bf16.msra.mxu0 %v6184
    %7403 = vmatprep.subr.bf16.mxu0 %v6209
    %7404 = vmatpush1.bf16.msra.mxu0 %v6208
    %7405 = vmatprep.subr.bf16.mxu0 %v6233
    %7406 = vmatpush1.bf16.msra.mxu0 %v6232
    %7407 = vmatprep.subr.bf16.mxu0 %v6257
    %7408 = vmatpush1.bf16.msra.mxu0 %v6256
    %7409 = vmatprep.mubr.bf16.mxu0 %v5505
    %7410 = vmatmul.mubr.bf16.gmra.mrb[0].mxu0 %v5504
    %v7411 = vpop.f32.mrb[0].mxu0
    %v7412 = vadd.f32 %v7371, %v7411
    %v7413 = vpop.f32.mrb[0].mxu0
    %v7414 = vadd.f32 %v7373, %v7413
    %v7415 = vpop.f32.mrb[0].mxu0
    %v7416 = vpop.f32.mrb[0].mxu0
    %7417 = vdwg.mxu0
    %7418 = vmatprep.subr.bf16.mxu0 %v6281
    %7419 = vmatpush1.bf16.msra.mxu0 %v6280
    %7420 = vmatprep.subr.bf16.mxu0 %v6305
    %7421 = vmatpush1.bf16.msra.mxu0 %v6304
    %7422 = vmatprep.subr.bf16.mxu0 %v6329
    %7423 = vmatpush1.bf16.msra.mxu0 %v6328
    %7424 = vmatprep.subr.bf16.mxu0 %v6353
    %7425 = vmatpush1.bf16.msra.mxu0 %v6352
    %7426 = vmatprep.subr.bf16.mxu0 %v6377
    %7427 = vmatpush1.bf16.msra.mxu0 %v6376
    %7428 = vmatprep.subr.bf16.mxu0 %v6401
    %7429 = vmatpush1.bf16.msra.mxu0 %v6400
    %7430 = vmatprep.subr.bf16.mxu0 %v6425
    %7431 = vmatpush1.bf16.msra.mxu0 %v6424
    %7432 = vmatprep.subr.bf16.mxu0 %v6449
    %7433 = vmatpush1.bf16.msra.mxu0 %v6448
    %7434 = vmatprep.subr.bf16.mxu0 %v6473
    %7435 = vmatpush1.bf16.msra.mxu0 %v6472
    %7436 = vmatprep.subr.bf16.mxu0 %v6497
    %7437 = vmatpush1.bf16.msra.mxu0 %v6496
    %7438 = vmatprep.subr.bf16.mxu0 %v6521
    %7439 = vmatpush1.bf16.msra.mxu0 %v6520
    %7440 = vmatprep.subr.bf16.mxu0 %v6545
    %7441 = vmatpush1.bf16.msra.mxu0 %v6544
    %7442 = vmatprep.subr.bf16.mxu0 %v6569
    %7443 = vmatpush1.bf16.msra.mxu0 %v6568
    %7444 = vmatprep.subr.bf16.mxu0 %v6593
    %7445 = vmatpush1.bf16.msra.mxu0 %v6592
    %7446 = vmatprep.subr.bf16.mxu0 %v6617
    %7447 = vmatpush1.bf16.msra.mxu0 %v6616
    %7448 = vmatprep.subr.bf16.mxu0 %v6641
    %7449 = vmatpush1.bf16.msra.mxu0 %v6640
    %7450 = vmatprep.mubr.bf16.mxu0 %v5507
    %7451 = vmatmul.mubr.bf16.gmra.mrb[0].mxu0 %v5506
    %v7452 = vpop.f32.mrb[0].mxu0
    %v7453 = vadd.f32 %v7412, %v7452
    %v7454 = vpop.f32.mrb[0].mxu0
    %v7455 = vadd.f32 %v7414, %v7454
    %v7456 = vpop.f32.mrb[0].mxu0
    %v7457 = vpop.f32.mrb[0].mxu0
    %7458 = vdwg.mxu0
    %7459 = vmatprep.subr.bf16.mxu0 %v6665
    %7460 = vmatpush1.bf16.msra.mxu0 %v6664
    %7461 = vmatprep.subr.bf16.mxu0 %v6689
    %7462 = vmatpush1.bf16.msra.mxu0 %v6688
    %7463 = vmatprep.subr.bf16.mxu0 %v6713
    %7464 = vmatpush1.bf16.msra.mxu0 %v6712
    %7465 = vmatprep.subr.bf16.mxu0 %v6737
    %7466 = vmatpush1.bf16.msra.mxu0 %v6736
    %7467 = vmatprep.subr.bf16.mxu0 %v6761
    %7468 = vmatpush1.bf16.msra.mxu0 %v6760
    %7469 = vmatprep.subr.bf16.mxu0 %v6785
    %7470 = vmatpush1.bf16.msra.mxu0 %v6784
    %7471 = vmatprep.subr.bf16.mxu0 %v6809
    %7472 = vmatpush1.bf16.msra.mxu0 %v6808
    %7473 = vmatprep.subr.bf16.mxu0 %v6833
    %7474 = vmatpush1.bf16.msra.mxu0 %v6832
    %7475 = vmatprep.subr.bf16.mxu0 %v6857
    %7476 = vmatpush1.bf16.msra.mxu0 %v6856
    %7477 = vmatprep.subr.bf16.mxu0 %v6881
    %7478 = vmatpush1.bf16.msra.mxu0 %v6880
    %7479 = vmatprep.subr.bf16.mxu0 %v6905
    %7480 = vmatpush1.bf16.msra.mxu0 %v6904
    %7481 = vmatprep.subr.bf16.mxu0 %v6929
    %7482 = vmatpush1.bf16.msra.mxu0 %v6928
    %7483 = vmatprep.subr.bf16.mxu0 %v6953
    %7484 = vmatpush1.bf16.msra.mxu0 %v6952
    %7485 = vmatprep.subr.bf16.mxu0 %v6977
    %7486 = vmatpush1.bf16.msra.mxu0 %v6976
    %7487 = vmatprep.subr.bf16.mxu0 %v7001
    %7488 = vmatpush1.bf16.msra.mxu0 %v7000
    %7489 = vmatprep.subr.bf16.mxu0 %v7025
    %7490 = vmatpush1.bf16.msra.mxu0 %v7024
    %7491 = vmatprep.mubr.bf16.mxu0 %v5509
    %7492 = vmatmul.mubr.bf16.gmra.mrb[0].mxu0 %v5508
    %v7493 = vpop.f32.mrb[0].mxu0
    %v7494 = vadd.f32 %v7453, %v7493
    %v7495 = vpop.f32.mrb[0].mxu0
    %v7496 = vadd.f32 %v7455, %v7495
    %v7497 = vpop.f32.mrb[0].mxu0
    %v7498 = vpop.f32.mrb[0].mxu0
    %7499 = vdwg.mxu0
    %7500 = vmatprep.subr.bf16.mxu0 %v5515
    %7501 = vmatpush1.bf16.msra.mxu0 %v5514
    %7502 = vmatprep.subr.bf16.mxu0 %v5539
    %7503 = vmatpush1.bf16.msra.mxu0 %v5538
    %7504 = vmatprep.subr.bf16.mxu0 %v5563
    %7505 = vmatpush1.bf16.msra.mxu0 %v5562
    %7506 = vmatprep.subr.bf16.mxu0 %v5587
    %7507 = vmatpush1.bf16.msra.mxu0 %v5586
    %7508 = vmatprep.subr.bf16.mxu0 %v5611
    %7509 = vmatpush1.bf16.msra.mxu0 %v5610
    %7510 = vmatprep.subr.bf16.mxu0 %v5635
    %7511 = vmatpush1.bf16.msra.mxu0 %v5634
    %7512 = vmatprep.subr.bf16.mxu0 %v5659
    %7513 = vmatpush1.bf16.msra.mxu0 %v5658
    %7514 = vmatprep.subr.bf16.mxu0 %v5683
    %7515 = vmatpush1.bf16.msra.mxu0 %v5682
    %7516 = vmatprep.subr.bf16.mxu0 %v5707
    %7517 = vmatpush1.bf16.msra.mxu0 %v5706
    %7518 = vmatprep.subr.bf16.mxu0 %v5731
    %7519 = vmatpush1.bf16.msra.mxu0 %v5730
    %7520 = vmatprep.subr.bf16.mxu0 %v5755
    %7521 = vmatpush1.bf16.msra.mxu0 %v5754
    %7522 = vmatprep.subr.bf16.mxu0 %v5779
    %7523 = vmatpush1.bf16.msra.mxu0 %v5778
    %7524 = vmatprep.subr.bf16.mxu0 %v5803
    %7525 = vmatpush1.bf16.msra.mxu0 %v5802
    %7526 = vmatprep.subr.bf16.mxu0 %v5827
    %7527 = vmatpush1.bf16.msra.mxu0 %v5826
    %7528 = vmatprep.subr.bf16.mxu0 %v5851
    %7529 = vmatpush1.bf16.msra.mxu0 %v5850
    %7530 = vmatprep.subr.bf16.mxu0 %v5875
    %7531 = vmatpush1.bf16.msra.mxu0 %v5874
    %7532 = vmatprep.mubr.bf16.mxu0 %v5503
    %7533 = vmatmul.mubr.bf16.gmra.mrb[0].mxu0 %v5502
    %v7534 = vpop.f32.mrb[0].mxu0
    %v7535 = vadd.f32 %v7071, %v7534
    %v7536 = vpop.f32.mrb[0].mxu0
    %v7537 = vadd.f32 %v7075, %v7536
    %v7538 = vpop.f32.mrb[0].mxu0
    %v7539 = vpop.f32.mrb[0].mxu0
    %7540 = vdwg.mxu0
    %7541 = vmatprep.subr.bf16.mxu0 %v5899
    %7542 = vmatpush1.bf16.msra.mxu0 %v5898
    %7543 = vmatprep.subr.bf16.mxu0 %v5923
    %7544 = vmatpush1.bf16.msra.mxu0 %v5922
    %7545 = vmatprep.subr.bf16.mxu0 %v5947
    %7546 = vmatpush1.bf16.msra.mxu0 %v5946
    %7547 = vmatprep.subr.bf16.mxu0 %v5971
    %7548 = vmatpush1.bf16.msra.mxu0 %v5970
    %7549 = vmatprep.subr.bf16.mxu0 %v5995
    %7550 = vmatpush1.bf16.msra.mxu0 %v5994
    %7551 = vmatprep.subr.bf16.mxu0 %v6019
    %7552 = vmatpush1.bf16.msra.mxu0 %v6018
    %7553 = vmatprep.subr.bf16.mxu0 %v6043
    %7554 = vmatpush1.bf16.msra.mxu0 %v6042
    %7555 = vmatprep.subr.bf16.mxu0 %v6067
    %7556 = vmatpush1.bf16.msra.mxu0 %v6066
    %7557 = vmatprep.subr.bf16.mxu0 %v6091
    %7558 = vmatpush1.bf16.msra.mxu0 %v6090
    %7559 = vmatprep.subr.bf16.mxu0 %v6115
    %7560 = vmatpush1.bf16.msra.mxu0 %v6114
    %7561 = vmatprep.subr.bf16.mxu0 %v6139
    %7562 = vmatpush1.bf16.msra.mxu0 %v6138
    %7563 = vmatprep.subr.bf16.mxu0 %v6163
    %7564 = vmatpush1.bf16.msra.mxu0 %v6162
    %7565 = vmatprep.subr.bf16.mxu0 %v6187
    %7566 = vmatpush1.bf16.msra.mxu0 %v6186
    %7567 = vmatprep.subr.bf16.mxu0 %v6211
    %7568 = vmatpush1.bf16.msra.mxu0 %v6210
    %7569 = vmatprep.subr.bf16.mxu0 %v6235
    %7570 = vmatpush1.bf16.msra.mxu0 %v6234
    %7571 = vmatprep.subr.bf16.mxu0 %v6259
    %7572 = vmatpush1.bf16.msra.mxu0 %v6258
    %7573 = vmatprep.mubr.bf16.mxu0 %v5505
    %7574 = vmatmul.mubr.bf16.gmra.mrb[0].mxu0 %v5504
    %v7575 = vpop.f32.mrb[0].mxu0
    %v7576 = vadd.f32 %v7535, %v7575
    %v7577 = vpop.f32.mrb[0].mxu0
    %v7578 = vadd.f32 %v7537, %v7577
    %v7579 = vpop.f32.mrb[0].mxu0
    %v7580 = vpop.f32.mrb[0].mxu0
    %7581 = vdwg.mxu0
    %7582 = vmatprep.subr.bf16.mxu0 %v6283
    %7583 = vmatpush1.bf16.msra.mxu0 %v6282
    %7584 = vmatprep.subr.bf16.mxu0 %v6307
    %7585 = vmatpush1.bf16.msra.mxu0 %v6306
    %7586 = vmatprep.subr.bf16.mxu0 %v6331
    %7587 = vmatpush1.bf16.msra.mxu0 %v6330
    %7588 = vmatprep.subr.bf16.mxu0 %v6355
    %7589 = vmatpush1.bf16.msra.mxu0 %v6354
    %7590 = vmatprep.subr.bf16.mxu0 %v6379
    %7591 = vmatpush1.bf16.msra.mxu0 %v6378
    %7592 = vmatprep.subr.bf16.mxu0 %v6403
    %7593 = vmatpush1.bf16.msra.mxu0 %v6402
    %7594 = vmatprep.subr.bf16.mxu0 %v6427
    %7595 = vmatpush1.bf16.msra.mxu0 %v6426
    %7596 = vmatprep.subr.bf16.mxu0 %v6451
    %7597 = vmatpush1.bf16.msra.mxu0 %v6450
    %7598 = vmatprep.subr.bf16.mxu0 %v6475
    %7599 = vmatpush1.bf16.msra.mxu0 %v6474
    %7600 = vmatprep.subr.bf16.mxu0 %v6499
    %7601 = vmatpush1.bf16.msra.mxu0 %v6498
    %7602 = vmatprep.subr.bf16.mxu0 %v6523
    %7603 = vmatpush1.bf16.msra.mxu0 %v6522
    %7604 = vmatprep.subr.bf16.mxu0 %v6547
    %7605 = vmatpush1.bf16.msra.mxu0 %v6546
    %7606 = vmatprep.subr.bf16.mxu0 %v6571
    %7607 = vmatpush1.bf16.msra.mxu0 %v6570
    %7608 = vmatprep.subr.bf16.mxu0 %v6595
    %7609 = vmatpush1.bf16.msra.mxu0 %v6594
    %7610 = vmatprep.subr.bf16.mxu0 %v6619
    %7611 = vmatpush1.bf16.msra.mxu0 %v6618
    %7612 = vmatprep.subr.bf16.mxu0 %v6643
    %7613 = vmatpush1.bf16.msra.mxu0 %v6642
    %7614 = vmatprep.mubr.bf16.mxu0 %v5507
    %7615 = vmatmul.mubr.bf16.gmra.mrb[0].mxu0 %v5506
    %v7616 = vpop.f32.mrb[0].mxu0
    %v7617 = vadd.f32 %v7576, %v7616
    %v7618 = vpop.f32.mrb[0].mxu0
    %v7619 = vadd.f32 %v7578, %v7618
    %v7620 = vpop.f32.mrb[0].mxu0
    %v7621 = vpop.f32.mrb[0].mxu0
    %7622 = vdwg.mxu0
    %7623 = vmatprep.subr.bf16.mxu0 %v6667
    %7624 = vmatpush1.bf16.msra.mxu0 %v6666
    %7625 = vmatprep.subr.bf16.mxu0 %v6691
    %7626 = vmatpush1.bf16.msra.mxu0 %v6690
    %7627 = vmatprep.subr.bf16.mxu0 %v6715
    %7628 = vmatpush1.bf16.msra.mxu0 %v6714
    %7629 = vmatprep.subr.bf16.mxu0 %v6739
    %7630 = vmatpush1.bf16.msra.mxu0 %v6738
    %7631 = vmatprep.subr.bf16.mxu0 %v6763
    %7632 = vmatpush1.bf16.msra.mxu0 %v6762
    %7633 = vmatprep.subr.bf16.mxu0 %v6787
    %7634 = vmatpush1.bf16.msra.mxu0 %v6786
    %7635 = vmatprep.subr.bf16.mxu0 %v6811
    %7636 = vmatpush1.bf16.msra.mxu0 %v6810
    %7637 = vmatprep.subr.bf16.mxu0 %v6835
    %7638 = vmatpush1.bf16.msra.mxu0 %v6834
    %7639 = vmatprep.subr.bf16.mxu0 %v6859
    %7640 = vmatpush1.bf16.msra.mxu0 %v6858
    %7641 = vmatprep.subr.bf16.mxu0 %v6883
    %7642 = vmatpush1.bf16.msra.mxu0 %v6882
    %7643 = vmatprep.subr.bf16.mxu0 %v6907
    %7644 = vmatpush1.bf16.msra.mxu0 %v6906
    %7645 = vmatprep.subr.bf16.mxu0 %v6931
    %7646 = vmatpush1.bf16.msra.mxu0 %v6930
    %7647 = vmatprep.subr.bf16.mxu0 %v6955
    %7648 = vmatpush1.bf16.msra.mxu0 %v6954
    %7649 = vmatprep.subr.bf16.mxu0 %v6979
    %7650 = vmatpush1.bf16.msra.mxu0 %v6978
    %7651 = vmatprep.subr.bf16.mxu0 %v7003
    %7652 = vmatpush1.bf16.msra.mxu0 %v7002
    %7653 = vmatprep.subr.bf16.mxu0 %v7027
    %7654 = vmatpush1.bf16.msra.mxu0 %v7026
    %7655 = vmatprep.mubr.bf16.mxu0 %v5509
    %7656 = vmatmul.mubr.bf16.gmra.mrb[0].mxu0 %v5508
    %v7657 = vpop.f32.mrb[0].mxu0
    %v7658 = vadd.f32 %v7617, %v7657
    %v7659 = vpop.f32.mrb[0].mxu0
    %v7660 = vadd.f32 %v7619, %v7659
    %v7661 = vpop.f32.mrb[0].mxu0
    %v7662 = vpop.f32.mrb[0].mxu0
    %7663 = vdwg.mxu0
    %7664 = vmatprep.subr.bf16.mxu0 %v5517
    %7665 = vmatpush1.bf16.msra.mxu0 %v5516
    %7666 = vmatprep.subr.bf16.mxu0 %v5541
    %7667 = vmatpush1.bf16.msra.mxu0 %v5540
    %7668 = vmatprep.subr.bf16.mxu0 %v5565
    %7669 = vmatpush1.bf16.msra.mxu0 %v5564
    %7670 = vmatprep.subr.bf16.mxu0 %v5589
    %7671 = vmatpush1.bf16.msra.mxu0 %v5588
    %7672 = vmatprep.subr.bf16.mxu0 %v5613
    %7673 = vmatpush1.bf16.msra.mxu0 %v5612
    %7674 = vmatprep.subr.bf16.mxu0 %v5637
    %7675 = vmatpush1.bf16.msra.mxu0 %v5636
    %7676 = vmatprep.subr.bf16.mxu0 %v5661
    %7677 = vmatpush1.bf16.msra.mxu0 %v5660
    %7678 = vmatprep.subr.bf16.mxu0 %v5685
    %7679 = vmatpush1.bf16.msra.mxu0 %v5684
    %7680 = vmatprep.subr.bf16.mxu0 %v5709
    %7681 = vmatpush1.bf16.msra.mxu0 %v5708
    %7682 = vmatprep.subr.bf16.mxu0 %v5733
    %7683 = vmatpush1.bf16.msra.mxu0 %v5732
    %7684 = vmatprep.subr.bf16.mxu0 %v5757
    %7685 = vmatpush1.bf16.msra.mxu0 %v5756
    %7686 = vmatprep.subr.bf16.mxu0 %v5781
    %7687 = vmatpush1.bf16.msra.mxu0 %v5780
    %7688 = vmatprep.subr.bf16.mxu0 %v5805
    %7689 = vmatpush1.bf16.msra.mxu0 %v5804
    %7690 = vmatprep.subr.bf16.mxu0 %v5829
    %7691 = vmatpush1.bf16.msra.mxu0 %v5828
    %7692 = vmatprep.subr.bf16.mxu0 %v5853
    %7693 = vmatpush1.bf16.msra.mxu0 %v5852
    %7694 = vmatprep.subr.bf16.mxu0 %v5877
    %7695 = vmatpush1.bf16.msra.mxu0 %v5876
    %7696 = vmatprep.mubr.bf16.mxu0 %v5503
    %7697 = vmatmul.mubr.bf16.gmra.mrb[0].mxu0 %v5502
    %v7698 = vpop.f32.mrb[0].mxu0
    %v7699 = vadd.f32 %v7079, %v7698
    %v7700 = vpop.f32.mrb[0].mxu0
    %v7701 = vadd.f32 %v7083, %v7700
    %v7702 = vpop.f32.mrb[0].mxu0
    %v7703 = vpop.f32.mrb[0].mxu0
    %7704 = vdwg.mxu0
    %7705 = vmatprep.subr.bf16.mxu0 %v5901
    %7706 = vmatpush1.bf16.msra.mxu0 %v5900
    %7707 = vmatprep.subr.bf16.mxu0 %v5925
    %7708 = vmatpush1.bf16.msra.mxu0 %v5924
    %7709 = vmatprep.subr.bf16.mxu0 %v5949
    %7710 = vmatpush1.bf16.msra.mxu0 %v5948
    %7711 = vmatprep.subr.bf16.mxu0 %v5973
    %7712 = vmatpush1.bf16.msra.mxu0 %v5972
    %7713 = vmatprep.subr.bf16.mxu0 %v5997
    %7714 = vmatpush1.bf16.msra.mxu0 %v5996
    %7715 = vmatprep.subr.bf16.mxu0 %v6021
    %7716 = vmatpush1.bf16.msra.mxu0 %v6020
    %7717 = vmatprep.subr.bf16.mxu0 %v6045
    %7718 = vmatpush1.bf16.msra.mxu0 %v6044
    %7719 = vmatprep.subr.bf16.mxu0 %v6069
    %7720 = vmatpush1.bf16.msra.mxu0 %v6068
    %7721 = vmatprep.subr.bf16.mxu0 %v6093
    %7722 = vmatpush1.bf16.msra.mxu0 %v6092
    %7723 = vmatprep.subr.bf16.mxu0 %v6117
    %7724 = vmatpush1.bf16.msra.mxu0 %v6116
    %7725 = vmatprep.subr.bf16.mxu0 %v6141
    %7726 = vmatpush1.bf16.msra.mxu0 %v6140
    %7727 = vmatprep.subr.bf16.mxu0 %v6165
    %7728 = vmatpush1.bf16.msra.mxu0 %v6164
    %7729 = vmatprep.subr.bf16.mxu0 %v6189
    %7730 = vmatpush1.bf16.msra.mxu0 %v6188
    %7731 = vmatprep.subr.bf16.mxu0 %v6213
    %7732 = vmatpush1.bf16.msra.mxu0 %v6212
    %7733 = vmatprep.subr.bf16.mxu0 %v6237
    %7734 = vmatpush1.bf16.msra.mxu0 %v6236
    %7735 = vmatprep.subr.bf16.mxu0 %v6261
    %7736 = vmatpush1.bf16.msra.mxu0 %v6260
    %7737 = vmatprep.mubr.bf16.mxu0 %v5505
    %7738 = vmatmul.mubr.bf16.gmra.mrb[0].mxu0 %v5504
    %v7739 = vpop.f32.mrb[0].mxu0
    %v7740 = vadd.f32 %v7699, %v7739
    %v7741 = vpop.f32.mrb[0].mxu0
    %v7742 = vadd.f32 %v7701, %v7741
    %v7743 = vpop.f32.mrb[0].mxu0
    %v7744 = vpop.f32.mrb[0].mxu0
    %7745 = vdwg.mxu0
    %7746 = vmatprep.subr.bf16.mxu0 %v6285
    %7747 = vmatpush1.bf16.msra.mxu0 %v6284
    %7748 = vmatprep.subr.bf16.mxu0 %v6309
    %7749 = vmatpush1.bf16.msra.mxu0 %v6308
    %7750 = vmatprep.subr.bf16.mxu0 %v6333
    %7751 = vmatpush1.bf16.msra.mxu0 %v6332
    %7752 = vmatprep.subr.bf16.mxu0 %v6357
    %7753 = vmatpush1.bf16.msra.mxu0 %v6356
    %7754 = vmatprep.subr.bf16.mxu0 %v6381
    %7755 = vmatpush1.bf16.msra.mxu0 %v6380
    %7756 = vmatprep.subr.bf16.mxu0 %v6405
    %7757 = vmatpush1.bf16.msra.mxu0 %v6404
    %7758 = vmatprep.subr.bf16.mxu0 %v6429
    %7759 = vmatpush1.bf16.msra.mxu0 %v6428
    %7760 = vmatprep.subr.bf16.mxu0 %v6453
    %7761 = vmatpush1.bf16.msra.mxu0 %v6452
    %7762 = vmatprep.subr.bf16.mxu0 %v6477
    %7763 = vmatpush1.bf16.msra.mxu0 %v6476
    %7764 = vmatprep.subr.bf16.mxu0 %v6501
    %7765 = vmatpush1.bf16.msra.mxu0 %v6500
    %7766 = vmatprep.subr.bf16.mxu0 %v6525
    %7767 = vmatpush1.bf16.msra.mxu0 %v6524
    %7768 = vmatprep.subr.bf16.mxu0 %v6549
    %7769 = vmatpush1.bf16.msra.mxu0 %v6548
    %7770 = vmatprep.subr.bf16.mxu0 %v6573
    %7771 = vmatpush1.bf16.msra.mxu0 %v6572
    %7772 = vmatprep.subr.bf16.mxu0 %v6597
    %7773 = vmatpush1.bf16.msra.mxu0 %v6596
    %7774 = vmatprep.subr.bf16.mxu0 %v6621
    %7775 = vmatpush1.bf16.msra.mxu0 %v6620
    %7776 = vmatprep.subr.bf16.mxu0 %v6645
    %7777 = vmatpush1.bf16.msra.mxu0 %v6644
    %7778 = vmatprep.mubr.bf16.mxu0 %v5507
    %7779 = vmatmul.mubr.bf16.gmra.mrb[0].mxu0 %v5506
    %v7780 = vpop.f32.mrb[0].mxu0
    %v7781 = vadd.f32 %v7740, %v7780
    %v7782 = vpop.f32.mrb[0].mxu0
    %v7783 = vadd.f32 %v7742, %v7782
    %v7784 = vpop.f32.mrb[0].mxu0
    %v7785 = vpop.f32.mrb[0].mxu0
    %7786 = vdwg.mxu0
    %7787 = vmatprep.subr.bf16.mxu0 %v6669
    %7788 = vmatpush1.bf16.msra.mxu0 %v6668
    %7789 = vmatprep.subr.bf16.mxu0 %v6693
    %7790 = vmatpush1.bf16.msra.mxu0 %v6692
    %7791 = vmatprep.subr.bf16.mxu0 %v6717
    %7792 = vmatpush1.bf16.msra.mxu0 %v6716
    %7793 = vmatprep.subr.bf16.mxu0 %v6741
    %7794 = vmatpush1.bf16.msra.mxu0 %v6740
    %7795 = vmatprep.subr.bf16.mxu0 %v6765
    %7796 = vmatpush1.bf16.msra.mxu0 %v6764
    %7797 = vmatprep.subr.bf16.mxu0 %v6789
    %7798 = vmatpush1.bf16.msra.mxu0 %v6788
    %7799 = vmatprep.subr.bf16.mxu0 %v6813
    %7800 = vmatpush1.bf16.msra.mxu0 %v6812
    %7801 = vmatprep.subr.bf16.mxu0 %v6837
    %7802 = vmatpush1.bf16.msra.mxu0 %v6836
    %7803 = vmatprep.subr.bf16.mxu0 %v6861
    %7804 = vmatpush1.bf16.msra.mxu0 %v6860
    %7805 = vmatprep.subr.bf16.mxu0 %v6885
    %7806 = vmatpush1.bf16.msra.mxu0 %v6884
    %7807 = vmatprep.subr.bf16.mxu0 %v6909
    %7808 = vmatpush1.bf16.msra.mxu0 %v6908
    %7809 = vmatprep.subr.bf16.mxu0 %v6933
    %7810 = vmatpush1.bf16.msra.mxu0 %v6932
    %7811 = vmatprep.subr.bf16.mxu0 %v6957
    %7812 = vmatpush1.bf16.msra.mxu0 %v6956
    %7813 = vmatprep.subr.bf16.mxu0 %v6981
    %7814 = vmatpush1.bf16.msra.mxu0 %v6980
    %7815 = vmatprep.subr.bf16.mxu0 %v7005
    %7816 = vmatpush1.bf16.msra.mxu0 %v7004
    %7817 = vmatprep.subr.bf16.mxu0 %v7029
    %7818 = vmatpush1.bf16.msra.mxu0 %v7028
    %7819 = vmatprep.mubr.bf16.mxu0 %v5509
    %7820 = vmatmul.mubr.bf16.gmra.mrb[0].mxu0 %v5508
    %v7821 = vpop.f32.mrb[0].mxu0
    %v7822 = vadd.f32 %v7781, %v7821
    %v7823 = vpop.f32.mrb[0].mxu0
    %v7824 = vadd.f32 %v7783, %v7823
    %v7825 = vpop.f32.mrb[0].mxu0
    %v7826 = vpop.f32.mrb[0].mxu0
    %7827 = vdwg.mxu0
    %7828 = vmatprep.subr.bf16.mxu0 %v5519
    %7829 = vmatpush1.bf16.msra.mxu0 %v5518
    %7830 = vmatprep.subr.bf16.mxu0 %v5543
    %7831 = vmatpush1.bf16.msra.mxu0 %v5542
    %7832 = vmatprep.subr.bf16.mxu0 %v5567
    %7833 = vmatpush1.bf16.msra.mxu0 %v5566
    %7834 = vmatprep.subr.bf16.mxu0 %v5591
    %7835 = vmatpush1.bf16.msra.mxu0 %v5590
    %7836 = vmatprep.subr.bf16.mxu0 %v5615
    %7837 = vmatpush1.bf16.msra.mxu0 %v5614
    %7838 = vmatprep.subr.bf16.mxu0 %v5639
    %7839 = vmatpush1.bf16.msra.mxu0 %v5638
    %7840 = vmatprep.subr.bf16.mxu0 %v5663
    %7841 = vmatpush1.bf16.msra.mxu0 %v5662
    %7842 = vmatprep.subr.bf16.mxu0 %v5687
    %7843 = vmatpush1.bf16.msra.mxu0 %v5686
    %7844 = vmatprep.subr.bf16.mxu0 %v5711
    %7845 = vmatpush1.bf16.msra.mxu0 %v5710
    %7846 = vmatprep.subr.bf16.mxu0 %v5735
    %7847 = vmatpush1.bf16.msra.mxu0 %v5734
    %7848 = vmatprep.subr.bf16.mxu0 %v5759
    %7849 = vmatpush1.bf16.msra.mxu0 %v5758
    %7850 = vmatprep.subr.bf16.mxu0 %v5783
    %7851 = vmatpush1.bf16.msra.mxu0 %v5782
    %7852 = vmatprep.subr.bf16.mxu0 %v5807
    %7853 = vmatpush1.bf16.msra.mxu0 %v5806
    %7854 = vmatprep.subr.bf16.mxu0 %v5831
    %7855 = vmatpush1.bf16.msra.mxu0 %v5830
    %7856 = vmatprep.subr.bf16.mxu0 %v5855
    %7857 = vmatpush1.bf16.msra.mxu0 %v5854
    %7858 = vmatprep.subr.bf16.mxu0 %v5879
    %7859 = vmatpush1.bf16.msra.mxu0 %v5878
    %7860 = vmatprep.mubr.bf16.mxu0 %v5503
    %7861 = vmatmul.mubr.bf16.gmra.mrb[0].mxu0 %v5502
    %v7862 = vpop.f32.mrb[0].mxu0
    %v7863 = vadd.f32 %v7087, %v7862
    %v7864 = vpop.f32.mrb[0].mxu0
    %v7865 = vadd.f32 %v7091, %v7864
    %v7866 = vpop.f32.mrb[0].mxu0
    %v7867 = vpop.f32.mrb[0].mxu0
    %7868 = vdwg.mxu0
    %7869 = vmatprep.subr.bf16.mxu0 %v5903
    %7870 = vmatpush1.bf16.msra.mxu0 %v5902
    %7871 = vmatprep.subr.bf16.mxu0 %v5927
    %7872 = vmatpush1.bf16.msra.mxu0 %v5926
    %7873 = vmatprep.subr.bf16.mxu0 %v5951
    %7874 = vmatpush1.bf16.msra.mxu0 %v5950
    %7875 = vmatprep.subr.bf16.mxu0 %v5975
    %7876 = vmatpush1.bf16.msra.mxu0 %v5974
    %7877 = vmatprep.subr.bf16.mxu0 %v5999
    %7878 = vmatpush1.bf16.msra.mxu0 %v5998
    %7879 = vmatprep.subr.bf16.mxu0 %v6023
    %7880 = vmatpush1.bf16.msra.mxu0 %v6022
    %7881 = vmatprep.subr.bf16.mxu0 %v6047
    %7882 = vmatpush1.bf16.msra.mxu0 %v6046
    %7883 = vmatprep.subr.bf16.mxu0 %v6071
    %7884 = vmatpush1.bf16.msra.mxu0 %v6070
    %7885 = vmatprep.subr.bf16.mxu0 %v6095
    %7886 = vmatpush1.bf16.msra.mxu0 %v6094
    %7887 = vmatprep.subr.bf16.mxu0 %v6119
    %7888 = vmatpush1.bf16.msra.mxu0 %v6118
    %7889 = vmatprep.subr.bf16.mxu0 %v6143
    %7890 = vmatpush1.bf16.msra.mxu0 %v6142
    %7891 = vmatprep.subr.bf16.mxu0 %v6167
    %7892 = vmatpush1.bf16.msra.mxu0 %v6166
    %7893 = vmatprep.subr.bf16.mxu0 %v6191
    %7894 = vmatpush1.bf16.msra.mxu0 %v6190
    %7895 = vmatprep.subr.bf16.mxu0 %v6215
    %7896 = vmatpush1.bf16.msra.mxu0 %v6214
    %7897 = vmatprep.subr.bf16.mxu0 %v6239
    %7898 = vmatpush1.bf16.msra.mxu0 %v6238
    %7899 = vmatprep.subr.bf16.mxu0 %v6263
    %7900 = vmatpush1.bf16.msra.mxu0 %v6262
    %7901 = vmatprep.mubr.bf16.mxu0 %v5505
    %7902 = vmatmul.mubr.bf16.gmra.mrb[0].mxu0 %v5504
    %v7903 = vpop.f32.mrb[0].mxu0
    %v7904 = vadd.f32 %v7863, %v7903
    %v7905 = vpop.f32.mrb[0].mxu0
    %v7906 = vadd.f32 %v7865, %v7905
    %v7907 = vpop.f32.mrb[0].mxu0
    %v7908 = vpop.f32.mrb[0].mxu0
    %7909 = vdwg.mxu0
    %7910 = vmatprep.subr.bf16.mxu0 %v6287
    %7911 = vmatpush1.bf16.msra.mxu0 %v6286
    %7912 = vmatprep.subr.bf16.mxu0 %v6311
    %7913 = vmatpush1.bf16.msra.mxu0 %v6310
    %7914 = vmatprep.subr.bf16.mxu0 %v6335
    %7915 = vmatpush1.bf16.msra.mxu0 %v6334
    %7916 = vmatprep.subr.bf16.mxu0 %v6359
    %7917 = vmatpush1.bf16.msra.mxu0 %v6358
    %7918 = vmatprep.subr.bf16.mxu0 %v6383
    %7919 = vmatpush1.bf16.msra.mxu0 %v6382
    %7920 = vmatprep.subr.bf16.mxu0 %v6407
    %7921 = vmatpush1.bf16.msra.mxu0 %v6406
    %7922 = vmatprep.subr.bf16.mxu0 %v6431
    %7923 = vmatpush1.bf16.msra.mxu0 %v6430
    %7924 = vmatprep.subr.bf16.mxu0 %v6455
    %7925 = vmatpush1.bf16.msra.mxu0 %v6454
    %7926 = vmatprep.subr.bf16.mxu0 %v6479
    %7927 = vmatpush1.bf16.msra.mxu0 %v6478
    %7928 = vmatprep.subr.bf16.mxu0 %v6503
    %7929 = vmatpush1.bf16.msra.mxu0 %v6502
    %7930 = vmatprep.subr.bf16.mxu0 %v6527
    %7931 = vmatpush1.bf16.msra.mxu0 %v6526
    %7932 = vmatprep.subr.bf16.mxu0 %v6551
    %7933 = vmatpush1.bf16.msra.mxu0 %v6550
    %7934 = vmatprep.subr.bf16.mxu0 %v6575
    %7935 = vmatpush1.bf16.msra.mxu0 %v6574
    %7936 = vmatprep.subr.bf16.mxu0 %v6599
    %7937 = vmatpush1.bf16.msra.mxu0 %v6598
    %7938 = vmatprep.subr.bf16.mxu0 %v6623
    %7939 = vmatpush1.bf16.msra.mxu0 %v6622
    %7940 = vmatprep.subr.bf16.mxu0 %v6647
    %7941 = vmatpush1.bf16.msra.mxu0 %v6646
    %7942 = vmatprep.mubr.bf16.mxu0 %v5507
    %7943 = vmatmul.mubr.bf16.gmra.mrb[0].mxu0 %v5506
    %v7944 = vpop.f32.mrb[0].mxu0
    %v7945 = vadd.f32 %v7904, %v7944
    %v7946 = vpop.f32.mrb[0].mxu0
    %v7947 = vadd.f32 %v7906, %v7946
    %v7948 = vpop.f32.mrb[0].mxu0
    %v7949 = vpop.f32.mrb[0].mxu0
    %7950 = vdwg.mxu0
    %7951 = vmatprep.subr.bf16.mxu0 %v6671
    %7952 = vmatpush1.bf16.msra.mxu0 %v6670
    %7953 = vmatprep.subr.bf16.mxu0 %v6695
    %7954 = vmatpush1.bf16.msra.mxu0 %v6694
    %7955 = vmatprep.subr.bf16.mxu0 %v6719
    %7956 = vmatpush1.bf16.msra.mxu0 %v6718
    %7957 = vmatprep.subr.bf16.mxu0 %v6743
    %7958 = vmatpush1.bf16.msra.mxu0 %v6742
    %7959 = vmatprep.subr.bf16.mxu0 %v6767
    %7960 = vmatpush1.bf16.msra.mxu0 %v6766
    %7961 = vmatprep.subr.bf16.mxu0 %v6791
    %7962 = vmatpush1.bf16.msra.mxu0 %v6790
    %7963 = vmatprep.subr.bf16.mxu0 %v6815
    %7964 = vmatpush1.bf16.msra.mxu0 %v6814
    %7965 = vmatprep.subr.bf16.mxu0 %v6839
    %7966 = vmatpush1.bf16.msra.mxu0 %v6838
    %7967 = vmatprep.subr.bf16.mxu0 %v6863
    %7968 = vmatpush1.bf16.msra.mxu0 %v6862
    %7969 = vmatprep.subr.bf16.mxu0 %v6887
    %7970 = vmatpush1.bf16.msra.mxu0 %v6886
    %7971 = vmatprep.subr.bf16.mxu0 %v6911
    %7972 = vmatpush1.bf16.msra.mxu0 %v6910
    %7973 = vmatprep.subr.bf16.mxu0 %v6935
    %7974 = vmatpush1.bf16.msra.mxu0 %v6934
    %7975 = vmatprep.subr.bf16.mxu0 %v6959
    %7976 = vmatpush1.bf16.msra.mxu0 %v6958
    %7977 = vmatprep.subr.bf16.mxu0 %v6983
    %7978 = vmatpush1.bf16.msra.mxu0 %v6982
    %7979 = vmatprep.subr.bf16.mxu0 %v7007
    %7980 = vmatpush1.bf16.msra.mxu0 %v7006
    %7981 = vmatprep.subr.bf16.mxu0 %v7031
    %7982 = vmatpush1.bf16.msra.mxu0 %v7030
    %7983 = vmatprep.mubr.bf16.mxu0 %v5509
    %7984 = vmatmul.mubr.bf16.gmra.mrb[0].mxu0 %v5508
    %v7985 = vpop.f32.mrb[0].mxu0
    %v7986 = vadd.f32 %v7945, %v7985
    %v7987 = vpop.f32.mrb[0].mxu0
    %v7988 = vadd.f32 %v7947, %v7987
    %v7989 = vpop.f32.mrb[0].mxu0
    %v7990 = vpop.f32.mrb[0].mxu0
    %7991 = vdwg.mxu0
    %7992 = vmatprep.subr.bf16.mxu0 %v5521
    %7993 = vmatpush1.bf16.msra.mxu0 %v5520
    %7994 = vmatprep.subr.bf16.mxu0 %v5545
    %7995 = vmatpush1.bf16.msra.mxu0 %v5544
    %7996 = vmatprep.subr.bf16.mxu0 %v5569
    %7997 = vmatpush1.bf16.msra.mxu0 %v5568
    %7998 = vmatprep.subr.bf16.mxu0 %v5593
    %7999 = vmatpush1.bf16.msra.mxu0 %v5592
    %8000 = vmatprep.subr.bf16.mxu0 %v5617
    %8001 = vmatpush1.bf16.msra.mxu0 %v5616
    %8002 = vmatprep.subr.bf16.mxu0 %v5641
    %8003 = vmatpush1.bf16.msra.mxu0 %v5640
    %8004 = vmatprep.subr.bf16.mxu0 %v5665
    %8005 = vmatpush1.bf16.msra.mxu0 %v5664
    %8006 = vmatprep.subr.bf16.mxu0 %v5689
    %8007 = vmatpush1.bf16.msra.mxu0 %v5688
    %8008 = vmatprep.subr.bf16.mxu0 %v5713
    %8009 = vmatpush1.bf16.msra.mxu0 %v5712
    %8010 = vmatprep.subr.bf16.mxu0 %v5737
    %8011 = vmatpush1.bf16.msra.mxu0 %v5736
    %8012 = vmatprep.subr.bf16.mxu0 %v5761
    %8013 = vmatpush1.bf16.msra.mxu0 %v5760
    %8014 = vmatprep.subr.bf16.mxu0 %v5785
    %8015 = vmatpush1.bf16.msra.mxu0 %v5784
    %8016 = vmatprep.subr.bf16.mxu0 %v5809
    %8017 = vmatpush1.bf16.msra.mxu0 %v5808
    %8018 = vmatprep.subr.bf16.mxu0 %v5833
    %8019 = vmatpush1.bf16.msra.mxu0 %v5832
    %8020 = vmatprep.subr.bf16.mxu0 %v5857
    %8021 = vmatpush1.bf16.msra.mxu0 %v5856
    %8022 = vmatprep.subr.bf16.mxu0 %v5881
    %8023 = vmatpush1.bf16.msra.mxu0 %v5880
    %8024 = vmatprep.mubr.bf16.mxu0 %v5503
    %8025 = vmatmul.mubr.bf16.gmra.mrb[0].mxu0 %v5502
    %v8026 = vpop.f32.mrb[0].mxu0
    %v8027 = vadd.f32 %v7095, %v8026
    %v8028 = vpop.f32.mrb[0].mxu0
    %v8029 = vadd.f32 %v7099, %v8028
    %v8030 = vpop.f32.mrb[0].mxu0
    %v8031 = vpop.f32.mrb[0].mxu0
    %8032 = vdwg.mxu0
    %8033 = vmatprep.subr.bf16.mxu0 %v5905
    %8034 = vmatpush1.bf16.msra.mxu0 %v5904
    %8035 = vmatprep.subr.bf16.mxu0 %v5929
    %8036 = vmatpush1.bf16.msra.mxu0 %v5928
    %8037 = vmatprep.subr.bf16.mxu0 %v5953
    %8038 = vmatpush1.bf16.msra.mxu0 %v5952
    %8039 = vmatprep.subr.bf16.mxu0 %v5977
    %8040 = vmatpush1.bf16.msra.mxu0 %v5976
    %8041 = vmatprep.subr.bf16.mxu0 %v6001
    %8042 = vmatpush1.bf16.msra.mxu0 %v6000
    %8043 = vmatprep.subr.bf16.mxu0 %v6025
    %8044 = vmatpush1.bf16.msra.mxu0 %v6024
    %8045 = vmatprep.subr.bf16.mxu0 %v6049
    %8046 = vmatpush1.bf16.msra.mxu0 %v6048
    %8047 = vmatprep.subr.bf16.mxu0 %v6073
    %8048 = vmatpush1.bf16.msra.mxu0 %v6072
    %8049 = vmatprep.subr.bf16.mxu0 %v6097
    %8050 = vmatpush1.bf16.msra.mxu0 %v6096
    %8051 = vmatprep.subr.bf16.mxu0 %v6121
    %8052 = vmatpush1.bf16.msra.mxu0 %v6120
    %8053 = vmatprep.subr.bf16.mxu0 %v6145
    %8054 = vmatpush1.bf16.msra.mxu0 %v6144
    %8055 = vmatprep.subr.bf16.mxu0 %v6169
    %8056 = vmatpush1.bf16.msra.mxu0 %v6168
    %8057 = vmatprep.subr.bf16.mxu0 %v6193
    %8058 = vmatpush1.bf16.msra.mxu0 %v6192
    %8059 = vmatprep.subr.bf16.mxu0 %v6217
    %8060 = vmatpush1.bf16.msra.mxu0 %v6216
    %8061 = vmatprep.subr.bf16.mxu0 %v6241
    %8062 = vmatpush1.bf16.msra.mxu0 %v6240
    %8063 = vmatprep.subr.bf16.mxu0 %v6265
    %8064 = vmatpush1.bf16.msra.mxu0 %v6264
    %8065 = vmatprep.mubr.bf16.mxu0 %v5505
    %8066 = vmatmul.mubr.bf16.gmra.mrb[0].mxu0 %v5504
    %v8067 = vpop.f32.mrb[0].mxu0
    %v8068 = vadd.f32 %v8027, %v8067
    %v8069 = vpop.f32.mrb[0].mxu0
    %v8070 = vadd.f32 %v8029, %v8069
    %v8071 = vpop.f32.mrb[0].mxu0
    %v8072 = vpop.f32.mrb[0].mxu0
    %8073 = vdwg.mxu0
    %8074 = vmatprep.subr.bf16.mxu0 %v6289
    %8075 = vmatpush1.bf16.msra.mxu0 %v6288
    %8076 = vmatprep.subr.bf16.mxu0 %v6313
    %8077 = vmatpush1.bf16.msra.mxu0 %v6312
    %8078 = vmatprep.subr.bf16.mxu0 %v6337
    %8079 = vmatpush1.bf16.msra.mxu0 %v6336
    %8080 = vmatprep.subr.bf16.mxu0 %v6361
    %8081 = vmatpush1.bf16.msra.mxu0 %v6360
    %8082 = vmatprep.subr.bf16.mxu0 %v6385
    %8083 = vmatpush1.bf16.msra.mxu0 %v6384
    %8084 = vmatprep.subr.bf16.mxu0 %v6409
    %8085 = vmatpush1.bf16.msra.mxu0 %v6408
    %8086 = vmatprep.subr.bf16.mxu0 %v6433
    %8087 = vmatpush1.bf16.msra.mxu0 %v6432
    %8088 = vmatprep.subr.bf16.mxu0 %v6457
    %8089 = vmatpush1.bf16.msra.mxu0 %v6456
    %8090 = vmatprep.subr.bf16.mxu0 %v6481
    %8091 = vmatpush1.bf16.msra.mxu0 %v6480
    %8092 = vmatprep.subr.bf16.mxu0 %v6505
    %8093 = vmatpush1.bf16.msra.mxu0 %v6504
    %8094 = vmatprep.subr.bf16.mxu0 %v6529
    %8095 = vmatpush1.bf16.msra.mxu0 %v6528
    %8096 = vmatprep.subr.bf16.mxu0 %v6553
    %8097 = vmatpush1.bf16.msra.mxu0 %v6552
    %8098 = vmatprep.subr.bf16.mxu0 %v6577
    %8099 = vmatpush1.bf16.msra.mxu0 %v6576
    %8100 = vmatprep.subr.bf16.mxu0 %v6601
    %8101 = vmatpush1.bf16.msra.mxu0 %v6600
    %8102 = vmatprep.subr.bf16.mxu0 %v6625
    %8103 = vmatpush1.bf16.msra.mxu0 %v6624
    %8104 = vmatprep.subr.bf16.mxu0 %v6649
    %8105 = vmatpush1.bf16.msra.mxu0 %v6648
    %8106 = vmatprep.mubr.bf16.mxu0 %v5507
    %8107 = vmatmul.mubr.bf16.gmra.mrb[0].mxu0 %v5506
    %v8108 = vpop.f32.mrb[0].mxu0
    %v8109 = vadd.f32 %v8068, %v8108
    %v8110 = vpop.f32.mrb[0].mxu0
    %v8111 = vadd.f32 %v8070, %v8110
    %v8112 = vpop.f32.mrb[0].mxu0
    %v8113 = vpop.f32.mrb[0].mxu0
    %8114 = vdwg.mxu0
    %8115 = vmatprep.subr.bf16.mxu0 %v6673
    %8116 = vmatpush1.bf16.msra.mxu0 %v6672
    %8117 = vmatprep.subr.bf16.mxu0 %v6697
    %8118 = vmatpush1.bf16.msra.mxu0 %v6696
    %8119 = vmatprep.subr.bf16.mxu0 %v6721
    %8120 = vmatpush1.bf16.msra.mxu0 %v6720
    %8121 = vmatprep.subr.bf16.mxu0 %v6745
    %8122 = vmatpush1.bf16.msra.mxu0 %v6744
    %8123 = vmatprep.subr.bf16.mxu0 %v6769
    %8124 = vmatpush1.bf16.msra.mxu0 %v6768
    %8125 = vmatprep.subr.bf16.mxu0 %v6793
    %8126 = vmatpush1.bf16.msra.mxu0 %v6792
    %8127 = vmatprep.subr.bf16.mxu0 %v6817
    %8128 = vmatpush1.bf16.msra.mxu0 %v6816
    %8129 = vmatprep.subr.bf16.mxu0 %v6841
    %8130 = vmatpush1.bf16.msra.mxu0 %v6840
    %8131 = vmatprep.subr.bf16.mxu0 %v6865
    %8132 = vmatpush1.bf16.msra.mxu0 %v6864
    %8133 = vmatprep.subr.bf16.mxu0 %v6889
    %8134 = vmatpush1.bf16.msra.mxu0 %v6888
    %8135 = vmatprep.subr.bf16.mxu0 %v6913
    %8136 = vmatpush1.bf16.msra.mxu0 %v6912
    %8137 = vmatprep.subr.bf16.mxu0 %v6937
    %8138 = vmatpush1.bf16.msra.mxu0 %v6936
    %8139 = vmatprep.subr.bf16.mxu0 %v6961
    %8140 = vmatpush1.bf16.msra.mxu0 %v6960
    %8141 = vmatprep.subr.bf16.mxu0 %v6985
    %8142 = vmatpush1.bf16.msra.mxu0 %v6984
    %8143 = vmatprep.subr.bf16.mxu0 %v7009
    %8144 = vmatpush1.bf16.msra.mxu0 %v7008
    %8145 = vmatprep.subr.bf16.mxu0 %v7033
    %8146 = vmatpush1.bf16.msra.mxu0 %v7032
    %8147 = vmatprep.mubr.bf16.mxu0 %v5509
    %8148 = vmatmul.mubr.bf16.gmra.mrb[0].mxu0 %v5508
    %v8149 = vpop.f32.mrb[0].mxu0
    %v8150 = vadd.f32 %v8109, %v8149
    %v8151 = vpop.f32.mrb[0].mxu0
    %v8152 = vadd.f32 %v8111, %v8151
    %v8153 = vpop.f32.mrb[0].mxu0
    %v8154 = vpop.f32.mrb[0].mxu0
    %8155 = vdwg.mxu0
    %8156 = vmatprep.subr.bf16.mxu0 %v5523
    %8157 = vmatpush1.bf16.msra.mxu0 %v5522
    %8158 = vmatprep.subr.bf16.mxu0 %v5547
    %8159 = vmatpush1.bf16.msra.mxu0 %v5546
    %8160 = vmatprep.subr.bf16.mxu0 %v5571
    %8161 = vmatpush1.bf16.msra.mxu0 %v5570
    %8162 = vmatprep.subr.bf16.mxu0 %v5595
    %8163 = vmatpush1.bf16.msra.mxu0 %v5594
    %8164 = vmatprep.subr.bf16.mxu0 %v5619
    %8165 = vmatpush1.bf16.msra.mxu0 %v5618
    %8166 = vmatprep.subr.bf16.mxu0 %v5643
    %8167 = vmatpush1.bf16.msra.mxu0 %v5642
    %8168 = vmatprep.subr.bf16.mxu0 %v5667
    %8169 = vmatpush1.bf16.msra.mxu0 %v5666
    %8170 = vmatprep.subr.bf16.mxu0 %v5691
    %8171 = vmatpush1.bf16.msra.mxu0 %v5690
    %8172 = vmatprep.subr.bf16.mxu0 %v5715
    %8173 = vmatpush1.bf16.msra.mxu0 %v5714
    %8174 = vmatprep.subr.bf16.mxu0 %v5739
    %8175 = vmatpush1.bf16.msra.mxu0 %v5738
    %8176 = vmatprep.subr.bf16.mxu0 %v5763
    %8177 = vmatpush1.bf16.msra.mxu0 %v5762
    %8178 = vmatprep.subr.bf16.mxu0 %v5787
    %8179 = vmatpush1.bf16.msra.mxu0 %v5786
    %8180 = vmatprep.subr.bf16.mxu0 %v5811
    %8181 = vmatpush1.bf16.msra.mxu0 %v5810
    %8182 = vmatprep.subr.bf16.mxu0 %v5835
    %8183 = vmatpush1.bf16.msra.mxu0 %v5834
    %8184 = vmatprep.subr.bf16.mxu0 %v5859
    %8185 = vmatpush1.bf16.msra.mxu0 %v5858
    %8186 = vmatprep.subr.bf16.mxu0 %v5883
    %8187 = vmatpush1.bf16.msra.mxu0 %v5882
    %8188 = vmatprep.mubr.bf16.mxu0 %v5503
    %8189 = vmatmul.mubr.bf16.gmra.mrb[0].mxu0 %v5502
    %v8190 = vpop.f32.mrb[0].mxu0
    %v8191 = vadd.f32 %v7103, %v8190
    %v8192 = vpop.f32.mrb[0].mxu0
    %v8193 = vadd.f32 %v7107, %v8192
    %v8194 = vpop.f32.mrb[0].mxu0
    %v8195 = vpop.f32.mrb[0].mxu0
    %8196 = vdwg.mxu0
    %8197 = vmatprep.subr.bf16.mxu0 %v5907
    %8198 = vmatpush1.bf16.msra.mxu0 %v5906
    %8199 = vmatprep.subr.bf16.mxu0 %v5931
    %8200 = vmatpush1.bf16.msra.mxu0 %v5930
    %8201 = vmatprep.subr.bf16.mxu0 %v5955
    %8202 = vmatpush1.bf16.msra.mxu0 %v5954
    %8203 = vmatprep.subr.bf16.mxu0 %v5979
    %8204 = vmatpush1.bf16.msra.mxu0 %v5978
    %8205 = vmatprep.subr.bf16.mxu0 %v6003
    %8206 = vmatpush1.bf16.msra.mxu0 %v6002
    %8207 = vmatprep.subr.bf16.mxu0 %v6027
    %8208 = vmatpush1.bf16.msra.mxu0 %v6026
    %8209 = vmatprep.subr.bf16.mxu0 %v6051
    %8210 = vmatpush1.bf16.msra.mxu0 %v6050
    %8211 = vmatprep.subr.bf16.mxu0 %v6075
    %8212 = vmatpush1.bf16.msra.mxu0 %v6074
    %8213 = vmatprep.subr.bf16.mxu0 %v6099
    %8214 = vmatpush1.bf16.msra.mxu0 %v6098
    %8215 = vmatprep.subr.bf16.mxu0 %v6123
    %8216 = vmatpush1.bf16.msra.mxu0 %v6122
    %8217 = vmatprep.subr.bf16.mxu0 %v6147
    %8218 = vmatpush1.bf16.msra.mxu0 %v6146
    %8219 = vmatprep.subr.bf16.mxu0 %v6171
    %8220 = vmatpush1.bf16.msra.mxu0 %v6170
    %8221 = vmatprep.subr.bf16.mxu0 %v6195
    %8222 = vmatpush1.bf16.msra.mxu0 %v6194
    %8223 = vmatprep.subr.bf16.mxu0 %v6219
    %8224 = vmatpush1.bf16.msra.mxu0 %v6218
    %8225 = vmatprep.subr.bf16.mxu0 %v6243
    %8226 = vmatpush1.bf16.msra.mxu0 %v6242
    %8227 = vmatprep.subr.bf16.mxu0 %v6267
    %8228 = vmatpush1.bf16.msra.mxu0 %v6266
    %8229 = vmatprep.mubr.bf16.mxu0 %v5505
    %8230 = vmatmul.mubr.bf16.gmra.mrb[0].mxu0 %v5504
    %v8231 = vpop.f32.mrb[0].mxu0
    %v8232 = vadd.f32 %v8191, %v8231
    %v8233 = vpop.f32.mrb[0].mxu0
    %v8234 = vadd.f32 %v8193, %v8233
    %v8235 = vpop.f32.mrb[0].mxu0
    %v8236 = vpop.f32.mrb[0].mxu0
    %8237 = vdwg.mxu0
    %8238 = vmatprep.subr.bf16.mxu0 %v6291
    %8239 = vmatpush1.bf16.msra.mxu0 %v6290
    %8240 = vmatprep.subr.bf16.mxu0 %v6315
    %8241 = vmatpush1.bf16.msra.mxu0 %v6314
    %8242 = vmatprep.subr.bf16.mxu0 %v6339
    %8243 = vmatpush1.bf16.msra.mxu0 %v6338
    %8244 = vmatprep.subr.bf16.mxu0 %v6363
    %8245 = vmatpush1.bf16.msra.mxu0 %v6362
    %8246 = vmatprep.subr.bf16.mxu0 %v6387
    %8247 = vmatpush1.bf16.msra.mxu0 %v6386
    %8248 = vmatprep.subr.bf16.mxu0 %v6411
    %8249 = vmatpush1.bf16.msra.mxu0 %v6410
    %8250 = vmatprep.subr.bf16.mxu0 %v6435
    %8251 = vmatpush1.bf16.msra.mxu0 %v6434
    %8252 = vmatprep.subr.bf16.mxu0 %v6459
    %8253 = vmatpush1.bf16.msra.mxu0 %v6458
    %8254 = vmatprep.subr.bf16.mxu0 %v6483
    %8255 = vmatpush1.bf16.msra.mxu0 %v6482
    %8256 = vmatprep.subr.bf16.mxu0 %v6507
    %8257 = vmatpush1.bf16.msra.mxu0 %v6506
    %8258 = vmatprep.subr.bf16.mxu0 %v6531
    %8259 = vmatpush1.bf16.msra.mxu0 %v6530
    %8260 = vmatprep.subr.bf16.mxu0 %v6555
    %8261 = vmatpush1.bf16.msra.mxu0 %v6554
    %8262 = vmatprep.subr.bf16.mxu0 %v6579
    %8263 = vmatpush1.bf16.msra.mxu0 %v6578
    %8264 = vmatprep.subr.bf16.mxu0 %v6603
    %8265 = vmatpush1.bf16.msra.mxu0 %v6602
    %8266 = vmatprep.subr.bf16.mxu0 %v6627
    %8267 = vmatpush1.bf16.msra.mxu0 %v6626
    %8268 = vmatprep.subr.bf16.mxu0 %v6651
    %8269 = vmatpush1.bf16.msra.mxu0 %v6650
    %8270 = vmatprep.mubr.bf16.mxu0 %v5507
    %8271 = vmatmul.mubr.bf16.gmra.mrb[0].mxu0 %v5506
    %v8272 = vpop.f32.mrb[0].mxu0
    %v8273 = vadd.f32 %v8232, %v8272
    %v8274 = vpop.f32.mrb[0].mxu0
    %v8275 = vadd.f32 %v8234, %v8274
    %v8276 = vpop.f32.mrb[0].mxu0
    %v8277 = vpop.f32.mrb[0].mxu0
    %8278 = vdwg.mxu0
    %8279 = vmatprep.subr.bf16.mxu0 %v6675
    %8280 = vmatpush1.bf16.msra.mxu0 %v6674
    %8281 = vmatprep.subr.bf16.mxu0 %v6699
    %8282 = vmatpush1.bf16.msra.mxu0 %v6698
    %8283 = vmatprep.subr.bf16.mxu0 %v6723
    %8284 = vmatpush1.bf16.msra.mxu0 %v6722
    %8285 = vmatprep.subr.bf16.mxu0 %v6747
    %8286 = vmatpush1.bf16.msra.mxu0 %v6746
    %8287 = vmatprep.subr.bf16.mxu0 %v6771
    %8288 = vmatpush1.bf16.msra.mxu0 %v6770
    %8289 = vmatprep.subr.bf16.mxu0 %v6795
    %8290 = vmatpush1.bf16.msra.mxu0 %v6794
    %8291 = vmatprep.subr.bf16.mxu0 %v6819
    %8292 = vmatpush1.bf16.msra.mxu0 %v6818
    %8293 = vmatprep.subr.bf16.mxu0 %v6843
    %8294 = vmatpush1.bf16.msra.mxu0 %v6842
    %8295 = vmatprep.subr.bf16.mxu0 %v6867
    %8296 = vmatpush1.bf16.msra.mxu0 %v6866
    %8297 = vmatprep.subr.bf16.mxu0 %v6891
    %8298 = vmatpush1.bf16.msra.mxu0 %v6890
    %8299 = vmatprep.subr.bf16.mxu0 %v6915
    %8300 = vmatpush1.bf16.msra.mxu0 %v6914
    %8301 = vmatprep.subr.bf16.mxu0 %v6939
    %8302 = vmatpush1.bf16.msra.mxu0 %v6938
    %8303 = vmatprep.subr.bf16.mxu0 %v6963
    %8304 = vmatpush1.bf16.msra.mxu0 %v6962
    %8305 = vmatprep.subr.bf16.mxu0 %v6987
    %8306 = vmatpush1.bf16.msra.mxu0 %v6986
    %8307 = vmatprep.subr.bf16.mxu0 %v7011
    %8308 = vmatpush1.bf16.msra.mxu0 %v7010
    %8309 = vmatprep.subr.bf16.mxu0 %v7035
    %8310 = vmatpush1.bf16.msra.mxu0 %v7034
    %8311 = vmatprep.mubr.bf16.mxu0 %v5509
    %8312 = vmatmul.mubr.bf16.gmra.mrb[0].mxu0 %v5508
    %v8313 = vpop.f32.mrb[0].mxu0
    %v8314 = vadd.f32 %v8273, %v8313
    %v8315 = vpop.f32.mrb[0].mxu0
    %v8316 = vadd.f32 %v8275, %v8315
    %v8317 = vpop.f32.mrb[0].mxu0
    %v8318 = vpop.f32.mrb[0].mxu0
    %8319 = vdwg.mxu0
    %8320 = vmatprep.subr.bf16.mxu0 %v5525
    %8321 = vmatpush1.bf16.msra.mxu0 %v5524
    %8322 = vmatprep.subr.bf16.mxu0 %v5549
    %8323 = vmatpush1.bf16.msra.mxu0 %v5548
    %8324 = vmatprep.subr.bf16.mxu0 %v5573
    %8325 = vmatpush1.bf16.msra.mxu0 %v5572
    %8326 = vmatprep.subr.bf16.mxu0 %v5597
    %8327 = vmatpush1.bf16.msra.mxu0 %v5596
    %8328 = vmatprep.subr.bf16.mxu0 %v5621
    %8329 = vmatpush1.bf16.msra.mxu0 %v5620
    %8330 = vmatprep.subr.bf16.mxu0 %v5645
    %8331 = vmatpush1.bf16.msra.mxu0 %v5644
    %8332 = vmatprep.subr.bf16.mxu0 %v5669
    %8333 = vmatpush1.bf16.msra.mxu0 %v5668
    %8334 = vmatprep.subr.bf16.mxu0 %v5693
    %8335 = vmatpush1.bf16.msra.mxu0 %v5692
    %8336 = vmatprep.subr.bf16.mxu0 %v5717
    %8337 = vmatpush1.bf16.msra.mxu0 %v5716
    %8338 = vmatprep.subr.bf16.mxu0 %v5741
    %8339 = vmatpush1.bf16.msra.mxu0 %v5740
    %8340 = vmatprep.subr.bf16.mxu0 %v5765
    %8341 = vmatpush1.bf16.msra.mxu0 %v5764
    %8342 = vmatprep.subr.bf16.mxu0 %v5789
    %8343 = vmatpush1.bf16.msra.mxu0 %v5788
    %8344 = vmatprep.subr.bf16.mxu0 %v5813
    %8345 = vmatpush1.bf16.msra.mxu0 %v5812
    %8346 = vmatprep.subr.bf16.mxu0 %v5837
    %8347 = vmatpush1.bf16.msra.mxu0 %v5836
    %8348 = vmatprep.subr.bf16.mxu0 %v5861
    %8349 = vmatpush1.bf16.msra.mxu0 %v5860
    %8350 = vmatprep.subr.bf16.mxu0 %v5885
    %8351 = vmatpush1.bf16.msra.mxu0 %v5884
    %8352 = vmatprep.mubr.bf16.mxu0 %v5503
    %8353 = vmatmul.mubr.bf16.gmra.mrb[0].mxu0 %v5502
    %v8354 = vpop.f32.mrb[0].mxu0
    %v8355 = vadd.f32 %v7111, %v8354
    %v8356 = vpop.f32.mrb[0].mxu0
    %v8357 = vadd.f32 %v7115, %v8356
    %v8358 = vpop.f32.mrb[0].mxu0
    %v8359 = vpop.f32.mrb[0].mxu0
    %8360 = vdwg.mxu0
    %8361 = vmatprep.subr.bf16.mxu0 %v5909
    %8362 = vmatpush1.bf16.msra.mxu0 %v5908
    %8363 = vmatprep.subr.bf16.mxu0 %v5933
    %8364 = vmatpush1.bf16.msra.mxu0 %v5932
    %8365 = vmatprep.subr.bf16.mxu0 %v5957
    %8366 = vmatpush1.bf16.msra.mxu0 %v5956
    %8367 = vmatprep.subr.bf16.mxu0 %v5981
    %8368 = vmatpush1.bf16.msra.mxu0 %v5980
    %8369 = vmatprep.subr.bf16.mxu0 %v6005
    %8370 = vmatpush1.bf16.msra.mxu0 %v6004
    %8371 = vmatprep.subr.bf16.mxu0 %v6029
    %8372 = vmatpush1.bf16.msra.mxu0 %v6028
    %8373 = vmatprep.subr.bf16.mxu0 %v6053
    %8374 = vmatpush1.bf16.msra.mxu0 %v6052
    %8375 = vmatprep.subr.bf16.mxu0 %v6077
    %8376 = vmatpush1.bf16.msra.mxu0 %v6076
    %8377 = vmatprep.subr.bf16.mxu0 %v6101
    %8378 = vmatpush1.bf16.msra.mxu0 %v6100
    %8379 = vmatprep.subr.bf16.mxu0 %v6125
    %8380 = vmatpush1.bf16.msra.mxu0 %v6124
    %8381 = vmatprep.subr.bf16.mxu0 %v6149
    %8382 = vmatpush1.bf16.msra.mxu0 %v6148
    %8383 = vmatprep.subr.bf16.mxu0 %v6173
    %8384 = vmatpush1.bf16.msra.mxu0 %v6172
    %8385 = vmatprep.subr.bf16.mxu0 %v6197
    %8386 = vmatpush1.bf16.msra.mxu0 %v6196
    %8387 = vmatprep.subr.bf16.mxu0 %v6221
    %8388 = vmatpush1.bf16.msra.mxu0 %v6220
    %8389 = vmatprep.subr.bf16.mxu0 %v6245
    %8390 = vmatpush1.bf16.msra.mxu0 %v6244
    %8391 = vmatprep.subr.bf16.mxu0 %v6269
    %8392 = vmatpush1.bf16.msra.mxu0 %v6268
    %8393 = vmatprep.mubr.bf16.mxu0 %v5505
    %8394 = vmatmul.mubr.bf16.gmra.mrb[0].mxu0 %v5504
    %v8395 = vpop.f32.mrb[0].mxu0
    %v8396 = vadd.f32 %v8355, %v8395
    %v8397 = vpop.f32.mrb[0].mxu0
    %v8398 = vadd.f32 %v8357, %v8397
    %v8399 = vpop.f32.mrb[0].mxu0
    %v8400 = vpop.f32.mrb[0].mxu0
    %8401 = vdwg.mxu0
    %8402 = vmatprep.subr.bf16.mxu0 %v6293
    %8403 = vmatpush1.bf16.msra.mxu0 %v6292
    %8404 = vmatprep.subr.bf16.mxu0 %v6317
    %8405 = vmatpush1.bf16.msra.mxu0 %v6316
    %8406 = vmatprep.subr.bf16.mxu0 %v6341
    %8407 = vmatpush1.bf16.msra.mxu0 %v6340
    %8408 = vmatprep.subr.bf16.mxu0 %v6365
    %8409 = vmatpush1.bf16.msra.mxu0 %v6364
    %8410 = vmatprep.subr.bf16.mxu0 %v6389
    %8411 = vmatpush1.bf16.msra.mxu0 %v6388
    %8412 = vmatprep.subr.bf16.mxu0 %v6413
    %8413 = vmatpush1.bf16.msra.mxu0 %v6412
    %8414 = vmatprep.subr.bf16.mxu0 %v6437
    %8415 = vmatpush1.bf16.msra.mxu0 %v6436
    %8416 = vmatprep.subr.bf16.mxu0 %v6461
    %8417 = vmatpush1.bf16.msra.mxu0 %v6460
    %8418 = vmatprep.subr.bf16.mxu0 %v6485
    %8419 = vmatpush1.bf16.msra.mxu0 %v6484
    %8420 = vmatprep.subr.bf16.mxu0 %v6509
    %8421 = vmatpush1.bf16.msra.mxu0 %v6508
    %8422 = vmatprep.subr.bf16.mxu0 %v6533
    %8423 = vmatpush1.bf16.msra.mxu0 %v6532
    %8424 = vmatprep.subr.bf16.mxu0 %v6557
    %8425 = vmatpush1.bf16.msra.mxu0 %v6556
    %8426 = vmatprep.subr.bf16.mxu0 %v6581
    %8427 = vmatpush1.bf16.msra.mxu0 %v6580
    %8428 = vmatprep.subr.bf16.mxu0 %v6605
    %8429 = vmatpush1.bf16.msra.mxu0 %v6604
    %8430 = vmatprep.subr.bf16.mxu0 %v6629
    %8431 = vmatpush1.bf16.msra.mxu0 %v6628
    %8432 = vmatprep.subr.bf16.mxu0 %v6653
    %8433 = vmatpush1.bf16.msra.mxu0 %v6652
    %8434 = vmatprep.mubr.bf16.mxu0 %v5507
    %8435 = vmatmul.mubr.bf16.gmra.mrb[0].mxu0 %v5506
    %v8436 = vpop.f32.mrb[0].mxu0
    %v8437 = vadd.f32 %v8396, %v8436
    %v8438 = vpop.f32.mrb[0].mxu0
    %v8439 = vadd.f32 %v8398, %v8438
    %v8440 = vpop.f32.mrb[0].mxu0
    %v8441 = vpop.f32.mrb[0].mxu0
    %8442 = vdwg.mxu0
    %8443 = vmatprep.subr.bf16.mxu0 %v6677
    %8444 = vmatpush1.bf16.msra.mxu0 %v6676
    %8445 = vmatprep.subr.bf16.mxu0 %v6701
    %8446 = vmatpush1.bf16.msra.mxu0 %v6700
    %8447 = vmatprep.subr.bf16.mxu0 %v6725
    %8448 = vmatpush1.bf16.msra.mxu0 %v6724
    %8449 = vmatprep.subr.bf16.mxu0 %v6749
    %8450 = vmatpush1.bf16.msra.mxu0 %v6748
    %8451 = vmatprep.subr.bf16.mxu0 %v6773
    %8452 = vmatpush1.bf16.msra.mxu0 %v6772
    %8453 = vmatprep.subr.bf16.mxu0 %v6797
    %8454 = vmatpush1.bf16.msra.mxu0 %v6796
    %8455 = vmatprep.subr.bf16.mxu0 %v6821
    %8456 = vmatpush1.bf16.msra.mxu0 %v6820
    %8457 = vmatprep.subr.bf16.mxu0 %v6845
    %8458 = vmatpush1.bf16.msra.mxu0 %v6844
    %8459 = vmatprep.subr.bf16.mxu0 %v6869
    %8460 = vmatpush1.bf16.msra.mxu0 %v6868
    %8461 = vmatprep.subr.bf16.mxu0 %v6893
    %8462 = vmatpush1.bf16.msra.mxu0 %v6892
    %8463 = vmatprep.subr.bf16.mxu0 %v6917
    %8464 = vmatpush1.bf16.msra.mxu0 %v6916
    %8465 = vmatprep.subr.bf16.mxu0 %v6941
    %8466 = vmatpush1.bf16.msra.mxu0 %v6940
    %8467 = vmatprep.subr.bf16.mxu0 %v6965
    %8468 = vmatpush1.bf16.msra.mxu0 %v6964
    %8469 = vmatprep.subr.bf16.mxu0 %v6989
    %8470 = vmatpush1.bf16.msra.mxu0 %v6988
    %8471 = vmatprep.subr.bf16.mxu0 %v7013
    %8472 = vmatpush1.bf16.msra.mxu0 %v7012
    %8473 = vmatprep.subr.bf16.mxu0 %v7037
    %8474 = vmatpush1.bf16.msra.mxu0 %v7036
    %8475 = vmatprep.mubr.bf16.mxu0 %v5509
    %8476 = vmatmul.mubr.bf16.gmra.mrb[0].mxu0 %v5508
    %v8477 = vpop.f32.mrb[0].mxu0
    %v8478 = vadd.f32 %v8437, %v8477
    %v8479 = vpop.f32.mrb[0].mxu0
    %v8480 = vadd.f32 %v8439, %v8479
    %v8481 = vpop.f32.mrb[0].mxu0
    %v8482 = vpop.f32.mrb[0].mxu0
    %8483 = vdwg.mxu0
    %8484 = vmatprep.subr.bf16.mxu0 %v5527
    %8485 = vmatpush1.bf16.msra.mxu0 %v5526
    %8486 = vmatprep.subr.bf16.mxu0 %v5551
    %8487 = vmatpush1.bf16.msra.mxu0 %v5550
    %8488 = vmatprep.subr.bf16.mxu0 %v5575
    %8489 = vmatpush1.bf16.msra.mxu0 %v5574
    %8490 = vmatprep.subr.bf16.mxu0 %v5599
    %8491 = vmatpush1.bf16.msra.mxu0 %v5598
    %8492 = vmatprep.subr.bf16.mxu0 %v5623
    %8493 = vmatpush1.bf16.msra.mxu0 %v5622
    %8494 = vmatprep.subr.bf16.mxu0 %v5647
    %8495 = vmatpush1.bf16.msra.mxu0 %v5646
    %8496 = vmatprep.subr.bf16.mxu0 %v5671
    %8497 = vmatpush1.bf16.msra.mxu0 %v5670
    %8498 = vmatprep.subr.bf16.mxu0 %v5695
    %8499 = vmatpush1.bf16.msra.mxu0 %v5694
    %8500 = vmatprep.subr.bf16.mxu0 %v5719
    %8501 = vmatpush1.bf16.msra.mxu0 %v5718
    %8502 = vmatprep.subr.bf16.mxu0 %v5743
    %8503 = vmatpush1.bf16.msra.mxu0 %v5742
    %8504 = vmatprep.subr.bf16.mxu0 %v5767
    %8505 = vmatpush1.bf16.msra.mxu0 %v5766
    %8506 = vmatprep.subr.bf16.mxu0 %v5791
    %8507 = vmatpush1.bf16.msra.mxu0 %v5790
    %8508 = vmatprep.subr.bf16.mxu0 %v5815
    %8509 = vmatpush1.bf16.msra.mxu0 %v5814
    %8510 = vmatprep.subr.bf16.mxu0 %v5839
    %8511 = vmatpush1.bf16.msra.mxu0 %v5838
    %8512 = vmatprep.subr.bf16.mxu0 %v5863
    %8513 = vmatpush1.bf16.msra.mxu0 %v5862
    %8514 = vmatprep.subr.bf16.mxu0 %v5887
    %8515 = vmatpush1.bf16.msra.mxu0 %v5886
    %8516 = vmatprep.mubr.bf16.mxu0 %v5503
    %8517 = vmatmul.mubr.bf16.gmra.mrb[0].mxu0 %v5502
    %v8518 = vpop.f32.mrb[0].mxu0
    %v8519 = vadd.f32 %v7119, %v8518
    %v8520 = vpop.f32.mrb[0].mxu0
    %v8521 = vadd.f32 %v7123, %v8520
    %v8522 = vpop.f32.mrb[0].mxu0
    %v8523 = vpop.f32.mrb[0].mxu0
    %8524 = vdwg.mxu0
    %8525 = vmatprep.subr.bf16.mxu0 %v5911
    %8526 = vmatpush1.bf16.msra.mxu0 %v5910
    %8527 = vmatprep.subr.bf16.mxu0 %v5935
    %8528 = vmatpush1.bf16.msra.mxu0 %v5934
    %8529 = vmatprep.subr.bf16.mxu0 %v5959
    %8530 = vmatpush1.bf16.msra.mxu0 %v5958
    %8531 = vmatprep.subr.bf16.mxu0 %v5983
    %8532 = vmatpush1.bf16.msra.mxu0 %v5982
    %8533 = vmatprep.subr.bf16.mxu0 %v6007
    %8534 = vmatpush1.bf16.msra.mxu0 %v6006
    %8535 = vmatprep.subr.bf16.mxu0 %v6031
    %8536 = vmatpush1.bf16.msra.mxu0 %v6030
    %8537 = vmatprep.subr.bf16.mxu0 %v6055
    %8538 = vmatpush1.bf16.msra.mxu0 %v6054
    %8539 = vmatprep.subr.bf16.mxu0 %v6079
    %8540 = vmatpush1.bf16.msra.mxu0 %v6078
    %8541 = vmatprep.subr.bf16.mxu0 %v6103
    %8542 = vmatpush1.bf16.msra.mxu0 %v6102
    %8543 = vmatprep.subr.bf16.mxu0 %v6127
    %8544 = vmatpush1.bf16.msra.mxu0 %v6126
    %8545 = vmatprep.subr.bf16.mxu0 %v6151
    %8546 = vmatpush1.bf16.msra.mxu0 %v6150
    %8547 = vmatprep.subr.bf16.mxu0 %v6175
    %8548 = vmatpush1.bf16.msra.mxu0 %v6174
    %8549 = vmatprep.subr.bf16.mxu0 %v6199
    %8550 = vmatpush1.bf16.msra.mxu0 %v6198
    %8551 = vmatprep.subr.bf16.mxu0 %v6223
    %8552 = vmatpush1.bf16.msra.mxu0 %v6222
    %8553 = vmatprep.subr.bf16.mxu0 %v6247
    %8554 = vmatpush1.bf16.msra.mxu0 %v6246
    %8555 = vmatprep.subr.bf16.mxu0 %v6271
    %8556 = vmatpush1.bf16.msra.mxu0 %v6270
    %8557 = vmatprep.mubr.bf16.mxu0 %v5505
    %8558 = vmatmul.mubr.bf16.gmra.mrb[0].mxu0 %v5504
    %v8559 = vpop.f32.mrb[0].mxu0
    %v8560 = vadd.f32 %v8519, %v8559
    %v8561 = vpop.f32.mrb[0].mxu0
    %v8562 = vadd.f32 %v8521, %v8561
    %v8563 = vpop.f32.mrb[0].mxu0
    %v8564 = vpop.f32.mrb[0].mxu0
    %8565 = vdwg.mxu0
    %8566 = vmatprep.subr.bf16.mxu0 %v6295
    %8567 = vmatpush1.bf16.msra.mxu0 %v6294
    %8568 = vmatprep.subr.bf16.mxu0 %v6319
    %8569 = vmatpush1.bf16.msra.mxu0 %v6318
    %8570 = vmatprep.subr.bf16.mxu0 %v6343
    %8571 = vmatpush1.bf16.msra.mxu0 %v6342
    %8572 = vmatprep.subr.bf16.mxu0 %v6367
    %8573 = vmatpush1.bf16.msra.mxu0 %v6366
    %8574 = vmatprep.subr.bf16.mxu0 %v6391
    %8575 = vmatpush1.bf16.msra.mxu0 %v6390
    %8576 = vmatprep.subr.bf16.mxu0 %v6415
    %8577 = vmatpush1.bf16.msra.mxu0 %v6414
    %8578 = vmatprep.subr.bf16.mxu0 %v6439
    %8579 = vmatpush1.bf16.msra.mxu0 %v6438
    %8580 = vmatprep.subr.bf16.mxu0 %v6463
    %8581 = vmatpush1.bf16.msra.mxu0 %v6462
    %8582 = vmatprep.subr.bf16.mxu0 %v6487
    %8583 = vmatpush1.bf16.msra.mxu0 %v6486
    %8584 = vmatprep.subr.bf16.mxu0 %v6511
    %8585 = vmatpush1.bf16.msra.mxu0 %v6510
    %8586 = vmatprep.subr.bf16.mxu0 %v6535
    %8587 = vmatpush1.bf16.msra.mxu0 %v6534
    %8588 = vmatprep.subr.bf16.mxu0 %v6559
    %8589 = vmatpush1.bf16.msra.mxu0 %v6558
    %8590 = vmatprep.subr.bf16.mxu0 %v6583
    %8591 = vmatpush1.bf16.msra.mxu0 %v6582
    %8592 = vmatprep.subr.bf16.mxu0 %v6607
    %8593 = vmatpush1.bf16.msra.mxu0 %v6606
    %8594 = vmatprep.subr.bf16.mxu0 %v6631
    %8595 = vmatpush1.bf16.msra.mxu0 %v6630
    %8596 = vmatprep.subr.bf16.mxu0 %v6655
    %8597 = vmatpush1.bf16.msra.mxu0 %v6654
    %8598 = vmatprep.mubr.bf16.mxu0 %v5507
    %8599 = vmatmul.mubr.bf16.gmra.mrb[0].mxu0 %v5506
    %v8600 = vpop.f32.mrb[0].mxu0
    %v8601 = vadd.f32 %v8560, %v8600
    %v8602 = vpop.f32.mrb[0].mxu0
    %v8603 = vadd.f32 %v8562, %v8602
    %v8604 = vpop.f32.mrb[0].mxu0
    %v8605 = vpop.f32.mrb[0].mxu0
    %8606 = vdwg.mxu0
    %8607 = vmatprep.subr.bf16.mxu0 %v6679
    %8608 = vmatpush1.bf16.msra.mxu0 %v6678
    %8609 = vmatprep.subr.bf16.mxu0 %v6703
    %8610 = vmatpush1.bf16.msra.mxu0 %v6702
    %8611 = vmatprep.subr.bf16.mxu0 %v6727
    %8612 = vmatpush1.bf16.msra.mxu0 %v6726
    %8613 = vmatprep.subr.bf16.mxu0 %v6751
    %8614 = vmatpush1.bf16.msra.mxu0 %v6750
    %8615 = vmatprep.subr.bf16.mxu0 %v6775
    %8616 = vmatpush1.bf16.msra.mxu0 %v6774
    %8617 = vmatprep.subr.bf16.mxu0 %v6799
    %8618 = vmatpush1.bf16.msra.mxu0 %v6798
    %8619 = vmatprep.subr.bf16.mxu0 %v6823
    %8620 = vmatpush1.bf16.msra.mxu0 %v6822
    %8621 = vmatprep.subr.bf16.mxu0 %v6847
    %8622 = vmatpush1.bf16.msra.mxu0 %v6846
    %8623 = vmatprep.subr.bf16.mxu0 %v6871
    %8624 = vmatpush1.bf16.msra.mxu0 %v6870
    %8625 = vmatprep.subr.bf16.mxu0 %v6895
    %8626 = vmatpush1.bf16.msra.mxu0 %v6894
    %8627 = vmatprep.subr.bf16.mxu0 %v6919
    %8628 = vmatpush1.bf16.msra.mxu0 %v6918
    %8629 = vmatprep.subr.bf16.mxu0 %v6943
    %8630 = vmatpush1.bf16.msra.mxu0 %v6942
    %8631 = vmatprep.subr.bf16.mxu0 %v6967
    %8632 = vmatpush1.bf16.msra.mxu0 %v6966
    %8633 = vmatprep.subr.bf16.mxu0 %v6991
    %8634 = vmatpush1.bf16.msra.mxu0 %v6990
    %8635 = vmatprep.subr.bf16.mxu0 %v7015
    %8636 = vmatpush1.bf16.msra.mxu0 %v7014
    %8637 = vmatprep.subr.bf16.mxu0 %v7039
    %8638 = vmatpush1.bf16.msra.mxu0 %v7038
    %8639 = vmatprep.mubr.bf16.mxu0 %v5509
    %8640 = vmatmul.mubr.bf16.gmra.mrb[0].mxu0 %v5508
    %v8641 = vpop.f32.mrb[0].mxu0
    %v8642 = vadd.f32 %v8601, %v8641
    %v8643 = vpop.f32.mrb[0].mxu0
    %v8644 = vadd.f32 %v8603, %v8643
    %v8645 = vpop.f32.mrb[0].mxu0
    %v8646 = vpop.f32.mrb[0].mxu0
    %8647 = vdwg.mxu0
    %8648 = vmatprep.subr.bf16.mxu0 %v5529
    %8649 = vmatpush1.bf16.msra.mxu0 %v5528
    %8650 = vmatprep.subr.bf16.mxu0 %v5553
    %8651 = vmatpush1.bf16.msra.mxu0 %v5552
    %8652 = vmatprep.subr.bf16.mxu0 %v5577
    %8653 = vmatpush1.bf16.msra.mxu0 %v5576
    %8654 = vmatprep.subr.bf16.mxu0 %v5601
    %8655 = vmatpush1.bf16.msra.mxu0 %v5600
    %8656 = vmatprep.subr.bf16.mxu0 %v5625
    %8657 = vmatpush1.bf16.msra.mxu0 %v5624
    %8658 = vmatprep.subr.bf16.mxu0 %v5649
    %8659 = vmatpush1.bf16.msra.mxu0 %v5648
    %8660 = vmatprep.subr.bf16.mxu0 %v5673
    %8661 = vmatpush1.bf16.msra.mxu0 %v5672
    %8662 = vmatprep.subr.bf16.mxu0 %v5697
    %8663 = vmatpush1.bf16.msra.mxu0 %v5696
    %8664 = vmatprep.subr.bf16.mxu0 %v5721
    %8665 = vmatpush1.bf16.msra.mxu0 %v5720
    %8666 = vmatprep.subr.bf16.mxu0 %v5745
    %8667 = vmatpush1.bf16.msra.mxu0 %v5744
    %8668 = vmatprep.subr.bf16.mxu0 %v5769
    %8669 = vmatpush1.bf16.msra.mxu0 %v5768
    %8670 = vmatprep.subr.bf16.mxu0 %v5793
    %8671 = vmatpush1.bf16.msra.mxu0 %v5792
    %8672 = vmatprep.subr.bf16.mxu0 %v5817
    %8673 = vmatpush1.bf16.msra.mxu0 %v5816
    %8674 = vmatprep.subr.bf16.mxu0 %v5841
    %8675 = vmatpush1.bf16.msra.mxu0 %v5840
    %8676 = vmatprep.subr.bf16.mxu0 %v5865
    %8677 = vmatpush1.bf16.msra.mxu0 %v5864
    %8678 = vmatprep.subr.bf16.mxu0 %v5889
    %8679 = vmatpush1.bf16.msra.mxu0 %v5888
    %8680 = vmatprep.mubr.bf16.mxu0 %v5503
    %8681 = vmatmul.mubr.bf16.gmra.mrb[0].mxu0 %v5502
    %v8682 = vpop.f32.mrb[0].mxu0
    %v8683 = vadd.f32 %v7127, %v8682
    %v8684 = vpop.f32.mrb[0].mxu0
    %v8685 = vadd.f32 %v7131, %v8684
    %v8686 = vpop.f32.mrb[0].mxu0
    %v8687 = vpop.f32.mrb[0].mxu0
    %8688 = vdwg.mxu0
    %8689 = vmatprep.subr.bf16.mxu0 %v5913
    %8690 = vmatpush1.bf16.msra.mxu0 %v5912
    %8691 = vmatprep.subr.bf16.mxu0 %v5937
    %8692 = vmatpush1.bf16.msra.mxu0 %v5936
    %8693 = vmatprep.subr.bf16.mxu0 %v5961
    %8694 = vmatpush1.bf16.msra.mxu0 %v5960
    %8695 = vmatprep.subr.bf16.mxu0 %v5985
    %8696 = vmatpush1.bf16.msra.mxu0 %v5984
    %8697 = vmatprep.subr.bf16.mxu0 %v6009
    %8698 = vmatpush1.bf16.msra.mxu0 %v6008
    %8699 = vmatprep.subr.bf16.mxu0 %v6033
    %8700 = vmatpush1.bf16.msra.mxu0 %v6032
    %8701 = vmatprep.subr.bf16.mxu0 %v6057
    %8702 = vmatpush1.bf16.msra.mxu0 %v6056
    %8703 = vmatprep.subr.bf16.mxu0 %v6081
    %8704 = vmatpush1.bf16.msra.mxu0 %v6080
    %8705 = vmatprep.subr.bf16.mxu0 %v6105
    %8706 = vmatpush1.bf16.msra.mxu0 %v6104
    %8707 = vmatprep.subr.bf16.mxu0 %v6129
    %8708 = vmatpush1.bf16.msra.mxu0 %v6128
    %8709 = vmatprep.subr.bf16.mxu0 %v6153
    %8710 = vmatpush1.bf16.msra.mxu0 %v6152
    %8711 = vmatprep.subr.bf16.mxu0 %v6177
    %8712 = vmatpush1.bf16.msra.mxu0 %v6176
    %8713 = vmatprep.subr.bf16.mxu0 %v6201
    %8714 = vmatpush1.bf16.msra.mxu0 %v6200
    %8715 = vmatprep.subr.bf16.mxu0 %v6225
    %8716 = vmatpush1.bf16.msra.mxu0 %v6224
    %8717 = vmatprep.subr.bf16.mxu0 %v6249
    %8718 = vmatpush1.bf16.msra.mxu0 %v6248
    %8719 = vmatprep.subr.bf16.mxu0 %v6273
    %8720 = vmatpush1.bf16.msra.mxu0 %v6272
    %8721 = vmatprep.mubr.bf16.mxu0 %v5505
    %8722 = vmatmul.mubr.bf16.gmra.mrb[0].mxu0 %v5504
    %v8723 = vpop.f32.mrb[0].mxu0
    %v8724 = vadd.f32 %v8683, %v8723
    %v8725 = vpop.f32.mrb[0].mxu0
    %v8726 = vadd.f32 %v8685, %v8725
    %v8727 = vpop.f32.mrb[0].mxu0
    %v8728 = vpop.f32.mrb[0].mxu0
    %8729 = vdwg.mxu0
    %8730 = vmatprep.subr.bf16.mxu0 %v6297
    %8731 = vmatpush1.bf16.msra.mxu0 %v6296
    %8732 = vmatprep.subr.bf16.mxu0 %v6321
    %8733 = vmatpush1.bf16.msra.mxu0 %v6320
    %8734 = vmatprep.subr.bf16.mxu0 %v6345
    %8735 = vmatpush1.bf16.msra.mxu0 %v6344
    %8736 = vmatprep.subr.bf16.mxu0 %v6369
    %8737 = vmatpush1.bf16.msra.mxu0 %v6368
    %8738 = vmatprep.subr.bf16.mxu0 %v6393
    %8739 = vmatpush1.bf16.msra.mxu0 %v6392
    %8740 = vmatprep.subr.bf16.mxu0 %v6417
    %8741 = vmatpush1.bf16.msra.mxu0 %v6416
    %8742 = vmatprep.subr.bf16.mxu0 %v6441
    %8743 = vmatpush1.bf16.msra.mxu0 %v6440
    %8744 = vmatprep.subr.bf16.mxu0 %v6465
    %8745 = vmatpush1.bf16.msra.mxu0 %v6464
    %8746 = vmatprep.subr.bf16.mxu0 %v6489
    %8747 = vmatpush1.bf16.msra.mxu0 %v6488
    %8748 = vmatprep.subr.bf16.mxu0 %v6513
    %8749 = vmatpush1.bf16.msra.mxu0 %v6512
    %8750 = vmatprep.subr.bf16.mxu0 %v6537
    %8751 = vmatpush1.bf16.msra.mxu0 %v6536
    %8752 = vmatprep.subr.bf16.mxu0 %v6561
    %8753 = vmatpush1.bf16.msra.mxu0 %v6560
    %8754 = vmatprep.subr.bf16.mxu0 %v6585
    %8755 = vmatpush1.bf16.msra.mxu0 %v6584
    %8756 = vmatprep.subr.bf16.mxu0 %v6609
    %8757 = vmatpush1.bf16.msra.mxu0 %v6608
    %8758 = vmatprep.subr.bf16.mxu0 %v6633
    %8759 = vmatpush1.bf16.msra.mxu0 %v6632
    %8760 = vmatprep.subr.bf16.mxu0 %v6657
    %8761 = vmatpush1.bf16.msra.mxu0 %v6656
    %8762 = vmatprep.mubr.bf16.mxu0 %v5507
    %8763 = vmatmul.mubr.bf16.gmra.mrb[0].mxu0 %v5506
    %v8764 = vpop.f32.mrb[0].mxu0
    %v8765 = vadd.f32 %v8724, %v8764
    %v8766 = vpop.f32.mrb[0].mxu0
    %v8767 = vadd.f32 %v8726, %v8766
    %v8768 = vpop.f32.mrb[0].mxu0
    %v8769 = vpop.f32.mrb[0].mxu0
    %8770 = vdwg.mxu0
    %8771 = vmatprep.subr.bf16.mxu0 %v6681
    %8772 = vmatpush1.bf16.msra.mxu0 %v6680
    %8773 = vmatprep.subr.bf16.mxu0 %v6705
    %8774 = vmatpush1.bf16.msra.mxu0 %v6704
    %8775 = vmatprep.subr.bf16.mxu0 %v6729
    %8776 = vmatpush1.bf16.msra.mxu0 %v6728
    %8777 = vmatprep.subr.bf16.mxu0 %v6753
    %8778 = vmatpush1.bf16.msra.mxu0 %v6752
    %8779 = vmatprep.subr.bf16.mxu0 %v6777
    %8780 = vmatpush1.bf16.msra.mxu0 %v6776
    %8781 = vmatprep.subr.bf16.mxu0 %v6801
    %8782 = vmatpush1.bf16.msra.mxu0 %v6800
    %8783 = vmatprep.subr.bf16.mxu0 %v6825
    %8784 = vmatpush1.bf16.msra.mxu0 %v6824
    %8785 = vmatprep.subr.bf16.mxu0 %v6849
    %8786 = vmatpush1.bf16.msra.mxu0 %v6848
    %8787 = vmatprep.subr.bf16.mxu0 %v6873
    %8788 = vmatpush1.bf16.msra.mxu0 %v6872
    %8789 = vmatprep.subr.bf16.mxu0 %v6897
    %8790 = vmatpush1.bf16.msra.mxu0 %v6896
    %8791 = vmatprep.subr.bf16.mxu0 %v6921
    %8792 = vmatpush1.bf16.msra.mxu0 %v6920
    %8793 = vmatprep.subr.bf16.mxu0 %v6945
    %8794 = vmatpush1.bf16.msra.mxu0 %v6944
    %8795 = vmatprep.subr.bf16.mxu0 %v6969
    %8796 = vmatpush1.bf16.msra.mxu0 %v6968
    %8797 = vmatprep.subr.bf16.mxu0 %v6993
    %8798 = vmatpush1.bf16.msra.mxu0 %v6992
    %8799 = vmatprep.subr.bf16.mxu0 %v7017
    %8800 = vmatpush1.bf16.msra.mxu0 %v7016
    %8801 = vmatprep.subr.bf16.mxu0 %v7041
    %8802 = vmatpush1.bf16.msra.mxu0 %v7040
    %8803 = vmatprep.mubr.bf16.mxu0 %v5509
    %8804 = vmatmul.mubr.bf16.gmra.mrb[0].mxu0 %v5508
    %v8805 = vpop.f32.mrb[0].mxu0
    %v8806 = vadd.f32 %v8765, %v8805
    %v8807 = vpop.f32.mrb[0].mxu0
    %v8808 = vadd.f32 %v8767, %v8807
    %v8809 = vpop.f32.mrb[0].mxu0
    %v8810 = vpop.f32.mrb[0].mxu0
    %8811 = vdwg.mxu0
    %8812 = vmatprep.subr.bf16.mxu0 %v5531
    %8813 = vmatpush1.bf16.msra.mxu0 %v5530
    %8814 = vmatprep.subr.bf16.mxu0 %v5555
    %8815 = vmatpush1.bf16.msra.mxu0 %v5554
    %8816 = vmatprep.subr.bf16.mxu0 %v5579
    %8817 = vmatpush1.bf16.msra.mxu0 %v5578
    %8818 = vmatprep.subr.bf16.mxu0 %v5603
    %8819 = vmatpush1.bf16.msra.mxu0 %v5602
    %8820 = vmatprep.subr.bf16.mxu0 %v5627
    %8821 = vmatpush1.bf16.msra.mxu0 %v5626
    %8822 = vmatprep.subr.bf16.mxu0 %v5651
    %8823 = vmatpush1.bf16.msra.mxu0 %v5650
    %8824 = vmatprep.subr.bf16.mxu0 %v5675
    %8825 = vmatpush1.bf16.msra.mxu0 %v5674
    %8826 = vmatprep.subr.bf16.mxu0 %v5699
    %8827 = vmatpush1.bf16.msra.mxu0 %v5698
    %8828 = vmatprep.subr.bf16.mxu0 %v5723
    %8829 = vmatpush1.bf16.msra.mxu0 %v5722
    %8830 = vmatprep.subr.bf16.mxu0 %v5747
    %8831 = vmatpush1.bf16.msra.mxu0 %v5746
    %8832 = vmatprep.subr.bf16.mxu0 %v5771
    %8833 = vmatpush1.bf16.msra.mxu0 %v5770
    %8834 = vmatprep.subr.bf16.mxu0 %v5795
    %8835 = vmatpush1.bf16.msra.mxu0 %v5794
    %8836 = vmatprep.subr.bf16.mxu0 %v5819
    %8837 = vmatpush1.bf16.msra.mxu0 %v5818
    %8838 = vmatprep.subr.bf16.mxu0 %v5843
    %8839 = vmatpush1.bf16.msra.mxu0 %v5842
    %8840 = vmatprep.subr.bf16.mxu0 %v5867
    %8841 = vmatpush1.bf16.msra.mxu0 %v5866
    %8842 = vmatprep.subr.bf16.mxu0 %v5891
    %8843 = vmatpush1.bf16.msra.mxu0 %v5890
    %8844 = vmatprep.mubr.bf16.mxu0 %v5503
    %8845 = vmatmul.mubr.bf16.gmra.mrb[0].mxu0 %v5502
    %v8846 = vpop.f32.mrb[0].mxu0
    %v8847 = vadd.f32 %v7135, %v8846
    %v8848 = vpop.f32.mrb[0].mxu0
    %v8849 = vadd.f32 %v7139, %v8848
    %v8850 = vpop.f32.mrb[0].mxu0
    %v8851 = vpop.f32.mrb[0].mxu0
    %8852 = vdwg.mxu0
    %8853 = vmatprep.subr.bf16.mxu0 %v5915
    %8854 = vmatpush1.bf16.msra.mxu0 %v5914
    %8855 = vmatprep.subr.bf16.mxu0 %v5939
    %8856 = vmatpush1.bf16.msra.mxu0 %v5938
    %8857 = vmatprep.subr.bf16.mxu0 %v5963
    %8858 = vmatpush1.bf16.msra.mxu0 %v5962
    %8859 = vmatprep.subr.bf16.mxu0 %v5987
    %8860 = vmatpush1.bf16.msra.mxu0 %v5986
    %8861 = vmatprep.subr.bf16.mxu0 %v6011
    %8862 = vmatpush1.bf16.msra.mxu0 %v6010
    %8863 = vmatprep.subr.bf16.mxu0 %v6035
    %8864 = vmatpush1.bf16.msra.mxu0 %v6034
    %8865 = vmatprep.subr.bf16.mxu0 %v6059
    %8866 = vmatpush1.bf16.msra.mxu0 %v6058
    %8867 = vmatprep.subr.bf16.mxu0 %v6083
    %8868 = vmatpush1.bf16.msra.mxu0 %v6082
    %8869 = vmatprep.subr.bf16.mxu0 %v6107
    %8870 = vmatpush1.bf16.msra.mxu0 %v6106
    %8871 = vmatprep.subr.bf16.mxu0 %v6131
    %8872 = vmatpush1.bf16.msra.mxu0 %v6130
    %8873 = vmatprep.subr.bf16.mxu0 %v6155
    %8874 = vmatpush1.bf16.msra.mxu0 %v6154
    %8875 = vmatprep.subr.bf16.mxu0 %v6179
    %8876 = vmatpush1.bf16.msra.mxu0 %v6178
    %8877 = vmatprep.subr.bf16.mxu0 %v6203
    %8878 = vmatpush1.bf16.msra.mxu0 %v6202
    %8879 = vmatprep.subr.bf16.mxu0 %v6227
    %8880 = vmatpush1.bf16.msra.mxu0 %v6226
    %8881 = vmatprep.subr.bf16.mxu0 %v6251
    %8882 = vmatpush1.bf16.msra.mxu0 %v6250
    %8883 = vmatprep.subr.bf16.mxu0 %v6275
    %8884 = vmatpush1.bf16.msra.mxu0 %v6274
    %8885 = vmatprep.mubr.bf16.mxu0 %v5505
    %8886 = vmatmul.mubr.bf16.gmra.mrb[0].mxu0 %v5504
    %v8887 = vpop.f32.mrb[0].mxu0
    %v8888 = vadd.f32 %v8847, %v8887
    %v8889 = vpop.f32.mrb[0].mxu0
    %v8890 = vadd.f32 %v8849, %v8889
    %v8891 = vpop.f32.mrb[0].mxu0
    %v8892 = vpop.f32.mrb[0].mxu0
    %8893 = vdwg.mxu0
    %8894 = vmatprep.subr.bf16.mxu0 %v6299
    %8895 = vmatpush1.bf16.msra.mxu0 %v6298
    %8896 = vmatprep.subr.bf16.mxu0 %v6323
    %8897 = vmatpush1.bf16.msra.mxu0 %v6322
    %8898 = vmatprep.subr.bf16.mxu0 %v6347
    %8899 = vmatpush1.bf16.msra.mxu0 %v6346
    %8900 = vmatprep.subr.bf16.mxu0 %v6371
    %8901 = vmatpush1.bf16.msra.mxu0 %v6370
    %8902 = vmatprep.subr.bf16.mxu0 %v6395
    %8903 = vmatpush1.bf16.msra.mxu0 %v6394
    %8904 = vmatprep.subr.bf16.mxu0 %v6419
    %8905 = vmatpush1.bf16.msra.mxu0 %v6418
    %8906 = vmatprep.subr.bf16.mxu0 %v6443
    %8907 = vmatpush1.bf16.msra.mxu0 %v6442
    %8908 = vmatprep.subr.bf16.mxu0 %v6467
    %8909 = vmatpush1.bf16.msra.mxu0 %v6466
    %8910 = vmatprep.subr.bf16.mxu0 %v6491
    %8911 = vmatpush1.bf16.msra.mxu0 %v6490
    %8912 = vmatprep.subr.bf16.mxu0 %v6515
    %8913 = vmatpush1.bf16.msra.mxu0 %v6514
    %8914 = vmatprep.subr.bf16.mxu0 %v6539
    %8915 = vmatpush1.bf16.msra.mxu0 %v6538
    %8916 = vmatprep.subr.bf16.mxu0 %v6563
    %8917 = vmatpush1.bf16.msra.mxu0 %v6562
    %8918 = vmatprep.subr.bf16.mxu0 %v6587
    %8919 = vmatpush1.bf16.msra.mxu0 %v6586
    %8920 = vmatprep.subr.bf16.mxu0 %v6611
    %8921 = vmatpush1.bf16.msra.mxu0 %v6610
    %8922 = vmatprep.subr.bf16.mxu0 %v6635
    %8923 = vmatpush1.bf16.msra.mxu0 %v6634
    %8924 = vmatprep.subr.bf16.mxu0 %v6659
    %8925 = vmatpush1.bf16.msra.mxu0 %v6658
    %8926 = vmatprep.mubr.bf16.mxu0 %v5507
    %8927 = vmatmul.mubr.bf16.gmra.mrb[0].mxu0 %v5506
    %v8928 = vpop.f32.mrb[0].mxu0
    %v8929 = vadd.f32 %v8888, %v8928
    %v8930 = vpop.f32.mrb[0].mxu0
    %v8931 = vadd.f32 %v8890, %v8930
    %v8932 = vpop.f32.mrb[0].mxu0
    %v8933 = vpop.f32.mrb[0].mxu0
    %8934 = vdwg.mxu0
    %8935 = vmatprep.subr.bf16.mxu0 %v6683
    %8936 = vmatpush1.bf16.msra.mxu0 %v6682
    %8937 = vmatprep.subr.bf16.mxu0 %v6707
    %8938 = vmatpush1.bf16.msra.mxu0 %v6706
    %8939 = vmatprep.subr.bf16.mxu0 %v6731
    %8940 = vmatpush1.bf16.msra.mxu0 %v6730
    %8941 = vmatprep.subr.bf16.mxu0 %v6755
    %8942 = vmatpush1.bf16.msra.mxu0 %v6754
    %8943 = vmatprep.subr.bf16.mxu0 %v6779
    %8944 = vmatpush1.bf16.msra.mxu0 %v6778
    %8945 = vmatprep.subr.bf16.mxu0 %v6803
    %8946 = vmatpush1.bf16.msra.mxu0 %v6802
    %8947 = vmatprep.subr.bf16.mxu0 %v6827
    %8948 = vmatpush1.bf16.msra.mxu0 %v6826
    %8949 = vmatprep.subr.bf16.mxu0 %v6851
    %8950 = vmatpush1.bf16.msra.mxu0 %v6850
    %8951 = vmatprep.subr.bf16.mxu0 %v6875
    %8952 = vmatpush1.bf16.msra.mxu0 %v6874
    %8953 = vmatprep.subr.bf16.mxu0 %v6899
    %8954 = vmatpush1.bf16.msra.mxu0 %v6898
    %8955 = vmatprep.subr.bf16.mxu0 %v6923
    %8956 = vmatpush1.bf16.msra.mxu0 %v6922
    %8957 = vmatprep.subr.bf16.mxu0 %v6947
    %8958 = vmatpush1.bf16.msra.mxu0 %v6946
    %8959 = vmatprep.subr.bf16.mxu0 %v6971
    %8960 = vmatpush1.bf16.msra.mxu0 %v6970
    %8961 = vmatprep.subr.bf16.mxu0 %v6995
    %8962 = vmatpush1.bf16.msra.mxu0 %v6994
    %8963 = vmatprep.subr.bf16.mxu0 %v7019
    %8964 = vmatpush1.bf16.msra.mxu0 %v7018
    %8965 = vmatprep.subr.bf16.mxu0 %v7043
    %8966 = vmatpush1.bf16.msra.mxu0 %v7042
    %8967 = vmatprep.mubr.bf16.mxu0 %v5509
    %8968 = vmatmul.mubr.bf16.gmra.mrb[0].mxu0 %v5508
    %v8969 = vpop.f32.mrb[0].mxu0
    %v8970 = vadd.f32 %v8929, %v8969
    %v8971 = vpop.f32.mrb[0].mxu0
    %v8972 = vadd.f32 %v8931, %v8971
    %v8973 = vpop.f32.mrb[0].mxu0
    %v8974 = vpop.f32.mrb[0].mxu0
    %8975 = vdwg.mxu0
    %8976 = vmatprep.subr.bf16.mxu0 %v5533
    %8977 = vmatpush1.bf16.msra.mxu0 %v5532
    %8978 = vmatprep.subr.bf16.mxu0 %v5557
    %8979 = vmatpush1.bf16.msra.mxu0 %v5556
    %8980 = vmatprep.subr.bf16.mxu0 %v5581
    %8981 = vmatpush1.bf16.msra.mxu0 %v5580
    %8982 = vmatprep.subr.bf16.mxu0 %v5605
    %8983 = vmatpush1.bf16.msra.mxu0 %v5604
    %8984 = vmatprep.subr.bf16.mxu0 %v5629
    %8985 = vmatpush1.bf16.msra.mxu0 %v5628
    %8986 = vmatprep.subr.bf16.mxu0 %v5653
    %8987 = vmatpush1.bf16.msra.mxu0 %v5652
    %8988 = vmatprep.subr.bf16.mxu0 %v5677
    %8989 = vmatpush1.bf16.msra.mxu0 %v5676
    %8990 = vmatprep.subr.bf16.mxu0 %v5701
    %8991 = vmatpush1.bf16.msra.mxu0 %v5700
    %8992 = vmatprep.subr.bf16.mxu0 %v5725
    %8993 = vmatpush1.bf16.msra.mxu0 %v5724
    %8994 = vmatprep.subr.bf16.mxu0 %v5749
    %8995 = vmatpush1.bf16.msra.mxu0 %v5748
    %8996 = vmatprep.subr.bf16.mxu0 %v5773
    %8997 = vmatpush1.bf16.msra.mxu0 %v5772
    %8998 = vmatprep.subr.bf16.mxu0 %v5797
    %8999 = vmatpush1.bf16.msra.mxu0 %v5796
    %9000 = vmatprep.subr.bf16.mxu0 %v5821
    %9001 = vmatpush1.bf16.msra.mxu0 %v5820
    %9002 = vmatprep.subr.bf16.mxu0 %v5845
    %9003 = vmatpush1.bf16.msra.mxu0 %v5844
    %9004 = vmatprep.subr.bf16.mxu0 %v5869
    %9005 = vmatpush1.bf16.msra.mxu0 %v5868
    %9006 = vmatprep.subr.bf16.mxu0 %v5893
    %9007 = vmatpush1.bf16.msra.mxu0 %v5892
    %9008 = vmatprep.mubr.bf16.mxu0 %v5503
    %9009 = vmatmul.mubr.bf16.gmra.mrb[0].mxu0 %v5502
    %v9010 = vpop.f32.mrb[0].mxu0
    %v9011 = vadd.f32 %v7143, %v9010
    %v9012 = vpop.f32.mrb[0].mxu0
    %v9013 = vadd.f32 %v7147, %v9012
    %v9014 = vpop.f32.mrb[0].mxu0
    %v9015 = vpop.f32.mrb[0].mxu0
    %9016 = vdwg.mxu0
    %9017 = vmatprep.subr.bf16.mxu0 %v5917
    %9018 = vmatpush1.bf16.msra.mxu0 %v5916
    %9019 = vmatprep.subr.bf16.mxu0 %v5941
    %9020 = vmatpush1.bf16.msra.mxu0 %v5940
    %9021 = vmatprep.subr.bf16.mxu0 %v5965
    %9022 = vmatpush1.bf16.msra.mxu0 %v5964
    %9023 = vmatprep.subr.bf16.mxu0 %v5989
    %9024 = vmatpush1.bf16.msra.mxu0 %v5988
    %9025 = vmatprep.subr.bf16.mxu0 %v6013
    %9026 = vmatpush1.bf16.msra.mxu0 %v6012
    %9027 = vmatprep.subr.bf16.mxu0 %v6037
    %9028 = vmatpush1.bf16.msra.mxu0 %v6036
    %9029 = vmatprep.subr.bf16.mxu0 %v6061
    %9030 = vmatpush1.bf16.msra.mxu0 %v6060
    %9031 = vmatprep.subr.bf16.mxu0 %v6085
    %9032 = vmatpush1.bf16.msra.mxu0 %v6084
    %9033 = vmatprep.subr.bf16.mxu0 %v6109
    %9034 = vmatpush1.bf16.msra.mxu0 %v6108
    %9035 = vmatprep.subr.bf16.mxu0 %v6133
    %9036 = vmatpush1.bf16.msra.mxu0 %v6132
    %9037 = vmatprep.subr.bf16.mxu0 %v6157
    %9038 = vmatpush1.bf16.msra.mxu0 %v6156
    %9039 = vmatprep.subr.bf16.mxu0 %v6181
    %9040 = vmatpush1.bf16.msra.mxu0 %v6180
    %9041 = vmatprep.subr.bf16.mxu0 %v6205
    %9042 = vmatpush1.bf16.msra.mxu0 %v6204
    %9043 = vmatprep.subr.bf16.mxu0 %v6229
    %9044 = vmatpush1.bf16.msra.mxu0 %v6228
    %9045 = vmatprep.subr.bf16.mxu0 %v6253
    %9046 = vmatpush1.bf16.msra.mxu0 %v6252
    %9047 = vmatprep.subr.bf16.mxu0 %v6277
    %9048 = vmatpush1.bf16.msra.mxu0 %v6276
    %9049 = vmatprep.mubr.bf16.mxu0 %v5505
    %9050 = vmatmul.mubr.bf16.gmra.mrb[0].mxu0 %v5504
    %v9051 = vpop.f32.mrb[0].mxu0
    %v9052 = vadd.f32 %v9011, %v9051
    %v9053 = vpop.f32.mrb[0].mxu0
    %v9054 = vadd.f32 %v9013, %v9053
    %v9055 = vpop.f32.mrb[0].mxu0
    %v9056 = vpop.f32.mrb[0].mxu0
    %9057 = vdwg.mxu0
    %9058 = vmatprep.subr.bf16.mxu0 %v6301
    %9059 = vmatpush1.bf16.msra.mxu0 %v6300
    %9060 = vmatprep.subr.bf16.mxu0 %v6325
    %9061 = vmatpush1.bf16.msra.mxu0 %v6324
    %9062 = vmatprep.subr.bf16.mxu0 %v6349
    %9063 = vmatpush1.bf16.msra.mxu0 %v6348
    %9064 = vmatprep.subr.bf16.mxu0 %v6373
    %9065 = vmatpush1.bf16.msra.mxu0 %v6372
    %9066 = vmatprep.subr.bf16.mxu0 %v6397
    %9067 = vmatpush1.bf16.msra.mxu0 %v6396
    %9068 = vmatprep.subr.bf16.mxu0 %v6421
    %9069 = vmatpush1.bf16.msra.mxu0 %v6420
    %9070 = vmatprep.subr.bf16.mxu0 %v6445
    %9071 = vmatpush1.bf16.msra.mxu0 %v6444
    %9072 = vmatprep.subr.bf16.mxu0 %v6469
    %9073 = vmatpush1.bf16.msra.mxu0 %v6468
    %9074 = vmatprep.subr.bf16.mxu0 %v6493
    %9075 = vmatpush1.bf16.msra.mxu0 %v6492
    %9076 = vmatprep.subr.bf16.mxu0 %v6517
    %9077 = vmatpush1.bf16.msra.mxu0 %v6516
    %9078 = vmatprep.subr.bf16.mxu0 %v6541
    %9079 = vmatpush1.bf16.msra.mxu0 %v6540
    %9080 = vmatprep.subr.bf16.mxu0 %v6565
    %9081 = vmatpush1.bf16.msra.mxu0 %v6564
    %9082 = vmatprep.subr.bf16.mxu0 %v6589
    %9083 = vmatpush1.bf16.msra.mxu0 %v6588
    %9084 = vmatprep.subr.bf16.mxu0 %v6613
    %9085 = vmatpush1.bf16.msra.mxu0 %v6612
    %9086 = vmatprep.subr.bf16.mxu0 %v6637
    %9087 = vmatpush1.bf16.msra.mxu0 %v6636
    %9088 = vmatprep.subr.bf16.mxu0 %v6661
    %9089 = vmatpush1.bf16.msra.mxu0 %v6660
    %9090 = vmatprep.mubr.bf16.mxu0 %v5507
    %9091 = vmatmul.mubr.bf16.gmra.mrb[0].mxu0 %v5506
    %v9092 = vpop.f32.mrb[0].mxu0
    %v9093 = vadd.f32 %v9052, %v9092
    %v9094 = vpop.f32.mrb[0].mxu0
    %v9095 = vadd.f32 %v9054, %v9094
    %v9096 = vpop.f32.mrb[0].mxu0
    %v9097 = vpop.f32.mrb[0].mxu0
    %9098 = vdwg.mxu0
    %9099 = vmatprep.subr.bf16.mxu0 %v6685
    %9100 = vmatpush1.bf16.msra.mxu0 %v6684
    %9101 = vmatprep.subr.bf16.mxu0 %v6709
    %9102 = vmatpush1.bf16.msra.mxu0 %v6708
    %9103 = vmatprep.subr.bf16.mxu0 %v6733
    %9104 = vmatpush1.bf16.msra.mxu0 %v6732
    %9105 = vmatprep.subr.bf16.mxu0 %v6757
    %9106 = vmatpush1.bf16.msra.mxu0 %v6756
    %9107 = vmatprep.subr.bf16.mxu0 %v6781
    %9108 = vmatpush1.bf16.msra.mxu0 %v6780
    %9109 = vmatprep.subr.bf16.mxu0 %v6805
    %9110 = vmatpush1.bf16.msra.mxu0 %v6804
    %9111 = vmatprep.subr.bf16.mxu0 %v6829
    %9112 = vmatpush1.bf16.msra.mxu0 %v6828
    %9113 = vmatprep.subr.bf16.mxu0 %v6853
    %9114 = vmatpush1.bf16.msra.mxu0 %v6852
    %9115 = vmatprep.subr.bf16.mxu0 %v6877
    %9116 = vmatpush1.bf16.msra.mxu0 %v6876
    %9117 = vmatprep.subr.bf16.mxu0 %v6901
    %9118 = vmatpush1.bf16.msra.mxu0 %v6900
    %9119 = vmatprep.subr.bf16.mxu0 %v6925
    %9120 = vmatpush1.bf16.msra.mxu0 %v6924
    %9121 = vmatprep.subr.bf16.mxu0 %v6949
    %9122 = vmatpush1.bf16.msra.mxu0 %v6948
    %9123 = vmatprep.subr.bf16.mxu0 %v6973
    %9124 = vmatpush1.bf16.msra.mxu0 %v6972
    %9125 = vmatprep.subr.bf16.mxu0 %v6997
    %9126 = vmatpush1.bf16.msra.mxu0 %v6996
    %9127 = vmatprep.subr.bf16.mxu0 %v7021
    %9128 = vmatpush1.bf16.msra.mxu0 %v7020
    %9129 = vmatprep.subr.bf16.mxu0 %v7045
    %9130 = vmatpush1.bf16.msra.mxu0 %v7044
    %9131 = vmatprep.mubr.bf16.mxu0 %v5509
    %9132 = vmatmul.mubr.bf16.gmra.mrb[0].mxu0 %v5508
    %v9133 = vpop.f32.mrb[0].mxu0
    %v9134 = vadd.f32 %v9093, %v9133
    %v9135 = vpop.f32.mrb[0].mxu0
    %v9136 = vadd.f32 %v9095, %v9135
    %v9137 = vpop.f32.mrb[0].mxu0
    %v9138 = vpop.f32.mrb[0].mxu0
    %9139 = vdwg.mxu0
    %9140 = vst [vmem:[%s12] sm:$0xff] %v7330
    %9141 = vst [vmem:[%s12 + $0x8] sm:$0xff] %v7332
    %9142 = vst [vmem:[%s12 + $0x10] sm:$0xff] %v7494
    %9143 = vst [vmem:[%s12 + $0x18] sm:$0xff] %v7496
    %9144 = vst [vmem:[%s12 + $0x20] sm:$0xff] %v7658
    %9145 = vst [vmem:[%s12 + $0x28] sm:$0xff] %v7660
    %9146 = vst [vmem:[%s12 + $0x30] sm:$0xff] %v7822
    %9147 = vst [vmem:[%s12 + $0x38] sm:$0xff] %v7824
    %9148 = vst [vmem:[%s12 + $0x40] sm:$0xff] %v7986
    %9149 = vst [vmem:[%s12 + $0x48] sm:$0xff] %v7988
    %9150 = vst [vmem:[%s12 + $0x50] sm:$0xff] %v8150
    %9151 = vst [vmem:[%s12 + $0x58] sm:$0xff] %v8152
    %9152 = vst [vmem:[%s12 + $0x60] sm:$0xff] %v8314
    %9153 = vst [vmem:[%s12 + $0x68] sm:$0xff] %v8316
    %9154 = vst [vmem:[%s12 + $0x70] sm:$0xff] %v8478
    %9155 = vst [vmem:[%s12 + $0x78] sm:$0xff] %v8480
    %9156 = vst [vmem:[%s12 + $0x80] sm:$0xff] %v8642
    %9157 = vst [vmem:[%s12 + $0x88] sm:$0xff] %v8644
    %9158 = vst [vmem:[%s12 + $0x90] sm:$0xff] %v8806
    %9159 = vst [vmem:[%s12 + $0x98] sm:$0xff] %v8808
    %9160 = vst [vmem:[%s12 + $0xa0] sm:$0xff] %v8970
    %9161 = vst [vmem:[%s12 + $0xa8] sm:$0xff] %v8972
    %9162 = vst [vmem:[%s12 + $0xb0] sm:$0xff] %v9134
    %9163 = vst [vmem:[%s12 + $0xb8] sm:$0xff] %v9136
    // Predicated region
    $region74: #{auto_forward.1} parent=1 // pred_check
      _
    $region75: #{auto_forward.1} parent=1 // pred_check_branch
      %9165 = sbr.rel (0) target = $region77
    $region76: #{auto_forward.1} parent=1 // pred_region
      _
    $region77: #{auto_forward.1} parent=1 // pred_fallthru
      _
    // Predicated region
    $region78: #{auto_forward.1} parent=1 // pred_check
      _
    $region79: #{auto_forward.1} parent=1 // pred_check_branch
      %9167 = sbr.rel (0) target = $region81
    $region80: #{auto_forward.1} parent=1 // pred_region
      _
    $region81: #{auto_forward.1} parent=1 // pred_fallthru
      _
    %9168 = vsyncpa [#allocation10], 1
    %9169 = vsyncpa [#allocation12], 1
    %9170 = vsyncpa [#allocation15], 1
  %9171 = vsyncmov [#allocation8]
  %s9172 = vpop.sfrf %9171
  %p9173 = scmp.eq.s32.totalorder %s9172, 0
  %p9174 = pneg %p9173
  %9176 = shalt.err (%p9174)
  %s9177 = scalar_lea.sflag [#allocation8], 1
  %9178 = vsyncmov %s9177
  %s9179 = vpop.sfrf %9178
  %p9180 = scmp.eq.s32.totalorder %s9179, 0
  %p9181 = pneg %p9180
  %9183 = shalt.err (%p9181)
  %s9184 = scalar_lea.sflag [#allocation8], 2
  %9185 = vsyncmov %s9184
  %s9186 = vpop.sfrf %9185
  %p9187 = scmp.eq.s32.totalorder %s9186, 0
  %p9188 = pneg %p9187
  %9190 = shalt.err (%p9188)
  %s9191 = scalar_lea.sflag [#allocation8], 3
  %9192 = vsyncmov %s9191
  %s9193 = vpop.sfrf %9192
  %p9194 = scmp.eq.s32.totalorder %s9193, 0
  %p9195 = pneg %p9194
  %9197 = shalt.err (%p9195)
  %s9198 = scalar_lea.sflag [#allocation8], 4
  %9199 = vsyncmov %s9198
  %s9200 = vpop.sfrf %9199
  %p9201 = scmp.eq.s32.totalorder %s9200, 0
  %p9202 = pneg %p9201
  %9204 = shalt.err (%p9202)
  %s9205 = scalar_lea.sflag [#allocation8], 5
  %9206 = vsyncmov %s9205
  %s9207 = vpop.sfrf %9206
  %p9208 = scmp.eq.s32.totalorder %s9207, 0
  %p9209 = pneg %p9208
  %9211 = shalt.err (%p9209)

</llo_original>
